<compile_context>
chip_gen: v7x
topology: tpu7x:2x2x1
jax: 0.10.0
libtpu: 0.0.40
codegen_flags: <defaults>
</compile_context>

<pallas_src>
import functools

import jax
import jax.numpy as jnp
from jax.experimental import pallas as pl
from jax.experimental.pallas import tpu as pltpu

EPS = 1e-5
LANE = 128
VMEM_LIMIT = 48 * 1024 * 1024   # headroom vs. v7x's 64 MiB physical VMEM


def _round_up(n, m):
    return (n + m - 1) // m * m


# ---------------------------------------------------------------------------
# In-kernel helper: KxK stride-1 conv over a flat padded activation
# (rows = spatial pixels with pitch wp, lanes = channels), expressed as k*k
# accumulated bf16 MXU dots over contiguous row slices.
# ---------------------------------------------------------------------------
def _conv_accum(load, w_ref, offsets, cin):
    acc = None
    for t, off in enumerate(offsets):
        xs = load(off)                               # (m, cin) bf16
        wk = w_ref[t * cin:(t + 1) * cin, :]         # (cin, cout) bf16
        d = jnp.dot(xs, wk, preferred_element_type=jnp.float32)
        acc = d if acc is None else acc + d
    return acc


# ---------------------------------------------------------------------------
# Kernel A: conv1 = 3x3 stride-2 pad-1 conv rewritten as a 2x2 stride-1 conv
# over the space-to-depth input, + folded-BN shift + ReLU.  The result is
# written directly in the zero-padded flat layout consumed by the conv2
# kernel (zero ring, interior starts at row wp+1).
# ---------------------------------------------------------------------------
def _conv1_kernel(x_ref, w_ref, shift_ref, mask_ref, o_ref, *, wp, h1, w1):
    cin = x_ref.shape[-1]
    m = (h1 - 1) * wp + w1
    offsets = (0, 1, wp, wp + 1)
    acc = _conv_accum(lambda off: x_ref[0, off:off + m, :], w_ref, offsets, cin)
    y = jnp.maximum(acc + shift_ref[...], 0.0) * mask_ref[...]
    o_ref[...] = jnp.zeros(o_ref.shape, o_ref.dtype)
    o_ref[0, wp + 1:wp + 1 + m, :] = y.astype(o_ref.dtype)


# ---------------------------------------------------------------------------
# Kernel B: fused conv2[0](3x3 s1 p1)+BN+ReLU -> conv2[1](3x3 s1 p1)+BN
#           + residual.  The intermediate activation lives only in VMEM.
# ---------------------------------------------------------------------------
def _conv2_kernel(x_ref, wa_ref, sa_ref, wb_ref, sb_ref, mask_ref,
                  o_ref, xa_ref, *, wp, h1, w1):
    c = x_ref.shape[-1]
    m = (h1 - 1) * wp + w1
    offsets = tuple(dy * wp + dx for dy in range(3) for dx in range(3))

    # conv2[0] + BN + ReLU  -> zero-padded flat scratch (stays in VMEM)
    ya = _conv_accum(lambda off: x_ref[0, off:off + m, :], wa_ref, offsets, c)
    ya = jnp.maximum(ya + sa_ref[...], 0.0) * mask_ref[...]
    xa_ref[...] = jnp.zeros(xa_ref.shape, xa_ref.dtype)
    xa_ref[wp + 1:wp + 1 + m, :] = ya.astype(xa_ref.dtype)

    # conv2[1] + BN + residual (interior rows of this kernel's own input)
    yb = _conv_accum(lambda off: xa_ref[off:off + m, :], wb_ref, offsets, c)
    res = x_ref[0, wp + 1:wp + 1 + m, :].astype(jnp.float32)
    y = (yb + sb_ref[...] + res) * mask_ref[...]
    o_ref[...] = jnp.zeros(o_ref.shape, o_ref.dtype)
    o_ref[0, wp + 1:wp + 1 + m, :] = y.astype(o_ref.dtype)


# ---------------------------------------------------------------------------
# Kernel C: fused conv3[0] (3x3 s2 p1 via space-to-depth -> 2x2 s1 conv)
#           + BN + ReLU, immediately followed by the 1x1 conv3[1] + BN.
# ---------------------------------------------------------------------------
def _conv3_kernel(x_ref, wa_ref, sa_ref, wb_ref, sb_ref, o_ref, *, ws, h2, w2):
    c = x_ref.shape[-1]
    m = (h2 - 1) * ws + w2
    offsets = (0, 1, ws, ws + 1)
    acc = _conv_accum(lambda off: x_ref[0, off:off + m, :], wa_ref, offsets, c)
    x3 = jnp.maximum(acc + sa_ref[...], 0.0).astype(jnp.bfloat16)
    y = jnp.dot(x3, wb_ref[...], preferred_element_type=jnp.float32) + sb_ref[...]
    o_ref[...] = jnp.zeros(o_ref.shape, o_ref.dtype)
    o_ref[0, :m, :] = y.astype(o_ref.dtype)


# ---------------------------------------------------------------------------
# pallas_call wrappers
# ---------------------------------------------------------------------------
def _compiler_params():
    return pltpu.CompilerParams(dimension_semantics=("parallel",),
                                vmem_limit_bytes=VMEM_LIMIT)


def _full_spec(arr):
    n = arr.ndim
    return pl.BlockSpec(arr.shape, lambda i: (0,) * n)


def _run_conv1(xs, w, s, mask, hp, wp, h1, w1):
    b, n_in, cin = xs.shape
    cout = w.shape[1]
    kernel = functools.partial(_conv1_kernel, wp=wp, h1=h1, w1=w1)
    return pl.pallas_call(
        kernel,
        out_shape=jax.ShapeDtypeStruct((b, hp * wp, cout), jnp.bfloat16),
        grid=(b,),
        in_specs=[
            pl.BlockSpec((1, n_in, cin), lambda i: (i, 0, 0)),
            _full_spec(w), _full_spec(s), _full_spec(mask),
        ],
        out_specs=pl.BlockSpec((1, hp * wp, cout), lambda i: (i, 0, 0)),
        compiler_params=_compiler_params(),
    )(xs, w, s, mask)


def _run_conv2(x1p, wa, sa, wb, sb, mask, hp, wp, h1, w1):
    b, n_in, c = x1p.shape
    kernel = functools.partial(_conv2_kernel, wp=wp, h1=h1, w1=w1)
    return pl.pallas_call(
        kernel,
        out_shape=jax.ShapeDtypeStruct((b, hp * wp, c), jnp.bfloat16),
        grid=(b,),
        in_specs=[
            pl.BlockSpec((1, n_in, c), lambda i: (i, 0, 0)),
            _full_spec(wa), _full_spec(sa), _full_spec(wb), _full_spec(sb),
            _full_spec(mask),
        ],
        out_specs=pl.BlockSpec((1, hp * wp, c), lambda i: (i, 0, 0)),
        scratch_shapes=[pltpu.VMEM((hp * wp, c), jnp.bfloat16)],
        compiler_params=_compiler_params(),
    )(x1p, wa, sa, wb, sb, mask)


def _run_conv3(x2s, wa, sa, wb, sb, ws, h2, w2):
    b, n_in, c = x2s.shape
    cout = wb.shape[1]
    kernel = functools.partial(_conv3_kernel, ws=ws, h2=h2, w2=w2)
    return pl.pallas_call(
        kernel,
        out_shape=jax.ShapeDtypeStruct((b, h2 * ws, cout), jnp.float32),
        grid=(b,),
        in_specs=[
            pl.BlockSpec((1, n_in, c), lambda i: (i, 0, 0)),
            _full_spec(wa), _full_spec(sa), _full_spec(wb), _full_spec(sb),
        ],
        out_specs=pl.BlockSpec((1, h2 * ws, cout), lambda i: (i, 0, 0)),
        compiler_params=_compiler_params(),
    )(x2s, wa, sa, wb, sb)


# ---------------------------------------------------------------------------
# Wrapper glue (pure data movement: transpose / pad / space-to-depth / slice)
# ---------------------------------------------------------------------------
def _space_to_depth2(x):
    b, h, w, c = x.shape
    x = x.reshape(b, h // 2, 2, w // 2, 2, c)
    x = jnp.transpose(x, (0, 1, 3, 2, 4, 5))
    return x.reshape(b, h // 2, w // 2, 4 * c)


def stem_forward(x_nchw, prep, embed_dim):
    x = jnp.transpose(x_nchw, (0, 2, 3, 1)).astype(jnp.float32)   # NCHW -> NHWC
    b, h, w, _ = x.shape
    assert h % 4 == 0 and w % 4 == 0, "Stem expects H, W divisible by 4"
    h1, w1, h2, w2 = h // 2, w // 2, h // 4, w // 4
    hp, wp = h1 + 2, w1 + 2          # zero-padded conv2 resolution
    ws = w2 + 1                      # conv3 space-to-depth width
    m12 = (h1 - 1) * wp + w1         # valid flat rows for conv1/conv2 outputs

    # column mask: zero the padding-ring columns of the flat layout
    mask = (jnp.arange(m12) % wp < w1).astype(jnp.float32)[:, None]

    # conv1: pad W by an extra 2 so the space-to-depth width equals wp, which
    # lets the kernel write its output directly in conv2's padded layout.
    xp = jnp.pad(x, ((0, 0), (1, 1), (1, 3), (0, 0)))
    xs = _space_to_depth2(xp).reshape(b, (h1 + 1) * wp, -1).astype(jnp.bfloat16)
    x1p = _run_conv1(xs, prep["w1"], prep["s1"], mask, hp, wp, h1, w1)

    # conv2[0] + ReLU + conv2[1] + BN + residual: one fused kernel.
    x2p = _run_conv2(x1p, prep["w2a"], prep["s2a"], prep["w2b"], prep["s2b"],
                     mask, hp, wp, h1, w1)

    # conv3[0] (space-to-depth) fused with the 1x1 conv3[1].
    x2s = _space_to_depth2(x2p.reshape(b, hp, wp, -1))
    x2s = x2s.reshape(b, (h2 + 1) * ws, -1)
    out = _run_conv3(x2s, prep["w3a"], prep["s3a"], prep["w3b"], prep["s3b"],
                     ws, h2, w2)

    # drop garbage columns / padded channels -> (b, H/4, W/4, embed_dim) NHWC
    return out.reshape(b, h2, ws, -1)[:, :, :w2, :embed_dim]


# ---------------------------------------------------------------------------
# Parameter init (synthetic, matches PyTorch Stem layer shapes) + preparation
# ---------------------------------------------------------------------------
def init_stem_params(key, in_chans, embed_dim):
    half = embed_dim // 2

    def conv_bn(k, cin, cout, ksz):
        kw_, kg, kb, km, kv = jax.random.split(k, 5)
        return {
            "w": jax.random.normal(kw_, (ksz, ksz, cin, cout), jnp.float32) * 0.1,
            "gamma": 1.0 + 0.1 * jax.random.normal(kg, (cout,), jnp.float32),
            "beta": 0.1 * jax.random.normal(kb, (cout,), jnp.float32),
            "mean": 0.1 * jax.random.normal(km, (cout,), jnp.float32),
            "var": jax.random.uniform(kv, (cout,), jnp.float32,
                                      minval=0.5, maxval=1.5),
        }

    k1, k2a, k2b, k3a, k3b = jax.random.split(key, 5)
    return {
        "c1": conv_bn(k1, in_chans, half, 3),
        "c2a": conv_bn(k2a, half, half, 3),
        "c2b": conv_bn(k2b, half, half, 3),
        "c3a": conv_bn(k3a, half, embed_dim * 4, 3),
        "c3b": conv_bn(k3b, embed_dim * 4, embed_dim, 1),
    }


def _fold_bn(p):
    scale = p["gamma"] / jnp.sqrt(p["var"] + EPS)
    shift = p["beta"] - p["mean"] * scale
    return scale, shift


def _stride2_fold(w):
    """(3,3,cin,cout) stride-2 conv -> (2*2*4*cin, cout) stride-1 conv over the
    space-to-depth input (tap/phase order matches _space_to_depth2)."""
    _, _, cin, cout = w.shape
    w2 = jnp.zeros((2, 2, 2, 2, cin, cout), w.dtype)
    for ky in range(3):
        for kx in range(3):
            w2 = w2.at[ky // 2, kx // 2, ky % 2, kx % 2].set(w[ky, kx])
    return w2.reshape(2 * 2 * 4 * cin, cout)


def prepare_stem_params(params, in_chans, embed_dim):
    """Fold BN scale into the conv weights (kernels only add the shift), pad
    produced channel dims to 128-lane multiples, rewrite stride-2 weights for
    the space-to-depth formulation, and cast matmul operands to bf16."""
    half = embed_dim // 2
    half_p = _round_up(half, LANE)
    e4_p = _round_up(embed_dim * 4, LANE)
    ed_p = _round_up(embed_dim, LANE)

    def fold(p, cin_pad, cout_pad):
        scale, shift = _fold_bn(p)
        w = p["w"] * scale[None, None, None, :]
        _, _, cin, cout = w.shape
        w = jnp.pad(w, ((0, 0), (0, 0), (0, cin_pad - cin),
                        (0, cout_pad - cout)))
        shift = jnp.pad(shift, (0, cout_pad - cout))[None, :].astype(jnp.float32)
        return w, shift

    w1, s1 = fold(params["c1"], in_chans, half_p)
    w2a, s2a = fold(params["c2a"], half_p, half_p)
    w2b, s2b = fold(params["c2b"], half_p, half_p)
    w3a, s3a = fold(params["c3a"], half_p, e4_p)
    w3b, s3b = fold(params["c3b"], e4_p, ed_p)

    return {
        "w1": _stride2_fold(w1).astype(jnp.bfloat16), "s1": s1,
        "w2a": w2a.reshape(9 * half_p, half_p).astype(jnp.bfloat16), "s2a": s2a,
        "w2b": w2b.reshape(9 * half_p, half_p).astype(jnp.bfloat16), "s2b": s2b,
        "w3a": _stride2_fold(w3a).astype(jnp.bfloat16), "s3a": s3a,
        "w3b": w3b.reshape(e4_p, ed_p).astype(jnp.bfloat16), "s3b": s3b,
    }


# ---------------------------------------------------------------------------
# Pure-JAX reference, emulating the same bf16 rounding points as the Pallas
# path (bf16 matmul operands, f32 accumulation / epilogue).
# ---------------------------------------------------------------------------
def _bf16(x):
    return x.astype(jnp.bfloat16).astype(jnp.float32)


def stem_reference(x_nchw, params):
    def conv(x, p, stride, pad, relu):
        scale, shift = _fold_bn(p)
        wq = _bf16(p["w"] * scale[None, None, None, :])
        y = jax.lax.conv_general_dilated(
            x, wq, (stride, stride), [(pad, pad), (pad, pad)],
            dimension_numbers=("NHWC", "HWIO", "NHWC"),
            precision=jax.lax.Precision.HIGHEST)
        y = y + shift
        return jnp.maximum(y, 0.0) if relu else y

    x = _bf16(jnp.transpose(x_nchw, (0, 2, 3, 1)).astype(jnp.float32))
    x1 = _bf16(conv(x, params["c1"], 2, 1, True))
    y = _bf16(conv(x1, params["c2a"], 1, 1, True))
    y = _bf16(conv(y, params["c2b"], 1, 1, False) + x1)
    y = _bf16(conv(y, params["c3a"], 2, 1, True))
    return conv(y, params["c3b"], 1, 0, False)


# ---------------------------------------------------------------------------
if __name__ == "__main__":
    B, in_chans, H, W = 2, 4, 16, 16
    embed_dim = 32

    key = jax.random.PRNGKey(0)
    kx, kp = jax.random.split(key)
    x = jax.random.normal(kx, (B, in_chans, H, W), jnp.float32)

    params = init_stem_params(kp, in_chans, embed_dim)
    prep = prepare_stem_params(params, in_chans, embed_dim)

    fwd = jax.jit(stem_forward, static_argnums=2)
    out = jax.block_until_ready(fwd(x, prep, embed_dim))

    assert out.shape == (B, H // 4, W // 4, embed_dim), out.shape

    ref = jax.block_until_ready(stem_reference(x, params))
    max_err = float(jnp.max(jnp.abs(out - ref)))
    assert jnp.allclose(out, ref, atol=5e-3, rtol=5e-3), max_err

    print("KERNEL_OK")
</pallas_src>

<mosaic_0001>
module attributes {stable_mosaic.version = 11 : i64} {
  func.func @_conv1_kernel(%arg0: i32, %arg1: memref<1x90x16xbf16, #tpu.memory_space<vmem>>, %arg2: memref<64x128xbf16, #tpu.memory_space<vmem>>, %arg3: memref<1x128xf32, #tpu.memory_space<vmem>>, %arg4: memref<78x1xf32, #tpu.memory_space<vmem>>, %arg5: memref<1x100x128xbf16, #tpu.memory_space<vmem>>) attributes {dimension_semantics = [#tpu.dimension_semantics<parallel>], iteration_bounds = array<i64: 2>, scalar_prefetch = 0 : i64, scratch_operands = 0 : i64, tpu.core_type = #tpu.core_type<tc>, window_params = [{transform_indices = @transform_0, window_bounds = array<i64: 1, 90, 16>}, {pipeline_mode = #tpu.pipeline_mode<synchronous>, transform_indices = @transform_1, window_bounds = array<i64: 64, 128>}, {pipeline_mode = #tpu.pipeline_mode<synchronous>, transform_indices = @transform_2, window_bounds = array<i64: 1, 128>}, {pipeline_mode = #tpu.pipeline_mode<synchronous>, transform_indices = @transform_3, window_bounds = array<i64: 78, 1>}, {transform_indices = @transform_4, window_bounds = array<i64: 1, 100, 128>}]} {
    %c0 = arith.constant 0 : index
    %c0_0 = arith.constant 0 : index
    %c0_1 = arith.constant 0 : index
    %0 = vector.load %arg1[%c0, %c0_0, %c0_1] : memref<1x90x16xbf16, #tpu.memory_space<vmem>>, vector<1x78x16xbf16>
    %1 = vector.shape_cast %0 : vector<1x78x16xbf16> to vector<78x16xbf16>
    %c0_2 = arith.constant 0 : index
    %c0_3 = arith.constant 0 : index
    %2 = vector.load %arg2[%c0_2, %c0_3] : memref<64x128xbf16, #tpu.memory_space<vmem>>, vector<16x128xbf16>
    %cst = arith.constant dense<0.000000e+00> : vector<78x128xf32>
    %3 = tpu.matmul %1, %2, %cst {dimension_numbers = #tpu.dot_dimension_numbers<[1], [0], [0], [1], [0, 0, 1, 1], [], []>} : vector<78x16xbf16>, vector<16x128xbf16>, vector<78x128xf32> -> vector<78x128xf32>
    %c0_4 = arith.constant 0 : index
    %c1 = arith.constant 1 : index
    %c0_5 = arith.constant 0 : index
    %4 = vector.load %arg1[%c0_4, %c1, %c0_5] : memref<1x90x16xbf16, #tpu.memory_space<vmem>>, vector<1x78x16xbf16>
    %5 = vector.shape_cast %4 : vector<1x78x16xbf16> to vector<78x16xbf16>
    %c16 = arith.constant 16 : index
    %c0_6 = arith.constant 0 : index
    %6 = vector.load %arg2[%c16, %c0_6] : memref<64x128xbf16, #tpu.memory_space<vmem>>, vector<16x128xbf16>
    %cst_7 = arith.constant dense<0.000000e+00> : vector<78x128xf32>
    %7 = tpu.matmul %5, %6, %cst_7 {dimension_numbers = #tpu.dot_dimension_numbers<[1], [0], [0], [1], [0, 0, 1, 1], [], []>} : vector<78x16xbf16>, vector<16x128xbf16>, vector<78x128xf32> -> vector<78x128xf32>
    %8 = arith.addf %3, %7 : vector<78x128xf32>
    %c0_8 = arith.constant 0 : index
    %c10 = arith.constant 10 : index
    %c0_9 = arith.constant 0 : index
    %9 = vector.load %arg1[%c0_8, %c10, %c0_9] : memref<1x90x16xbf16, #tpu.memory_space<vmem>>, vector<1x78x16xbf16>
    %10 = vector.shape_cast %9 : vector<1x78x16xbf16> to vector<78x16xbf16>
    %c32 = arith.constant 32 : index
    %c0_10 = arith.constant 0 : index
    %11 = vector.load %arg2[%c32, %c0_10] : memref<64x128xbf16, #tpu.memory_space<vmem>>, vector<16x128xbf16>
    %cst_11 = arith.constant dense<0.000000e+00> : vector<78x128xf32>
    %12 = tpu.matmul %10, %11, %cst_11 {dimension_numbers = #tpu.dot_dimension_numbers<[1], [0], [0], [1], [0, 0, 1, 1], [], []>} : vector<78x16xbf16>, vector<16x128xbf16>, vector<78x128xf32> -> vector<78x128xf32>
    %13 = arith.addf %8, %12 : vector<78x128xf32>
    %c0_12 = arith.constant 0 : index
    %c11 = arith.constant 11 : index
    %c0_13 = arith.constant 0 : index
    %14 = vector.load %arg1[%c0_12, %c11, %c0_13] : memref<1x90x16xbf16, #tpu.memory_space<vmem>>, vector<1x78x16xbf16>
    %15 = vector.shape_cast %14 : vector<1x78x16xbf16> to vector<78x16xbf16>
    %c48 = arith.constant 48 : index
    %c0_14 = arith.constant 0 : index
    %16 = vector.load %arg2[%c48, %c0_14] : memref<64x128xbf16, #tpu.memory_space<vmem>>, vector<16x128xbf16>
    %cst_15 = arith.constant dense<0.000000e+00> : vector<78x128xf32>
    %17 = tpu.matmul %15, %16, %cst_15 {dimension_numbers = #tpu.dot_dimension_numbers<[1], [0], [0], [1], [0, 0, 1, 1], [], []>} : vector<78x16xbf16>, vector<16x128xbf16>, vector<78x128xf32> -> vector<78x128xf32>
    %18 = arith.addf %13, %17 : vector<78x128xf32>
    %c0_16 = arith.constant 0 : index
    %c0_17 = arith.constant 0 : index
    %19 = vector.load %arg3[%c0_16, %c0_17] : memref<1x128xf32, #tpu.memory_space<vmem>>, vector<1x128xf32>
    %20 = vector.broadcast %19 : vector<1x128xf32> to vector<78x128xf32>
    %21 = arith.addf %18, %20 : vector<78x128xf32>
    %cst_18 = arith.constant 0.000000e+00 : f32
    %22 = vector.broadcast %cst_18 : f32 to vector<78x128xf32>
    %23 = arith.maximumf %21, %22 : vector<78x128xf32>
    %c0_19 = arith.constant 0 : index
    %c0_20 = arith.constant 0 : index
    %24 = vector.load %arg4[%c0_19, %c0_20] : memref<78x1xf32, #tpu.memory_space<vmem>>, vector<78x1xf32>
    %25 = vector.broadcast %24 : vector<78x1xf32> to vector<78x128xf32>
    %26 = arith.mulf %23, %25 : vector<78x128xf32>
    %cst_21 = arith.constant 0.000000e+00 : bf16
    %27 = vector.broadcast %cst_21 : bf16 to vector<1x100x128xbf16>
    %c0_22 = arith.constant 0 : index
    %c0_23 = arith.constant 0 : index
    %c0_24 = arith.constant 0 : index
    %28 = vector.load %arg5[%c0_22, %c0_23, %c0_24] : memref<1x100x128xbf16, #tpu.memory_space<vmem>>, vector<1x100x128xbf16>
    tpu.vector_store %arg5[%c0_22, %c0_23, %c0_24], %27 {strides = array<i32>} : memref<1x100x128xbf16, #tpu.memory_space<vmem>>, vector<1x100x128xbf16>,
    %29 = arith.truncf %26 : vector<78x128xf32> to vector<78x128xbf16>
    %c0_25 = arith.constant 0 : index
    %c11_26 = arith.constant 11 : index
    %c0_27 = arith.constant 0 : index
    %30 = vector.load %arg5[%c0_25, %c11_26, %c0_27] : memref<1x100x128xbf16, #tpu.memory_space<vmem>>, vector<1x78x128xbf16>
    %31 = vector.shape_cast %30 : vector<1x78x128xbf16> to vector<78x128xbf16>
    %32 = vector.shape_cast %29 : vector<78x128xbf16> to vector<1x78x128xbf16>
    tpu.vector_store %arg5[%c0_25, %c11_26, %c0_27], %32 {strides = array<i32>} : memref<1x100x128xbf16, #tpu.memory_space<vmem>>, vector<1x78x128xbf16>,
    return
  }
  func.func @transform_0(%arg0: i32) -> (i32, i32, i32) {
    %c0_i32 = arith.constant 0 : i32
    %c0_i32_0 = arith.constant 0 : i32
    %c0_i32_1 = arith.constant 0 : i32
    return %arg0, %c0_i32, %c0_i32_0 : i32, i32, i32
  }
  func.func @transform_1(%arg0: i32) -> (i32, i32) {
    %c0_i32 = arith.constant 0 : i32
    %c0_i32_0 = arith.constant 0 : i32
    %c0_i32_1 = arith.constant 0 : i32
    return %c0_i32, %c0_i32_0 : i32, i32
  }
  func.func @transform_2(%arg0: i32) -> (i32, i32) {
    %c0_i32 = arith.constant 0 : i32
    %c0_i32_0 = arith.constant 0 : i32
    %c0_i32_1 = arith.constant 0 : i32
    return %c0_i32, %c0_i32_0 : i32, i32
  }
  func.func @transform_3(%arg0: i32) -> (i32, i32) {
    %c0_i32 = arith.constant 0 : i32
    %c0_i32_0 = arith.constant 0 : i32
    %c0_i32_1 = arith.constant 0 : i32
    return %c0_i32, %c0_i32_0 : i32, i32
  }
  func.func @transform_4(%arg0: i32) -> (i32, i32, i32) {
    %c0_i32 = arith.constant 0 : i32
    %c0_i32_0 = arith.constant 0 : i32
    %c0_i32_1 = arith.constant 0 : i32
    return %arg0, %c0_i32, %c0_i32_0 : i32, i32, i32
  }
}

module attributes {stable_mosaic.version = 11 : i64} {
  func.func @_conv2_kernel(%arg0: i32, %arg1: memref<1x100x128xbf16, #tpu.memory_space<vmem>>, %arg2: memref<1152x128xbf16, #tpu.memory_space<vmem>>, %arg3: memref<1x128xf32, #tpu.memory_space<vmem>>, %arg4: memref<1152x128xbf16, #tpu.memory_space<vmem>>, %arg5: memref<1x128xf32, #tpu.memory_space<vmem>>, %arg6: memref<78x1xf32, #tpu.memory_space<vmem>>, %arg7: memref<1x100x128xbf16, #tpu.memory_space<vmem>>, %arg8: memref<100x128xbf16, #tpu.memory_space<vmem>>) attributes {dimension_semantics = [#tpu.dimension_semantics<parallel>], iteration_bounds = array<i64: 2>, scalar_prefetch = 0 : i64, scratch_operands = 1 : i64, tpu.core_type = #tpu.core_type<tc>, window_params = [{transform_indices = @transform_0, window_bounds = array<i64: 1, 100, 128>}, {pipeline_mode = #tpu.pipeline_mode<synchronous>, transform_indices = @transform_1, window_bounds = array<i64: 1152, 128>}, {pipeline_mode = #tpu.pipeline_mode<synchronous>, transform_indices = @transform_2, window_bounds = array<i64: 1, 128>}, {pipeline_mode = #tpu.pipeline_mode<synchronous>, transform_indices = @transform_3, window_bounds = array<i64: 1152, 128>}, {pipeline_mode = #tpu.pipeline_mode<synchronous>, transform_indices = @transform_4, window_bounds = array<i64: 1, 128>}, {pipeline_mode = #tpu.pipeline_mode<synchronous>, transform_indices = @transform_5, window_bounds = array<i64: 78, 1>}, {transform_indices = @transform_6, window_bounds = array<i64: 1, 100, 128>}]} {
    %c0 = arith.constant 0 : index
    %c0_0 = arith.constant 0 : index
    %c0_1 = arith.constant 0 : index
    %0 = vector.load %arg1[%c0, %c0_0, %c0_1] : memref<1x100x128xbf16, #tpu.memory_space<vmem>>, vector<1x78x128xbf16>
    %1 = vector.shape_cast %0 : vector<1x78x128xbf16> to vector<78x128xbf16>
    %c0_2 = arith.constant 0 : index
    %c0_3 = arith.constant 0 : index
    %2 = vector.load %arg2[%c0_2, %c0_3] : memref<1152x128xbf16, #tpu.memory_space<vmem>>, vector<128x128xbf16>
    %cst = arith.constant dense<0.000000e+00> : vector<78x128xf32>
    %3 = tpu.matmul %1, %2, %cst {dimension_numbers = #tpu.dot_dimension_numbers<[1], [0], [0], [1], [0, 0, 1, 1], [], []>} : vector<78x128xbf16>, vector<128x128xbf16>, vector<78x128xf32> -> vector<78x128xf32>
    %c0_4 = arith.constant 0 : index
    %c1 = arith.constant 1 : index
    %c0_5 = arith.constant 0 : index
    %4 = vector.load %arg1[%c0_4, %c1, %c0_5] : memref<1x100x128xbf16, #tpu.memory_space<vmem>>, vector<1x78x128xbf16>
    %5 = vector.shape_cast %4 : vector<1x78x128xbf16> to vector<78x128xbf16>
    %c128 = arith.constant 128 : index
    %c0_6 = arith.constant 0 : index
    %6 = vector.load %arg2[%c128, %c0_6] : memref<1152x128xbf16, #tpu.memory_space<vmem>>, vector<128x128xbf16>
    %cst_7 = arith.constant dense<0.000000e+00> : vector<78x128xf32>
    %7 = tpu.matmul %5, %6, %cst_7 {dimension_numbers = #tpu.dot_dimension_numbers<[1], [0], [0], [1], [0, 0, 1, 1], [], []>} : vector<78x128xbf16>, vector<128x128xbf16>, vector<78x128xf32> -> vector<78x128xf32>
    %8 = arith.addf %3, %7 : vector<78x128xf32>
    %c0_8 = arith.constant 0 : index
    %c2 = arith.constant 2 : index
    %c0_9 = arith.constant 0 : index
    %9 = vector.load %arg1[%c0_8, %c2, %c0_9] : memref<1x100x128xbf16, #tpu.memory_space<vmem>>, vector<1x78x128xbf16>
    %10 = vector.shape_cast %9 : vector<1x78x128xbf16> to vector<78x128xbf16>
    %c256 = arith.constant 256 : index
    %c0_10 = arith.constant 0 : index
    %11 = vector.load %arg2[%c256, %c0_10] : memref<1152x128xbf16, #tpu.memory_space<vmem>>, vector<128x128xbf16>
    %cst_11 = arith.constant dense<0.000000e+00> : vector<78x128xf32>
    %12 = tpu.matmul %10, %11, %cst_11 {dimension_numbers = #tpu.dot_dimension_numbers<[1], [0], [0], [1], [0, 0, 1, 1], [], []>} : vector<78x128xbf16>, vector<128x128xbf16>, vector<78x128xf32> -> vector<78x128xf32>
    %13 = arith.addf %8, %12 : vector<78x128xf32>
    %c0_12 = arith.constant 0 : index
    %c10 = arith.constant 10 : index
    %c0_13 = arith.constant 0 : index
    %14 = vector.load %arg1[%c0_12, %c10, %c0_13] : memref<1x100x128xbf16, #tpu.memory_space<vmem>>, vector<1x78x128xbf16>
    %15 = vector.shape_cast %14 : vector<1x78x128xbf16> to vector<78x128xbf16>
    %c384 = arith.constant 384 : index
    %c0_14 = arith.constant 0 : index
    %16 = vector.load %arg2[%c384, %c0_14] : memref<1152x128xbf16, #tpu.memory_space<vmem>>, vector<128x128xbf16>
    %cst_15 = arith.constant dense<0.000000e+00> : vector<78x128xf32>
    %17 = tpu.matmul %15, %16, %cst_15 {dimension_numbers = #tpu.dot_dimension_numbers<[1], [0], [0], [1], [0, 0, 1, 1], [], []>} : vector<78x128xbf16>, vector<128x128xbf16>, vector<78x128xf32> -> vector<78x128xf32>
    %18 = arith.addf %13, %17 : vector<78x128xf32>
    %c0_16 = arith.constant 0 : index
    %c11 = arith.constant 11 : index
    %c0_17 = arith.constant 0 : index
    %19 = vector.load %arg1[%c0_16, %c11, %c0_17] : memref<1x100x128xbf16, #tpu.memory_space<vmem>>, vector<1x78x128xbf16>
    %20 = vector.shape_cast %19 : vector<1x78x128xbf16> to vector<78x128xbf16>
    %c512 = arith.constant 512 : index
    %c0_18 = arith.constant 0 : index
    %21 = vector.load %arg2[%c512, %c0_18] : memref<1152x128xbf16, #tpu.memory_space<vmem>>, vector<128x128xbf16>
    %cst_19 = arith.constant dense<0.000000e+00> : vector<78x128xf32>
    %22 = tpu.matmul %20, %21, %cst_19 {dimension_numbers = #tpu.dot_dimension_numbers<[1], [0], [0], [1], [0, 0, 1, 1], [], []>} : vector<78x128xbf16>, vector<128x128xbf16>, vector<78x128xf32> -> vector<78x128xf32>
    %23 = arith.addf %18, %22 : vector<78x128xf32>
    %c0_20 = arith.constant 0 : index
    %c12 = arith.constant 12 : index
    %c0_21 = arith.constant 0 : index
    %24 = vector.load %arg1[%c0_20, %c12, %c0_21] : memref<1x100x128xbf16, #tpu.memory_space<vmem>>, vector<1x78x128xbf16>
    %25 = vector.shape_cast %24 : vector<1x78x128xbf16> to vector<78x128xbf16>
    %c640 = arith.constant 640 : index
    %c0_22 = arith.constant 0 : index
    %26 = vector.load %arg2[%c640, %c0_22] : memref<1152x128xbf16, #tpu.memory_space<vmem>>, vector<128x128xbf16>
    %cst_23 = arith.constant dense<0.000000e+00> : vector<78x128xf32>
    %27 = tpu.matmul %25, %26, %cst_23 {dimension_numbers = #tpu.dot_dimension_numbers<[1], [0], [0], [1], [0, 0, 1, 1], [], []>} : vector<78x128xbf16>, vector<128x128xbf16>, vector<78x128xf32> -> vector<78x128xf32>
    %28 = arith.addf %23, %27 : vector<78x128xf32>
    %c0_24 = arith.constant 0 : index
    %c20 = arith.constant 20 : index
    %c0_25 = arith.constant 0 : index
    %29 = vector.load %arg1[%c0_24, %c20, %c0_25] : memref<1x100x128xbf16, #tpu.memory_space<vmem>>, vector<1x78x128xbf16>
    %30 = vector.shape_cast %29 : vector<1x78x128xbf16> to vector<78x128xbf16>
    %c768 = arith.constant 768 : index
    %c0_26 = arith.constant 0 : index
    %31 = vector.load %arg2[%c768, %c0_26] : memref<1152x128xbf16, #tpu.memory_space<vmem>>, vector<128x128xbf16>
    %cst_27 = arith.constant dense<0.000000e+00> : vector<78x128xf32>
    %32 = tpu.matmul %30, %31, %cst_27 {dimension_numbers = #tpu.dot_dimension_numbers<[1], [0], [0], [1], [0, 0, 1, 1], [], []>} : vector<78x128xbf16>, vector<128x128xbf16>, vector<78x128xf32> -> vector<78x128xf32>
    %33 = arith.addf %28, %32 : vector<78x128xf32>
    %c0_28 = arith.constant 0 : index
    %c21 = arith.constant 21 : index
    %c0_29 = arith.constant 0 : index
    %34 = vector.load %arg1[%c0_28, %c21, %c0_29] : memref<1x100x128xbf16, #tpu.memory_space<vmem>>, vector<1x78x128xbf16>
    %35 = vector.shape_cast %34 : vector<1x78x128xbf16> to vector<78x128xbf16>
    %c896 = arith.constant 896 : index
    %c0_30 = arith.constant 0 : index
    %36 = vector.load %arg2[%c896, %c0_30] : memref<1152x128xbf16, #tpu.memory_space<vmem>>, vector<128x128xbf16>
    %cst_31 = arith.constant dense<0.000000e+00> : vector<78x128xf32>
    %37 = tpu.matmul %35, %36, %cst_31 {dimension_numbers = #tpu.dot_dimension_numbers<[1], [0], [0], [1], [0, 0, 1, 1], [], []>} : vector<78x128xbf16>, vector<128x128xbf16>, vector<78x128xf32> -> vector<78x128xf32>
    %38 = arith.addf %33, %37 : vector<78x128xf32>
    %c0_32 = arith.constant 0 : index
    %c22 = arith.constant 22 : index
    %c0_33 = arith.constant 0 : index
    %39 = vector.load %arg1[%c0_32, %c22, %c0_33] : memref<1x100x128xbf16, #tpu.memory_space<vmem>>, vector<1x78x128xbf16>
    %40 = vector.shape_cast %39 : vector<1x78x128xbf16> to vector<78x128xbf16>
    %c1024 = arith.constant 1024 : index
    %c0_34 = arith.constant 0 : index
    %41 = vector.load %arg2[%c1024, %c0_34] : memref<1152x128xbf16, #tpu.memory_space<vmem>>, vector<128x128xbf16>
    %cst_35 = arith.constant dense<0.000000e+00> : vector<78x128xf32>
    %42 = tpu.matmul %40, %41, %cst_35 {dimension_numbers = #tpu.dot_dimension_numbers<[1], [0], [0], [1], [0, 0, 1, 1], [], []>} : vector<78x128xbf16>, vector<128x128xbf16>, vector<78x128xf32> -> vector<78x128xf32>
    %43 = arith.addf %38, %42 : vector<78x128xf32>
    %c0_36 = arith.constant 0 : index
    %c0_37 = arith.constant 0 : index
    %44 = vector.load %arg3[%c0_36, %c0_37] : memref<1x128xf32, #tpu.memory_space<vmem>>, vector<1x128xf32>
    %45 = vector.broadcast %44 : vector<1x128xf32> to vector<78x128xf32>
    %46 = arith.addf %43, %45 : vector<78x128xf32>
    %cst_38 = arith.constant 0.000000e+00 : f32
    %47 = vector.broadcast %cst_38 : f32 to vector<78x128xf32>
    %48 = arith.maximumf %46, %47 : vector<78x128xf32>
    %c0_39 = arith.constant 0 : index
    %c0_40 = arith.constant 0 : index
    %49 = vector.load %arg6[%c0_39, %c0_40] : memref<78x1xf32, #tpu.memory_space<vmem>>, vector<78x1xf32>
    %50 = vector.broadcast %49 : vector<78x1xf32> to vector<78x128xf32>
    %51 = arith.mulf %48, %50 : vector<78x128xf32>
    %cst_41 = arith.constant 0.000000e+00 : bf16
    %52 = vector.broadcast %cst_41 : bf16 to vector<100x128xbf16>
    %c0_42 = arith.constant 0 : index
    %c0_43 = arith.constant 0 : index
    %53 = vector.load %arg8[%c0_42, %c0_43] : memref<100x128xbf16, #tpu.memory_space<vmem>>, vector<100x128xbf16>
    tpu.vector_store %arg8[%c0_42, %c0_43], %52 {strides = array<i32>} : memref<100x128xbf16, #tpu.memory_space<vmem>>, vector<100x128xbf16>,
    %54 = arith.truncf %51 : vector<78x128xf32> to vector<78x128xbf16>
    %c11_44 = arith.constant 11 : index
    %c0_45 = arith.constant 0 : index
    %55 = vector.load %arg8[%c11_44, %c0_45] : memref<100x128xbf16, #tpu.memory_space<vmem>>, vector<78x128xbf16>
    tpu.vector_store %arg8[%c11_44, %c0_45], %54 {strides = array<i32>} : memref<100x128xbf16, #tpu.memory_space<vmem>>, vector<78x128xbf16>,
    %c0_46 = arith.constant 0 : index
    %c0_47 = arith.constant 0 : index
    %56 = vector.load %arg8[%c0_46, %c0_47] : memref<100x128xbf16, #tpu.memory_space<vmem>>, vector<78x128xbf16>
    %c0_48 = arith.constant 0 : index
    %c0_49 = arith.constant 0 : index
    %57 = vector.load %arg4[%c0_48, %c0_49] : memref<1152x128xbf16, #tpu.memory_space<vmem>>, vector<128x128xbf16>
    %cst_50 = arith.constant dense<0.000000e+00> : vector<78x128xf32>
    %58 = tpu.matmul %56, %57, %cst_50 {dimension_numbers = #tpu.dot_dimension_numbers<[1], [0], [0], [1], [0, 0, 1, 1], [], []>} : vector<78x128xbf16>, vector<128x128xbf16>, vector<78x128xf32> -> vector<78x128xf32>
    %c1_51 = arith.constant 1 : index
    %c0_52 = arith.constant 0 : index
    %59 = vector.load %arg8[%c1_51, %c0_52] : memref<100x128xbf16, #tpu.memory_space<vmem>>, vector<78x128xbf16>
    %c128_53 = arith.constant 128 : index
    %c0_54 = arith.constant 0 : index
    %60 = vector.load %arg4[%c128_53, %c0_54] : memref<1152x128xbf16, #tpu.memory_space<vmem>>, vector<128x128xbf16>
    %cst_55 = arith.constant dense<0.000000e+00> : vector<78x128xf32>
    %61 = tpu.matmul %59, %60, %cst_55 {dimension_numbers = #tpu.dot_dimension_numbers<[1], [0], [0], [1], [0, 0, 1, 1], [], []>} : vector<78x128xbf16>, vector<128x128xbf16>, vector<78x128xf32> -> vector<78x128xf32>
    %62 = arith.addf %58, %61 : vector<78x128xf32>
    %c2_56 = arith.constant 2 : index
    %c0_57 = arith.constant 0 : index
    %63 = vector.load %arg8[%c2_56, %c0_57] : memref<100x128xbf16, #tpu.memory_space<vmem>>, vector<78x128xbf16>
    %c256_58 = arith.constant 256 : index
    %c0_59 = arith.constant 0 : index
    %64 = vector.load %arg4[%c256_58, %c0_59] : memref<1152x128xbf16, #tpu.memory_space<vmem>>, vector<128x128xbf16>
    %cst_60 = arith.constant dense<0.000000e+00> : vector<78x128xf32>
    %65 = tpu.matmul %63, %64, %cst_60 {dimension_numbers = #tpu.dot_dimension_numbers<[1], [0], [0], [1], [0, 0, 1, 1], [], []>} : vector<78x128xbf16>, vector<128x128xbf16>, vector<78x128xf32> -> vector<78x128xf32>
    %66 = arith.addf %62, %65 : vector<78x128xf32>
    %c10_61 = arith.constant 10 : index
    %c0_62 = arith.constant 0 : index
    %67 = vector.load %arg8[%c10_61, %c0_62] : memref<100x128xbf16, #tpu.memory_space<vmem>>, vector<78x128xbf16>
    %c384_63 = arith.constant 384 : index
    %c0_64 = arith.constant 0 : index
    %68 = vector.load %arg4[%c384_63, %c0_64] : memref<1152x128xbf16, #tpu.memory_space<vmem>>, vector<128x128xbf16>
    %cst_65 = arith.constant dense<0.000000e+00> : vector<78x128xf32>
    %69 = tpu.matmul %67, %68, %cst_65 {dimension_numbers = #tpu.dot_dimension_numbers<[1], [0], [0], [1], [0, 0, 1, 1], [], []>} : vector<78x128xbf16>, vector<128x128xbf16>, vector<78x128xf32> -> vector<78x128xf32>
    %70 = arith.addf %66, %69 : vector<78x128xf32>
    %c11_66 = arith.constant 11 : index
    %c0_67 = arith.constant 0 : index
    %71 = vector.load %arg8[%c11_66, %c0_67] : memref<100x128xbf16, #tpu.memory_space<vmem>>, vector<78x128xbf16>
    %c512_68 = arith.constant 512 : index
    %c0_69 = arith.constant 0 : index
    %72 = vector.load %arg4[%c512_68, %c0_69] : memref<1152x128xbf16, #tpu.memory_space<vmem>>, vector<128x128xbf16>
    %cst_70 = arith.constant dense<0.000000e+00> : vector<78x128xf32>
    %73 = tpu.matmul %71, %72, %cst_70 {dimension_numbers = #tpu.dot_dimension_numbers<[1], [0], [0], [1], [0, 0, 1, 1], [], []>} : vector<78x128xbf16>, vector<128x128xbf16>, vector<78x128xf32> -> vector<78x128xf32>
    %74 = arith.addf %70, %73 : vector<78x128xf32>
    %c12_71 = arith.constant 12 : index
    %c0_72 = arith.constant 0 : index
    %75 = vector.load %arg8[%c12_71, %c0_72] : memref<100x128xbf16, #tpu.memory_space<vmem>>, vector<78x128xbf16>
    %c640_73 = arith.constant 640 : index
    %c0_74 = arith.constant 0 : index
    %76 = vector.load %arg4[%c640_73, %c0_74] : memref<1152x128xbf16, #tpu.memory_space<vmem>>, vector<128x128xbf16>
    %cst_75 = arith.constant dense<0.000000e+00> : vector<78x128xf32>
    %77 = tpu.matmul %75, %76, %cst_75 {dimension_numbers = #tpu.dot_dimension_numbers<[1], [0], [0], [1], [0, 0, 1, 1], [], []>} : vector<78x128xbf16>, vector<128x128xbf16>, vector<78x128xf32> -> vector<78x128xf32>
    %78 = arith.addf %74, %77 : vector<78x128xf32>
    %c20_76 = arith.constant 20 : index
    %c0_77 = arith.constant 0 : index
    %79 = vector.load %arg8[%c20_76, %c0_77] : memref<100x128xbf16, #tpu.memory_space<vmem>>, vector<78x128xbf16>
    %c768_78 = arith.constant 768 : index
    %c0_79 = arith.constant 0 : index
    %80 = vector.load %arg4[%c768_78, %c0_79] : memref<1152x128xbf16, #tpu.memory_space<vmem>>, vector<128x128xbf16>
    %cst_80 = arith.constant dense<0.000000e+00> : vector<78x128xf32>
    %81 = tpu.matmul %79, %80, %cst_80 {dimension_numbers = #tpu.dot_dimension_numbers<[1], [0], [0], [1], [0, 0, 1, 1], [], []>} : vector<78x128xbf16>, vector<128x128xbf16>, vector<78x128xf32> -> vector<78x128xf32>
    %82 = arith.addf %78, %81 : vector<78x128xf32>
    %c21_81 = arith.constant 21 : index
    %c0_82 = arith.constant 0 : index
    %83 = vector.load %arg8[%c21_81, %c0_82] : memref<100x128xbf16, #tpu.memory_space<vmem>>, vector<78x128xbf16>
    %c896_83 = arith.constant 896 : index
    %c0_84 = arith.constant 0 : index
    %84 = vector.load %arg4[%c896_83, %c0_84] : memref<1152x128xbf16, #tpu.memory_space<vmem>>, vector<128x128xbf16>
    %cst_85 = arith.constant dense<0.000000e+00> : vector<78x128xf32>
    %85 = tpu.matmul %83, %84, %cst_85 {dimension_numbers = #tpu.dot_dimension_numbers<[1], [0], [0], [1], [0, 0, 1, 1], [], []>} : vector<78x128xbf16>, vector<128x128xbf16>, vector<78x128xf32> -> vector<78x128xf32>
    %86 = arith.addf %82, %85 : vector<78x128xf32>
    %c22_86 = arith.constant 22 : index
    %c0_87 = arith.constant 0 : index
    %87 = vector.load %arg8[%c22_86, %c0_87] : memref<100x128xbf16, #tpu.memory_space<vmem>>, vector<78x128xbf16>
    %c1024_88 = arith.constant 1024 : index
    %c0_89 = arith.constant 0 : index
    %88 = vector.load %arg4[%c1024_88, %c0_89] : memref<1152x128xbf16, #tpu.memory_space<vmem>>, vector<128x128xbf16>
    %cst_90 = arith.constant dense<0.000000e+00> : vector<78x128xf32>
    %89 = tpu.matmul %87, %88, %cst_90 {dimension_numbers = #tpu.dot_dimension_numbers<[1], [0], [0], [1], [0, 0, 1, 1], [], []>} : vector<78x128xbf16>, vector<128x128xbf16>, vector<78x128xf32> -> vector<78x128xf32>
    %90 = arith.addf %86, %89 : vector<78x128xf32>
    %c0_91 = arith.constant 0 : index
    %c11_92 = arith.constant 11 : index
    %c0_93 = arith.constant 0 : index
    %91 = vector.load %arg1[%c0_91, %c11_92, %c0_93] : memref<1x100x128xbf16, #tpu.memory_space<vmem>>, vector<1x78x128xbf16>
    %92 = vector.shape_cast %91 : vector<1x78x128xbf16> to vector<78x128xbf16>
    %93 = arith.extf %92 : vector<78x128xbf16> to vector<78x128xf32>
    %c0_94 = arith.constant 0 : index
    %c0_95 = arith.constant 0 : index
    %94 = vector.load %arg5[%c0_94, %c0_95] : memref<1x128xf32, #tpu.memory_space<vmem>>, vector<1x128xf32>
    %95 = vector.broadcast %94 : vector<1x128xf32> to vector<78x128xf32>
    %96 = arith.addf %90, %95 : vector<78x128xf32>
    %97 = arith.addf %96, %93 : vector<78x128xf32>
    %c0_96 = arith.constant 0 : index
    %c0_97 = arith.constant 0 : index
    %98 = vector.load %arg6[%c0_96, %c0_97] : memref<78x1xf32, #tpu.memory_space<vmem>>, vector<78x1xf32>
    %99 = vector.broadcast %98 : vector<78x1xf32> to vector<78x128xf32>
    %100 = arith.mulf %97, %99 : vector<78x128xf32>
    %cst_98 = arith.constant 0.000000e+00 : bf16
    %101 = vector.broadcast %cst_98 : bf16 to vector<1x100x128xbf16>
    %c0_99 = arith.constant 0 : index
    %c0_100 = arith.constant 0 : index
    %c0_101 = arith.constant 0 : index
    %102 = vector.load %arg7[%c0_99, %c0_100, %c0_101] : memref<1x100x128xbf16, #tpu.memory_space<vmem>>, vector<1x100x128xbf16>
    tpu.vector_store %arg7[%c0_99, %c0_100, %c0_101], %101 {strides = array<i32>} : memref<1x100x128xbf16, #tpu.memory_space<vmem>>, vector<1x100x128xbf16>,
    %103 = arith.truncf %100 : vector<78x128xf32> to vector<78x128xbf16>
    %c0_102 = arith.constant 0 : index
    %c11_103 = arith.constant 11 : index
    %c0_104 = arith.constant 0 : index
    %104 = vector.load %arg7[%c0_102, %c11_103, %c0_104] : memref<1x100x128xbf16, #tpu.memory_space<vmem>>, vector<1x78x128xbf16>
    %105 = vector.shape_cast %104 : vector<1x78x128xbf16> to vector<78x128xbf16>
    %106 = vector.shape_cast %103 : vector<78x128xbf16> to vector<1x78x128xbf16>
    tpu.vector_store %arg7[%c0_102, %c11_103, %c0_104], %106 {strides = array<i32>} : memref<1x100x128xbf16, #tpu.memory_space<vmem>>, vector<1x78x128xbf16>,
    return
  }
  func.func @transform_0(%arg0: i32) -> (i32, i32, i32) {
    %c0_i32 = arith.constant 0 : i32
    %c0_i32_0 = arith.constant 0 : i32
    %c0_i32_1 = arith.constant 0 : i32
    return %arg0, %c0_i32, %c0_i32_0 : i32, i32, i32
  }
  func.func @transform_1(%arg0: i32) -> (i32, i32) {
    %c0_i32 = arith.constant 0 : i32
    %c0_i32_0 = arith.constant 0 : i32
    %c0_i32_1 = arith.constant 0 : i32
    return %c0_i32, %c0_i32_0 : i32, i32
  }
  func.func @transform_2(%arg0: i32) -> (i32, i32) {
    %c0_i32 = arith.constant 0 : i32
    %c0_i32_0 = arith.constant 0 : i32
    %c0_i32_1 = arith.constant 0 : i32
    return %c0_i32, %c0_i32_0 : i32, i32
  }
  func.func @transform_3(%arg0: i32) -> (i32, i32) {
    %c0_i32 = arith.constant 0 : i32
    %c0_i32_0 = arith.constant 0 : i32
    %c0_i32_1 = arith.constant 0 : i32
    return %c0_i32, %c0_i32_0 : i32, i32
  }
  func.func @transform_4(%arg0: i32) -> (i32, i32) {
    %c0_i32 = arith.constant 0 : i32
    %c0_i32_0 = arith.constant 0 : i32
    %c0_i32_1 = arith.constant 0 : i32
    return %c0_i32, %c0_i32_0 : i32, i32
  }
  func.func @transform_5(%arg0: i32) -> (i32, i32) {
    %c0_i32 = arith.constant 0 : i32
    %c0_i32_0 = arith.constant 0 : i32
    %c0_i32_1 = arith.constant 0 : i32
    return %c0_i32, %c0_i32_0 : i32, i32
  }
  func.func @transform_6(%arg0: i32) -> (i32, i32, i32) {
    %c0_i32 = arith.constant 0 : i32
    %c0_i32_0 = arith.constant 0 : i32
    %c0_i32_1 = arith.constant 0 : i32
    return %arg0, %c0_i32, %c0_i32_0 : i32, i32, i32
  }
}

module attributes {stable_mosaic.version = 11 : i64} {
  func.func @_conv3_kernel(%arg0: i32, %arg1: memref<1x25x512xbf16, #tpu.memory_space<vmem>>, %arg2: memref<2048x128xbf16, #tpu.memory_space<vmem>>, %arg3: memref<1x128xf32, #tpu.memory_space<vmem>>, %arg4: memref<128x128xbf16, #tpu.memory_space<vmem>>, %arg5: memref<1x128xf32, #tpu.memory_space<vmem>>, %arg6: memref<1x20x128xf32, #tpu.memory_space<vmem>>) attributes {dimension_semantics = [#tpu.dimension_semantics<parallel>], iteration_bounds = array<i64: 2>, scalar_prefetch = 0 : i64, scratch_operands = 0 : i64, tpu.core_type = #tpu.core_type<tc>, window_params = [{transform_indices = @transform_0, window_bounds = array<i64: 1, 25, 512>}, {pipeline_mode = #tpu.pipeline_mode<synchronous>, transform_indices = @transform_1, window_bounds = array<i64: 2048, 128>}, {pipeline_mode = #tpu.pipeline_mode<synchronous>, transform_indices = @transform_2, window_bounds = array<i64: 1, 128>}, {pipeline_mode = #tpu.pipeline_mode<synchronous>, transform_indices = @transform_3, window_bounds = array<i64: 128, 128>}, {pipeline_mode = #tpu.pipeline_mode<synchronous>, transform_indices = @transform_4, window_bounds = array<i64: 1, 128>}, {transform_indices = @transform_5, window_bounds = array<i64: 1, 20, 128>}]} {
    %c0 = arith.constant 0 : index
    %c0_0 = arith.constant 0 : index
    %c0_1 = arith.constant 0 : index
    %0 = vector.load %arg1[%c0, %c0_0, %c0_1] : memref<1x25x512xbf16, #tpu.memory_space<vmem>>, vector<1x19x512xbf16>
    %1 = vector.shape_cast %0 : vector<1x19x512xbf16> to vector<19x512xbf16>
    %c0_2 = arith.constant 0 : index
    %c0_3 = arith.constant 0 : index
    %2 = vector.load %arg2[%c0_2, %c0_3] : memref<2048x128xbf16, #tpu.memory_space<vmem>>, vector<512x128xbf16>
    %cst = arith.constant dense<0.000000e+00> : vector<19x128xf32>
    %3 = tpu.matmul %1, %2, %cst {dimension_numbers = #tpu.dot_dimension_numbers<[1], [0], [0], [1], [0, 0, 1, 1], [], []>} : vector<19x512xbf16>, vector<512x128xbf16>, vector<19x128xf32> -> vector<19x128xf32>
    %c0_4 = arith.constant 0 : index
    %c1 = arith.constant 1 : index
    %c0_5 = arith.constant 0 : index
    %4 = vector.load %arg1[%c0_4, %c1, %c0_5] : memref<1x25x512xbf16, #tpu.memory_space<vmem>>, vector<1x19x512xbf16>
    %5 = vector.shape_cast %4 : vector<1x19x512xbf16> to vector<19x512xbf16>
    %c512 = arith.constant 512 : index
    %c0_6 = arith.constant 0 : index
    %6 = vector.load %arg2[%c512, %c0_6] : memref<2048x128xbf16, #tpu.memory_space<vmem>>, vector<512x128xbf16>
    %cst_7 = arith.constant dense<0.000000e+00> : vector<19x128xf32>
    %7 = tpu.matmul %5, %6, %cst_7 {dimension_numbers = #tpu.dot_dimension_numbers<[1], [0], [0], [1], [0, 0, 1, 1], [], []>} : vector<19x512xbf16>, vector<512x128xbf16>, vector<19x128xf32> -> vector<19x128xf32>
    %8 = arith.addf %3, %7 : vector<19x128xf32>
    %c0_8 = arith.constant 0 : index
    %c5 = arith.constant 5 : index
    %c0_9 = arith.constant 0 : index
    %9 = vector.load %arg1[%c0_8, %c5, %c0_9] : memref<1x25x512xbf16, #tpu.memory_space<vmem>>, vector<1x19x512xbf16>
    %10 = vector.shape_cast %9 : vector<1x19x512xbf16> to vector<19x512xbf16>
    %c1024 = arith.constant 1024 : index
    %c0_10 = arith.constant 0 : index
    %11 = vector.load %arg2[%c1024, %c0_10] : memref<2048x128xbf16, #tpu.memory_space<vmem>>, vector<512x128xbf16>
    %cst_11 = arith.constant dense<0.000000e+00> : vector<19x128xf32>
    %12 = tpu.matmul %10, %11, %cst_11 {dimension_numbers = #tpu.dot_dimension_numbers<[1], [0], [0], [1], [0, 0, 1, 1], [], []>} : vector<19x512xbf16>, vector<512x128xbf16>, vector<19x128xf32> -> vector<19x128xf32>
    %13 = arith.addf %8, %12 : vector<19x128xf32>
    %c0_12 = arith.constant 0 : index
    %c6 = arith.constant 6 : index
    %c0_13 = arith.constant 0 : index
    %14 = vector.load %arg1[%c0_12, %c6, %c0_13] : memref<1x25x512xbf16, #tpu.memory_space<vmem>>, vector<1x19x512xbf16>
    %15 = vector.shape_cast %14 : vector<1x19x512xbf16> to vector<19x512xbf16>
    %c1536 = arith.constant 1536 : index
    %c0_14 = arith.constant 0 : index
    %16 = vector.load %arg2[%c1536, %c0_14] : memref<2048x128xbf16, #tpu.memory_space<vmem>>, vector<512x128xbf16>
    %cst_15 = arith.constant dense<0.000000e+00> : vector<19x128xf32>
    %17 = tpu.matmul %15, %16, %cst_15 {dimension_numbers = #tpu.dot_dimension_numbers<[1], [0], [0], [1], [0, 0, 1, 1], [], []>} : vector<19x512xbf16>, vector<512x128xbf16>, vector<19x128xf32> -> vector<19x128xf32>
    %18 = arith.addf %13, %17 : vector<19x128xf32>
    %c0_16 = arith.constant 0 : index
    %c0_17 = arith.constant 0 : index
    %19 = vector.load %arg3[%c0_16, %c0_17] : memref<1x128xf32, #tpu.memory_space<vmem>>, vector<1x128xf32>
    %20 = vector.broadcast %19 : vector<1x128xf32> to vector<19x128xf32>
    %21 = arith.addf %18, %20 : vector<19x128xf32>
    %cst_18 = arith.constant 0.000000e+00 : f32
    %22 = vector.broadcast %cst_18 : f32 to vector<19x128xf32>
    %23 = arith.maximumf %21, %22 : vector<19x128xf32>
    %24 = arith.truncf %23 : vector<19x128xf32> to vector<19x128xbf16>
    %c0_19 = arith.constant 0 : index
    %c0_20 = arith.constant 0 : index
    %25 = vector.load %arg4[%c0_19, %c0_20] : memref<128x128xbf16, #tpu.memory_space<vmem>>, vector<128x128xbf16>
    %cst_21 = arith.constant dense<0.000000e+00> : vector<19x128xf32>
    %26 = tpu.matmul %24, %25, %cst_21 {dimension_numbers = #tpu.dot_dimension_numbers<[1], [0], [0], [1], [0, 0, 1, 1], [], []>} : vector<19x128xbf16>, vector<128x128xbf16>, vector<19x128xf32> -> vector<19x128xf32>
    %c0_22 = arith.constant 0 : index
    %c0_23 = arith.constant 0 : index
    %27 = vector.load %arg5[%c0_22, %c0_23] : memref<1x128xf32, #tpu.memory_space<vmem>>, vector<1x128xf32>
    %28 = vector.broadcast %27 : vector<1x128xf32> to vector<19x128xf32>
    %29 = arith.addf %26, %28 : vector<19x128xf32>
    %cst_24 = arith.constant 0.000000e+00 : f32
    %30 = vector.broadcast %cst_24 : f32 to vector<1x20x128xf32>
    %c0_25 = arith.constant 0 : index
    %c0_26 = arith.constant 0 : index
    %c0_27 = arith.constant 0 : index
    %31 = vector.load %arg6[%c0_25, %c0_26, %c0_27] : memref<1x20x128xf32, #tpu.memory_space<vmem>>, vector<1x20x128xf32>
    tpu.vector_store %arg6[%c0_25, %c0_26, %c0_27], %30 {strides = array<i32>} : memref<1x20x128xf32, #tpu.memory_space<vmem>>, vector<1x20x128xf32>,
    %c0_28 = arith.constant 0 : index
    %c0_29 = arith.constant 0 : index
    %c0_30 = arith.constant 0 : index
    %32 = vector.load %arg6[%c0_28, %c0_29, %c0_30] : memref<1x20x128xf32, #tpu.memory_space<vmem>>, vector<1x19x128xf32>
    %33 = vector.shape_cast %32 : vector<1x19x128xf32> to vector<19x128xf32>
    %34 = vector.shape_cast %29 : vector<19x128xf32> to vector<1x19x128xf32>
    tpu.vector_store %arg6[%c0_28, %c0_29, %c0_30], %34 {strides = array<i32>} : memref<1x20x128xf32, #tpu.memory_space<vmem>>, vector<1x19x128xf32>,
    return
  }
  func.func @transform_0(%arg0: i32) -> (i32, i32, i32) {
    %c0_i32 = arith.constant 0 : i32
    %c0_i32_0 = arith.constant 0 : i32
    %c0_i32_1 = arith.constant 0 : i32
    return %arg0, %c0_i32, %c0_i32_0 : i32, i32, i32
  }
  func.func @transform_1(%arg0: i32) -> (i32, i32) {
    %c0_i32 = arith.constant 0 : i32
    %c0_i32_0 = arith.constant 0 : i32
    %c0_i32_1 = arith.constant 0 : i32
    return %c0_i32, %c0_i32_0 : i32, i32
  }
  func.func @transform_2(%arg0: i32) -> (i32, i32) {
    %c0_i32 = arith.constant 0 : i32
    %c0_i32_0 = arith.constant 0 : i32
    %c0_i32_1 = arith.constant 0 : i32
    return %c0_i32, %c0_i32_0 : i32, i32
  }
  func.func @transform_3(%arg0: i32) -> (i32, i32) {
    %c0_i32 = arith.constant 0 : i32
    %c0_i32_0 = arith.constant 0 : i32
    %c0_i32_1 = arith.constant 0 : i32
    return %c0_i32, %c0_i32_0 : i32, i32
  }
  func.func @transform_4(%arg0: i32) -> (i32, i32) {
    %c0_i32 = arith.constant 0 : i32
    %c0_i32_0 = arith.constant 0 : i32
    %c0_i32_1 = arith.constant 0 : i32
    return %c0_i32, %c0_i32_0 : i32, i32
  }
  func.func @transform_5(%arg0: i32) -> (i32, i32, i32) {
    %c0_i32 = arith.constant 0 : i32
    %c0_i32_0 = arith.constant 0 : i32
    %c0_i32_1 = arith.constant 0 : i32
    return %arg0, %c0_i32, %c0_i32_0 : i32, i32, i32
  }
}

</mosaic_0001>

<llo_original>
// kernel: stem_forward.3
$region0: #{stem_forward.3}
  #allocation0 [shape = 'u32[]', space=smem, size = 0x4, offset = 0x4, fixed_abs, tag = 'smem constant byte address 0x4 - core index']
  #allocation1 [shape = 'u32[144,128]{1,0:T(1,128)}', space=vmem, size = 0x12000, scoped, tag = 'internal scratch']
  %s0 = inlined_call_operand.vmem [shape: bf16[2,90,16], index: 0, kind: input, shape index: {}]
  %s1 = inlined_call_operand.vmem [shape: bf16[64,128], index: 1, kind: input, shape index: {}]
  %s2 = inlined_call_operand.vmem [shape: f32[1,128], index: 2, kind: input, shape index: {}]
  %s3 = inlined_call_operand.vmem [shape: f32[78,1], index: 3, kind: input, shape index: {}]
  %s4 = inlined_call_operand.vmem [shape: bf16[2,100,128], index: 4, kind: output, shape index: {}]
  %s5 = sld [smem:[#allocation0]]
  $region49: #{stem_forward.3} parent=0
    _
  %s7 = ssub.s32 1, %s5
  %s8 = scalar_select 0, %s7, %s5
  loop: start=0, step=1, limit=4
  $region2: #{stem_forward.3} parent=0 // loop_pre_header
    _
  $region3: #{stem_forward.3} parent=0 // loop_header
    %s10 = sphi 0, %s14
    %p11 = scmp.ge.s32.totalorder %s10, 4
    %s20 = sphi 0, %s22
    %s23 = sphi 0, %s20
    %s24 = sphi 0, %s23
    %s40 = sphi 0, %s24
    %s44 = sphi 0, %s44
    %s46 = sphi 0, %s44
    %s47 = sphi 0, %s46
    %s61 = sphi 0, %s47
    %s65 = sphi 0, %s65
    %s67 = sphi 0, %s65
    %s68 = sphi 0, %s67
    %s82 = sphi 0, %s68
    %s86 = sphi 0, %s86
    %s88 = sphi 0, %s86
    %s89 = sphi 0, %s88
    %s103 = sphi 0, %s89
    %s109 = sphi 0, %s111
    %s112 = sphi 0, %s109
    %s113 = sphi 0, %s112
    %s129 = sphi 0, %s113
  $region4: #{stem_forward.3} parent=0 // loop_header_branch
    %13 = sbr.rel (%p11) target = $region8
  $region5: #{stem_forward.3} parent=0 // loop_body
    %s15 = ssub.s32 %s10, 1
    %s16 = ssub.s32 %s10, 2
    %s17 = sadd.s32 %s10, 1
    %s18 = ssub.s32 %s10, %s17
    %p19 = scmp.eq.s32.totalorder %s18, 0
    %s21 = sadd.s32 %s20, 1
    %s22 = scalar_select %p19, %s20, %s21
    %p25 = pneg %p19
    %p26 = scmp.eq.s32.totalorder %s10, 1
    %p27 = por %p25, %p26
    %p28 = scmp.ne.s32.totalorder %s20, %s23
    %p29 = scmp.eq.s32.totalorder %s10, 0
    %p30 = por %p28, %p29
    %p31 = scmp.ne.s32.totalorder %s20, %s23
    %p32 = scmp.eq.s32.totalorder %s15, 1
    %p33 = por %p31, %p32
    %p34 = scmp.ne.s32.totalorder %s23, %s24
    %p35 = scmp.eq.s32.totalorder %s15, 0
    %p36 = por %p34, %p35
    %p37 = scmp.ne.s32.totalorder %s23, %s24
    %p38 = scmp.eq.s32.totalorder %s16, 1
    %p39 = por %p37, %p38
    %p41 = scmp.ne.s32.totalorder %s24, %s40
    %p42 = scmp.eq.s32.totalorder %s16, 0
    %p43 = por %p41, %p42
    %s45 = sadd.s32 %s44, 1
    %p48 = scmp.eq.s32.totalorder %s10, 1
    %p49 = scmp.ne.s32.totalorder %s44, %s46
    %p50 = scmp.eq.s32.totalorder %s10, 0
    %p51 = por %p49, %p50
    %p52 = scmp.ne.s32.totalorder %s44, %s46
    %p53 = scmp.eq.s32.totalorder %s15, 1
    %p54 = por %p52, %p53
    %p55 = scmp.ne.s32.totalorder %s46, %s47
    %p56 = scmp.eq.s32.totalorder %s15, 0
    %p57 = por %p55, %p56
    %p58 = scmp.ne.s32.totalorder %s46, %s47
    %p59 = scmp.eq.s32.totalorder %s16, 1
    %p60 = por %p58, %p59
    %p62 = scmp.ne.s32.totalorder %s47, %s61
    %p63 = scmp.eq.s32.totalorder %s16, 0
    %p64 = por %p62, %p63
    %s66 = sadd.s32 %s65, 1
    %p69 = scmp.eq.s32.totalorder %s10, 1
    %p70 = scmp.ne.s32.totalorder %s65, %s67
    %p71 = scmp.eq.s32.totalorder %s10, 0
    %p72 = por %p70, %p71
    %p73 = scmp.ne.s32.totalorder %s65, %s67
    %p74 = scmp.eq.s32.totalorder %s15, 1
    %p75 = por %p73, %p74
    %p76 = scmp.ne.s32.totalorder %s67, %s68
    %p77 = scmp.eq.s32.totalorder %s15, 0
    %p78 = por %p76, %p77
    %p79 = scmp.ne.s32.totalorder %s67, %s68
    %p80 = scmp.eq.s32.totalorder %s16, 1
    %p81 = por %p79, %p80
    %p83 = scmp.ne.s32.totalorder %s68, %s82
    %p84 = scmp.eq.s32.totalorder %s16, 0
    %p85 = por %p83, %p84
    %s87 = sadd.s32 %s86, 1
    %p90 = scmp.eq.s32.totalorder %s10, 1
    %p91 = scmp.ne.s32.totalorder %s86, %s88
    %p92 = scmp.eq.s32.totalorder %s10, 0
    %p93 = por %p91, %p92
    %p94 = scmp.ne.s32.totalorder %s86, %s88
    %p95 = scmp.eq.s32.totalorder %s15, 1
    %p96 = por %p94, %p95
    %p97 = scmp.ne.s32.totalorder %s88, %s89
    %p98 = scmp.eq.s32.totalorder %s15, 0
    %p99 = por %p97, %p98
    %p100 = scmp.ne.s32.totalorder %s88, %s89
    %p101 = scmp.eq.s32.totalorder %s16, 1
    %p102 = por %p100, %p101
    %p104 = scmp.ne.s32.totalorder %s89, %s103
    %p105 = scmp.eq.s32.totalorder %s16, 0
    %p106 = por %p104, %p105
    %s107 = ssub.s32 %s10, %s17
    %p108 = scmp.eq.s32.totalorder %s107, 0
    %s110 = sadd.s32 %s109, 1
    %s111 = scalar_select %p108, %s109, %s110
    %p114 = pneg %p108
    %p115 = scmp.eq.s32.totalorder %s10, 1
    %p116 = por %p114, %p115
    %p117 = scmp.ne.s32.totalorder %s109, %s112
    %p118 = scmp.eq.s32.totalorder %s10, 0
    %p119 = por %p117, %p118
    %p120 = scmp.ne.s32.totalorder %s109, %s112
    %p121 = scmp.eq.s32.totalorder %s15, 1
    %p122 = por %p120, %p121
    %p123 = scmp.ne.s32.totalorder %s112, %s113
    %p124 = scmp.eq.s32.totalorder %s15, 0
    %p125 = por %p123, %p124
    %p126 = scmp.ne.s32.totalorder %s112, %s113
    %p127 = scmp.eq.s32.totalorder %s16, 1
    %p128 = por %p126, %p127
    %p130 = scmp.ne.s32.totalorder %s113, %s129
    %p131 = scmp.eq.s32.totalorder %s16, 0
    %p132 = por %p130, %p131
    %p133 = scmp.le.s32.totalorder 1, %s10
    %p134 = scmp.lt.s32.totalorder %s10, 3
    %p135 = pnand %p133, %p134
    %p136 = pneg %p135
    // Predicated region
    $region9: #{stem_forward.3} parent=5 // pred_check
      _
    $region10: #{stem_forward.3} parent=5 // pred_check_branch
      %138 = sbr.rel (%p135) target = $region12
    $region11: #{stem_forward.3} parent=5 // pred_region
      %s139 = ssub.s32 %s10, 1
      // Predicated region
      $region13: #{stem_forward.3} parent=11 // pred_check
        %p140 = pneg %p57
      $region14: #{stem_forward.3} parent=11 // pred_check_branch
        %142 = sbr.rel (%p140) target = $region16
      $region15: #{stem_forward.3} parent=11 // pred_region
        _
      $region16: #{stem_forward.3} parent=11 // pred_fallthru
        _
      // Predicated region
      $region17: #{stem_forward.3} parent=11 // pred_check
        %p143 = pneg %p78
      $region18: #{stem_forward.3} parent=11 // pred_check_branch
        %145 = sbr.rel (%p143) target = $region20
      $region19: #{stem_forward.3} parent=11 // pred_region
        _
      $region20: #{stem_forward.3} parent=11 // pred_fallthru
        _
      // Predicated region
      $region21: #{stem_forward.3} parent=11 // pred_check
        %p146 = pneg %p99
      $region22: #{stem_forward.3} parent=11 // pred_check_branch
        %148 = sbr.rel (%p146) target = $region24
      $region23: #{stem_forward.3} parent=11 // pred_region
        _
      $region24: #{stem_forward.3} parent=11 // pred_fallthru
        _
    $region12: #{stem_forward.3} parent=5 // pred_fallthru
      _
    %p149 = scmp.lt.s32.totalorder %s10, 2
    // Predicated region
    $region25: #{stem_forward.3} parent=5 // pred_check
      %p150 = pneg %p149
    $region26: #{stem_forward.3} parent=5 // pred_check_branch
      %152 = sbr.rel (%p150) target = $region28
    $region27: #{stem_forward.3} parent=5 // pred_region
      // Predicated region
      $region29: #{stem_forward.3} parent=27 // pred_check
        %p153 = pneg %p30
      $region30: #{stem_forward.3} parent=27 // pred_check_branch
        %155 = sbr.rel (%p153) target = $region32
      $region31: #{stem_forward.3} parent=27 // pred_region
        %p156 = scmp.lt.s32.totalorder %s10, 1
        %s157 = scalar_select %p156, %s10, 1
        %s158 = smul.addr %s157, 12
        %s159 = smul.addr %s158, 4
        %s160 = scalar_lea.vmem %s0, %s159
      $region32: #{stem_forward.3} parent=27 // pred_fallthru
        _
    $region28: #{stem_forward.3} parent=5 // pred_fallthru
      _
    %p161 = scmp.le.s32.totalorder 1, %s10
    %p162 = scmp.lt.s32.totalorder %s10, 3
    %p163 = pnand %p161, %p162
    %p164 = pneg %p163
    // Predicated region
    $region33: #{stem_forward.3} parent=5 // pred_check
      _
    $region34: #{stem_forward.3} parent=5 // pred_check_branch
      %166 = sbr.rel (%p163) target = $region36
    $region35: #{stem_forward.3} parent=5 // pred_region
      %s167 = ssub.s32 %s10, 1
      %p168 = scmp.lt.s32.totalorder %s15, 1
      %s169 = scalar_select %p168, %s15, 1
      %s170 = smul.addr %s169, 12
      %s171 = smul.addr %s170, 4
      %s172 = scalar_lea.vmem %s0, %s171
      %p173 = pneg %p36
      %p174 = pneg %p33
      %p175 = pneg %p57
      %p176 = pneg %p54
      %p177 = pneg %p78
      %p178 = pneg %p75
      %p179 = pneg %p99
      %p180 = pneg %p96
      %p181 = pneg %p125
      %p182 = pneg %p122
      %p183 = scmp.lt.s32.totalorder %s15, 1
      %s184 = scalar_select %p183, %s15, 1
      %s185 = smul.addr %s184, 13
      %s186 = smul.addr %s185, 4
      %s187 = scalar_lea.vmem %s4, %s186
      %p188 = scmp.lt.s32.totalorder %s15, 1
      %s189 = scalar_select %p188, %s15, 1
      %s190 = smul.addr %s189, 12
      %s191 = smul.addr %s190, 4
      %s192 = scalar_lea.vmem %s0, %s191
      %p193 = scmp.lt.s32.totalorder %s15, 1
      %s194 = scalar_select %p193, %s15, 1
      %s195 = smul.addr %s194, 13
      %s196 = smul.addr %s195, 4
      %s197 = scalar_lea.vmem %s4, %s196
      %v199 = vld [vmem:[%s192] sm:$0xf]
      %v200 = vld [vmem:[%s192 + $0x4] sm:$0xf]
      %v201 = vld [vmem:[%s192 + $0x8] sm:$0xf]
      %v202 = vld [vmem:[%s192 + $0xc] sm:$0xf]
      %v203 = vld [vmem:[%s192 + $0x10] sm:$0xf]
      %v204 = vld [vmem:[%s192 + $0x14] sm:$0xf]
      %v205 = vld [vmem:[%s192 + $0x18] sm:$0xf]
      %v206 = vld [vmem:[%s192 + $0x1c] sm:$0xf]
      %v207 = vld [vmem:[%s192 + $0x20] sm:$0xf]
      %v208 = vld [vmem:[%s192 + $0x24] sm:$0x7]
      %v209 = vld [vmem:[%s1] sm:$0xf]
      %v210 = vld [vmem:[%s1 + $0x4] sm:$0xf]
      %v211 = vld [vmem:[%s192 + $0x24] sm:$0xf]
      %v212 = vld [vmem:[%s1 + $0x8] sm:$0xf]
      %v213 = vld [vmem:[%s1 + $0xc] sm:$0xf]
      %v224 = vunpack.c.l.b16 %v199
      %v225 = vunpack.c.l.b16 %v200
      %v226 = vunpack.c.l.b16 %v201
      %v227 = vunpack.c.l.b16 %v202
      %v228 = vunpack.c.l.b16 %v203
      %v229 = vunpack.c.l.b16 %v204
      %v230 = vunpack.c.l.b16 %v205
      %v231 = vunpack.c.l.b16 %v206
      %v232 = vunpack.c.l.b16 %v207
      %v233 = vunpack.c.l.b16 %v211
      %v234 = vpack.c.b16 %v225, %v224
      %v235 = vpack.c.b16 %v227, %v226
      %v236 = vpack.c.b16 %v229, %v228
      %v237 = vpack.c.b16 %v231, %v230
      %v238 = vpack.c.b16 %v233, %v232
      %vm239 = vsmask.f32 7424
      %v241 = vshrl.u32 %v234, 16
      %v243 = vshll.u32 %v234, 16
      %v245 = vrot.slane %v243, 1
      %v246 = vor.u32 %v241, %v245
      %v248 = vshll.u32 %v235, 16
      %v250 = vrot.slane %v248, 1
      %v251 = vsel %vm239, %v246, %v250
      %v252 = vshrl.u32 %v235, 16
      %v254 = vor.u32 %v252, %v250
      %v256 = vshll.u32 %v236, 16
      %v258 = vrot.slane %v256, 1
      %v259 = vsel %vm239, %v254, %v258
      %v260 = vshrl.u32 %v236, 16
      %v262 = vor.u32 %v260, %v258
      %v264 = vshll.u32 %v237, 16
      %v266 = vrot.slane %v264, 1
      %v267 = vsel %vm239, %v262, %v266
      %v268 = vshrl.u32 %v237, 16
      %v270 = vor.u32 %v268, %v266
      %v272 = vshll.u32 %v238, 16
      %v274 = vrot.slane %v272, 1
      %v275 = vsel %vm239, %v270, %v274
      %v276 = vshrl.u32 %v238, 16
      %v278 = vor.u32 %v276, %v274
      %v281 = vunpack.c.l.b16 %v212
      %v282 = vunpack.c.l.b16 %v213
      %v283 = vpack.c.b16 %v282, %v281
      %vm285 = vcmask 130048
      %v287 = vsel %vm285, %v251, 0
      %v290 = vsel %vm285, %v259, 0
      %v293 = vsel %vm285, %v267, 0
      %v296 = vsel %vm285, %v275, 0
      %v299 = vsel %vm285, %v278, 0
      %301 = vmatprep.subr.bf16.mxu0 0
      %302 = vmatpush1.bf16.msra.mxu0 %v283
      %303 = vmatprep.subr.bf16.mxu0 0
      %304 = vmatpush1.bf16.msra.mxu0 0
      %305 = vmatprep.subr.bf16.mxu0 0
      %306 = vmatpush1.bf16.msra.mxu0 0
      %307 = vmatprep.subr.bf16.mxu0 0
      %308 = vmatpush1.bf16.msra.mxu0 0
      %309 = vmatprep.subr.bf16.mxu0 0
      %310 = vmatpush1.bf16.msra.mxu0 0
      %311 = vmatprep.subr.bf16.mxu0 0
      %312 = vmatpush1.bf16.msra.mxu0 0
      %313 = vmatprep.subr.bf16.mxu0 0
      %314 = vmatpush1.bf16.msra.mxu0 0
      %315 = vmatprep.subr.bf16.mxu0 0
      %316 = vmatpush1.bf16.msra.mxu0 0
      %317 = vmatprep.subr.bf16.mxu0 0
      %318 = vmatpush1.bf16.msra.mxu0 0
      %319 = vmatprep.subr.bf16.mxu0 0
      %320 = vmatpush1.bf16.msra.mxu0 0
      %321 = vmatprep.subr.bf16.mxu0 0
      %322 = vmatpush1.bf16.msra.mxu0 0
      %323 = vmatprep.subr.bf16.mxu0 0
      %324 = vmatpush1.bf16.msra.mxu0 0
      %325 = vmatprep.subr.bf16.mxu0 0
      %326 = vmatpush1.bf16.msra.mxu0 0
      %327 = vmatprep.subr.bf16.mxu0 0
      %328 = vmatpush1.bf16.msra.mxu0 0
      %329 = vmatprep.subr.bf16.mxu0 0
      %330 = vmatpush1.bf16.msra.mxu0 0
      %331 = vmatprep.subr.bf16.mxu0 0
      %332 = vmatpush1.bf16.msra.mxu0 0
      %333 = vmatprep.mubr.bf16.mxu0 0
      %334 = vmatmul.mubr.bf16.gmra.mrb[0].mxu0 %v287
      %v335 = vpop.f32.mrb[0].mxu0
      %v336 = vadd.f32 0.0, %v335
      %v337 = vpop.f32.mrb[0].mxu0
      %v338 = vpop.f32.mrb[0].mxu0
      %v339 = vadd.f32 0.0, %v338
      %v340 = vpop.f32.mrb[0].mxu0
      %341 = vmatprep.mubr.bf16.mxu0 0
      %342 = vmatmul.mubr.bf16.gmra.mrb[0].mxu0 %v290
      %v343 = vpop.f32.mrb[0].mxu0
      %v344 = vadd.f32 0.0, %v343
      %v345 = vpop.f32.mrb[0].mxu0
      %v346 = vpop.f32.mrb[0].mxu0
      %v347 = vadd.f32 0.0, %v346
      %v348 = vpop.f32.mrb[0].mxu0
      %349 = vmatprep.mubr.bf16.mxu0 0
      %350 = vmatmul.mubr.bf16.gmra.mrb[0].mxu0 %v293
      %v351 = vpop.f32.mrb[0].mxu0
      %v352 = vadd.f32 0.0, %v351
      %v353 = vpop.f32.mrb[0].mxu0
      %v354 = vpop.f32.mrb[0].mxu0
      %v355 = vadd.f32 0.0, %v354
      %v356 = vpop.f32.mrb[0].mxu0
      %357 = vmatprep.mubr.bf16.mxu0 0
      %358 = vmatmul.mubr.bf16.gmra.mrb[0].mxu0 %v296
      %v359 = vpop.f32.mrb[0].mxu0
      %v360 = vadd.f32 0.0, %v359
      %v361 = vpop.f32.mrb[0].mxu0
      %v362 = vpop.f32.mrb[0].mxu0
      %v363 = vadd.f32 0.0, %v362
      %v364 = vpop.f32.mrb[0].mxu0
      %365 = vmatprep.mubr.bf16.mxu0 0
      %366 = vmatmul.mubr.bf16.gmra.mrb[0].mxu0 %v299
      %v367 = vpop.f32.mrb[0].mxu0
      %v368 = vadd.f32 0.0, %v367
      %v369 = vpop.f32.mrb[0].mxu0
      %v370 = vpop.f32.mrb[0].mxu0
      %v371 = vadd.f32 0.0, %v370
      %v372 = vpop.f32.mrb[0].mxu0
      %373 = vdwg.mxu0
      %v375 = vunpack.c.l.b16 %v208
      %v376 = vpack.c.b16 %v375, %v232
      %v379 = vunpack.c.l.b16 %v209
      %v380 = vunpack.c.l.b16 %v210
      %v381 = vpack.c.b16 %v380, %v379
      %v383 = vsel %vm285, %v234, 0
      %v385 = vsel %vm285, %v235, 0
      %v387 = vsel %vm285, %v236, 0
      %v389 = vsel %vm285, %v237, 0
      %v392 = vsel %vm285, %v376, 0
      %394 = vmatprep.subr.bf16.mxu0 0
      %395 = vmatpush1.bf16.msra.mxu0 %v381
      %396 = vmatprep.subr.bf16.mxu0 0
      %397 = vmatpush1.bf16.msra.mxu0 0
      %398 = vmatprep.subr.bf16.mxu0 0
      %399 = vmatpush1.bf16.msra.mxu0 0
      %400 = vmatprep.subr.bf16.mxu0 0
      %401 = vmatpush1.bf16.msra.mxu0 0
      %402 = vmatprep.subr.bf16.mxu0 0
      %403 = vmatpush1.bf16.msra.mxu0 0
      %404 = vmatprep.subr.bf16.mxu0 0
      %405 = vmatpush1.bf16.msra.mxu0 0
      %406 = vmatprep.subr.bf16.mxu0 0
      %407 = vmatpush1.bf16.msra.mxu0 0
      %408 = vmatprep.subr.bf16.mxu0 0
      %409 = vmatpush1.bf16.msra.mxu0 0
      %410 = vmatprep.subr.bf16.mxu0 0
      %411 = vmatpush1.bf16.msra.mxu0 0
      %412 = vmatprep.subr.bf16.mxu0 0
      %413 = vmatpush1.bf16.msra.mxu0 0
      %414 = vmatprep.subr.bf16.mxu0 0
      %415 = vmatpush1.bf16.msra.mxu0 0
      %416 = vmatprep.subr.bf16.mxu0 0
      %417 = vmatpush1.bf16.msra.mxu0 0
      %418 = vmatprep.subr.bf16.mxu0 0
      %419 = vmatpush1.bf16.msra.mxu0 0
      %420 = vmatprep.subr.bf16.mxu0 0
      %421 = vmatpush1.bf16.msra.mxu0 0
      %422 = vmatprep.subr.bf16.mxu0 0
      %423 = vmatpush1.bf16.msra.mxu0 0
      %424 = vmatprep.subr.bf16.mxu0 0
      %425 = vmatpush1.bf16.msra.mxu0 0
      %426 = vmatprep.mubr.bf16.mxu0 0
      %427 = vmatmul.mubr.bf16.gmra.mrb[0].mxu0 %v383
      %v428 = vpop.f32.mrb[0].mxu0
      %v429 = vadd.f32 %v336, %v428
      %v430 = vpop.f32.mrb[0].mxu0
      %v431 = vpop.f32.mrb[0].mxu0
      %v432 = vadd.f32 %v339, %v431
      %v433 = vpop.f32.mrb[0].mxu0
      %434 = vmatprep.mubr.bf16.mxu0 0
      %435 = vmatmul.mubr.bf16.gmra.mrb[0].mxu0 %v385
      %v436 = vpop.f32.mrb[0].mxu0
      %v437 = vadd.f32 %v344, %v436
      %v438 = vpop.f32.mrb[0].mxu0
      %v439 = vpop.f32.mrb[0].mxu0
      %v440 = vadd.f32 %v347, %v439
      %v441 = vpop.f32.mrb[0].mxu0
      %442 = vmatprep.mubr.bf16.mxu0 0
      %443 = vmatmul.mubr.bf16.gmra.mrb[0].mxu0 %v387
      %v444 = vpop.f32.mrb[0].mxu0
      %v445 = vadd.f32 %v352, %v444
      %v446 = vpop.f32.mrb[0].mxu0
      %v447 = vpop.f32.mrb[0].mxu0
      %v448 = vadd.f32 %v355, %v447
      %v449 = vpop.f32.mrb[0].mxu0
      %450 = vmatprep.mubr.bf16.mxu0 0
      %451 = vmatmul.mubr.bf16.gmra.mrb[0].mxu0 %v389
      %v452 = vpop.f32.mrb[0].mxu0
      %v453 = vadd.f32 %v360, %v452
      %v454 = vpop.f32.mrb[0].mxu0
      %v455 = vpop.f32.mrb[0].mxu0
      %v456 = vadd.f32 %v363, %v455
      %v457 = vpop.f32.mrb[0].mxu0
      %458 = vmatprep.mubr.bf16.mxu0 0
      %459 = vmatmul.mubr.bf16.gmra.mrb[0].mxu0 %v392
      %v460 = vpop.f32.mrb[0].mxu0
      %v461 = vadd.f32 %v368, %v460
      %v462 = vpop.f32.mrb[0].mxu0
      %v463 = vpop.f32.mrb[0].mxu0
      %v464 = vadd.f32 %v371, %v463
      %v465 = vpop.f32.mrb[0].mxu0
      %466 = vdwg.mxu0
      %v467 = vld [vmem:[%s192 + $0x4] sm:$0xe]
      %v468 = vld [vmem:[%s192 + $0x8] sm:$0xf]
      %v469 = vld [vmem:[%s192 + $0xc] sm:$0xf]
      %v470 = vld [vmem:[%s192 + $0x10] sm:$0xf]
      %v471 = vld [vmem:[%s192 + $0x14] sm:$0xf]
      %v472 = vld [vmem:[%s192 + $0x18] sm:$0xf]
      %v473 = vld [vmem:[%s192 + $0x1c] sm:$0xf]
      %v474 = vld [vmem:[%s192 + $0x20] sm:$0xf]
      %v475 = vld [vmem:[%s192 + $0x24] sm:$0xf]
      %v476 = vld [vmem:[%s192 + $0x28] sm:$0xf]
      %v477 = vld [vmem:[%s1 + $0x10] sm:$0xf]
      %v478 = vld [vmem:[%s1 + $0x14] sm:$0xf]
      %v489 = vunpack.c.l.b16 %v467
      %v490 = vunpack.c.l.b16 %v468
      %v491 = vunpack.c.l.b16 %v469
      %v492 = vunpack.c.l.b16 %v470
      %v493 = vunpack.c.l.b16 %v471
      %v494 = vunpack.c.l.b16 %v472
      %v495 = vunpack.c.l.b16 %v473
      %v496 = vunpack.c.l.b16 %v474
      %v497 = vunpack.c.l.b16 %v475
      %v498 = vunpack.c.l.b16 %v476
      %v499 = vpack.c.b16 %v490, %v489
      %v500 = vpack.c.b16 %v492, %v491
      %v501 = vpack.c.b16 %v494, %v493
      %v502 = vpack.c.b16 %v496, %v495
      %v503 = vpack.c.b16 %v498, %v497
      %vm504 = vcmask 1046528
      %v505 = vrot.slane %v499, 1
      %v506 = vrot.slane %v500, 1
      %v507 = vsel %vm504, %v505, %v506
      %v508 = vrot.slane %v501, 1
      %v509 = vsel %vm504, %v506, %v508
      %v510 = vrot.slane %v502, 1
      %v511 = vsel %vm504, %v508, %v510
      %v512 = vrot.slane %v503, 1
      %v513 = vsel %vm504, %v510, %v512
      %v516 = vunpack.c.l.b16 %v477
      %v517 = vunpack.c.l.b16 %v478
      %v518 = vpack.c.b16 %v517, %v516
      %v521 = vsel %vm285, %v507, 0
      %v524 = vsel %vm285, %v509, 0
      %v527 = vsel %vm285, %v511, 0
      %v530 = vsel %vm285, %v513, 0
      %v533 = vsel %vm285, %v512, 0
      %535 = vmatprep.subr.bf16.mxu0 0
      %536 = vmatpush1.bf16.msra.mxu0 %v518
      %537 = vmatprep.subr.bf16.mxu0 0
      %538 = vmatpush1.bf16.msra.mxu0 0
      %539 = vmatprep.subr.bf16.mxu0 0
      %540 = vmatpush1.bf16.msra.mxu0 0
      %541 = vmatprep.subr.bf16.mxu0 0
      %542 = vmatpush1.bf16.msra.mxu0 0
      %543 = vmatprep.subr.bf16.mxu0 0
      %544 = vmatpush1.bf16.msra.mxu0 0
      %545 = vmatprep.subr.bf16.mxu0 0
      %546 = vmatpush1.bf16.msra.mxu0 0
      %547 = vmatprep.subr.bf16.mxu0 0
      %548 = vmatpush1.bf16.msra.mxu0 0
      %549 = vmatprep.subr.bf16.mxu0 0
      %550 = vmatpush1.bf16.msra.mxu0 0
      %551 = vmatprep.subr.bf16.mxu0 0
      %552 = vmatpush1.bf16.msra.mxu0 0
      %553 = vmatprep.subr.bf16.mxu0 0
      %554 = vmatpush1.bf16.msra.mxu0 0
      %555 = vmatprep.subr.bf16.mxu0 0
      %556 = vmatpush1.bf16.msra.mxu0 0
      %557 = vmatprep.subr.bf16.mxu0 0
      %558 = vmatpush1.bf16.msra.mxu0 0
      %559 = vmatprep.subr.bf16.mxu0 0
      %560 = vmatpush1.bf16.msra.mxu0 0
      %561 = vmatprep.subr.bf16.mxu0 0
      %562 = vmatpush1.bf16.msra.mxu0 0
      %563 = vmatprep.subr.bf16.mxu0 0
      %564 = vmatpush1.bf16.msra.mxu0 0
      %565 = vmatprep.subr.bf16.mxu0 0
      %566 = vmatpush1.bf16.msra.mxu0 0
      %567 = vmatprep.mubr.bf16.mxu0 0
      %568 = vmatmul.mubr.bf16.gmra.mrb[0].mxu0 %v521
      %v569 = vpop.f32.mrb[0].mxu0
      %v570 = vadd.f32 0.0, %v569
      %v571 = vpop.f32.mrb[0].mxu0
      %v572 = vpop.f32.mrb[0].mxu0
      %v573 = vadd.f32 0.0, %v572
      %v574 = vpop.f32.mrb[0].mxu0
      %575 = vmatprep.mubr.bf16.mxu0 0
      %576 = vmatmul.mubr.bf16.gmra.mrb[0].mxu0 %v524
      %v577 = vpop.f32.mrb[0].mxu0
      %v578 = vadd.f32 0.0, %v577
      %v579 = vpop.f32.mrb[0].mxu0
      %v580 = vpop.f32.mrb[0].mxu0
      %v581 = vadd.f32 0.0, %v580
      %v582 = vpop.f32.mrb[0].mxu0
      %583 = vmatprep.mubr.bf16.mxu0 0
      %584 = vmatmul.mubr.bf16.gmra.mrb[0].mxu0 %v527
      %v585 = vpop.f32.mrb[0].mxu0
      %v586 = vadd.f32 0.0, %v585
      %v587 = vpop.f32.mrb[0].mxu0
      %v588 = vpop.f32.mrb[0].mxu0
      %v589 = vadd.f32 0.0, %v588
      %v590 = vpop.f32.mrb[0].mxu0
      %591 = vmatprep.mubr.bf16.mxu0 0
      %592 = vmatmul.mubr.bf16.gmra.mrb[0].mxu0 %v530
      %v593 = vpop.f32.mrb[0].mxu0
      %v594 = vadd.f32 0.0, %v593
      %v595 = vpop.f32.mrb[0].mxu0
      %v596 = vpop.f32.mrb[0].mxu0
      %v597 = vadd.f32 0.0, %v596
      %v598 = vpop.f32.mrb[0].mxu0
      %599 = vmatprep.mubr.bf16.mxu0 0
      %600 = vmatmul.mubr.bf16.gmra.mrb[0].mxu0 %v533
      %v601 = vpop.f32.mrb[0].mxu0
      %v602 = vadd.f32 0.0, %v601
      %v603 = vpop.f32.mrb[0].mxu0
      %v604 = vpop.f32.mrb[0].mxu0
      %v605 = vadd.f32 0.0, %v604
      %v606 = vpop.f32.mrb[0].mxu0
      %607 = vdwg.mxu0
      %v608 = vadd.f32 %v429, %v570
      %v609 = vadd.f32 %v432, %v573
      %v610 = vadd.f32 %v437, %v578
      %v611 = vadd.f32 %v440, %v581
      %v612 = vadd.f32 %v445, %v586
      %v613 = vadd.f32 %v448, %v589
      %v614 = vadd.f32 %v453, %v594
      %v615 = vadd.f32 %v456, %v597
      %v616 = vadd.f32 %v461, %v602
      %v617 = vadd.f32 %v464, %v605
      %v618 = vld [vmem:[%s192 + $0x4] sm:$0xe]
      %v619 = vld [vmem:[%s192 + $0x8] sm:$0xf]
      %v620 = vld [vmem:[%s192 + $0xc] sm:$0xf]
      %v621 = vld [vmem:[%s192 + $0x10] sm:$0xf]
      %v622 = vld [vmem:[%s192 + $0x14] sm:$0xf]
      %v623 = vld [vmem:[%s192 + $0x18] sm:$0xf]
      %v624 = vld [vmem:[%s192 + $0x1c] sm:$0xf]
      %v625 = vld [vmem:[%s192 + $0x20] sm:$0xf]
      %v626 = vld [vmem:[%s192 + $0x24] sm:$0xf]
      %v627 = vld [vmem:[%s192 + $0x28] sm:$0xf]
      %v628 = vld [vmem:[%s192 + $0x2c] sm:$0x1]
      %v629 = vld [vmem:[%s1 + $0x18] sm:$0xf]
      %v630 = vld [vmem:[%s1 + $0x1c] sm:$0xf]
      %v642 = vunpack.c.l.b16 %v618
      %v643 = vunpack.c.l.b16 %v619
      %v644 = vunpack.c.l.b16 %v620
      %v645 = vunpack.c.l.b16 %v621
      %v646 = vunpack.c.l.b16 %v622
      %v647 = vunpack.c.l.b16 %v623
      %v648 = vunpack.c.l.b16 %v624
      %v649 = vunpack.c.l.b16 %v625
      %v650 = vunpack.c.l.b16 %v626
      %v651 = vunpack.c.l.b16 %v627
      %v652 = vunpack.c.l.b16 %v628
      %v653 = vpack.c.b16 %v643, %v642
      %v654 = vpack.c.b16 %v645, %v644
      %v655 = vpack.c.b16 %v647, %v646
      %v656 = vpack.c.b16 %v649, %v648
      %v657 = vpack.c.b16 %v651, %v650
      %v658 = vpack.c.b16 %v652, %v652
      %vm659 = vsmask.f32 6400
      %v661 = vshrl.u32 %v653, 16
      %v663 = vrot.slane %v661, 1
      %v664 = vshll.u32 %v653, 16
      %v666 = vrot.slane %v664, 2
      %v667 = vor.u32 %v663, %v666
      %v669 = vshrl.u32 %v654, 16
      %v671 = vrot.slane %v669, 1
      %v672 = vshll.u32 %v654, 16
      %v674 = vrot.slane %v672, 2
      %v675 = vor.u32 %v671, %v674
      %v676 = vsel %vm659, %v667, %v675
      %v678 = vshrl.u32 %v655, 16
      %v680 = vrot.slane %v678, 1
      %v681 = vshll.u32 %v655, 16
      %v683 = vrot.slane %v681, 2
      %v684 = vor.u32 %v680, %v683
      %v685 = vsel %vm659, %v675, %v684
      %v687 = vshrl.u32 %v656, 16
      %v689 = vrot.slane %v687, 1
      %v690 = vshll.u32 %v656, 16
      %v692 = vrot.slane %v690, 2
      %v693 = vor.u32 %v689, %v692
      %v694 = vsel %vm659, %v684, %v693
      %v696 = vshrl.u32 %v657, 16
      %v698 = vrot.slane %v696, 1
      %v699 = vshll.u32 %v657, 16
      %v701 = vrot.slane %v699, 2
      %v702 = vor.u32 %v698, %v701
      %v703 = vsel %vm659, %v693, %v702
      %v705 = vshll.u32 %v658, 16
      %v707 = vrot.slane %v705, 2
      %v708 = vsel %vm659, %v702, %v707
      %v711 = vunpack.c.l.b16 %v629
      %v712 = vunpack.c.l.b16 %v630
      %v713 = vpack.c.b16 %v712, %v711
      %v716 = vsel %vm285, %v676, 0
      %v719 = vsel %vm285, %v685, 0
      %v722 = vsel %vm285, %v694, 0
      %v725 = vsel %vm285, %v703, 0
      %v728 = vsel %vm285, %v708, 0
      %730 = vmatprep.subr.bf16.mxu0 0
      %731 = vmatpush1.bf16.msra.mxu0 %v713
      %732 = vmatprep.subr.bf16.mxu0 0
      %733 = vmatpush1.bf16.msra.mxu0 0
      %734 = vmatprep.subr.bf16.mxu0 0
      %735 = vmatpush1.bf16.msra.mxu0 0
      %736 = vmatprep.subr.bf16.mxu0 0
      %737 = vmatpush1.bf16.msra.mxu0 0
      %738 = vmatprep.subr.bf16.mxu0 0
      %739 = vmatpush1.bf16.msra.mxu0 0
      %740 = vmatprep.subr.bf16.mxu0 0
      %741 = vmatpush1.bf16.msra.mxu0 0
      %742 = vmatprep.subr.bf16.mxu0 0
      %743 = vmatpush1.bf16.msra.mxu0 0
      %744 = vmatprep.subr.bf16.mxu0 0
      %745 = vmatpush1.bf16.msra.mxu0 0
      %746 = vmatprep.subr.bf16.mxu0 0
      %747 = vmatpush1.bf16.msra.mxu0 0
      %748 = vmatprep.subr.bf16.mxu0 0
      %749 = vmatpush1.bf16.msra.mxu0 0
      %750 = vmatprep.subr.bf16.mxu0 0
      %751 = vmatpush1.bf16.msra.mxu0 0
      %752 = vmatprep.subr.bf16.mxu0 0
      %753 = vmatpush1.bf16.msra.mxu0 0
      %754 = vmatprep.subr.bf16.mxu0 0
      %755 = vmatpush1.bf16.msra.mxu0 0
      %756 = vmatprep.subr.bf16.mxu0 0
      %757 = vmatpush1.bf16.msra.mxu0 0
      %758 = vmatprep.subr.bf16.mxu0 0
      %759 = vmatpush1.bf16.msra.mxu0 0
      %760 = vmatprep.subr.bf16.mxu0 0
      %761 = vmatpush1.bf16.msra.mxu0 0
      %762 = vmatprep.mubr.bf16.mxu0 0
      %763 = vmatmul.mubr.bf16.gmra.mrb[0].mxu0 %v716
      %v764 = vpop.f32.mrb[0].mxu0
      %v765 = vadd.f32 0.0, %v764
      %v766 = vpop.f32.mrb[0].mxu0
      %v767 = vpop.f32.mrb[0].mxu0
      %v768 = vadd.f32 0.0, %v767
      %v769 = vpop.f32.mrb[0].mxu0
      %770 = vmatprep.mubr.bf16.mxu0 0
      %771 = vmatmul.mubr.bf16.gmra.mrb[0].mxu0 %v719
      %v772 = vpop.f32.mrb[0].mxu0
      %v773 = vadd.f32 0.0, %v772
      %v774 = vpop.f32.mrb[0].mxu0
      %v775 = vpop.f32.mrb[0].mxu0
      %v776 = vadd.f32 0.0, %v775
      %v777 = vpop.f32.mrb[0].mxu0
      %778 = vmatprep.mubr.bf16.mxu0 0
      %779 = vmatmul.mubr.bf16.gmra.mrb[0].mxu0 %v722
      %v780 = vpop.f32.mrb[0].mxu0
      %v781 = vadd.f32 0.0, %v780
      %v782 = vpop.f32.mrb[0].mxu0
      %v783 = vpop.f32.mrb[0].mxu0
      %v784 = vadd.f32 0.0, %v783
      %v785 = vpop.f32.mrb[0].mxu0
      %786 = vmatprep.mubr.bf16.mxu0 0
      %787 = vmatmul.mubr.bf16.gmra.mrb[0].mxu0 %v725
      %v788 = vpop.f32.mrb[0].mxu0
      %v789 = vadd.f32 0.0, %v788
      %v790 = vpop.f32.mrb[0].mxu0
      %v791 = vpop.f32.mrb[0].mxu0
      %v792 = vadd.f32 0.0, %v791
      %v793 = vpop.f32.mrb[0].mxu0
      %794 = vmatprep.mubr.bf16.mxu0 0
      %795 = vmatmul.mubr.bf16.gmra.mrb[0].mxu0 %v728
      %v796 = vpop.f32.mrb[0].mxu0
      %v797 = vadd.f32 0.0, %v796
      %v798 = vpop.f32.mrb[0].mxu0
      %v799 = vpop.f32.mrb[0].mxu0
      %v800 = vadd.f32 0.0, %v799
      %v801 = vpop.f32.mrb[0].mxu0
      %802 = vdwg.mxu0
      %v803 = vadd.f32 %v608, %v765
      %v804 = vadd.f32 %v609, %v768
      %v805 = vadd.f32 %v610, %v773
      %v806 = vadd.f32 %v611, %v776
      %v807 = vadd.f32 %v612, %v781
      %v808 = vadd.f32 %v613, %v784
      %v809 = vadd.f32 %v614, %v789
      %v810 = vadd.f32 %v615, %v792
      %v811 = vadd.f32 %v616, %v797
      %v812 = vadd.f32 %v617, %v800
      %v813 = vld [vmem:[%s2] sm:$0x1]
      %v815 = vlaneseq
      %v816 = vshrl.u32 %v815, 7
      %v817 = vsub.s32 0, %v816
      %v818 = vrot.slane %v813, %v817
      %v820 = vadd.f32 %v803, %v818
      %v821 = vadd.f32 %v804, %v818
      %v822 = vadd.f32 %v805, %v818
      %v823 = vadd.f32 %v806, %v818
      %v824 = vadd.f32 %v807, %v818
      %v825 = vadd.f32 %v808, %v818
      %v826 = vadd.f32 %v809, %v818
      %v827 = vadd.f32 %v810, %v818
      %v828 = vadd.f32 %v811, %v818
      %v829 = vadd.f32 %v812, %v818
      %v830 = vmax.f32 %v820, 0.0
      %v831 = vmax.f32 %v821, 0.0
      %v832 = vmax.f32 %v822, 0.0
      %v833 = vmax.f32 %v823, 0.0
      %v834 = vmax.f32 %v824, 0.0
      %v835 = vmax.f32 %v825, 0.0
      %v836 = vmax.f32 %v826, 0.0
      %v837 = vmax.f32 %v827, 0.0
      %v838 = vmax.f32 %v828, 0.0
      %v839 = vmax.f32 %v829, 0.0
      %v840 = vld [vmem:[%s3] sm:$0xff]
      %v841 = vld [vmem:[%s3 + $0x8] sm:$0xff]
      %v842 = vld [vmem:[%s3 + $0x10] sm:$0xff]
      %v843 = vld [vmem:[%s3 + $0x18] sm:$0xff]
      %v844 = vld [vmem:[%s3 + $0x20] sm:$0xff]
      %v845 = vld [vmem:[%s3 + $0x28] sm:$0xff]
      %v846 = vld [vmem:[%s3 + $0x30] sm:$0xff]
      %v847 = vld [vmem:[%s3 + $0x38] sm:$0xff]
      %v848 = vld [vmem:[%s3 + $0x40] sm:$0xff]
      %v849 = vld [vmem:[%s3 + $0x48] sm:$0x3f]
      %851 = vset.pattern.permute.xlu0 0
      %852 = vperm.xlu0 %851, %v840
      %v853 = vpop.permute.xlu0 %852
      %856 = vset.pattern.permute.xlu0 0
      %857 = vperm.xlu0 %856, %v841
      %v858 = vpop.permute.xlu0 %857
      %861 = vset.pattern.permute.xlu0 0
      %862 = vperm.xlu0 %861, %v842
      %v863 = vpop.permute.xlu0 %862
      %866 = vset.pattern.permute.xlu0 0
      %867 = vperm.xlu0 %866, %v843
      %v868 = vpop.permute.xlu0 %867
      %871 = vset.pattern.permute.xlu0 0
      %872 = vperm.xlu0 %871, %v844
      %v873 = vpop.permute.xlu0 %872
      %876 = vset.pattern.permute.xlu0 0
      %877 = vperm.xlu0 %876, %v845
      %v878 = vpop.permute.xlu0 %877
      %881 = vset.pattern.permute.xlu0 0
      %882 = vperm.xlu0 %881, %v846
      %v883 = vpop.permute.xlu0 %882
      %886 = vset.pattern.permute.xlu0 0
      %887 = vperm.xlu0 %886, %v847
      %v888 = vpop.permute.xlu0 %887
      %891 = vset.pattern.permute.xlu0 0
      %892 = vperm.xlu0 %891, %v848
      %v893 = vpop.permute.xlu0 %892
      %896 = vset.pattern.permute.xlu0 0
      %897 = vperm.xlu0 %896, %v849
      %v898 = vpop.permute.xlu0 %897
      %v900 = vmul.f32 %v830, %v853
      %v901 = vmul.f32 %v831, %v858
      %v902 = vmul.f32 %v832, %v863
      %v903 = vmul.f32 %v833, %v868
      %v904 = vmul.f32 %v834, %v873
      %v905 = vmul.f32 %v835, %v878
      %v906 = vmul.f32 %v836, %v883
      %v907 = vmul.f32 %v837, %v888
      %v908 = vmul.f32 %v838, %v893
      %v909 = vmul.f32 %v839, %v898
      %910 = vst [vmem:[%s197] sm:$0xf] 0
      %911 = vst [vmem:[%s197 + $0x4] sm:$0xf] 0
      %912 = vst [vmem:[%s197 + $0x8] sm:$0xf] 0
      %913 = vst [vmem:[%s197 + $0xc] sm:$0xf] 0
      %914 = vst [vmem:[%s197 + $0x10] sm:$0xf] 0
      %915 = vst [vmem:[%s197 + $0x14] sm:$0xf] 0
      %916 = vst [vmem:[%s197 + $0x18] sm:$0xf] 0
      %917 = vst [vmem:[%s197 + $0x1c] sm:$0xf] 0
      %918 = vst [vmem:[%s197 + $0x20] sm:$0xf] 0
      %919 = vst [vmem:[%s197 + $0x24] sm:$0xf] 0
      %920 = vst [vmem:[%s197 + $0x28] sm:$0xf] 0
      %921 = vst [vmem:[%s197 + $0x2c] sm:$0xf] 0
      %922 = vst [vmem:[%s197 + $0x30] sm:$0x3] 0
      %v923 = vpack.c.bf16 %v901, %v900
      %v924 = vpack.c.bf16 %v903, %v902
      %v925 = vpack.c.bf16 %v905, %v904
      %v926 = vpack.c.bf16 %v907, %v906
      %v927 = vpack.c.bf16 %v909, %v908
      %v933 = vunpack.c.l.b16 %v923
      %v934 = vunpack.c.h.b16 %v923
      %v935 = vunpack.c.l.b16 %v924
      %v936 = vunpack.c.h.b16 %v924
      %v937 = vunpack.c.l.b16 %v925
      %v938 = vunpack.c.h.b16 %v925
      %v939 = vunpack.c.l.b16 %v926
      %v940 = vunpack.c.h.b16 %v926
      %v941 = vunpack.c.l.b16 %v927
      %v942 = vunpack.c.h.b16 %v927
      %v943 = vpack.c.b16 %v933, %v933
      %v944 = vpack.c.b16 %v934, %v934
      %v945 = vpack.c.b16 %v935, %v935
      %v946 = vpack.c.b16 %v936, %v936
      %v947 = vpack.c.b16 %v937, %v937
      %v948 = vpack.c.b16 %v938, %v938
      %v949 = vpack.c.b16 %v939, %v939
      %v950 = vpack.c.b16 %v940, %v940
      %v951 = vpack.c.b16 %v941, %v941
      %v952 = vpack.c.b16 %v942, %v942
      %vm953 = vsmask.f32 1280
      %vm954 = vsmask.f32 5392
      %vm955 = vmor %vm953, %vm954
      %v957 = vshrl.u32 %v943, 16
      %v959 = vrot.slane %v957, 6
      %v960 = vshll.u32 %v943, 16
      %v962 = vrot.slane %v960, 7
      %v963 = vor.u32 %v959, %v962
      %v964 = vrot.slane %v963, 4
      %v966 = vshrl.u32 %v944, 16
      %v968 = vrot.slane %v966, 6
      %v969 = vshll.u32 %v944, 16
      %v971 = vrot.slane %v969, 7
      %v972 = vor.u32 %v968, %v971
      %v973 = vsel %vm955, %v964, %v972
      %v974 = vrot.slane %v972, 4
      %v976 = vshrl.u32 %v945, 16
      %v978 = vrot.slane %v976, 6
      %v979 = vshll.u32 %v945, 16
      %v981 = vrot.slane %v979, 7
      %v982 = vor.u32 %v978, %v981
      %v983 = vsel %vm955, %v974, %v982
      %v984 = vrot.slane %v982, 4
      %v986 = vshrl.u32 %v946, 16
      %v988 = vrot.slane %v986, 6
      %v989 = vshll.u32 %v946, 16
      %v991 = vrot.slane %v989, 7
      %v992 = vor.u32 %v988, %v991
      %v993 = vsel %vm955, %v984, %v992
      %v994 = vrot.slane %v992, 4
      %v996 = vshrl.u32 %v947, 16
      %v998 = vrot.slane %v996, 6
      %v999 = vshll.u32 %v947, 16
      %v1001 = vrot.slane %v999, 7
      %v1002 = vor.u32 %v998, %v1001
      %v1003 = vsel %vm955, %v994, %v1002
      %v1004 = vrot.slane %v1002, 4
      %v1006 = vshrl.u32 %v948, 16
      %v1008 = vrot.slane %v1006, 6
      %v1009 = vshll.u32 %v948, 16
      %v1011 = vrot.slane %v1009, 7
      %v1012 = vor.u32 %v1008, %v1011
      %v1013 = vsel %vm955, %v1004, %v1012
      %v1014 = vrot.slane %v1012, 4
      %v1016 = vshrl.u32 %v949, 16
      %v1018 = vrot.slane %v1016, 6
      %v1019 = vshll.u32 %v949, 16
      %v1021 = vrot.slane %v1019, 7
      %v1022 = vor.u32 %v1018, %v1021
      %v1023 = vsel %vm955, %v1014, %v1022
      %v1024 = vrot.slane %v1022, 4
      %v1026 = vshrl.u32 %v950, 16
      %v1028 = vrot.slane %v1026, 6
      %v1029 = vshll.u32 %v950, 16
      %v1031 = vrot.slane %v1029, 7
      %v1032 = vor.u32 %v1028, %v1031
      %v1033 = vsel %vm955, %v1024, %v1032
      %v1034 = vrot.slane %v1032, 4
      %v1036 = vshrl.u32 %v951, 16
      %v1038 = vrot.slane %v1036, 6
      %v1039 = vshll.u32 %v951, 16
      %v1041 = vrot.slane %v1039, 7
      %v1042 = vor.u32 %v1038, %v1041
      %v1043 = vsel %vm955, %v1034, %v1042
      %v1044 = vrot.slane %v1042, 4
      %v1046 = vshrl.u32 %v952, 16
      %v1048 = vrot.slane %v1046, 6
      %v1049 = vshll.u32 %v952, 16
      %v1051 = vrot.slane %v1049, 7
      %v1052 = vor.u32 %v1048, %v1051
      %v1053 = vsel %vm955, %v1044, %v1052
      %v1054 = vrot.slane %v1048, 4
      %vm1066 = vcmask 1043457
      %vm1067 = vsmask.f32 7942
      %vm1068 = vmand %vm1066, %vm1067
      %v1069 = vld [vmem:[%s197 + $0x4] sm:$0xe]
      %v1070 = vsel %vm1068, %v963, %v1069
      %1071 = vst [vmem:[%s197 + $0x4] sm:$0xe] %v1070
      %1072 = vst [vmem:[%s197 + $0x8] sm:$0xf] %v973
      %1073 = vst [vmem:[%s197 + $0xc] sm:$0xf] %v983
      %1074 = vst [vmem:[%s197 + $0x10] sm:$0xf] %v993
      %1075 = vst [vmem:[%s197 + $0x14] sm:$0xf] %v1003
      %1076 = vst [vmem:[%s197 + $0x18] sm:$0xf] %v1013
      %1077 = vst [vmem:[%s197 + $0x1c] sm:$0xf] %v1023
      %1078 = vst [vmem:[%s197 + $0x20] sm:$0xf] %v1033
      %1079 = vst [vmem:[%s197 + $0x24] sm:$0xf] %v1043
      %1080 = vst [vmem:[%s197 + $0x28] sm:$0xf] %v1053
      %vm1081 = vcmask 1040384
      %vm1082 = vsmask.f32 256
      %vm1083 = vmand %vm1081, %vm1082
      %v1084 = vld [vmem:[%s197 + $0x2c] sm:$0x1]
      %v1085 = vsel %vm1083, %v1054, %v1084
      %1086 = vst [vmem:[%s197 + $0x2c] sm:$0x1] %v1085
      %p1087 = scmp.lt.s32.totalorder %s15, 1
      %s1088 = scalar_select %p1087, %s15, 1
      %s1089 = smul.addr %s1088, 13
      %s1090 = smul.addr %s1089, 4
      %s1091 = scalar_lea.vmem %s4, %s1090
      // Predicated region
      $region37: #{stem_forward.3} parent=35 // pred_check
        %p1092 = pneg %p122
      $region38: #{stem_forward.3} parent=35 // pred_check_branch
        %1094 = sbr.rel (%p1092) target = $region40
      $region39: #{stem_forward.3} parent=35 // pred_region
        _
      $region40: #{stem_forward.3} parent=35 // pred_fallthru
        _
    $region36: #{stem_forward.3} parent=5 // pred_fallthru
      _
    %p1095 = scmp.le.s32.totalorder 2, %s10
    // Predicated region
    $region41: #{stem_forward.3} parent=5 // pred_check
      %p1096 = pneg %p1095
    $region42: #{stem_forward.3} parent=5 // pred_check_branch
      %1098 = sbr.rel (%p1096) target = $region44
    $region43: #{stem_forward.3} parent=5 // pred_region
      %s1099 = ssub.s32 %s10, 2
      // Predicated region
      $region45: #{stem_forward.3} parent=43 // pred_check
        %p1100 = pneg %p128
      $region46: #{stem_forward.3} parent=43 // pred_check_branch
        %1102 = sbr.rel (%p1100) target = $region48
      $region47: #{stem_forward.3} parent=43 // pred_region
        %p1103 = scmp.lt.s32.totalorder %s16, 1
        %s1104 = scalar_select %p1103, %s16, 1
        %s1105 = smul.addr %s1104, 13
        %s1106 = smul.addr %s1105, 4
        %s1107 = scalar_lea.vmem %s4, %s1106
      $region48: #{stem_forward.3} parent=43 // pred_fallthru
        _
    $region44: #{stem_forward.3} parent=5 // pred_fallthru
      _
  $region6: #{stem_forward.3} parent=0 // loop_footer
    %s14 = sadd.s32 1, %s10
  $region7: #{stem_forward.3} parent=0 // loop_footer_branch
    %9 = sbr.rel target = $region3
  $region8: #{stem_forward.3} parent=0 // loop_exit
    _

// kernel: stem_forward.5
$region0: #{stem_forward.5}
  #allocation0 [shape = 'u32[]', space=smem, size = 0x4, offset = 0x4, fixed_abs, tag = 'smem constant byte address 0x4 - core index']
  #allocation1 [shape = 'u32[144,128]{1,0:T(1,128)}', space=vmem, size = 0x12000, scoped, tag = 'internal scratch']
  %s0 = inlined_call_operand.vmem [shape: bf16[2,25,512], index: 0, kind: input, shape index: {}]
  %s1 = inlined_call_operand.vmem [shape: bf16[2048,128], index: 1, kind: input, shape index: {}]
  %s2 = inlined_call_operand.vmem [shape: f32[1,128], index: 2, kind: input, shape index: {}]
  %s3 = inlined_call_operand.vmem [shape: bf16[128,128], index: 3, kind: input, shape index: {}]
  %s4 = inlined_call_operand.vmem [shape: f32[1,128], index: 4, kind: input, shape index: {}]
  %s5 = inlined_call_operand.vmem [shape: f32[2,20,128], index: 5, kind: output, shape index: {}]
  %s6 = sld [smem:[#allocation0]]
  $region53: #{stem_forward.5} parent=0
    _
  %s8 = ssub.s32 1, %s6
  %s9 = scalar_select 0, %s8, %s6
  loop: start=0, step=1, limit=4
  $region2: #{stem_forward.5} parent=0 // loop_pre_header
    _
  $region3: #{stem_forward.5} parent=0 // loop_header
    %s11 = sphi 0, %s15
    %p12 = scmp.ge.s32.totalorder %s11, 4
    %s21 = sphi 0, %s23
    %s24 = sphi 0, %s21
    %s25 = sphi 0, %s24
    %s41 = sphi 0, %s25
    %s45 = sphi 0, %s45
    %s47 = sphi 0, %s45
    %s48 = sphi 0, %s47
    %s62 = sphi 0, %s48
    %s66 = sphi 0, %s66
    %s68 = sphi 0, %s66
    %s69 = sphi 0, %s68
    %s83 = sphi 0, %s69
    %s87 = sphi 0, %s87
    %s89 = sphi 0, %s87
    %s90 = sphi 0, %s89
    %s104 = sphi 0, %s90
    %s108 = sphi 0, %s108
    %s110 = sphi 0, %s108
    %s111 = sphi 0, %s110
    %s125 = sphi 0, %s111
    %s131 = sphi 0, %s133
    %s134 = sphi 0, %s131
    %s135 = sphi 0, %s134
    %s151 = sphi 0, %s135
  $region4: #{stem_forward.5} parent=0 // loop_header_branch
    %14 = sbr.rel (%p12) target = $region8
  $region5: #{stem_forward.5} parent=0 // loop_body
    %s16 = ssub.s32 %s11, 1
    %s17 = ssub.s32 %s11, 2
    %s18 = sadd.s32 %s11, 1
    %s19 = ssub.s32 %s11, %s18
    %p20 = scmp.eq.s32.totalorder %s19, 0
    %s22 = sadd.s32 %s21, 1
    %s23 = scalar_select %p20, %s21, %s22
    %p26 = pneg %p20
    %p27 = scmp.eq.s32.totalorder %s11, 1
    %p28 = por %p26, %p27
    %p29 = scmp.ne.s32.totalorder %s21, %s24
    %p30 = scmp.eq.s32.totalorder %s11, 0
    %p31 = por %p29, %p30
    %p32 = scmp.ne.s32.totalorder %s21, %s24
    %p33 = scmp.eq.s32.totalorder %s16, 1
    %p34 = por %p32, %p33
    %p35 = scmp.ne.s32.totalorder %s24, %s25
    %p36 = scmp.eq.s32.totalorder %s16, 0
    %p37 = por %p35, %p36
    %p38 = scmp.ne.s32.totalorder %s24, %s25
    %p39 = scmp.eq.s32.totalorder %s17, 1
    %p40 = por %p38, %p39
    %p42 = scmp.ne.s32.totalorder %s25, %s41
    %p43 = scmp.eq.s32.totalorder %s17, 0
    %p44 = por %p42, %p43
    %s46 = sadd.s32 %s45, 1
    %p49 = scmp.eq.s32.totalorder %s11, 1
    %p50 = scmp.ne.s32.totalorder %s45, %s47
    %p51 = scmp.eq.s32.totalorder %s11, 0
    %p52 = por %p50, %p51
    %p53 = scmp.ne.s32.totalorder %s45, %s47
    %p54 = scmp.eq.s32.totalorder %s16, 1
    %p55 = por %p53, %p54
    %p56 = scmp.ne.s32.totalorder %s47, %s48
    %p57 = scmp.eq.s32.totalorder %s16, 0
    %p58 = por %p56, %p57
    %p59 = scmp.ne.s32.totalorder %s47, %s48
    %p60 = scmp.eq.s32.totalorder %s17, 1
    %p61 = por %p59, %p60
    %p63 = scmp.ne.s32.totalorder %s48, %s62
    %p64 = scmp.eq.s32.totalorder %s17, 0
    %p65 = por %p63, %p64
    %s67 = sadd.s32 %s66, 1
    %p70 = scmp.eq.s32.totalorder %s11, 1
    %p71 = scmp.ne.s32.totalorder %s66, %s68
    %p72 = scmp.eq.s32.totalorder %s11, 0
    %p73 = por %p71, %p72
    %p74 = scmp.ne.s32.totalorder %s66, %s68
    %p75 = scmp.eq.s32.totalorder %s16, 1
    %p76 = por %p74, %p75
    %p77 = scmp.ne.s32.totalorder %s68, %s69
    %p78 = scmp.eq.s32.totalorder %s16, 0
    %p79 = por %p77, %p78
    %p80 = scmp.ne.s32.totalorder %s68, %s69
    %p81 = scmp.eq.s32.totalorder %s17, 1
    %p82 = por %p80, %p81
    %p84 = scmp.ne.s32.totalorder %s69, %s83
    %p85 = scmp.eq.s32.totalorder %s17, 0
    %p86 = por %p84, %p85
    %s88 = sadd.s32 %s87, 1
    %p91 = scmp.eq.s32.totalorder %s11, 1
    %p92 = scmp.ne.s32.totalorder %s87, %s89
    %p93 = scmp.eq.s32.totalorder %s11, 0
    %p94 = por %p92, %p93
    %p95 = scmp.ne.s32.totalorder %s87, %s89
    %p96 = scmp.eq.s32.totalorder %s16, 1
    %p97 = por %p95, %p96
    %p98 = scmp.ne.s32.totalorder %s89, %s90
    %p99 = scmp.eq.s32.totalorder %s16, 0
    %p100 = por %p98, %p99
    %p101 = scmp.ne.s32.totalorder %s89, %s90
    %p102 = scmp.eq.s32.totalorder %s17, 1
    %p103 = por %p101, %p102
    %p105 = scmp.ne.s32.totalorder %s90, %s104
    %p106 = scmp.eq.s32.totalorder %s17, 0
    %p107 = por %p105, %p106
    %s109 = sadd.s32 %s108, 1
    %p112 = scmp.eq.s32.totalorder %s11, 1
    %p113 = scmp.ne.s32.totalorder %s108, %s110
    %p114 = scmp.eq.s32.totalorder %s11, 0
    %p115 = por %p113, %p114
    %p116 = scmp.ne.s32.totalorder %s108, %s110
    %p117 = scmp.eq.s32.totalorder %s16, 1
    %p118 = por %p116, %p117
    %p119 = scmp.ne.s32.totalorder %s110, %s111
    %p120 = scmp.eq.s32.totalorder %s16, 0
    %p121 = por %p119, %p120
    %p122 = scmp.ne.s32.totalorder %s110, %s111
    %p123 = scmp.eq.s32.totalorder %s17, 1
    %p124 = por %p122, %p123
    %p126 = scmp.ne.s32.totalorder %s111, %s125
    %p127 = scmp.eq.s32.totalorder %s17, 0
    %p128 = por %p126, %p127
    %s129 = ssub.s32 %s11, %s18
    %p130 = scmp.eq.s32.totalorder %s129, 0
    %s132 = sadd.s32 %s131, 1
    %s133 = scalar_select %p130, %s131, %s132
    %p136 = pneg %p130
    %p137 = scmp.eq.s32.totalorder %s11, 1
    %p138 = por %p136, %p137
    %p139 = scmp.ne.s32.totalorder %s131, %s134
    %p140 = scmp.eq.s32.totalorder %s11, 0
    %p141 = por %p139, %p140
    %p142 = scmp.ne.s32.totalorder %s131, %s134
    %p143 = scmp.eq.s32.totalorder %s16, 1
    %p144 = por %p142, %p143
    %p145 = scmp.ne.s32.totalorder %s134, %s135
    %p146 = scmp.eq.s32.totalorder %s16, 0
    %p147 = por %p145, %p146
    %p148 = scmp.ne.s32.totalorder %s134, %s135
    %p149 = scmp.eq.s32.totalorder %s17, 1
    %p150 = por %p148, %p149
    %p152 = scmp.ne.s32.totalorder %s135, %s151
    %p153 = scmp.eq.s32.totalorder %s17, 0
    %p154 = por %p152, %p153
    %p155 = scmp.le.s32.totalorder 1, %s11
    %p156 = scmp.lt.s32.totalorder %s11, 3
    %p157 = pnand %p155, %p156
    %p158 = pneg %p157
    // Predicated region
    $region9: #{stem_forward.5} parent=5 // pred_check
      _
    $region10: #{stem_forward.5} parent=5 // pred_check_branch
      %160 = sbr.rel (%p157) target = $region12
    $region11: #{stem_forward.5} parent=5 // pred_region
      %s161 = ssub.s32 %s11, 1
      // Predicated region
      $region13: #{stem_forward.5} parent=11 // pred_check
        %p162 = pneg %p58
      $region14: #{stem_forward.5} parent=11 // pred_check_branch
        %164 = sbr.rel (%p162) target = $region16
      $region15: #{stem_forward.5} parent=11 // pred_region
        _
      $region16: #{stem_forward.5} parent=11 // pred_fallthru
        _
      // Predicated region
      $region17: #{stem_forward.5} parent=11 // pred_check
        %p165 = pneg %p79
      $region18: #{stem_forward.5} parent=11 // pred_check_branch
        %167 = sbr.rel (%p165) target = $region20
      $region19: #{stem_forward.5} parent=11 // pred_region
        _
      $region20: #{stem_forward.5} parent=11 // pred_fallthru
        _
      // Predicated region
      $region21: #{stem_forward.5} parent=11 // pred_check
        %p168 = pneg %p100
      $region22: #{stem_forward.5} parent=11 // pred_check_branch
        %170 = sbr.rel (%p168) target = $region24
      $region23: #{stem_forward.5} parent=11 // pred_region
        _
      $region24: #{stem_forward.5} parent=11 // pred_fallthru
        _
      // Predicated region
      $region25: #{stem_forward.5} parent=11 // pred_check
        %p171 = pneg %p121
      $region26: #{stem_forward.5} parent=11 // pred_check_branch
        %173 = sbr.rel (%p171) target = $region28
      $region27: #{stem_forward.5} parent=11 // pred_region
        _
      $region28: #{stem_forward.5} parent=11 // pred_fallthru
        _
    $region12: #{stem_forward.5} parent=5 // pred_fallthru
      _
    %p174 = scmp.lt.s32.totalorder %s11, 2
    // Predicated region
    $region29: #{stem_forward.5} parent=5 // pred_check
      %p175 = pneg %p174
    $region30: #{stem_forward.5} parent=5 // pred_check_branch
      %177 = sbr.rel (%p175) target = $region32
    $region31: #{stem_forward.5} parent=5 // pred_region
      // Predicated region
      $region33: #{stem_forward.5} parent=31 // pred_check
        %p178 = pneg %p31
      $region34: #{stem_forward.5} parent=31 // pred_check_branch
        %180 = sbr.rel (%p178) target = $region36
      $region35: #{stem_forward.5} parent=31 // pred_region
        %p181 = scmp.lt.s32.totalorder %s11, 1
        %s182 = scalar_select %p181, %s11, 1
        %s183 = smul.addr %s182, 16
        %s184 = smul.addr %s183, 4
        %s185 = scalar_lea.vmem %s0, %s184
      $region36: #{stem_forward.5} parent=31 // pred_fallthru
        _
    $region32: #{stem_forward.5} parent=5 // pred_fallthru
      _
    %p186 = scmp.le.s32.totalorder 1, %s11
    %p187 = scmp.lt.s32.totalorder %s11, 3
    %p188 = pnand %p186, %p187
    %p189 = pneg %p188
    // Predicated region
    $region37: #{stem_forward.5} parent=5 // pred_check
      _
    $region38: #{stem_forward.5} parent=5 // pred_check_branch
      %191 = sbr.rel (%p188) target = $region40
    $region39: #{stem_forward.5} parent=5 // pred_region
      %s192 = ssub.s32 %s11, 1
      %p193 = scmp.lt.s32.totalorder %s16, 1
      %s194 = scalar_select %p193, %s16, 1
      %s195 = smul.addr %s194, 16
      %s196 = smul.addr %s195, 4
      %s197 = scalar_lea.vmem %s0, %s196
      %p198 = pneg %p37
      %p199 = pneg %p34
      %p200 = pneg %p58
      %p201 = pneg %p55
      %p202 = pneg %p79
      %p203 = pneg %p76
      %p204 = pneg %p100
      %p205 = pneg %p97
      %p206 = pneg %p121
      %p207 = pneg %p118
      %p208 = pneg %p147
      %p209 = pneg %p144
      %p210 = scmp.lt.s32.totalorder %s16, 1
      %s211 = scalar_select %p210, %s16, 1
      %s212 = smul.addr %s211, 3
      %s213 = smul.addr %s212, 8
      %s214 = scalar_lea.vmem %s5, %s213
      %p215 = scmp.lt.s32.totalorder %s16, 1
      %s216 = scalar_select %p215, %s16, 1
      %s217 = smul.addr %s216, 16
      %s218 = smul.addr %s217, 4
      %s219 = scalar_lea.vmem %s0, %s218
      %p220 = scmp.lt.s32.totalorder %s16, 1
      %s221 = scalar_select %p220, %s16, 1
      %s222 = smul.addr %s221, 3
      %s223 = smul.addr %s222, 8
      %s224 = scalar_lea.vmem %s5, %s223
      %v226 = vld [vmem:[%s219] sm:$0xff]
      %v227 = vld [vmem:[%s219 + $0x8] sm:$0xff]
      %v228 = vld [vmem:[%s219 + $0x10] sm:$0xff]
      %v229 = vld [vmem:[%s219 + $0x18] sm:$0xff]
      %v230 = vld [vmem:[%s219 + $0x20] sm:$0x33]
      %v231 = vld [vmem:[%s219 + $0x28] sm:$0x33]
      %v232 = vld [vmem:[%s1] sm:$0xf]
      %v233 = vld [vmem:[%s1 + $0x4] sm:$0xf]
      %v234 = vld [vmem:[%s1 + $0x8] sm:$0xf]
      %v235 = vld [vmem:[%s1 + $0xc] sm:$0xf]
      %v236 = vld [vmem:[%s1 + $0x10] sm:$0xf]
      %v237 = vld [vmem:[%s1 + $0x14] sm:$0xf]
      %v238 = vld [vmem:[%s1 + $0x18] sm:$0xf]
      %v239 = vld [vmem:[%s1 + $0x1c] sm:$0xf]
      %v240 = vld [vmem:[%s1 + $0x20] sm:$0xf]
      %v241 = vld [vmem:[%s1 + $0x24] sm:$0xf]
      %v242 = vld [vmem:[%s1 + $0x28] sm:$0xf]
      %v243 = vld [vmem:[%s1 + $0x2c] sm:$0xf]
      %v244 = vld [vmem:[%s1 + $0x30] sm:$0xf]
      %v245 = vld [vmem:[%s1 + $0x34] sm:$0xf]
      %v246 = vld [vmem:[%s1 + $0x38] sm:$0xf]
      %v247 = vld [vmem:[%s1 + $0x3c] sm:$0xf]
      %v248 = vld [vmem:[%s1 + $0x40] sm:$0xf]
      %v249 = vld [vmem:[%s1 + $0x44] sm:$0xf]
      %v250 = vld [vmem:[%s1 + $0x48] sm:$0xf]
      %v251 = vld [vmem:[%s1 + $0x4c] sm:$0xf]
      %v252 = vld [vmem:[%s1 + $0x50] sm:$0xf]
      %v253 = vld [vmem:[%s1 + $0x54] sm:$0xf]
      %v254 = vld [vmem:[%s1 + $0x58] sm:$0xf]
      %v255 = vld [vmem:[%s1 + $0x5c] sm:$0xf]
      %v256 = vld [vmem:[%s1 + $0x60] sm:$0xf]
      %v257 = vld [vmem:[%s1 + $0x64] sm:$0xf]
      %v258 = vld [vmem:[%s1 + $0x68] sm:$0xf]
      %v259 = vld [vmem:[%s1 + $0x6c] sm:$0xf]
      %v260 = vld [vmem:[%s1 + $0x70] sm:$0xf]
      %v261 = vld [vmem:[%s1 + $0x74] sm:$0xf]
      %v262 = vld [vmem:[%s1 + $0x78] sm:$0xf]
      %v263 = vld [vmem:[%s1 + $0x7c] sm:$0xf]
      %v264 = vld [vmem:[%s1 + $0x80] sm:$0xf]
      %v265 = vld [vmem:[%s1 + $0x84] sm:$0xf]
      %v266 = vld [vmem:[%s1 + $0x88] sm:$0xf]
      %v267 = vld [vmem:[%s1 + $0x8c] sm:$0xf]
      %v268 = vld [vmem:[%s1 + $0x90] sm:$0xf]
      %v269 = vld [vmem:[%s1 + $0x94] sm:$0xf]
      %v270 = vld [vmem:[%s1 + $0x98] sm:$0xf]
      %v271 = vld [vmem:[%s1 + $0x9c] sm:$0xf]
      %v272 = vld [vmem:[%s1 + $0xa0] sm:$0xf]
      %v273 = vld [vmem:[%s1 + $0xa4] sm:$0xf]
      %v274 = vld [vmem:[%s1 + $0xa8] sm:$0xf]
      %v275 = vld [vmem:[%s1 + $0xac] sm:$0xf]
      %v276 = vld [vmem:[%s1 + $0xb0] sm:$0xf]
      %v277 = vld [vmem:[%s1 + $0xb4] sm:$0xf]
      %v278 = vld [vmem:[%s1 + $0xb8] sm:$0xf]
      %v279 = vld [vmem:[%s1 + $0xbc] sm:$0xf]
      %v280 = vld [vmem:[%s1 + $0xc0] sm:$0xf]
      %v281 = vld [vmem:[%s1 + $0xc4] sm:$0xf]
      %v282 = vld [vmem:[%s1 + $0xc8] sm:$0xf]
      %v283 = vld [vmem:[%s1 + $0xcc] sm:$0xf]
      %v284 = vld [vmem:[%s1 + $0xd0] sm:$0xf]
      %v285 = vld [vmem:[%s1 + $0xd4] sm:$0xf]
      %v286 = vld [vmem:[%s1 + $0xd8] sm:$0xf]
      %v287 = vld [vmem:[%s1 + $0xdc] sm:$0xf]
      %v288 = vld [vmem:[%s1 + $0xe0] sm:$0xf]
      %v289 = vld [vmem:[%s1 + $0xe4] sm:$0xf]
      %v290 = vld [vmem:[%s1 + $0xe8] sm:$0xf]
      %v291 = vld [vmem:[%s1 + $0xec] sm:$0xf]
      %v292 = vld [vmem:[%s1 + $0xf0] sm:$0xf]
      %v293 = vld [vmem:[%s1 + $0xf4] sm:$0xf]
      %v294 = vld [vmem:[%s1 + $0xf8] sm:$0xf]
      %v295 = vld [vmem:[%s1 + $0xfc] sm:$0xf]
      %v296 = vld [vmem:[%s1 + $0x100] sm:$0xf]
      %v297 = vld [vmem:[%s1 + $0x104] sm:$0xf]
      %v298 = vld [vmem:[%s1 + $0x108] sm:$0xf]
      %v299 = vld [vmem:[%s1 + $0x10c] sm:$0xf]
      %v300 = vld [vmem:[%s1 + $0x110] sm:$0xf]
      %v301 = vld [vmem:[%s1 + $0x114] sm:$0xf]
      %v302 = vld [vmem:[%s1 + $0x118] sm:$0xf]
      %v303 = vld [vmem:[%s1 + $0x11c] sm:$0xf]
      %v304 = vld [vmem:[%s1 + $0x120] sm:$0xf]
      %v305 = vld [vmem:[%s1 + $0x124] sm:$0xf]
      %v306 = vld [vmem:[%s1 + $0x128] sm:$0xf]
      %v307 = vld [vmem:[%s1 + $0x12c] sm:$0xf]
      %v308 = vld [vmem:[%s1 + $0x130] sm:$0xf]
      %v309 = vld [vmem:[%s1 + $0x134] sm:$0xf]
      %v310 = vld [vmem:[%s1 + $0x138] sm:$0xf]
      %v311 = vld [vmem:[%s1 + $0x13c] sm:$0xf]
      %v312 = vld [vmem:[%s1 + $0x140] sm:$0xf]
      %v313 = vld [vmem:[%s1 + $0x144] sm:$0xf]
      %v314 = vld [vmem:[%s1 + $0x148] sm:$0xf]
      %v315 = vld [vmem:[%s1 + $0x14c] sm:$0xf]
      %v316 = vld [vmem:[%s1 + $0x150] sm:$0xf]
      %v317 = vld [vmem:[%s1 + $0x154] sm:$0xf]
      %v318 = vld [vmem:[%s1 + $0x158] sm:$0xf]
      %v319 = vld [vmem:[%s1 + $0x15c] sm:$0xf]
      %v320 = vld [vmem:[%s1 + $0x160] sm:$0xf]
      %v321 = vld [vmem:[%s1 + $0x164] sm:$0xf]
      %v322 = vld [vmem:[%s1 + $0x168] sm:$0xf]
      %v323 = vld [vmem:[%s1 + $0x16c] sm:$0xf]
      %v324 = vld [vmem:[%s1 + $0x170] sm:$0xf]
      %v325 = vld [vmem:[%s1 + $0x174] sm:$0xf]
      %v326 = vld [vmem:[%s1 + $0x178] sm:$0xf]
      %v327 = vld [vmem:[%s1 + $0x17c] sm:$0xf]
      %v328 = vld [vmem:[%s1 + $0x180] sm:$0xf]
      %v329 = vld [vmem:[%s1 + $0x184] sm:$0xf]
      %v330 = vld [vmem:[%s1 + $0x188] sm:$0xf]
      %v331 = vld [vmem:[%s1 + $0x18c] sm:$0xf]
      %v332 = vld [vmem:[%s1 + $0x190] sm:$0xf]
      %v333 = vld [vmem:[%s1 + $0x194] sm:$0xf]
      %v334 = vld [vmem:[%s1 + $0x198] sm:$0xf]
      %v335 = vld [vmem:[%s1 + $0x19c] sm:$0xf]
      %v336 = vld [vmem:[%s1 + $0x1a0] sm:$0xf]
      %v337 = vld [vmem:[%s1 + $0x1a4] sm:$0xf]
      %v338 = vld [vmem:[%s1 + $0x1a8] sm:$0xf]
      %v339 = vld [vmem:[%s1 + $0x1ac] sm:$0xf]
      %v340 = vld [vmem:[%s1 + $0x1b0] sm:$0xf]
      %v341 = vld [vmem:[%s1 + $0x1b4] sm:$0xf]
      %v342 = vld [vmem:[%s1 + $0x1b8] sm:$0xf]
      %v343 = vld [vmem:[%s1 + $0x1bc] sm:$0xf]
      %v344 = vld [vmem:[%s1 + $0x1c0] sm:$0xf]
      %v345 = vld [vmem:[%s1 + $0x1c4] sm:$0xf]
      %v346 = vld [vmem:[%s1 + $0x1c8] sm:$0xf]
      %v347 = vld [vmem:[%s1 + $0x1cc] sm:$0xf]
      %v348 = vld [vmem:[%s1 + $0x1d0] sm:$0xf]
      %v349 = vld [vmem:[%s1 + $0x1d4] sm:$0xf]
      %v350 = vld [vmem:[%s1 + $0x1d8] sm:$0xf]
      %v351 = vld [vmem:[%s1 + $0x1dc] sm:$0xf]
      %v352 = vld [vmem:[%s1 + $0x1e0] sm:$0xf]
      %v353 = vld [vmem:[%s1 + $0x1e4] sm:$0xf]
      %v354 = vld [vmem:[%s1 + $0x1e8] sm:$0xf]
      %v355 = vld [vmem:[%s1 + $0x1ec] sm:$0xf]
      %v356 = vld [vmem:[%s1 + $0x1f0] sm:$0xf]
      %v357 = vld [vmem:[%s1 + $0x1f4] sm:$0xf]
      %v358 = vld [vmem:[%s1 + $0x1f8] sm:$0xf]
      %v359 = vld [vmem:[%s1 + $0x1fc] sm:$0xf]
      %v366 = vunpack.c.l.b16 %v226
      %v367 = vunpack.c.h.b16 %v226
      %v368 = vunpack.c.l.b16 %v227
      %v369 = vunpack.c.h.b16 %v227
      %v370 = vunpack.c.l.b16 %v228
      %v371 = vunpack.c.h.b16 %v228
      %v372 = vunpack.c.l.b16 %v229
      %v373 = vunpack.c.h.b16 %v229
      %v374 = vunpack.c.l.b16 %v230
      %v375 = vunpack.c.h.b16 %v230
      %v376 = vunpack.c.l.b16 %v231
      %v377 = vunpack.c.h.b16 %v231
      %v378 = vpack.c.b16 %v370, %v366
      %v379 = vpack.c.b16 %v371, %v367
      %v380 = vpack.c.b16 %v372, %v368
      %v381 = vpack.c.b16 %v373, %v369
      %v382 = vpack.c.b16 %v374, %v374
      %v383 = vpack.c.b16 %v375, %v375
      %v384 = vpack.c.b16 %v376, %v376
      %v385 = vpack.c.b16 %v377, %v377
      %vm386 = vsmask.f32 7424
      %v388 = vshrl.u32 %v378, 16
      %v390 = vshll.u32 %v378, 16
      %v392 = vrot.slane %v390, 1
      %v393 = vor.u32 %v388, %v392
      %v395 = vshll.u32 %v382, 16
      %v397 = vrot.slane %v395, 1
      %v398 = vsel %vm386, %v393, %v397
      %v400 = vshrl.u32 %v379, 16
      %v402 = vshll.u32 %v379, 16
      %v404 = vrot.slane %v402, 1
      %v405 = vor.u32 %v400, %v404
      %v407 = vshll.u32 %v383, 16
      %v409 = vrot.slane %v407, 1
      %v410 = vsel %vm386, %v405, %v409
      %v412 = vshrl.u32 %v380, 16
      %v414 = vshll.u32 %v380, 16
      %v416 = vrot.slane %v414, 1
      %v417 = vor.u32 %v412, %v416
      %v419 = vshll.u32 %v384, 16
      %v421 = vrot.slane %v419, 1
      %v422 = vsel %vm386, %v417, %v421
      %v424 = vshrl.u32 %v381, 16
      %v426 = vshll.u32 %v381, 16
      %v428 = vrot.slane %v426, 1
      %v429 = vor.u32 %v424, %v428
      %v431 = vshll.u32 %v385, 16
      %v433 = vrot.slane %v431, 1
      %v434 = vsel %vm386, %v429, %v433
      %v435 = vshrl.u32 %v382, 16
      %v437 = vor.u32 %v435, %v397
      %v438 = vshrl.u32 %v383, 16
      %v440 = vor.u32 %v438, %v409
      %v441 = vshrl.u32 %v384, 16
      %v443 = vor.u32 %v441, %v421
      %v444 = vshrl.u32 %v385, 16
      %v446 = vor.u32 %v444, %v433
      %v519 = vunpack.c.l.b16 %v296
      %v520 = vunpack.c.l.b16 %v297
      %v521 = vunpack.c.l.b16 %v298
      %v522 = vunpack.c.l.b16 %v299
      %v523 = vunpack.c.l.b16 %v300
      %v524 = vunpack.c.l.b16 %v301
      %v525 = vunpack.c.l.b16 %v302
      %v526 = vunpack.c.l.b16 %v303
      %v527 = vunpack.c.l.b16 %v304
      %v528 = vunpack.c.l.b16 %v305
      %v529 = vunpack.c.l.b16 %v306
      %v530 = vunpack.c.l.b16 %v307
      %v531 = vunpack.c.l.b16 %v308
      %v532 = vunpack.c.l.b16 %v309
      %v533 = vunpack.c.l.b16 %v310
      %v534 = vunpack.c.l.b16 %v311
      %v535 = vunpack.c.l.b16 %v312
      %v536 = vunpack.c.l.b16 %v313
      %v537 = vunpack.c.l.b16 %v314
      %v538 = vunpack.c.l.b16 %v315
      %v539 = vunpack.c.l.b16 %v316
      %v540 = vunpack.c.l.b16 %v317
      %v541 = vunpack.c.l.b16 %v318
      %v542 = vunpack.c.l.b16 %v319
      %v543 = vunpack.c.l.b16 %v320
      %v544 = vunpack.c.l.b16 %v321
      %v545 = vunpack.c.l.b16 %v322
      %v546 = vunpack.c.l.b16 %v323
      %v547 = vunpack.c.l.b16 %v324
      %v548 = vunpack.c.l.b16 %v325
      %v549 = vunpack.c.l.b16 %v326
      %v550 = vunpack.c.l.b16 %v327
      %v551 = vunpack.c.l.b16 %v328
      %v552 = vunpack.c.l.b16 %v329
      %v553 = vunpack.c.l.b16 %v330
      %v554 = vunpack.c.l.b16 %v331
      %v555 = vunpack.c.l.b16 %v332
      %v556 = vunpack.c.l.b16 %v333
      %v557 = vunpack.c.l.b16 %v334
      %v558 = vunpack.c.l.b16 %v335
      %v559 = vunpack.c.l.b16 %v336
      %v560 = vunpack.c.l.b16 %v337
      %v561 = vunpack.c.l.b16 %v338
      %v562 = vunpack.c.l.b16 %v339
      %v563 = vunpack.c.l.b16 %v340
      %v564 = vunpack.c.l.b16 %v341
      %v565 = vunpack.c.l.b16 %v342
      %v566 = vunpack.c.l.b16 %v343
      %v567 = vunpack.c.l.b16 %v344
      %v568 = vunpack.c.l.b16 %v345
      %v569 = vunpack.c.l.b16 %v346
      %v570 = vunpack.c.l.b16 %v347
      %v571 = vunpack.c.l.b16 %v348
      %v572 = vunpack.c.l.b16 %v349
      %v573 = vunpack.c.l.b16 %v350
      %v574 = vunpack.c.l.b16 %v351
      %v575 = vunpack.c.l.b16 %v352
      %v576 = vunpack.c.l.b16 %v353
      %v577 = vunpack.c.l.b16 %v354
      %v578 = vunpack.c.l.b16 %v355
      %v579 = vunpack.c.l.b16 %v356
      %v580 = vunpack.c.l.b16 %v357
      %v581 = vunpack.c.l.b16 %v358
      %v582 = vunpack.c.l.b16 %v359
      %v583 = vpack.c.b16 %v520, %v519
      %v584 = vpack.c.b16 %v522, %v521
      %v585 = vpack.c.b16 %v524, %v523
      %v586 = vpack.c.b16 %v526, %v525
      %v587 = vpack.c.b16 %v528, %v527
      %v588 = vpack.c.b16 %v530, %v529
      %v589 = vpack.c.b16 %v532, %v531
      %v590 = vpack.c.b16 %v534, %v533
      %v591 = vpack.c.b16 %v536, %v535
      %v592 = vpack.c.b16 %v538, %v537
      %v593 = vpack.c.b16 %v540, %v539
      %v594 = vpack.c.b16 %v542, %v541
      %v595 = vpack.c.b16 %v544, %v543
      %v596 = vpack.c.b16 %v546, %v545
      %v597 = vpack.c.b16 %v548, %v547
      %v598 = vpack.c.b16 %v550, %v549
      %v599 = vpack.c.b16 %v552, %v551
      %v600 = vpack.c.b16 %v554, %v553
      %v601 = vpack.c.b16 %v556, %v555
      %v602 = vpack.c.b16 %v558, %v557
      %v603 = vpack.c.b16 %v560, %v559
      %v604 = vpack.c.b16 %v562, %v561
      %v605 = vpack.c.b16 %v564, %v563
      %v606 = vpack.c.b16 %v566, %v565
      %v607 = vpack.c.b16 %v568, %v567
      %v608 = vpack.c.b16 %v570, %v569
      %v609 = vpack.c.b16 %v572, %v571
      %v610 = vpack.c.b16 %v574, %v573
      %v611 = vpack.c.b16 %v576, %v575
      %v612 = vpack.c.b16 %v578, %v577
      %v613 = vpack.c.b16 %v580, %v579
      %v614 = vpack.c.b16 %v582, %v581
      %647 = vmatprep.subr.bf16.mxu0 0
      %648 = vmatpush1.bf16.msra.mxu0 %v583
      %649 = vmatprep.subr.bf16.mxu0 0
      %650 = vmatpush1.bf16.msra.mxu0 %v584
      %651 = vmatprep.subr.bf16.mxu0 0
      %652 = vmatpush1.bf16.msra.mxu0 %v585
      %653 = vmatprep.subr.bf16.mxu0 0
      %654 = vmatpush1.bf16.msra.mxu0 %v586
      %655 = vmatprep.subr.bf16.mxu0 0
      %656 = vmatpush1.bf16.msra.mxu0 %v587
      %657 = vmatprep.subr.bf16.mxu0 0
      %658 = vmatpush1.bf16.msra.mxu0 %v588
      %659 = vmatprep.subr.bf16.mxu0 0
      %660 = vmatpush1.bf16.msra.mxu0 %v589
      %661 = vmatprep.subr.bf16.mxu0 0
      %662 = vmatpush1.bf16.msra.mxu0 %v590
      %663 = vmatprep.subr.bf16.mxu0 0
      %664 = vmatpush1.bf16.msra.mxu0 %v591
      %665 = vmatprep.subr.bf16.mxu0 0
      %666 = vmatpush1.bf16.msra.mxu0 %v592
      %667 = vmatprep.subr.bf16.mxu0 0
      %668 = vmatpush1.bf16.msra.mxu0 %v593
      %669 = vmatprep.subr.bf16.mxu0 0
      %670 = vmatpush1.bf16.msra.mxu0 %v594
      %671 = vmatprep.subr.bf16.mxu0 0
      %672 = vmatpush1.bf16.msra.mxu0 %v595
      %673 = vmatprep.subr.bf16.mxu0 0
      %674 = vmatpush1.bf16.msra.mxu0 %v596
      %675 = vmatprep.subr.bf16.mxu0 0
      %676 = vmatpush1.bf16.msra.mxu0 %v597
      %677 = vmatprep.subr.bf16.mxu0 0
      %678 = vmatpush1.bf16.msra.mxu0 %v598
      %679 = vmatprep.mubr.bf16.mxu0 %v410
      %680 = vmatmul.mubr.bf16.gmra.mrb[0].mxu0 %v398
      %v681 = vpop.f32.mrb[0].mxu0
      %v682 = vadd.f32 0.0, %v681
      %v683 = vpop.f32.mrb[0].mxu0
      %v684 = vpop.f32.mrb[0].mxu0
      %v685 = vadd.f32 0.0, %v684
      %v686 = vpop.f32.mrb[0].mxu0
      %687 = vmatprep.mubr.bf16.mxu0 %v440
      %688 = vmatmul.mubr.bf16.gmra.mrb[0].mxu0 %v437
      %v689 = vpop.f32.mrb[0].mxu0
      %v690 = vadd.f32 0.0, %v689
      %v691 = vpop.f32.mrb[0].mxu0
      %v692 = vpop.f32.mrb[0].mxu0
      %v693 = vpop.f32.mrb[0].mxu0
      %694 = vdwg.mxu0
      %695 = vmatprep.subr.bf16.mxu0 0
      %696 = vmatpush1.bf16.msra.mxu0 %v599
      %697 = vmatprep.subr.bf16.mxu0 0
      %698 = vmatpush1.bf16.msra.mxu0 %v600
      %699 = vmatprep.subr.bf16.mxu0 0
      %700 = vmatpush1.bf16.msra.mxu0 %v601
      %701 = vmatprep.subr.bf16.mxu0 0
      %702 = vmatpush1.bf16.msra.mxu0 %v602
      %703 = vmatprep.subr.bf16.mxu0 0
      %704 = vmatpush1.bf16.msra.mxu0 %v603
      %705 = vmatprep.subr.bf16.mxu0 0
      %706 = vmatpush1.bf16.msra.mxu0 %v604
      %707 = vmatprep.subr.bf16.mxu0 0
      %708 = vmatpush1.bf16.msra.mxu0 %v605
      %709 = vmatprep.subr.bf16.mxu0 0
      %710 = vmatpush1.bf16.msra.mxu0 %v606
      %711 = vmatprep.subr.bf16.mxu0 0
      %712 = vmatpush1.bf16.msra.mxu0 %v607
      %713 = vmatprep.subr.bf16.mxu0 0
      %714 = vmatpush1.bf16.msra.mxu0 %v608
      %715 = vmatprep.subr.bf16.mxu0 0
      %716 = vmatpush1.bf16.msra.mxu0 %v609
      %717 = vmatprep.subr.bf16.mxu0 0
      %718 = vmatpush1.bf16.msra.mxu0 %v610
      %719 = vmatprep.subr.bf16.mxu0 0
      %720 = vmatpush1.bf16.msra.mxu0 %v611
      %721 = vmatprep.subr.bf16.mxu0 0
      %722 = vmatpush1.bf16.msra.mxu0 %v612
      %723 = vmatprep.subr.bf16.mxu0 0
      %724 = vmatpush1.bf16.msra.mxu0 %v613
      %725 = vmatprep.subr.bf16.mxu0 0
      %726 = vmatpush1.bf16.msra.mxu0 %v614
      %727 = vmatprep.mubr.bf16.mxu0 %v434
      %728 = vmatmul.mubr.bf16.gmra.mrb[0].mxu0 %v422
      %v729 = vpop.f32.mrb[0].mxu0
      %v730 = vadd.f32 %v682, %v729
      %v731 = vpop.f32.mrb[0].mxu0
      %v732 = vpop.f32.mrb[0].mxu0
      %v733 = vadd.f32 %v685, %v732
      %v734 = vpop.f32.mrb[0].mxu0
      %735 = vmatprep.mubr.bf16.mxu0 %v446
      %736 = vmatmul.mubr.bf16.gmra.mrb[0].mxu0 %v443
      %v737 = vpop.f32.mrb[0].mxu0
      %v738 = vadd.f32 %v690, %v737
      %v739 = vpop.f32.mrb[0].mxu0
      %v740 = vpop.f32.mrb[0].mxu0
      %v741 = vpop.f32.mrb[0].mxu0
      %742 = vdwg.mxu0
      %v815 = vunpack.c.l.b16 %v232
      %v816 = vunpack.c.l.b16 %v233
      %v817 = vunpack.c.l.b16 %v234
      %v818 = vunpack.c.l.b16 %v235
      %v819 = vunpack.c.l.b16 %v236
      %v820 = vunpack.c.l.b16 %v237
      %v821 = vunpack.c.l.b16 %v238
      %v822 = vunpack.c.l.b16 %v239
      %v823 = vunpack.c.l.b16 %v240
      %v824 = vunpack.c.l.b16 %v241
      %v825 = vunpack.c.l.b16 %v242
      %v826 = vunpack.c.l.b16 %v243
      %v827 = vunpack.c.l.b16 %v244
      %v828 = vunpack.c.l.b16 %v245
      %v829 = vunpack.c.l.b16 %v246
      %v830 = vunpack.c.l.b16 %v247
      %v831 = vunpack.c.l.b16 %v248
      %v832 = vunpack.c.l.b16 %v249
      %v833 = vunpack.c.l.b16 %v250
      %v834 = vunpack.c.l.b16 %v251
      %v835 = vunpack.c.l.b16 %v252
      %v836 = vunpack.c.l.b16 %v253
      %v837 = vunpack.c.l.b16 %v254
      %v838 = vunpack.c.l.b16 %v255
      %v839 = vunpack.c.l.b16 %v256
      %v840 = vunpack.c.l.b16 %v257
      %v841 = vunpack.c.l.b16 %v258
      %v842 = vunpack.c.l.b16 %v259
      %v843 = vunpack.c.l.b16 %v260
      %v844 = vunpack.c.l.b16 %v261
      %v845 = vunpack.c.l.b16 %v262
      %v846 = vunpack.c.l.b16 %v263
      %v847 = vunpack.c.l.b16 %v264
      %v848 = vunpack.c.l.b16 %v265
      %v849 = vunpack.c.l.b16 %v266
      %v850 = vunpack.c.l.b16 %v267
      %v851 = vunpack.c.l.b16 %v268
      %v852 = vunpack.c.l.b16 %v269
      %v853 = vunpack.c.l.b16 %v270
      %v854 = vunpack.c.l.b16 %v271
      %v855 = vunpack.c.l.b16 %v272
      %v856 = vunpack.c.l.b16 %v273
      %v857 = vunpack.c.l.b16 %v274
      %v858 = vunpack.c.l.b16 %v275
      %v859 = vunpack.c.l.b16 %v276
      %v860 = vunpack.c.l.b16 %v277
      %v861 = vunpack.c.l.b16 %v278
      %v862 = vunpack.c.l.b16 %v279
      %v863 = vunpack.c.l.b16 %v280
      %v864 = vunpack.c.l.b16 %v281
      %v865 = vunpack.c.l.b16 %v282
      %v866 = vunpack.c.l.b16 %v283
      %v867 = vunpack.c.l.b16 %v284
      %v868 = vunpack.c.l.b16 %v285
      %v869 = vunpack.c.l.b16 %v286
      %v870 = vunpack.c.l.b16 %v287
      %v871 = vunpack.c.l.b16 %v288
      %v872 = vunpack.c.l.b16 %v289
      %v873 = vunpack.c.l.b16 %v290
      %v874 = vunpack.c.l.b16 %v291
      %v875 = vunpack.c.l.b16 %v292
      %v876 = vunpack.c.l.b16 %v293
      %v877 = vunpack.c.l.b16 %v294
      %v878 = vunpack.c.l.b16 %v295
      %v879 = vpack.c.b16 %v816, %v815
      %v880 = vpack.c.b16 %v818, %v817
      %v881 = vpack.c.b16 %v820, %v819
      %v882 = vpack.c.b16 %v822, %v821
      %v883 = vpack.c.b16 %v824, %v823
      %v884 = vpack.c.b16 %v826, %v825
      %v885 = vpack.c.b16 %v828, %v827
      %v886 = vpack.c.b16 %v830, %v829
      %v887 = vpack.c.b16 %v832, %v831
      %v888 = vpack.c.b16 %v834, %v833
      %v889 = vpack.c.b16 %v836, %v835
      %v890 = vpack.c.b16 %v838, %v837
      %v891 = vpack.c.b16 %v840, %v839
      %v892 = vpack.c.b16 %v842, %v841
      %v893 = vpack.c.b16 %v844, %v843
      %v894 = vpack.c.b16 %v846, %v845
      %v895 = vpack.c.b16 %v848, %v847
      %v896 = vpack.c.b16 %v850, %v849
      %v897 = vpack.c.b16 %v852, %v851
      %v898 = vpack.c.b16 %v854, %v853
      %v899 = vpack.c.b16 %v856, %v855
      %v900 = vpack.c.b16 %v858, %v857
      %v901 = vpack.c.b16 %v860, %v859
      %v902 = vpack.c.b16 %v862, %v861
      %v903 = vpack.c.b16 %v864, %v863
      %v904 = vpack.c.b16 %v866, %v865
      %v905 = vpack.c.b16 %v868, %v867
      %v906 = vpack.c.b16 %v870, %v869
      %v907 = vpack.c.b16 %v872, %v871
      %v908 = vpack.c.b16 %v874, %v873
      %v909 = vpack.c.b16 %v876, %v875
      %v910 = vpack.c.b16 %v878, %v877
      %943 = vmatprep.subr.bf16.mxu0 0
      %944 = vmatpush1.bf16.msra.mxu0 %v879
      %945 = vmatprep.subr.bf16.mxu0 0
      %946 = vmatpush1.bf16.msra.mxu0 %v880
      %947 = vmatprep.subr.bf16.mxu0 0
      %948 = vmatpush1.bf16.msra.mxu0 %v881
      %949 = vmatprep.subr.bf16.mxu0 0
      %950 = vmatpush1.bf16.msra.mxu0 %v882
      %951 = vmatprep.subr.bf16.mxu0 0
      %952 = vmatpush1.bf16.msra.mxu0 %v883
      %953 = vmatprep.subr.bf16.mxu0 0
      %954 = vmatpush1.bf16.msra.mxu0 %v884
      %955 = vmatprep.subr.bf16.mxu0 0
      %956 = vmatpush1.bf16.msra.mxu0 %v885
      %957 = vmatprep.subr.bf16.mxu0 0
      %958 = vmatpush1.bf16.msra.mxu0 %v886
      %959 = vmatprep.subr.bf16.mxu0 0
      %960 = vmatpush1.bf16.msra.mxu0 %v887
      %961 = vmatprep.subr.bf16.mxu0 0
      %962 = vmatpush1.bf16.msra.mxu0 %v888
      %963 = vmatprep.subr.bf16.mxu0 0
      %964 = vmatpush1.bf16.msra.mxu0 %v889
      %965 = vmatprep.subr.bf16.mxu0 0
      %966 = vmatpush1.bf16.msra.mxu0 %v890
      %967 = vmatprep.subr.bf16.mxu0 0
      %968 = vmatpush1.bf16.msra.mxu0 %v891
      %969 = vmatprep.subr.bf16.mxu0 0
      %970 = vmatpush1.bf16.msra.mxu0 %v892
      %971 = vmatprep.subr.bf16.mxu0 0
      %972 = vmatpush1.bf16.msra.mxu0 %v893
      %973 = vmatprep.subr.bf16.mxu0 0
      %974 = vmatpush1.bf16.msra.mxu0 %v894
      %975 = vmatprep.mubr.bf16.mxu0 %v379
      %976 = vmatmul.mubr.bf16.gmra.mrb[0].mxu0 %v378
      %v977 = vpop.f32.mrb[0].mxu0
      %v978 = vadd.f32 %v730, %v977
      %v979 = vpop.f32.mrb[0].mxu0
      %v980 = vpop.f32.mrb[0].mxu0
      %v981 = vadd.f32 %v733, %v980
      %v982 = vpop.f32.mrb[0].mxu0
      %983 = vmatprep.mubr.bf16.mxu0 %v383
      %984 = vmatmul.mubr.bf16.gmra.mrb[0].mxu0 %v382
      %v985 = vpop.f32.mrb[0].mxu0
      %v986 = vadd.f32 %v738, %v985
      %v987 = vpop.f32.mrb[0].mxu0
      %v988 = vpop.f32.mrb[0].mxu0
      %v989 = vpop.f32.mrb[0].mxu0
      %990 = vdwg.mxu0
      %991 = vmatprep.subr.bf16.mxu0 0
      %992 = vmatpush1.bf16.msra.mxu0 %v895
      %993 = vmatprep.subr.bf16.mxu0 0
      %994 = vmatpush1.bf16.msra.mxu0 %v896
      %995 = vmatprep.subr.bf16.mxu0 0
      %996 = vmatpush1.bf16.msra.mxu0 %v897
      %997 = vmatprep.subr.bf16.mxu0 0
      %998 = vmatpush1.bf16.msra.mxu0 %v898
      %999 = vmatprep.subr.bf16.mxu0 0
      %1000 = vmatpush1.bf16.msra.mxu0 %v899
      %1001 = vmatprep.subr.bf16.mxu0 0
      %1002 = vmatpush1.bf16.msra.mxu0 %v900
      %1003 = vmatprep.subr.bf16.mxu0 0
      %1004 = vmatpush1.bf16.msra.mxu0 %v901
      %1005 = vmatprep.subr.bf16.mxu0 0
      %1006 = vmatpush1.bf16.msra.mxu0 %v902
      %1007 = vmatprep.subr.bf16.mxu0 0
      %1008 = vmatpush1.bf16.msra.mxu0 %v903
      %1009 = vmatprep.subr.bf16.mxu0 0
      %1010 = vmatpush1.bf16.msra.mxu0 %v904
      %1011 = vmatprep.subr.bf16.mxu0 0
      %1012 = vmatpush1.bf16.msra.mxu0 %v905
      %1013 = vmatprep.subr.bf16.mxu0 0
      %1014 = vmatpush1.bf16.msra.mxu0 %v906
      %1015 = vmatprep.subr.bf16.mxu0 0
      %1016 = vmatpush1.bf16.msra.mxu0 %v907
      %1017 = vmatprep.subr.bf16.mxu0 0
      %1018 = vmatpush1.bf16.msra.mxu0 %v908
      %1019 = vmatprep.subr.bf16.mxu0 0
      %1020 = vmatpush1.bf16.msra.mxu0 %v909
      %1021 = vmatprep.subr.bf16.mxu0 0
      %1022 = vmatpush1.bf16.msra.mxu0 %v910
      %1023 = vmatprep.mubr.bf16.mxu0 %v381
      %1024 = vmatmul.mubr.bf16.gmra.mrb[0].mxu0 %v380
      %v1025 = vpop.f32.mrb[0].mxu0
      %v1026 = vadd.f32 %v978, %v1025
      %v1027 = vpop.f32.mrb[0].mxu0
      %v1028 = vpop.f32.mrb[0].mxu0
      %v1029 = vadd.f32 %v981, %v1028
      %v1030 = vpop.f32.mrb[0].mxu0
      %1031 = vmatprep.mubr.bf16.mxu0 %v385
      %1032 = vmatmul.mubr.bf16.gmra.mrb[0].mxu0 %v384
      %v1033 = vpop.f32.mrb[0].mxu0
      %v1034 = vadd.f32 %v986, %v1033
      %v1035 = vpop.f32.mrb[0].mxu0
      %v1036 = vpop.f32.mrb[0].mxu0
      %v1037 = vpop.f32.mrb[0].mxu0
      %1038 = vdwg.mxu0
      %v1039 = vld [vmem:[%s219] sm:$0xcc]
      %v1040 = vld [vmem:[%s219 + $0x8] sm:$0xcc]
      %v1041 = vld [vmem:[%s219 + $0x20] sm:$0xff]
      %v1042 = vld [vmem:[%s219 + $0x28] sm:$0xff]
      %v1043 = vld [vmem:[%s1 + $0x200] sm:$0xf]
      %v1044 = vld [vmem:[%s1 + $0x204] sm:$0xf]
      %v1045 = vld [vmem:[%s1 + $0x208] sm:$0xf]
      %v1046 = vld [vmem:[%s1 + $0x20c] sm:$0xf]
      %v1047 = vld [vmem:[%s1 + $0x210] sm:$0xf]
      %v1048 = vld [vmem:[%s1 + $0x214] sm:$0xf]
      %v1049 = vld [vmem:[%s1 + $0x218] sm:$0xf]
      %v1050 = vld [vmem:[%s1 + $0x21c] sm:$0xf]
      %v1051 = vld [vmem:[%s1 + $0x220] sm:$0xf]
      %v1052 = vld [vmem:[%s1 + $0x224] sm:$0xf]
      %v1053 = vld [vmem:[%s1 + $0x228] sm:$0xf]
      %v1054 = vld [vmem:[%s1 + $0x22c] sm:$0xf]
      %v1055 = vld [vmem:[%s1 + $0x230] sm:$0xf]
      %v1056 = vld [vmem:[%s1 + $0x234] sm:$0xf]
      %v1057 = vld [vmem:[%s1 + $0x238] sm:$0xf]
      %v1058 = vld [vmem:[%s1 + $0x23c] sm:$0xf]
      %v1059 = vld [vmem:[%s1 + $0x240] sm:$0xf]
      %v1060 = vld [vmem:[%s1 + $0x244] sm:$0xf]
      %v1061 = vld [vmem:[%s1 + $0x248] sm:$0xf]
      %v1062 = vld [vmem:[%s1 + $0x24c] sm:$0xf]
      %v1063 = vld [vmem:[%s1 + $0x250] sm:$0xf]
      %v1064 = vld [vmem:[%s1 + $0x254] sm:$0xf]
      %v1065 = vld [vmem:[%s1 + $0x258] sm:$0xf]
      %v1066 = vld [vmem:[%s1 + $0x25c] sm:$0xf]
      %v1067 = vld [vmem:[%s1 + $0x260] sm:$0xf]
      %v1068 = vld [vmem:[%s1 + $0x264] sm:$0xf]
      %v1069 = vld [vmem:[%s1 + $0x268] sm:$0xf]
      %v1070 = vld [vmem:[%s1 + $0x26c] sm:$0xf]
      %v1071 = vld [vmem:[%s1 + $0x270] sm:$0xf]
      %v1072 = vld [vmem:[%s1 + $0x274] sm:$0xf]
      %v1073 = vld [vmem:[%s1 + $0x278] sm:$0xf]
      %v1074 = vld [vmem:[%s1 + $0x27c] sm:$0xf]
      %v1075 = vld [vmem:[%s1 + $0x280] sm:$0xf]
      %v1076 = vld [vmem:[%s1 + $0x284] sm:$0xf]
      %v1077 = vld [vmem:[%s1 + $0x288] sm:$0xf]
      %v1078 = vld [vmem:[%s1 + $0x28c] sm:$0xf]
      %v1079 = vld [vmem:[%s1 + $0x290] sm:$0xf]
      %v1080 = vld [vmem:[%s1 + $0x294] sm:$0xf]
      %v1081 = vld [vmem:[%s1 + $0x298] sm:$0xf]
      %v1082 = vld [vmem:[%s1 + $0x29c] sm:$0xf]
      %v1083 = vld [vmem:[%s1 + $0x2a0] sm:$0xf]
      %v1084 = vld [vmem:[%s1 + $0x2a4] sm:$0xf]
      %v1085 = vld [vmem:[%s1 + $0x2a8] sm:$0xf]
      %v1086 = vld [vmem:[%s1 + $0x2ac] sm:$0xf]
      %v1087 = vld [vmem:[%s1 + $0x2b0] sm:$0xf]
      %v1088 = vld [vmem:[%s1 + $0x2b4] sm:$0xf]
      %v1089 = vld [vmem:[%s1 + $0x2b8] sm:$0xf]
      %v1090 = vld [vmem:[%s1 + $0x2bc] sm:$0xf]
      %v1091 = vld [vmem:[%s1 + $0x2c0] sm:$0xf]
      %v1092 = vld [vmem:[%s1 + $0x2c4] sm:$0xf]
      %v1093 = vld [vmem:[%s1 + $0x2c8] sm:$0xf]
      %v1094 = vld [vmem:[%s1 + $0x2cc] sm:$0xf]
      %v1095 = vld [vmem:[%s1 + $0x2d0] sm:$0xf]
      %v1096 = vld [vmem:[%s1 + $0x2d4] sm:$0xf]
      %v1097 = vld [vmem:[%s1 + $0x2d8] sm:$0xf]
      %v1098 = vld [vmem:[%s1 + $0x2dc] sm:$0xf]
      %v1099 = vld [vmem:[%s1 + $0x2e0] sm:$0xf]
      %v1100 = vld [vmem:[%s1 + $0x2e4] sm:$0xf]
      %v1101 = vld [vmem:[%s1 + $0x2e8] sm:$0xf]
      %v1102 = vld [vmem:[%s1 + $0x2ec] sm:$0xf]
      %v1103 = vld [vmem:[%s1 + $0x2f0] sm:$0xf]
      %v1104 = vld [vmem:[%s1 + $0x2f4] sm:$0xf]
      %v1105 = vld [vmem:[%s1 + $0x2f8] sm:$0xf]
      %v1106 = vld [vmem:[%s1 + $0x2fc] sm:$0xf]
      %v1111 = vunpack.c.l.b16 %v1039
      %v1112 = vunpack.c.h.b16 %v1039
      %v1113 = vunpack.c.l.b16 %v1040
      %v1114 = vunpack.c.h.b16 %v1040
      %v1115 = vunpack.c.l.b16 %v1041
      %v1116 = vunpack.c.h.b16 %v1041
      %v1117 = vunpack.c.l.b16 %v1042
      %v1118 = vunpack.c.h.b16 %v1042
      %v1119 = vpack.c.b16 %v370, %v1111
      %v1120 = vpack.c.b16 %v371, %v1112
      %v1121 = vpack.c.b16 %v372, %v1113
      %v1122 = vpack.c.b16 %v373, %v1114
      %v1123 = vpack.c.b16 %v1115, %v1115
      %v1124 = vpack.c.b16 %v1116, %v1116
      %v1125 = vpack.c.b16 %v1117, %v1117
      %v1126 = vpack.c.b16 %v1118, %v1118
      %vm1127 = vsmask.f32 5376
      %v1129 = vshrl.u32 %v1119, 16
      %v1131 = vrot.slane %v1129, 2
      %v1132 = vshll.u32 %v1119, 16
      %v1134 = vrot.slane %v1132, 3
      %v1135 = vor.u32 %v1131, %v1134
      %v1137 = vshrl.u32 %v1123, 16
      %v1139 = vrot.slane %v1137, 2
      %v1140 = vshll.u32 %v1123, 16
      %v1142 = vrot.slane %v1140, 3
      %v1143 = vor.u32 %v1139, %v1142
      %v1144 = vsel %vm1127, %v1135, %v1143
      %v1146 = vshrl.u32 %v1120, 16
      %v1148 = vrot.slane %v1146, 2
      %v1149 = vshll.u32 %v1120, 16
      %v1151 = vrot.slane %v1149, 3
      %v1152 = vor.u32 %v1148, %v1151
      %v1154 = vshrl.u32 %v1124, 16
      %v1156 = vrot.slane %v1154, 2
      %v1157 = vshll.u32 %v1124, 16
      %v1159 = vrot.slane %v1157, 3
      %v1160 = vor.u32 %v1156, %v1159
      %v1161 = vsel %vm1127, %v1152, %v1160
      %v1163 = vshrl.u32 %v1121, 16
      %v1165 = vrot.slane %v1163, 2
      %v1166 = vshll.u32 %v1121, 16
      %v1168 = vrot.slane %v1166, 3
      %v1169 = vor.u32 %v1165, %v1168
      %v1171 = vshrl.u32 %v1125, 16
      %v1173 = vrot.slane %v1171, 2
      %v1174 = vshll.u32 %v1125, 16
      %v1176 = vrot.slane %v1174, 3
      %v1177 = vor.u32 %v1173, %v1176
      %v1178 = vsel %vm1127, %v1169, %v1177
      %v1180 = vshrl.u32 %v1122, 16
      %v1182 = vrot.slane %v1180, 2
      %v1183 = vshll.u32 %v1122, 16
      %v1185 = vrot.slane %v1183, 3
      %v1186 = vor.u32 %v1182, %v1185
      %v1188 = vshrl.u32 %v1126, 16
      %v1190 = vrot.slane %v1188, 2
      %v1191 = vshll.u32 %v1126, 16
      %v1193 = vrot.slane %v1191, 3
      %v1194 = vor.u32 %v1190, %v1193
      %v1195 = vsel %vm1127, %v1186, %v1194
      %v1268 = vunpack.c.l.b16 %v1043
      %v1269 = vunpack.c.l.b16 %v1044
      %v1270 = vunpack.c.l.b16 %v1045
      %v1271 = vunpack.c.l.b16 %v1046
      %v1272 = vunpack.c.l.b16 %v1047
      %v1273 = vunpack.c.l.b16 %v1048
      %v1274 = vunpack.c.l.b16 %v1049
      %v1275 = vunpack.c.l.b16 %v1050
      %v1276 = vunpack.c.l.b16 %v1051
      %v1277 = vunpack.c.l.b16 %v1052
      %v1278 = vunpack.c.l.b16 %v1053
      %v1279 = vunpack.c.l.b16 %v1054
      %v1280 = vunpack.c.l.b16 %v1055
      %v1281 = vunpack.c.l.b16 %v1056
      %v1282 = vunpack.c.l.b16 %v1057
      %v1283 = vunpack.c.l.b16 %v1058
      %v1284 = vunpack.c.l.b16 %v1059
      %v1285 = vunpack.c.l.b16 %v1060
      %v1286 = vunpack.c.l.b16 %v1061
      %v1287 = vunpack.c.l.b16 %v1062
      %v1288 = vunpack.c.l.b16 %v1063
      %v1289 = vunpack.c.l.b16 %v1064
      %v1290 = vunpack.c.l.b16 %v1065
      %v1291 = vunpack.c.l.b16 %v1066
      %v1292 = vunpack.c.l.b16 %v1067
      %v1293 = vunpack.c.l.b16 %v1068
      %v1294 = vunpack.c.l.b16 %v1069
      %v1295 = vunpack.c.l.b16 %v1070
      %v1296 = vunpack.c.l.b16 %v1071
      %v1297 = vunpack.c.l.b16 %v1072
      %v1298 = vunpack.c.l.b16 %v1073
      %v1299 = vunpack.c.l.b16 %v1074
      %v1300 = vunpack.c.l.b16 %v1075
      %v1301 = vunpack.c.l.b16 %v1076
      %v1302 = vunpack.c.l.b16 %v1077
      %v1303 = vunpack.c.l.b16 %v1078
      %v1304 = vunpack.c.l.b16 %v1079
      %v1305 = vunpack.c.l.b16 %v1080
      %v1306 = vunpack.c.l.b16 %v1081
      %v1307 = vunpack.c.l.b16 %v1082
      %v1308 = vunpack.c.l.b16 %v1083
      %v1309 = vunpack.c.l.b16 %v1084
      %v1310 = vunpack.c.l.b16 %v1085
      %v1311 = vunpack.c.l.b16 %v1086
      %v1312 = vunpack.c.l.b16 %v1087
      %v1313 = vunpack.c.l.b16 %v1088
      %v1314 = vunpack.c.l.b16 %v1089
      %v1315 = vunpack.c.l.b16 %v1090
      %v1316 = vunpack.c.l.b16 %v1091
      %v1317 = vunpack.c.l.b16 %v1092
      %v1318 = vunpack.c.l.b16 %v1093
      %v1319 = vunpack.c.l.b16 %v1094
      %v1320 = vunpack.c.l.b16 %v1095
      %v1321 = vunpack.c.l.b16 %v1096
      %v1322 = vunpack.c.l.b16 %v1097
      %v1323 = vunpack.c.l.b16 %v1098
      %v1324 = vunpack.c.l.b16 %v1099
      %v1325 = vunpack.c.l.b16 %v1100
      %v1326 = vunpack.c.l.b16 %v1101
      %v1327 = vunpack.c.l.b16 %v1102
      %v1328 = vunpack.c.l.b16 %v1103
      %v1329 = vunpack.c.l.b16 %v1104
      %v1330 = vunpack.c.l.b16 %v1105
      %v1331 = vunpack.c.l.b16 %v1106
      %v1332 = vpack.c.b16 %v1269, %v1268
      %v1333 = vpack.c.b16 %v1271, %v1270
      %v1334 = vpack.c.b16 %v1273, %v1272
      %v1335 = vpack.c.b16 %v1275, %v1274
      %v1336 = vpack.c.b16 %v1277, %v1276
      %v1337 = vpack.c.b16 %v1279, %v1278
      %v1338 = vpack.c.b16 %v1281, %v1280
      %v1339 = vpack.c.b16 %v1283, %v1282
      %v1340 = vpack.c.b16 %v1285, %v1284
      %v1341 = vpack.c.b16 %v1287, %v1286
      %v1342 = vpack.c.b16 %v1289, %v1288
      %v1343 = vpack.c.b16 %v1291, %v1290
      %v1344 = vpack.c.b16 %v1293, %v1292
      %v1345 = vpack.c.b16 %v1295, %v1294
      %v1346 = vpack.c.b16 %v1297, %v1296
      %v1347 = vpack.c.b16 %v1299, %v1298
      %v1348 = vpack.c.b16 %v1301, %v1300
      %v1349 = vpack.c.b16 %v1303, %v1302
      %v1350 = vpack.c.b16 %v1305, %v1304
      %v1351 = vpack.c.b16 %v1307, %v1306
      %v1352 = vpack.c.b16 %v1309, %v1308
      %v1353 = vpack.c.b16 %v1311, %v1310
      %v1354 = vpack.c.b16 %v1313, %v1312
      %v1355 = vpack.c.b16 %v1315, %v1314
      %v1356 = vpack.c.b16 %v1317, %v1316
      %v1357 = vpack.c.b16 %v1319, %v1318
      %v1358 = vpack.c.b16 %v1321, %v1320
      %v1359 = vpack.c.b16 %v1323, %v1322
      %v1360 = vpack.c.b16 %v1325, %v1324
      %v1361 = vpack.c.b16 %v1327, %v1326
      %v1362 = vpack.c.b16 %v1329, %v1328
      %v1363 = vpack.c.b16 %v1331, %v1330
      %1396 = vmatprep.subr.bf16.mxu0 0
      %1397 = vmatpush1.bf16.msra.mxu0 %v1332
      %1398 = vmatprep.subr.bf16.mxu0 0
      %1399 = vmatpush1.bf16.msra.mxu0 %v1333
      %1400 = vmatprep.subr.bf16.mxu0 0
      %1401 = vmatpush1.bf16.msra.mxu0 %v1334
      %1402 = vmatprep.subr.bf16.mxu0 0
      %1403 = vmatpush1.bf16.msra.mxu0 %v1335
      %1404 = vmatprep.subr.bf16.mxu0 0
      %1405 = vmatpush1.bf16.msra.mxu0 %v1336
      %1406 = vmatprep.subr.bf16.mxu0 0
      %1407 = vmatpush1.bf16.msra.mxu0 %v1337
      %1408 = vmatprep.subr.bf16.mxu0 0
      %1409 = vmatpush1.bf16.msra.mxu0 %v1338
      %1410 = vmatprep.subr.bf16.mxu0 0
      %1411 = vmatpush1.bf16.msra.mxu0 %v1339
      %1412 = vmatprep.subr.bf16.mxu0 0
      %1413 = vmatpush1.bf16.msra.mxu0 %v1340
      %1414 = vmatprep.subr.bf16.mxu0 0
      %1415 = vmatpush1.bf16.msra.mxu0 %v1341
      %1416 = vmatprep.subr.bf16.mxu0 0
      %1417 = vmatpush1.bf16.msra.mxu0 %v1342
      %1418 = vmatprep.subr.bf16.mxu0 0
      %1419 = vmatpush1.bf16.msra.mxu0 %v1343
      %1420 = vmatprep.subr.bf16.mxu0 0
      %1421 = vmatpush1.bf16.msra.mxu0 %v1344
      %1422 = vmatprep.subr.bf16.mxu0 0
      %1423 = vmatpush1.bf16.msra.mxu0 %v1345
      %1424 = vmatprep.subr.bf16.mxu0 0
      %1425 = vmatpush1.bf16.msra.mxu0 %v1346
      %1426 = vmatprep.subr.bf16.mxu0 0
      %1427 = vmatpush1.bf16.msra.mxu0 %v1347
      %1428 = vmatprep.mubr.bf16.mxu0 %v1161
      %1429 = vmatmul.mubr.bf16.gmra.mrb[0].mxu0 %v1144
      %v1430 = vpop.f32.mrb[0].mxu0
      %v1431 = vadd.f32 0.0, %v1430
      %v1432 = vpop.f32.mrb[0].mxu0
      %v1433 = vpop.f32.mrb[0].mxu0
      %v1434 = vadd.f32 0.0, %v1433
      %v1435 = vpop.f32.mrb[0].mxu0
      %1436 = vmatprep.mubr.bf16.mxu0 %v1160
      %1437 = vmatmul.mubr.bf16.gmra.mrb[0].mxu0 %v1143
      %v1438 = vpop.f32.mrb[0].mxu0
      %v1439 = vadd.f32 0.0, %v1438
      %v1440 = vpop.f32.mrb[0].mxu0
      %v1441 = vpop.f32.mrb[0].mxu0
      %v1442 = vpop.f32.mrb[0].mxu0
      %1443 = vdwg.mxu0
      %1444 = vmatprep.subr.bf16.mxu0 0
      %1445 = vmatpush1.bf16.msra.mxu0 %v1348
      %1446 = vmatprep.subr.bf16.mxu0 0
      %1447 = vmatpush1.bf16.msra.mxu0 %v1349
      %1448 = vmatprep.subr.bf16.mxu0 0
      %1449 = vmatpush1.bf16.msra.mxu0 %v1350
      %1450 = vmatprep.subr.bf16.mxu0 0
      %1451 = vmatpush1.bf16.msra.mxu0 %v1351
      %1452 = vmatprep.subr.bf16.mxu0 0
      %1453 = vmatpush1.bf16.msra.mxu0 %v1352
      %1454 = vmatprep.subr.bf16.mxu0 0
      %1455 = vmatpush1.bf16.msra.mxu0 %v1353
      %1456 = vmatprep.subr.bf16.mxu0 0
      %1457 = vmatpush1.bf16.msra.mxu0 %v1354
      %1458 = vmatprep.subr.bf16.mxu0 0
      %1459 = vmatpush1.bf16.msra.mxu0 %v1355
      %1460 = vmatprep.subr.bf16.mxu0 0
      %1461 = vmatpush1.bf16.msra.mxu0 %v1356
      %1462 = vmatprep.subr.bf16.mxu0 0
      %1463 = vmatpush1.bf16.msra.mxu0 %v1357
      %1464 = vmatprep.subr.bf16.mxu0 0
      %1465 = vmatpush1.bf16.msra.mxu0 %v1358
      %1466 = vmatprep.subr.bf16.mxu0 0
      %1467 = vmatpush1.bf16.msra.mxu0 %v1359
      %1468 = vmatprep.subr.bf16.mxu0 0
      %1469 = vmatpush1.bf16.msra.mxu0 %v1360
      %1470 = vmatprep.subr.bf16.mxu0 0
      %1471 = vmatpush1.bf16.msra.mxu0 %v1361
      %1472 = vmatprep.subr.bf16.mxu0 0
      %1473 = vmatpush1.bf16.msra.mxu0 %v1362
      %1474 = vmatprep.subr.bf16.mxu0 0
      %1475 = vmatpush1.bf16.msra.mxu0 %v1363
      %1476 = vmatprep.mubr.bf16.mxu0 %v1195
      %1477 = vmatmul.mubr.bf16.gmra.mrb[0].mxu0 %v1178
      %v1478 = vpop.f32.mrb[0].mxu0
      %v1479 = vadd.f32 %v1431, %v1478
      %v1480 = vpop.f32.mrb[0].mxu0
      %v1481 = vpop.f32.mrb[0].mxu0
      %v1482 = vadd.f32 %v1434, %v1481
      %v1483 = vpop.f32.mrb[0].mxu0
      %1484 = vmatprep.mubr.bf16.mxu0 %v1194
      %1485 = vmatmul.mubr.bf16.gmra.mrb[0].mxu0 %v1177
      %v1486 = vpop.f32.mrb[0].mxu0
      %v1487 = vadd.f32 %v1439, %v1486
      %v1488 = vpop.f32.mrb[0].mxu0
      %v1489 = vpop.f32.mrb[0].mxu0
      %v1490 = vpop.f32.mrb[0].mxu0
      %1491 = vdwg.mxu0
      %v1492 = vadd.f32 %v1026, %v1479
      %v1493 = vadd.f32 %v1029, %v1482
      %v1494 = vadd.f32 %v1034, %v1487
      %v1495 = vld [vmem:[%s219] sm:$0x88]
      %v1496 = vld [vmem:[%s219 + $0x8] sm:$0x88]
      %v1497 = vld [vmem:[%s219 + $0x10] sm:$0xff]
      %v1498 = vld [vmem:[%s219 + $0x18] sm:$0xff]
      %v1499 = vld [vmem:[%s219 + $0x20] sm:$0xff]
      %v1500 = vld [vmem:[%s219 + $0x28] sm:$0xff]
      %v1501 = vld [vmem:[%s219 + $0x30] sm:$0x11]
      %v1502 = vld [vmem:[%s219 + $0x38] sm:$0x11]
      %v1503 = vld [vmem:[%s1 + $0x300] sm:$0xf]
      %v1504 = vld [vmem:[%s1 + $0x304] sm:$0xf]
      %v1505 = vld [vmem:[%s1 + $0x308] sm:$0xf]
      %v1506 = vld [vmem:[%s1 + $0x30c] sm:$0xf]
      %v1507 = vld [vmem:[%s1 + $0x310] sm:$0xf]
      %v1508 = vld [vmem:[%s1 + $0x314] sm:$0xf]
      %v1509 = vld [vmem:[%s1 + $0x318] sm:$0xf]
      %v1510 = vld [vmem:[%s1 + $0x31c] sm:$0xf]
      %v1511 = vld [vmem:[%s1 + $0x320] sm:$0xf]
      %v1512 = vld [vmem:[%s1 + $0x324] sm:$0xf]
      %v1513 = vld [vmem:[%s1 + $0x328] sm:$0xf]
      %v1514 = vld [vmem:[%s1 + $0x32c] sm:$0xf]
      %v1515 = vld [vmem:[%s1 + $0x330] sm:$0xf]
      %v1516 = vld [vmem:[%s1 + $0x334] sm:$0xf]
      %v1517 = vld [vmem:[%s1 + $0x338] sm:$0xf]
      %v1518 = vld [vmem:[%s1 + $0x33c] sm:$0xf]
      %v1519 = vld [vmem:[%s1 + $0x340] sm:$0xf]
      %v1520 = vld [vmem:[%s1 + $0x344] sm:$0xf]
      %v1521 = vld [vmem:[%s1 + $0x348] sm:$0xf]
      %v1522 = vld [vmem:[%s1 + $0x34c] sm:$0xf]
      %v1523 = vld [vmem:[%s1 + $0x350] sm:$0xf]
      %v1524 = vld [vmem:[%s1 + $0x354] sm:$0xf]
      %v1525 = vld [vmem:[%s1 + $0x358] sm:$0xf]
      %v1526 = vld [vmem:[%s1 + $0x35c] sm:$0xf]
      %v1527 = vld [vmem:[%s1 + $0x360] sm:$0xf]
      %v1528 = vld [vmem:[%s1 + $0x364] sm:$0xf]
      %v1529 = vld [vmem:[%s1 + $0x368] sm:$0xf]
      %v1530 = vld [vmem:[%s1 + $0x36c] sm:$0xf]
      %v1531 = vld [vmem:[%s1 + $0x370] sm:$0xf]
      %v1532 = vld [vmem:[%s1 + $0x374] sm:$0xf]
      %v1533 = vld [vmem:[%s1 + $0x378] sm:$0xf]
      %v1534 = vld [vmem:[%s1 + $0x37c] sm:$0xf]
      %v1535 = vld [vmem:[%s1 + $0x380] sm:$0xf]
      %v1536 = vld [vmem:[%s1 + $0x384] sm:$0xf]
      %v1537 = vld [vmem:[%s1 + $0x388] sm:$0xf]
      %v1538 = vld [vmem:[%s1 + $0x38c] sm:$0xf]
      %v1539 = vld [vmem:[%s1 + $0x390] sm:$0xf]
      %v1540 = vld [vmem:[%s1 + $0x394] sm:$0xf]
      %v1541 = vld [vmem:[%s1 + $0x398] sm:$0xf]
      %v1542 = vld [vmem:[%s1 + $0x39c] sm:$0xf]
      %v1543 = vld [vmem:[%s1 + $0x3a0] sm:$0xf]
      %v1544 = vld [vmem:[%s1 + $0x3a4] sm:$0xf]
      %v1545 = vld [vmem:[%s1 + $0x3a8] sm:$0xf]
      %v1546 = vld [vmem:[%s1 + $0x3ac] sm:$0xf]
      %v1547 = vld [vmem:[%s1 + $0x3b0] sm:$0xf]
      %v1548 = vld [vmem:[%s1 + $0x3b4] sm:$0xf]
      %v1549 = vld [vmem:[%s1 + $0x3b8] sm:$0xf]
      %v1550 = vld [vmem:[%s1 + $0x3bc] sm:$0xf]
      %v1551 = vld [vmem:[%s1 + $0x3c0] sm:$0xf]
      %v1552 = vld [vmem:[%s1 + $0x3c4] sm:$0xf]
      %v1553 = vld [vmem:[%s1 + $0x3c8] sm:$0xf]
      %v1554 = vld [vmem:[%s1 + $0x3cc] sm:$0xf]
      %v1555 = vld [vmem:[%s1 + $0x3d0] sm:$0xf]
      %v1556 = vld [vmem:[%s1 + $0x3d4] sm:$0xf]
      %v1557 = vld [vmem:[%s1 + $0x3d8] sm:$0xf]
      %v1558 = vld [vmem:[%s1 + $0x3dc] sm:$0xf]
      %v1559 = vld [vmem:[%s1 + $0x3e0] sm:$0xf]
      %v1560 = vld [vmem:[%s1 + $0x3e4] sm:$0xf]
      %v1561 = vld [vmem:[%s1 + $0x3e8] sm:$0xf]
      %v1562 = vld [vmem:[%s1 + $0x3ec] sm:$0xf]
      %v1563 = vld [vmem:[%s1 + $0x3f0] sm:$0xf]
      %v1564 = vld [vmem:[%s1 + $0x3f4] sm:$0xf]
      %v1565 = vld [vmem:[%s1 + $0x3f8] sm:$0xf]
      %v1566 = vld [vmem:[%s1 + $0x3fc] sm:$0xf]
      %v1575 = vunpack.c.l.b16 %v1495
      %v1576 = vunpack.c.h.b16 %v1495
      %v1577 = vunpack.c.l.b16 %v1496
      %v1578 = vunpack.c.h.b16 %v1496
      %v1579 = vunpack.c.l.b16 %v1497
      %v1580 = vunpack.c.h.b16 %v1497
      %v1581 = vunpack.c.l.b16 %v1498
      %v1582 = vunpack.c.h.b16 %v1498
      %v1583 = vunpack.c.l.b16 %v1499
      %v1584 = vunpack.c.h.b16 %v1499
      %v1585 = vunpack.c.l.b16 %v1500
      %v1586 = vunpack.c.h.b16 %v1500
      %v1587 = vunpack.c.l.b16 %v1501
      %v1588 = vunpack.c.h.b16 %v1501
      %v1589 = vunpack.c.l.b16 %v1502
      %v1590 = vunpack.c.h.b16 %v1502
      %v1591 = vpack.c.b16 %v1579, %v1575
      %v1592 = vpack.c.b16 %v1580, %v1576
      %v1593 = vpack.c.b16 %v1581, %v1577
      %v1594 = vpack.c.b16 %v1582, %v1578
      %v1595 = vpack.c.b16 %v1587, %v1583
      %v1596 = vpack.c.b16 %v1588, %v1584
      %v1597 = vpack.c.b16 %v1589, %v1585
      %v1598 = vpack.c.b16 %v1590, %v1586
      %vm1599 = vcmask 1044480
      %v1600 = vrot.slane %v1591, 3
      %v1601 = vrot.slane %v1595, 3
      %v1602 = vsel %vm1599, %v1600, %v1601
      %v1603 = vrot.slane %v1592, 3
      %v1604 = vrot.slane %v1596, 3
      %v1605 = vsel %vm1599, %v1603, %v1604
      %v1606 = vrot.slane %v1593, 3
      %v1607 = vrot.slane %v1597, 3
      %v1608 = vsel %vm1599, %v1606, %v1607
      %v1609 = vrot.slane %v1594, 3
      %v1610 = vrot.slane %v1598, 3
      %v1611 = vsel %vm1599, %v1609, %v1610
      %v1684 = vunpack.c.l.b16 %v1503
      %v1685 = vunpack.c.l.b16 %v1504
      %v1686 = vunpack.c.l.b16 %v1505
      %v1687 = vunpack.c.l.b16 %v1506
      %v1688 = vunpack.c.l.b16 %v1507
      %v1689 = vunpack.c.l.b16 %v1508
      %v1690 = vunpack.c.l.b16 %v1509
      %v1691 = vunpack.c.l.b16 %v1510
      %v1692 = vunpack.c.l.b16 %v1511
      %v1693 = vunpack.c.l.b16 %v1512
      %v1694 = vunpack.c.l.b16 %v1513
      %v1695 = vunpack.c.l.b16 %v1514
      %v1696 = vunpack.c.l.b16 %v1515
      %v1697 = vunpack.c.l.b16 %v1516
      %v1698 = vunpack.c.l.b16 %v1517
      %v1699 = vunpack.c.l.b16 %v1518
      %v1700 = vunpack.c.l.b16 %v1519
      %v1701 = vunpack.c.l.b16 %v1520
      %v1702 = vunpack.c.l.b16 %v1521
      %v1703 = vunpack.c.l.b16 %v1522
      %v1704 = vunpack.c.l.b16 %v1523
      %v1705 = vunpack.c.l.b16 %v1524
      %v1706 = vunpack.c.l.b16 %v1525
      %v1707 = vunpack.c.l.b16 %v1526
      %v1708 = vunpack.c.l.b16 %v1527
      %v1709 = vunpack.c.l.b16 %v1528
      %v1710 = vunpack.c.l.b16 %v1529
      %v1711 = vunpack.c.l.b16 %v1530
      %v1712 = vunpack.c.l.b16 %v1531
      %v1713 = vunpack.c.l.b16 %v1532
      %v1714 = vunpack.c.l.b16 %v1533
      %v1715 = vunpack.c.l.b16 %v1534
      %v1716 = vunpack.c.l.b16 %v1535
      %v1717 = vunpack.c.l.b16 %v1536
      %v1718 = vunpack.c.l.b16 %v1537
      %v1719 = vunpack.c.l.b16 %v1538
      %v1720 = vunpack.c.l.b16 %v1539
      %v1721 = vunpack.c.l.b16 %v1540
      %v1722 = vunpack.c.l.b16 %v1541
      %v1723 = vunpack.c.l.b16 %v1542
      %v1724 = vunpack.c.l.b16 %v1543
      %v1725 = vunpack.c.l.b16 %v1544
      %v1726 = vunpack.c.l.b16 %v1545
      %v1727 = vunpack.c.l.b16 %v1546
      %v1728 = vunpack.c.l.b16 %v1547
      %v1729 = vunpack.c.l.b16 %v1548
      %v1730 = vunpack.c.l.b16 %v1549
      %v1731 = vunpack.c.l.b16 %v1550
      %v1732 = vunpack.c.l.b16 %v1551
      %v1733 = vunpack.c.l.b16 %v1552
      %v1734 = vunpack.c.l.b16 %v1553
      %v1735 = vunpack.c.l.b16 %v1554
      %v1736 = vunpack.c.l.b16 %v1555
      %v1737 = vunpack.c.l.b16 %v1556
      %v1738 = vunpack.c.l.b16 %v1557
      %v1739 = vunpack.c.l.b16 %v1558
      %v1740 = vunpack.c.l.b16 %v1559
      %v1741 = vunpack.c.l.b16 %v1560
      %v1742 = vunpack.c.l.b16 %v1561
      %v1743 = vunpack.c.l.b16 %v1562
      %v1744 = vunpack.c.l.b16 %v1563
      %v1745 = vunpack.c.l.b16 %v1564
      %v1746 = vunpack.c.l.b16 %v1565
      %v1747 = vunpack.c.l.b16 %v1566
      %v1748 = vpack.c.b16 %v1685, %v1684
      %v1749 = vpack.c.b16 %v1687, %v1686
      %v1750 = vpack.c.b16 %v1689, %v1688
      %v1751 = vpack.c.b16 %v1691, %v1690
      %v1752 = vpack.c.b16 %v1693, %v1692
      %v1753 = vpack.c.b16 %v1695, %v1694
      %v1754 = vpack.c.b16 %v1697, %v1696
      %v1755 = vpack.c.b16 %v1699, %v1698
      %v1756 = vpack.c.b16 %v1701, %v1700
      %v1757 = vpack.c.b16 %v1703, %v1702
      %v1758 = vpack.c.b16 %v1705, %v1704
      %v1759 = vpack.c.b16 %v1707, %v1706
      %v1760 = vpack.c.b16 %v1709, %v1708
      %v1761 = vpack.c.b16 %v1711, %v1710
      %v1762 = vpack.c.b16 %v1713, %v1712
      %v1763 = vpack.c.b16 %v1715, %v1714
      %v1764 = vpack.c.b16 %v1717, %v1716
      %v1765 = vpack.c.b16 %v1719, %v1718
      %v1766 = vpack.c.b16 %v1721, %v1720
      %v1767 = vpack.c.b16 %v1723, %v1722
      %v1768 = vpack.c.b16 %v1725, %v1724
      %v1769 = vpack.c.b16 %v1727, %v1726
      %v1770 = vpack.c.b16 %v1729, %v1728
      %v1771 = vpack.c.b16 %v1731, %v1730
      %v1772 = vpack.c.b16 %v1733, %v1732
      %v1773 = vpack.c.b16 %v1735, %v1734
      %v1774 = vpack.c.b16 %v1737, %v1736
      %v1775 = vpack.c.b16 %v1739, %v1738
      %v1776 = vpack.c.b16 %v1741, %v1740
      %v1777 = vpack.c.b16 %v1743, %v1742
      %v1778 = vpack.c.b16 %v1745, %v1744
      %v1779 = vpack.c.b16 %v1747, %v1746
      %1812 = vmatprep.subr.bf16.mxu0 0
      %1813 = vmatpush1.bf16.msra.mxu0 %v1748
      %1814 = vmatprep.subr.bf16.mxu0 0
      %1815 = vmatpush1.bf16.msra.mxu0 %v1749
      %1816 = vmatprep.subr.bf16.mxu0 0
      %1817 = vmatpush1.bf16.msra.mxu0 %v1750
      %1818 = vmatprep.subr.bf16.mxu0 0
      %1819 = vmatpush1.bf16.msra.mxu0 %v1751
      %1820 = vmatprep.subr.bf16.mxu0 0
      %1821 = vmatpush1.bf16.msra.mxu0 %v1752
      %1822 = vmatprep.subr.bf16.mxu0 0
      %1823 = vmatpush1.bf16.msra.mxu0 %v1753
      %1824 = vmatprep.subr.bf16.mxu0 0
      %1825 = vmatpush1.bf16.msra.mxu0 %v1754
      %1826 = vmatprep.subr.bf16.mxu0 0
      %1827 = vmatpush1.bf16.msra.mxu0 %v1755
      %1828 = vmatprep.subr.bf16.mxu0 0
      %1829 = vmatpush1.bf16.msra.mxu0 %v1756
      %1830 = vmatprep.subr.bf16.mxu0 0
      %1831 = vmatpush1.bf16.msra.mxu0 %v1757
      %1832 = vmatprep.subr.bf16.mxu0 0
      %1833 = vmatpush1.bf16.msra.mxu0 %v1758
      %1834 = vmatprep.subr.bf16.mxu0 0
      %1835 = vmatpush1.bf16.msra.mxu0 %v1759
      %1836 = vmatprep.subr.bf16.mxu0 0
      %1837 = vmatpush1.bf16.msra.mxu0 %v1760
      %1838 = vmatprep.subr.bf16.mxu0 0
      %1839 = vmatpush1.bf16.msra.mxu0 %v1761
      %1840 = vmatprep.subr.bf16.mxu0 0
      %1841 = vmatpush1.bf16.msra.mxu0 %v1762
      %1842 = vmatprep.subr.bf16.mxu0 0
      %1843 = vmatpush1.bf16.msra.mxu0 %v1763
      %1844 = vmatprep.mubr.bf16.mxu0 %v1605
      %1845 = vmatmul.mubr.bf16.gmra.mrb[0].mxu0 %v1602
      %v1846 = vpop.f32.mrb[0].mxu0
      %v1847 = vadd.f32 0.0, %v1846
      %v1848 = vpop.f32.mrb[0].mxu0
      %v1849 = vpop.f32.mrb[0].mxu0
      %v1850 = vadd.f32 0.0, %v1849
      %v1851 = vpop.f32.mrb[0].mxu0
      %1852 = vmatprep.mubr.bf16.mxu0 %v1604
      %1853 = vmatmul.mubr.bf16.gmra.mrb[0].mxu0 %v1601
      %v1854 = vpop.f32.mrb[0].mxu0
      %v1855 = vadd.f32 0.0, %v1854
      %v1856 = vpop.f32.mrb[0].mxu0
      %v1857 = vpop.f32.mrb[0].mxu0
      %v1858 = vpop.f32.mrb[0].mxu0
      %1859 = vdwg.mxu0
      %1860 = vmatprep.subr.bf16.mxu0 0
      %1861 = vmatpush1.bf16.msra.mxu0 %v1764
      %1862 = vmatprep.subr.bf16.mxu0 0
      %1863 = vmatpush1.bf16.msra.mxu0 %v1765
      %1864 = vmatprep.subr.bf16.mxu0 0
      %1865 = vmatpush1.bf16.msra.mxu0 %v1766
      %1866 = vmatprep.subr.bf16.mxu0 0
      %1867 = vmatpush1.bf16.msra.mxu0 %v1767
      %1868 = vmatprep.subr.bf16.mxu0 0
      %1869 = vmatpush1.bf16.msra.mxu0 %v1768
      %1870 = vmatprep.subr.bf16.mxu0 0
      %1871 = vmatpush1.bf16.msra.mxu0 %v1769
      %1872 = vmatprep.subr.bf16.mxu0 0
      %1873 = vmatpush1.bf16.msra.mxu0 %v1770
      %1874 = vmatprep.subr.bf16.mxu0 0
      %1875 = vmatpush1.bf16.msra.mxu0 %v1771
      %1876 = vmatprep.subr.bf16.mxu0 0
      %1877 = vmatpush1.bf16.msra.mxu0 %v1772
      %1878 = vmatprep.subr.bf16.mxu0 0
      %1879 = vmatpush1.bf16.msra.mxu0 %v1773
      %1880 = vmatprep.subr.bf16.mxu0 0
      %1881 = vmatpush1.bf16.msra.mxu0 %v1774
      %1882 = vmatprep.subr.bf16.mxu0 0
      %1883 = vmatpush1.bf16.msra.mxu0 %v1775
      %1884 = vmatprep.subr.bf16.mxu0 0
      %1885 = vmatpush1.bf16.msra.mxu0 %v1776
      %1886 = vmatprep.subr.bf16.mxu0 0
      %1887 = vmatpush1.bf16.msra.mxu0 %v1777
      %1888 = vmatprep.subr.bf16.mxu0 0
      %1889 = vmatpush1.bf16.msra.mxu0 %v1778
      %1890 = vmatprep.subr.bf16.mxu0 0
      %1891 = vmatpush1.bf16.msra.mxu0 %v1779
      %1892 = vmatprep.mubr.bf16.mxu0 %v1611
      %1893 = vmatmul.mubr.bf16.gmra.mrb[0].mxu0 %v1608
      %v1894 = vpop.f32.mrb[0].mxu0
      %v1895 = vadd.f32 %v1847, %v1894
      %v1896 = vpop.f32.mrb[0].mxu0
      %v1897 = vpop.f32.mrb[0].mxu0
      %v1898 = vadd.f32 %v1850, %v1897
      %v1899 = vpop.f32.mrb[0].mxu0
      %1900 = vmatprep.mubr.bf16.mxu0 %v1610
      %1901 = vmatmul.mubr.bf16.gmra.mrb[0].mxu0 %v1607
      %v1902 = vpop.f32.mrb[0].mxu0
      %v1903 = vadd.f32 %v1855, %v1902
      %v1904 = vpop.f32.mrb[0].mxu0
      %v1905 = vpop.f32.mrb[0].mxu0
      %v1906 = vpop.f32.mrb[0].mxu0
      %1907 = vdwg.mxu0
      %v1908 = vadd.f32 %v1492, %v1895
      %v1909 = vadd.f32 %v1493, %v1898
      %v1910 = vadd.f32 %v1494, %v1903
      %v1911 = vld [vmem:[%s2] sm:$0x1]
      %v1913 = vlaneseq
      %v1914 = vshrl.u32 %v1913, 7
      %v1915 = vsub.s32 0, %v1914
      %v1916 = vrot.slane %v1911, %v1915
      %v1918 = vadd.f32 %v1908, %v1916
      %v1919 = vadd.f32 %v1909, %v1916
      %v1920 = vadd.f32 %v1910, %v1916
      %v1921 = vmax.f32 %v1918, 0.0
      %v1922 = vmax.f32 %v1919, 0.0
      %v1923 = vmax.f32 %v1920, 0.0
      %v1924 = vpack.c.bf16 %v1922, %v1921
      %v1925 = vpack.c.bf16 %v1923, %v1923
      %v1926 = vld [vmem:[%s3] sm:$0xf]
      %v1927 = vld [vmem:[%s3 + $0x4] sm:$0xf]
      %v1928 = vld [vmem:[%s3 + $0x8] sm:$0xf]
      %v1929 = vld [vmem:[%s3 + $0xc] sm:$0xf]
      %v1930 = vld [vmem:[%s3 + $0x10] sm:$0xf]
      %v1931 = vld [vmem:[%s3 + $0x14] sm:$0xf]
      %v1932 = vld [vmem:[%s3 + $0x18] sm:$0xf]
      %v1933 = vld [vmem:[%s3 + $0x1c] sm:$0xf]
      %v1934 = vld [vmem:[%s3 + $0x20] sm:$0xf]
      %v1935 = vld [vmem:[%s3 + $0x24] sm:$0xf]
      %v1936 = vld [vmem:[%s3 + $0x28] sm:$0xf]
      %v1937 = vld [vmem:[%s3 + $0x2c] sm:$0xf]
      %v1938 = vld [vmem:[%s3 + $0x30] sm:$0xf]
      %v1939 = vld [vmem:[%s3 + $0x34] sm:$0xf]
      %v1940 = vld [vmem:[%s3 + $0x38] sm:$0xf]
      %v1941 = vld [vmem:[%s3 + $0x3c] sm:$0xf]
      %v1942 = vld [vmem:[%s4] sm:$0x1]
      %v1944 = vlaneseq
      %v1945 = vshrl.u32 %v1944, 7
      %v1946 = vsub.s32 0, %v1945
      %v1947 = vrot.slane %v1942, %v1946
      %v1965 = vunpack.c.l.b16 %v1926
      %v1966 = vunpack.c.l.b16 %v1927
      %v1967 = vunpack.c.l.b16 %v1928
      %v1968 = vunpack.c.l.b16 %v1929
      %v1969 = vunpack.c.l.b16 %v1930
      %v1970 = vunpack.c.l.b16 %v1931
      %v1971 = vunpack.c.l.b16 %v1932
      %v1972 = vunpack.c.l.b16 %v1933
      %v1973 = vunpack.c.l.b16 %v1934
      %v1974 = vunpack.c.l.b16 %v1935
      %v1975 = vunpack.c.l.b16 %v1936
      %v1976 = vunpack.c.l.b16 %v1937
      %v1977 = vunpack.c.l.b16 %v1938
      %v1978 = vunpack.c.l.b16 %v1939
      %v1979 = vunpack.c.l.b16 %v1940
      %v1980 = vunpack.c.l.b16 %v1941
      %v1981 = vpack.c.b16 %v1966, %v1965
      %v1982 = vpack.c.b16 %v1968, %v1967
      %v1983 = vpack.c.b16 %v1970, %v1969
      %v1984 = vpack.c.b16 %v1972, %v1971
      %v1985 = vpack.c.b16 %v1974, %v1973
      %v1986 = vpack.c.b16 %v1976, %v1975
      %v1987 = vpack.c.b16 %v1978, %v1977
      %v1988 = vpack.c.b16 %v1980, %v1979
      %1997 = vmatprep.subr.bf16.mxu0 0
      %1998 = vmatpush1.bf16.msra.mxu0 %v1981
      %1999 = vmatprep.subr.bf16.mxu0 0
      %2000 = vmatpush1.bf16.msra.mxu0 %v1982
      %2001 = vmatprep.subr.bf16.mxu0 0
      %2002 = vmatpush1.bf16.msra.mxu0 %v1983
      %2003 = vmatprep.subr.bf16.mxu0 0
      %2004 = vmatpush1.bf16.msra.mxu0 %v1984
      %2005 = vmatprep.subr.bf16.mxu0 0
      %2006 = vmatpush1.bf16.msra.mxu0 %v1985
      %2007 = vmatprep.subr.bf16.mxu0 0
      %2008 = vmatpush1.bf16.msra.mxu0 %v1986
      %2009 = vmatprep.subr.bf16.mxu0 0
      %2010 = vmatpush1.bf16.msra.mxu0 %v1987
      %2011 = vmatprep.subr.bf16.mxu0 0
      %2012 = vmatpush1.bf16.msra.mxu0 %v1988
      %2013 = vmatprep.subr.bf16.mxu0 0
      %2014 = vmatpush1.bf16.msra.mxu0 0
      %2015 = vmatprep.subr.bf16.mxu0 0
      %2016 = vmatpush1.bf16.msra.mxu0 0
      %2017 = vmatprep.subr.bf16.mxu0 0
      %2018 = vmatpush1.bf16.msra.mxu0 0
      %2019 = vmatprep.subr.bf16.mxu0 0
      %2020 = vmatpush1.bf16.msra.mxu0 0
      %2021 = vmatprep.subr.bf16.mxu0 0
      %2022 = vmatpush1.bf16.msra.mxu0 0
      %2023 = vmatprep.subr.bf16.mxu0 0
      %2024 = vmatpush1.bf16.msra.mxu0 0
      %2025 = vmatprep.subr.bf16.mxu0 0
      %2026 = vmatpush1.bf16.msra.mxu0 0
      %2027 = vmatprep.subr.bf16.mxu0 0
      %2028 = vmatpush1.bf16.msra.mxu0 0
      %2029 = vmatprep.mubr.bf16.mxu0 0
      %2030 = vmatmul.mubr.bf16.gmra.mrb[0].mxu0 %v1924
      %v2031 = vpop.f32.mrb[0].mxu0
      %v2032 = vadd.f32 %v1947, %v2031
      %v2033 = vpop.f32.mrb[0].mxu0
      %v2034 = vpop.f32.mrb[0].mxu0
      %v2035 = vadd.f32 %v1947, %v2034
      %v2036 = vpop.f32.mrb[0].mxu0
      %2037 = vmatprep.mubr.bf16.mxu0 0
      %2038 = vmatmul.mubr.bf16.gmra.mrb[0].mxu0 %v1925
      %v2039 = vpop.f32.mrb[0].mxu0
      %v2040 = vadd.f32 %v1947, %v2039
      %v2041 = vpop.f32.mrb[0].mxu0
      %v2042 = vpop.f32.mrb[0].mxu0
      %v2043 = vpop.f32.mrb[0].mxu0
      %2044 = vdwg.mxu0
      %2045 = vst [vmem:[%s224] sm:$0xff] 0.0
      %2046 = vst [vmem:[%s224 + $0x8] sm:$0xff] 0.0
      %2047 = vst [vmem:[%s224 + $0x10] sm:$0xf] 0.0
      %2048 = vst [vmem:[%s224] sm:$0xff] %v2032
      %2049 = vst [vmem:[%s224 + $0x8] sm:$0xff] %v2035
      %2050 = vst [vmem:[%s224 + $0x10] sm:$0x7] %v2040
      %p2051 = scmp.lt.s32.totalorder %s16, 1
      %s2052 = scalar_select %p2051, %s16, 1
      %s2053 = smul.addr %s2052, 3
      %s2054 = smul.addr %s2053, 8
      %s2055 = scalar_lea.vmem %s5, %s2054
      // Predicated region
      $region41: #{stem_forward.5} parent=39 // pred_check
        %p2056 = pneg %p144
      $region42: #{stem_forward.5} parent=39 // pred_check_branch
        %2058 = sbr.rel (%p2056) target = $region44
      $region43: #{stem_forward.5} parent=39 // pred_region
        _
      $region44: #{stem_forward.5} parent=39 // pred_fallthru
        _
    $region40: #{stem_forward.5} parent=5 // pred_fallthru
      _
    %p2059 = scmp.le.s32.totalorder 2, %s11
    // Predicated region
    $region45: #{stem_forward.5} parent=5 // pred_check
      %p2060 = pneg %p2059
    $region46: #{stem_forward.5} parent=5 // pred_check_branch
      %2062 = sbr.rel (%p2060) target = $region48
    $region47: #{stem_forward.5} parent=5 // pred_region
      %s2063 = ssub.s32 %s11, 2
      // Predicated region
      $region49: #{stem_forward.5} parent=47 // pred_check
        %p2064 = pneg %p150
      $region50: #{stem_forward.5} parent=47 // pred_check_branch
        %2066 = sbr.rel (%p2064) target = $region52
      $region51: #{stem_forward.5} parent=47 // pred_region
        %p2067 = scmp.lt.s32.totalorder %s17, 1
        %s2068 = scalar_select %p2067, %s17, 1
        %s2069 = smul.addr %s2068, 3
        %s2070 = smul.addr %s2069, 8
        %s2071 = scalar_lea.vmem %s5, %s2070
      $region52: #{stem_forward.5} parent=47 // pred_fallthru
        _
    $region48: #{stem_forward.5} parent=5 // pred_fallthru
      _
  $region6: #{stem_forward.5} parent=0 // loop_footer
    %s15 = sadd.s32 1, %s11
  $region7: #{stem_forward.5} parent=0 // loop_footer_branch
    %10 = sbr.rel target = $region3
  $region8: #{stem_forward.5} parent=0 // loop_exit
    _

// kernel: stem_forward.4
$region0: #{stem_forward.4}
  #allocation0 [shape = 'u32[]', space=smem, size = 0x4, offset = 0x4, fixed_abs, tag = 'smem constant byte address 0x4 - core index']
  #allocation1 [shape = 'u32[144,128]{1,0:T(1,128)}', space=vmem, size = 0x12000, scoped, tag = 'internal scratch']
  #allocation2 [shape = 'bf16[100,128]{1,0:T(8,128)(2,1)}', space=vmem, size = 0x6800, scoped, tag = 'scratch operand']
  %s0 = inlined_call_operand.vmem [shape: bf16[2,100,128], index: 0, kind: input, shape index: {}]
  %s1 = inlined_call_operand.vmem [shape: bf16[1152,128], index: 1, kind: input, shape index: {}]
  %s2 = inlined_call_operand.vmem [shape: f32[1,128], index: 2, kind: input, shape index: {}]
  %s3 = inlined_call_operand.vmem [shape: bf16[1152,128], index: 3, kind: input, shape index: {}]
  %s4 = inlined_call_operand.vmem [shape: f32[1,128], index: 4, kind: input, shape index: {}]
  %s5 = inlined_call_operand.vmem [shape: f32[78,1], index: 5, kind: input, shape index: {}]
  %s6 = inlined_call_operand.vmem [shape: bf16[2,100,128], index: 6, kind: output, shape index: {}]
  %s7 = sld [smem:[#allocation0]]
  $region57: #{stem_forward.4} parent=0
    _
  %s9 = ssub.s32 1, %s7
  %s10 = scalar_select 0, %s9, %s7
  loop: start=0, step=1, limit=4
  $region2: #{stem_forward.4} parent=0 // loop_pre_header
    _
  $region3: #{stem_forward.4} parent=0 // loop_header
    %s12 = sphi 0, %s16
    %p13 = scmp.ge.s32.totalorder %s12, 4
    %s22 = sphi 0, %s24
    %s25 = sphi 0, %s22
    %s26 = sphi 0, %s25
    %s42 = sphi 0, %s26
    %s46 = sphi 0, %s46
    %s48 = sphi 0, %s46
    %s49 = sphi 0, %s48
    %s63 = sphi 0, %s49
    %s67 = sphi 0, %s67
    %s69 = sphi 0, %s67
    %s70 = sphi 0, %s69
    %s84 = sphi 0, %s70
    %s88 = sphi 0, %s88
    %s90 = sphi 0, %s88
    %s91 = sphi 0, %s90
    %s105 = sphi 0, %s91
    %s109 = sphi 0, %s109
    %s111 = sphi 0, %s109
    %s112 = sphi 0, %s111
    %s126 = sphi 0, %s112
    %s130 = sphi 0, %s130
    %s132 = sphi 0, %s130
    %s133 = sphi 0, %s132
    %s147 = sphi 0, %s133
    %s153 = sphi 0, %s155
    %s156 = sphi 0, %s153
    %s157 = sphi 0, %s156
    %s173 = sphi 0, %s157
  $region4: #{stem_forward.4} parent=0 // loop_header_branch
    %15 = sbr.rel (%p13) target = $region8
  $region5: #{stem_forward.4} parent=0 // loop_body
    %s17 = ssub.s32 %s12, 1
    %s18 = ssub.s32 %s12, 2
    %s19 = sadd.s32 %s12, 1
    %s20 = ssub.s32 %s12, %s19
    %p21 = scmp.eq.s32.totalorder %s20, 0
    %s23 = sadd.s32 %s22, 1
    %s24 = scalar_select %p21, %s22, %s23
    %p27 = pneg %p21
    %p28 = scmp.eq.s32.totalorder %s12, 1
    %p29 = por %p27, %p28
    %p30 = scmp.ne.s32.totalorder %s22, %s25
    %p31 = scmp.eq.s32.totalorder %s12, 0
    %p32 = por %p30, %p31
    %p33 = scmp.ne.s32.totalorder %s22, %s25
    %p34 = scmp.eq.s32.totalorder %s17, 1
    %p35 = por %p33, %p34
    %p36 = scmp.ne.s32.totalorder %s25, %s26
    %p37 = scmp.eq.s32.totalorder %s17, 0
    %p38 = por %p36, %p37
    %p39 = scmp.ne.s32.totalorder %s25, %s26
    %p40 = scmp.eq.s32.totalorder %s18, 1
    %p41 = por %p39, %p40
    %p43 = scmp.ne.s32.totalorder %s26, %s42
    %p44 = scmp.eq.s32.totalorder %s18, 0
    %p45 = por %p43, %p44
    %s47 = sadd.s32 %s46, 1
    %p50 = scmp.eq.s32.totalorder %s12, 1
    %p51 = scmp.ne.s32.totalorder %s46, %s48
    %p52 = scmp.eq.s32.totalorder %s12, 0
    %p53 = por %p51, %p52
    %p54 = scmp.ne.s32.totalorder %s46, %s48
    %p55 = scmp.eq.s32.totalorder %s17, 1
    %p56 = por %p54, %p55
    %p57 = scmp.ne.s32.totalorder %s48, %s49
    %p58 = scmp.eq.s32.totalorder %s17, 0
    %p59 = por %p57, %p58
    %p60 = scmp.ne.s32.totalorder %s48, %s49
    %p61 = scmp.eq.s32.totalorder %s18, 1
    %p62 = por %p60, %p61
    %p64 = scmp.ne.s32.totalorder %s49, %s63
    %p65 = scmp.eq.s32.totalorder %s18, 0
    %p66 = por %p64, %p65
    %s68 = sadd.s32 %s67, 1
    %p71 = scmp.eq.s32.totalorder %s12, 1
    %p72 = scmp.ne.s32.totalorder %s67, %s69
    %p73 = scmp.eq.s32.totalorder %s12, 0
    %p74 = por %p72, %p73
    %p75 = scmp.ne.s32.totalorder %s67, %s69
    %p76 = scmp.eq.s32.totalorder %s17, 1
    %p77 = por %p75, %p76
    %p78 = scmp.ne.s32.totalorder %s69, %s70
    %p79 = scmp.eq.s32.totalorder %s17, 0
    %p80 = por %p78, %p79
    %p81 = scmp.ne.s32.totalorder %s69, %s70
    %p82 = scmp.eq.s32.totalorder %s18, 1
    %p83 = por %p81, %p82
    %p85 = scmp.ne.s32.totalorder %s70, %s84
    %p86 = scmp.eq.s32.totalorder %s18, 0
    %p87 = por %p85, %p86
    %s89 = sadd.s32 %s88, 1
    %p92 = scmp.eq.s32.totalorder %s12, 1
    %p93 = scmp.ne.s32.totalorder %s88, %s90
    %p94 = scmp.eq.s32.totalorder %s12, 0
    %p95 = por %p93, %p94
    %p96 = scmp.ne.s32.totalorder %s88, %s90
    %p97 = scmp.eq.s32.totalorder %s17, 1
    %p98 = por %p96, %p97
    %p99 = scmp.ne.s32.totalorder %s90, %s91
    %p100 = scmp.eq.s32.totalorder %s17, 0
    %p101 = por %p99, %p100
    %p102 = scmp.ne.s32.totalorder %s90, %s91
    %p103 = scmp.eq.s32.totalorder %s18, 1
    %p104 = por %p102, %p103
    %p106 = scmp.ne.s32.totalorder %s91, %s105
    %p107 = scmp.eq.s32.totalorder %s18, 0
    %p108 = por %p106, %p107
    %s110 = sadd.s32 %s109, 1
    %p113 = scmp.eq.s32.totalorder %s12, 1
    %p114 = scmp.ne.s32.totalorder %s109, %s111
    %p115 = scmp.eq.s32.totalorder %s12, 0
    %p116 = por %p114, %p115
    %p117 = scmp.ne.s32.totalorder %s109, %s111
    %p118 = scmp.eq.s32.totalorder %s17, 1
    %p119 = por %p117, %p118
    %p120 = scmp.ne.s32.totalorder %s111, %s112
    %p121 = scmp.eq.s32.totalorder %s17, 0
    %p122 = por %p120, %p121
    %p123 = scmp.ne.s32.totalorder %s111, %s112
    %p124 = scmp.eq.s32.totalorder %s18, 1
    %p125 = por %p123, %p124
    %p127 = scmp.ne.s32.totalorder %s112, %s126
    %p128 = scmp.eq.s32.totalorder %s18, 0
    %p129 = por %p127, %p128
    %s131 = sadd.s32 %s130, 1
    %p134 = scmp.eq.s32.totalorder %s12, 1
    %p135 = scmp.ne.s32.totalorder %s130, %s132
    %p136 = scmp.eq.s32.totalorder %s12, 0
    %p137 = por %p135, %p136
    %p138 = scmp.ne.s32.totalorder %s130, %s132
    %p139 = scmp.eq.s32.totalorder %s17, 1
    %p140 = por %p138, %p139
    %p141 = scmp.ne.s32.totalorder %s132, %s133
    %p142 = scmp.eq.s32.totalorder %s17, 0
    %p143 = por %p141, %p142
    %p144 = scmp.ne.s32.totalorder %s132, %s133
    %p145 = scmp.eq.s32.totalorder %s18, 1
    %p146 = por %p144, %p145
    %p148 = scmp.ne.s32.totalorder %s133, %s147
    %p149 = scmp.eq.s32.totalorder %s18, 0
    %p150 = por %p148, %p149
    %s151 = ssub.s32 %s12, %s19
    %p152 = scmp.eq.s32.totalorder %s151, 0
    %s154 = sadd.s32 %s153, 1
    %s155 = scalar_select %p152, %s153, %s154
    %p158 = pneg %p152
    %p159 = scmp.eq.s32.totalorder %s12, 1
    %p160 = por %p158, %p159
    %p161 = scmp.ne.s32.totalorder %s153, %s156
    %p162 = scmp.eq.s32.totalorder %s12, 0
    %p163 = por %p161, %p162
    %p164 = scmp.ne.s32.totalorder %s153, %s156
    %p165 = scmp.eq.s32.totalorder %s17, 1
    %p166 = por %p164, %p165
    %p167 = scmp.ne.s32.totalorder %s156, %s157
    %p168 = scmp.eq.s32.totalorder %s17, 0
    %p169 = por %p167, %p168
    %p170 = scmp.ne.s32.totalorder %s156, %s157
    %p171 = scmp.eq.s32.totalorder %s18, 1
    %p172 = por %p170, %p171
    %p174 = scmp.ne.s32.totalorder %s157, %s173
    %p175 = scmp.eq.s32.totalorder %s18, 0
    %p176 = por %p174, %p175
    %p177 = scmp.le.s32.totalorder 1, %s12
    %p178 = scmp.lt.s32.totalorder %s12, 3
    %p179 = pnand %p177, %p178
    %p180 = pneg %p179
    // Predicated region
    $region9: #{stem_forward.4} parent=5 // pred_check
      _
    $region10: #{stem_forward.4} parent=5 // pred_check_branch
      %182 = sbr.rel (%p179) target = $region12
    $region11: #{stem_forward.4} parent=5 // pred_region
      %s183 = ssub.s32 %s12, 1
      // Predicated region
      $region13: #{stem_forward.4} parent=11 // pred_check
        %p184 = pneg %p59
      $region14: #{stem_forward.4} parent=11 // pred_check_branch
        %186 = sbr.rel (%p184) target = $region16
      $region15: #{stem_forward.4} parent=11 // pred_region
        _
      $region16: #{stem_forward.4} parent=11 // pred_fallthru
        _
      // Predicated region
      $region17: #{stem_forward.4} parent=11 // pred_check
        %p187 = pneg %p80
      $region18: #{stem_forward.4} parent=11 // pred_check_branch
        %189 = sbr.rel (%p187) target = $region20
      $region19: #{stem_forward.4} parent=11 // pred_region
        _
      $region20: #{stem_forward.4} parent=11 // pred_fallthru
        _
      // Predicated region
      $region21: #{stem_forward.4} parent=11 // pred_check
        %p190 = pneg %p101
      $region22: #{stem_forward.4} parent=11 // pred_check_branch
        %192 = sbr.rel (%p190) target = $region24
      $region23: #{stem_forward.4} parent=11 // pred_region
        _
      $region24: #{stem_forward.4} parent=11 // pred_fallthru
        _
      // Predicated region
      $region25: #{stem_forward.4} parent=11 // pred_check
        %p193 = pneg %p122
      $region26: #{stem_forward.4} parent=11 // pred_check_branch
        %195 = sbr.rel (%p193) target = $region28
      $region27: #{stem_forward.4} parent=11 // pred_region
        _
      $region28: #{stem_forward.4} parent=11 // pred_fallthru
        _
      // Predicated region
      $region29: #{stem_forward.4} parent=11 // pred_check
        %p196 = pneg %p143
      $region30: #{stem_forward.4} parent=11 // pred_check_branch
        %198 = sbr.rel (%p196) target = $region32
      $region31: #{stem_forward.4} parent=11 // pred_region
        _
      $region32: #{stem_forward.4} parent=11 // pred_fallthru
        _
    $region12: #{stem_forward.4} parent=5 // pred_fallthru
      _
    %p199 = scmp.lt.s32.totalorder %s12, 2
    // Predicated region
    $region33: #{stem_forward.4} parent=5 // pred_check
      %p200 = pneg %p199
    $region34: #{stem_forward.4} parent=5 // pred_check_branch
      %202 = sbr.rel (%p200) target = $region36
    $region35: #{stem_forward.4} parent=5 // pred_region
      // Predicated region
      $region37: #{stem_forward.4} parent=35 // pred_check
        %p203 = pneg %p32
      $region38: #{stem_forward.4} parent=35 // pred_check_branch
        %205 = sbr.rel (%p203) target = $region40
      $region39: #{stem_forward.4} parent=35 // pred_region
        %p206 = scmp.lt.s32.totalorder %s12, 1
        %s207 = scalar_select %p206, %s12, 1
        %s208 = smul.addr %s207, 13
        %s209 = smul.addr %s208, 4
        %s210 = scalar_lea.vmem %s0, %s209
      $region40: #{stem_forward.4} parent=35 // pred_fallthru
        _
    $region36: #{stem_forward.4} parent=5 // pred_fallthru
      _
    %p211 = scmp.le.s32.totalorder 1, %s12
    %p212 = scmp.lt.s32.totalorder %s12, 3
    %p213 = pnand %p211, %p212
    %p214 = pneg %p213
    // Predicated region
    $region41: #{stem_forward.4} parent=5 // pred_check
      _
    $region42: #{stem_forward.4} parent=5 // pred_check_branch
      %216 = sbr.rel (%p213) target = $region44
    $region43: #{stem_forward.4} parent=5 // pred_region
      %s217 = ssub.s32 %s12, 1
      %p218 = scmp.lt.s32.totalorder %s17, 1
      %s219 = scalar_select %p218, %s17, 1
      %s220 = smul.addr %s219, 13
      %s221 = smul.addr %s220, 4
      %s222 = scalar_lea.vmem %s0, %s221
      %p223 = pneg %p38
      %p224 = pneg %p35
      %p225 = pneg %p59
      %p226 = pneg %p56
      %p227 = pneg %p80
      %p228 = pneg %p77
      %p229 = pneg %p101
      %p230 = pneg %p98
      %p231 = pneg %p122
      %p232 = pneg %p119
      %p233 = pneg %p143
      %p234 = pneg %p140
      %p235 = pneg %p169
      %p236 = pneg %p166
      %p237 = scmp.lt.s32.totalorder %s17, 1
      %s238 = scalar_select %p237, %s17, 1
      %s239 = smul.addr %s238, 13
      %s240 = smul.addr %s239, 4
      %s241 = scalar_lea.vmem %s6, %s240
      %p242 = scmp.lt.s32.totalorder %s17, 1
      %s243 = scalar_select %p242, %s17, 1
      %s244 = smul.addr %s243, 13
      %s245 = smul.addr %s244, 4
      %s246 = scalar_lea.vmem %s0, %s245
      %p247 = scmp.lt.s32.totalorder %s17, 1
      %s248 = scalar_select %p247, %s17, 1
      %s249 = smul.addr %s248, 13
      %s250 = smul.addr %s249, 4
      %s251 = scalar_lea.vmem %s6, %s250
      %v253 = vld [vmem:[%s246] sm:$0xf]
      %v254 = vld [vmem:[%s246 + $0x4] sm:$0xf]
      %v255 = vld [vmem:[%s246 + $0x8] sm:$0xf]
      %v256 = vld [vmem:[%s246 + $0xc] sm:$0xf]
      %v257 = vld [vmem:[%s246 + $0x10] sm:$0xf]
      %v258 = vld [vmem:[%s246 + $0x14] sm:$0xf]
      %v259 = vld [vmem:[%s246 + $0x18] sm:$0xf]
      %v260 = vld [vmem:[%s246 + $0x1c] sm:$0xf]
      %v261 = vld [vmem:[%s246 + $0x20] sm:$0xf]
      %v262 = vld [vmem:[%s246 + $0x24] sm:$0x7]
      %v263 = vld [vmem:[%s1] sm:$0xf]
      %v264 = vld [vmem:[%s1 + $0x4] sm:$0xf]
      %v265 = vld [vmem:[%s1 + $0x8] sm:$0xf]
      %v266 = vld [vmem:[%s1 + $0xc] sm:$0xf]
      %v267 = vld [vmem:[%s1 + $0x10] sm:$0xf]
      %v268 = vld [vmem:[%s1 + $0x14] sm:$0xf]
      %v269 = vld [vmem:[%s1 + $0x18] sm:$0xf]
      %v270 = vld [vmem:[%s1 + $0x1c] sm:$0xf]
      %v271 = vld [vmem:[%s1 + $0x20] sm:$0xf]
      %v272 = vld [vmem:[%s1 + $0x24] sm:$0xf]
      %v273 = vld [vmem:[%s1 + $0x28] sm:$0xf]
      %v274 = vld [vmem:[%s1 + $0x2c] sm:$0xf]
      %v275 = vld [vmem:[%s1 + $0x30] sm:$0xf]
      %v276 = vld [vmem:[%s1 + $0x34] sm:$0xf]
      %v277 = vld [vmem:[%s1 + $0x38] sm:$0xf]
      %v278 = vld [vmem:[%s1 + $0x3c] sm:$0xf]
      %v279 = vld [vmem:[%s246 + $0x24] sm:$0xf]
      %v280 = vld [vmem:[%s1 + $0x40] sm:$0xf]
      %v281 = vld [vmem:[%s1 + $0x44] sm:$0xf]
      %v282 = vld [vmem:[%s1 + $0x48] sm:$0xf]
      %v283 = vld [vmem:[%s1 + $0x4c] sm:$0xf]
      %v284 = vld [vmem:[%s1 + $0x50] sm:$0xf]
      %v285 = vld [vmem:[%s1 + $0x54] sm:$0xf]
      %v286 = vld [vmem:[%s1 + $0x58] sm:$0xf]
      %v287 = vld [vmem:[%s1 + $0x5c] sm:$0xf]
      %v288 = vld [vmem:[%s1 + $0x60] sm:$0xf]
      %v289 = vld [vmem:[%s1 + $0x64] sm:$0xf]
      %v290 = vld [vmem:[%s1 + $0x68] sm:$0xf]
      %v291 = vld [vmem:[%s1 + $0x6c] sm:$0xf]
      %v292 = vld [vmem:[%s1 + $0x70] sm:$0xf]
      %v293 = vld [vmem:[%s1 + $0x74] sm:$0xf]
      %v294 = vld [vmem:[%s1 + $0x78] sm:$0xf]
      %v295 = vld [vmem:[%s1 + $0x7c] sm:$0xf]
      %v306 = vunpack.c.l.b16 %v253
      %v307 = vunpack.c.l.b16 %v254
      %v308 = vunpack.c.l.b16 %v255
      %v309 = vunpack.c.l.b16 %v256
      %v310 = vunpack.c.l.b16 %v257
      %v311 = vunpack.c.l.b16 %v258
      %v312 = vunpack.c.l.b16 %v259
      %v313 = vunpack.c.l.b16 %v260
      %v314 = vunpack.c.l.b16 %v261
      %v315 = vunpack.c.l.b16 %v279
      %v316 = vpack.c.b16 %v307, %v306
      %v317 = vpack.c.b16 %v309, %v308
      %v318 = vpack.c.b16 %v311, %v310
      %v319 = vpack.c.b16 %v313, %v312
      %v320 = vpack.c.b16 %v315, %v314
      %vm321 = vsmask.f32 7424
      %v323 = vshrl.u32 %v316, 16
      %v325 = vshll.u32 %v316, 16
      %v327 = vrot.slane %v325, 1
      %v328 = vor.u32 %v323, %v327
      %v330 = vshll.u32 %v317, 16
      %v332 = vrot.slane %v330, 1
      %v333 = vsel %vm321, %v328, %v332
      %v334 = vshrl.u32 %v317, 16
      %v336 = vor.u32 %v334, %v332
      %v338 = vshll.u32 %v318, 16
      %v340 = vrot.slane %v338, 1
      %v341 = vsel %vm321, %v336, %v340
      %v342 = vshrl.u32 %v318, 16
      %v344 = vor.u32 %v342, %v340
      %v346 = vshll.u32 %v319, 16
      %v348 = vrot.slane %v346, 1
      %v349 = vsel %vm321, %v344, %v348
      %v350 = vshrl.u32 %v319, 16
      %v352 = vor.u32 %v350, %v348
      %v354 = vshll.u32 %v320, 16
      %v356 = vrot.slane %v354, 1
      %v357 = vsel %vm321, %v352, %v356
      %v358 = vshrl.u32 %v320, 16
      %v360 = vor.u32 %v358, %v356
      %v382 = vunpack.c.l.b16 %v280
      %v383 = vunpack.c.l.b16 %v281
      %v384 = vunpack.c.l.b16 %v282
      %v385 = vunpack.c.l.b16 %v283
      %v386 = vunpack.c.l.b16 %v284
      %v387 = vunpack.c.l.b16 %v285
      %v388 = vunpack.c.l.b16 %v286
      %v389 = vunpack.c.l.b16 %v287
      %v390 = vunpack.c.l.b16 %v288
      %v391 = vunpack.c.l.b16 %v289
      %v392 = vunpack.c.l.b16 %v290
      %v393 = vunpack.c.l.b16 %v291
      %v394 = vunpack.c.l.b16 %v292
      %v395 = vunpack.c.l.b16 %v293
      %v396 = vunpack.c.l.b16 %v294
      %v397 = vunpack.c.l.b16 %v295
      %v398 = vpack.c.b16 %v383, %v382
      %v399 = vpack.c.b16 %v385, %v384
      %v400 = vpack.c.b16 %v387, %v386
      %v401 = vpack.c.b16 %v389, %v388
      %v402 = vpack.c.b16 %v391, %v390
      %v403 = vpack.c.b16 %v393, %v392
      %v404 = vpack.c.b16 %v395, %v394
      %v405 = vpack.c.b16 %v397, %v396
      %414 = vmatprep.subr.bf16.mxu0 0
      %415 = vmatpush1.bf16.msra.mxu0 %v398
      %416 = vmatprep.subr.bf16.mxu0 0
      %417 = vmatpush1.bf16.msra.mxu0 %v399
      %418 = vmatprep.subr.bf16.mxu0 0
      %419 = vmatpush1.bf16.msra.mxu0 %v400
      %420 = vmatprep.subr.bf16.mxu0 0
      %421 = vmatpush1.bf16.msra.mxu0 %v401
      %422 = vmatprep.subr.bf16.mxu0 0
      %423 = vmatpush1.bf16.msra.mxu0 %v402
      %424 = vmatprep.subr.bf16.mxu0 0
      %425 = vmatpush1.bf16.msra.mxu0 %v403
      %426 = vmatprep.subr.bf16.mxu0 0
      %427 = vmatpush1.bf16.msra.mxu0 %v404
      %428 = vmatprep.subr.bf16.mxu0 0
      %429 = vmatpush1.bf16.msra.mxu0 %v405
      %430 = vmatprep.subr.bf16.mxu0 0
      %431 = vmatpush1.bf16.msra.mxu0 0
      %432 = vmatprep.subr.bf16.mxu0 0
      %433 = vmatpush1.bf16.msra.mxu0 0
      %434 = vmatprep.subr.bf16.mxu0 0
      %435 = vmatpush1.bf16.msra.mxu0 0
      %436 = vmatprep.subr.bf16.mxu0 0
      %437 = vmatpush1.bf16.msra.mxu0 0
      %438 = vmatprep.subr.bf16.mxu0 0
      %439 = vmatpush1.bf16.msra.mxu0 0
      %440 = vmatprep.subr.bf16.mxu0 0
      %441 = vmatpush1.bf16.msra.mxu0 0
      %442 = vmatprep.subr.bf16.mxu0 0
      %443 = vmatpush1.bf16.msra.mxu0 0
      %444 = vmatprep.subr.bf16.mxu0 0
      %445 = vmatpush1.bf16.msra.mxu0 0
      %446 = vmatprep.mubr.bf16.mxu0 0
      %447 = vmatmul.mubr.bf16.gmra.mrb[0].mxu0 %v333
      %v448 = vpop.f32.mrb[0].mxu0
      %v449 = vadd.f32 0.0, %v448
      %v450 = vpop.f32.mrb[0].mxu0
      %v451 = vpop.f32.mrb[0].mxu0
      %v452 = vadd.f32 0.0, %v451
      %v453 = vpop.f32.mrb[0].mxu0
      %454 = vmatprep.mubr.bf16.mxu0 0
      %455 = vmatmul.mubr.bf16.gmra.mrb[0].mxu0 %v341
      %v456 = vpop.f32.mrb[0].mxu0
      %v457 = vadd.f32 0.0, %v456
      %v458 = vpop.f32.mrb[0].mxu0
      %v459 = vpop.f32.mrb[0].mxu0
      %v460 = vadd.f32 0.0, %v459
      %v461 = vpop.f32.mrb[0].mxu0
      %462 = vmatprep.mubr.bf16.mxu0 0
      %463 = vmatmul.mubr.bf16.gmra.mrb[0].mxu0 %v349
      %v464 = vpop.f32.mrb[0].mxu0
      %v465 = vadd.f32 0.0, %v464
      %v466 = vpop.f32.mrb[0].mxu0
      %v467 = vpop.f32.mrb[0].mxu0
      %v468 = vadd.f32 0.0, %v467
      %v469 = vpop.f32.mrb[0].mxu0
      %470 = vmatprep.mubr.bf16.mxu0 0
      %471 = vmatmul.mubr.bf16.gmra.mrb[0].mxu0 %v357
      %v472 = vpop.f32.mrb[0].mxu0
      %v473 = vadd.f32 0.0, %v472
      %v474 = vpop.f32.mrb[0].mxu0
      %v475 = vpop.f32.mrb[0].mxu0
      %v476 = vadd.f32 0.0, %v475
      %v477 = vpop.f32.mrb[0].mxu0
      %478 = vmatprep.mubr.bf16.mxu0 0
      %479 = vmatmul.mubr.bf16.gmra.mrb[0].mxu0 %v360
      %v480 = vpop.f32.mrb[0].mxu0
      %v481 = vadd.f32 0.0, %v480
      %v482 = vpop.f32.mrb[0].mxu0
      %v483 = vpop.f32.mrb[0].mxu0
      %v484 = vadd.f32 0.0, %v483
      %v485 = vpop.f32.mrb[0].mxu0
      %486 = vdwg.mxu0
      %v488 = vunpack.c.l.b16 %v262
      %v489 = vpack.c.b16 %v488, %v314
      %v511 = vunpack.c.l.b16 %v263
      %v512 = vunpack.c.l.b16 %v264
      %v513 = vunpack.c.l.b16 %v265
      %v514 = vunpack.c.l.b16 %v266
      %v515 = vunpack.c.l.b16 %v267
      %v516 = vunpack.c.l.b16 %v268
      %v517 = vunpack.c.l.b16 %v269
      %v518 = vunpack.c.l.b16 %v270
      %v519 = vunpack.c.l.b16 %v271
      %v520 = vunpack.c.l.b16 %v272
      %v521 = vunpack.c.l.b16 %v273
      %v522 = vunpack.c.l.b16 %v274
      %v523 = vunpack.c.l.b16 %v275
      %v524 = vunpack.c.l.b16 %v276
      %v525 = vunpack.c.l.b16 %v277
      %v526 = vunpack.c.l.b16 %v278
      %v527 = vpack.c.b16 %v512, %v511
      %v528 = vpack.c.b16 %v514, %v513
      %v529 = vpack.c.b16 %v516, %v515
      %v530 = vpack.c.b16 %v518, %v517
      %v531 = vpack.c.b16 %v520, %v519
      %v532 = vpack.c.b16 %v522, %v521
      %v533 = vpack.c.b16 %v524, %v523
      %v534 = vpack.c.b16 %v526, %v525
      %543 = vmatprep.subr.bf16.mxu0 0
      %544 = vmatpush1.bf16.msra.mxu0 %v527
      %545 = vmatprep.subr.bf16.mxu0 0
      %546 = vmatpush1.bf16.msra.mxu0 %v528
      %547 = vmatprep.subr.bf16.mxu0 0
      %548 = vmatpush1.bf16.msra.mxu0 %v529
      %549 = vmatprep.subr.bf16.mxu0 0
      %550 = vmatpush1.bf16.msra.mxu0 %v530
      %551 = vmatprep.subr.bf16.mxu0 0
      %552 = vmatpush1.bf16.msra.mxu0 %v531
      %553 = vmatprep.subr.bf16.mxu0 0
      %554 = vmatpush1.bf16.msra.mxu0 %v532
      %555 = vmatprep.subr.bf16.mxu0 0
      %556 = vmatpush1.bf16.msra.mxu0 %v533
      %557 = vmatprep.subr.bf16.mxu0 0
      %558 = vmatpush1.bf16.msra.mxu0 %v534
      %559 = vmatprep.subr.bf16.mxu0 0
      %560 = vmatpush1.bf16.msra.mxu0 0
      %561 = vmatprep.subr.bf16.mxu0 0
      %562 = vmatpush1.bf16.msra.mxu0 0
      %563 = vmatprep.subr.bf16.mxu0 0
      %564 = vmatpush1.bf16.msra.mxu0 0
      %565 = vmatprep.subr.bf16.mxu0 0
      %566 = vmatpush1.bf16.msra.mxu0 0
      %567 = vmatprep.subr.bf16.mxu0 0
      %568 = vmatpush1.bf16.msra.mxu0 0
      %569 = vmatprep.subr.bf16.mxu0 0
      %570 = vmatpush1.bf16.msra.mxu0 0
      %571 = vmatprep.subr.bf16.mxu0 0
      %572 = vmatpush1.bf16.msra.mxu0 0
      %573 = vmatprep.subr.bf16.mxu0 0
      %574 = vmatpush1.bf16.msra.mxu0 0
      %575 = vmatprep.mubr.bf16.mxu0 0
      %576 = vmatmul.mubr.bf16.gmra.mrb[0].mxu0 %v316
      %v577 = vpop.f32.mrb[0].mxu0
      %v578 = vadd.f32 %v449, %v577
      %v579 = vpop.f32.mrb[0].mxu0
      %v580 = vpop.f32.mrb[0].mxu0
      %v581 = vadd.f32 %v452, %v580
      %v582 = vpop.f32.mrb[0].mxu0
      %583 = vmatprep.mubr.bf16.mxu0 0
      %584 = vmatmul.mubr.bf16.gmra.mrb[0].mxu0 %v317
      %v585 = vpop.f32.mrb[0].mxu0
      %v586 = vadd.f32 %v457, %v585
      %v587 = vpop.f32.mrb[0].mxu0
      %v588 = vpop.f32.mrb[0].mxu0
      %v589 = vadd.f32 %v460, %v588
      %v590 = vpop.f32.mrb[0].mxu0
      %591 = vmatprep.mubr.bf16.mxu0 0
      %592 = vmatmul.mubr.bf16.gmra.mrb[0].mxu0 %v318
      %v593 = vpop.f32.mrb[0].mxu0
      %v594 = vadd.f32 %v465, %v593
      %v595 = vpop.f32.mrb[0].mxu0
      %v596 = vpop.f32.mrb[0].mxu0
      %v597 = vadd.f32 %v468, %v596
      %v598 = vpop.f32.mrb[0].mxu0
      %599 = vmatprep.mubr.bf16.mxu0 0
      %600 = vmatmul.mubr.bf16.gmra.mrb[0].mxu0 %v319
      %v601 = vpop.f32.mrb[0].mxu0
      %v602 = vadd.f32 %v473, %v601
      %v603 = vpop.f32.mrb[0].mxu0
      %v604 = vpop.f32.mrb[0].mxu0
      %v605 = vadd.f32 %v476, %v604
      %v606 = vpop.f32.mrb[0].mxu0
      %607 = vmatprep.mubr.bf16.mxu0 0
      %608 = vmatmul.mubr.bf16.gmra.mrb[0].mxu0 %v489
      %v609 = vpop.f32.mrb[0].mxu0
      %v610 = vadd.f32 %v481, %v609
      %v611 = vpop.f32.mrb[0].mxu0
      %v612 = vpop.f32.mrb[0].mxu0
      %v613 = vadd.f32 %v484, %v612
      %v614 = vpop.f32.mrb[0].mxu0
      %615 = vdwg.mxu0
      %v616 = vld [vmem:[%s246] sm:$0xe]
      %v617 = vld [vmem:[%s1 + $0x80] sm:$0xf]
      %v618 = vld [vmem:[%s1 + $0x84] sm:$0xf]
      %v619 = vld [vmem:[%s1 + $0x88] sm:$0xf]
      %v620 = vld [vmem:[%s1 + $0x8c] sm:$0xf]
      %v621 = vld [vmem:[%s1 + $0x90] sm:$0xf]
      %v622 = vld [vmem:[%s1 + $0x94] sm:$0xf]
      %v623 = vld [vmem:[%s1 + $0x98] sm:$0xf]
      %v624 = vld [vmem:[%s1 + $0x9c] sm:$0xf]
      %v625 = vld [vmem:[%s1 + $0xa0] sm:$0xf]
      %v626 = vld [vmem:[%s1 + $0xa4] sm:$0xf]
      %v627 = vld [vmem:[%s1 + $0xa8] sm:$0xf]
      %v628 = vld [vmem:[%s1 + $0xac] sm:$0xf]
      %v629 = vld [vmem:[%s1 + $0xb0] sm:$0xf]
      %v630 = vld [vmem:[%s1 + $0xb4] sm:$0xf]
      %v631 = vld [vmem:[%s1 + $0xb8] sm:$0xf]
      %v632 = vld [vmem:[%s1 + $0xbc] sm:$0xf]
      %v634 = vunpack.c.l.b16 %v616
      %v635 = vpack.c.b16 %v307, %v634
      %vm636 = vcmask 1046528
      %v637 = vrot.slane %v635, 1
      %v638 = vrot.slane %v317, 1
      %v639 = vsel %vm636, %v637, %v638
      %v640 = vrot.slane %v318, 1
      %v641 = vsel %vm636, %v638, %v640
      %v642 = vrot.slane %v319, 1
      %v643 = vsel %vm636, %v640, %v642
      %v644 = vrot.slane %v320, 1
      %v645 = vsel %vm636, %v642, %v644
      %v667 = vunpack.c.l.b16 %v617
      %v668 = vunpack.c.l.b16 %v618
      %v669 = vunpack.c.l.b16 %v619
      %v670 = vunpack.c.l.b16 %v620
      %v671 = vunpack.c.l.b16 %v621
      %v672 = vunpack.c.l.b16 %v622
      %v673 = vunpack.c.l.b16 %v623
      %v674 = vunpack.c.l.b16 %v624
      %v675 = vunpack.c.l.b16 %v625
      %v676 = vunpack.c.l.b16 %v626
      %v677 = vunpack.c.l.b16 %v627
      %v678 = vunpack.c.l.b16 %v628
      %v679 = vunpack.c.l.b16 %v629
      %v680 = vunpack.c.l.b16 %v630
      %v681 = vunpack.c.l.b16 %v631
      %v682 = vunpack.c.l.b16 %v632
      %v683 = vpack.c.b16 %v668, %v667
      %v684 = vpack.c.b16 %v670, %v669
      %v685 = vpack.c.b16 %v672, %v671
      %v686 = vpack.c.b16 %v674, %v673
      %v687 = vpack.c.b16 %v676, %v675
      %v688 = vpack.c.b16 %v678, %v677
      %v689 = vpack.c.b16 %v680, %v679
      %v690 = vpack.c.b16 %v682, %v681
      %699 = vmatprep.subr.bf16.mxu0 0
      %700 = vmatpush1.bf16.msra.mxu0 %v683
      %701 = vmatprep.subr.bf16.mxu0 0
      %702 = vmatpush1.bf16.msra.mxu0 %v684
      %703 = vmatprep.subr.bf16.mxu0 0
      %704 = vmatpush1.bf16.msra.mxu0 %v685
      %705 = vmatprep.subr.bf16.mxu0 0
      %706 = vmatpush1.bf16.msra.mxu0 %v686
      %707 = vmatprep.subr.bf16.mxu0 0
      %708 = vmatpush1.bf16.msra.mxu0 %v687
      %709 = vmatprep.subr.bf16.mxu0 0
      %710 = vmatpush1.bf16.msra.mxu0 %v688
      %711 = vmatprep.subr.bf16.mxu0 0
      %712 = vmatpush1.bf16.msra.mxu0 %v689
      %713 = vmatprep.subr.bf16.mxu0 0
      %714 = vmatpush1.bf16.msra.mxu0 %v690
      %715 = vmatprep.subr.bf16.mxu0 0
      %716 = vmatpush1.bf16.msra.mxu0 0
      %717 = vmatprep.subr.bf16.mxu0 0
      %718 = vmatpush1.bf16.msra.mxu0 0
      %719 = vmatprep.subr.bf16.mxu0 0
      %720 = vmatpush1.bf16.msra.mxu0 0
      %721 = vmatprep.subr.bf16.mxu0 0
      %722 = vmatpush1.bf16.msra.mxu0 0
      %723 = vmatprep.subr.bf16.mxu0 0
      %724 = vmatpush1.bf16.msra.mxu0 0
      %725 = vmatprep.subr.bf16.mxu0 0
      %726 = vmatpush1.bf16.msra.mxu0 0
      %727 = vmatprep.subr.bf16.mxu0 0
      %728 = vmatpush1.bf16.msra.mxu0 0
      %729 = vmatprep.subr.bf16.mxu0 0
      %730 = vmatpush1.bf16.msra.mxu0 0
      %731 = vmatprep.mubr.bf16.mxu0 0
      %732 = vmatmul.mubr.bf16.gmra.mrb[0].mxu0 %v639
      %v733 = vpop.f32.mrb[0].mxu0
      %v734 = vadd.f32 0.0, %v733
      %v735 = vpop.f32.mrb[0].mxu0
      %v736 = vpop.f32.mrb[0].mxu0
      %v737 = vadd.f32 0.0, %v736
      %v738 = vpop.f32.mrb[0].mxu0
      %739 = vmatprep.mubr.bf16.mxu0 0
      %740 = vmatmul.mubr.bf16.gmra.mrb[0].mxu0 %v641
      %v741 = vpop.f32.mrb[0].mxu0
      %v742 = vadd.f32 0.0, %v741
      %v743 = vpop.f32.mrb[0].mxu0
      %v744 = vpop.f32.mrb[0].mxu0
      %v745 = vadd.f32 0.0, %v744
      %v746 = vpop.f32.mrb[0].mxu0
      %747 = vmatprep.mubr.bf16.mxu0 0
      %748 = vmatmul.mubr.bf16.gmra.mrb[0].mxu0 %v643
      %v749 = vpop.f32.mrb[0].mxu0
      %v750 = vadd.f32 0.0, %v749
      %v751 = vpop.f32.mrb[0].mxu0
      %v752 = vpop.f32.mrb[0].mxu0
      %v753 = vadd.f32 0.0, %v752
      %v754 = vpop.f32.mrb[0].mxu0
      %755 = vmatprep.mubr.bf16.mxu0 0
      %756 = vmatmul.mubr.bf16.gmra.mrb[0].mxu0 %v645
      %v757 = vpop.f32.mrb[0].mxu0
      %v758 = vadd.f32 0.0, %v757
      %v759 = vpop.f32.mrb[0].mxu0
      %v760 = vpop.f32.mrb[0].mxu0
      %v761 = vadd.f32 0.0, %v760
      %v762 = vpop.f32.mrb[0].mxu0
      %763 = vmatprep.mubr.bf16.mxu0 0
      %764 = vmatmul.mubr.bf16.gmra.mrb[0].mxu0 %v644
      %v765 = vpop.f32.mrb[0].mxu0
      %v766 = vadd.f32 0.0, %v765
      %v767 = vpop.f32.mrb[0].mxu0
      %v768 = vpop.f32.mrb[0].mxu0
      %v769 = vadd.f32 0.0, %v768
      %v770 = vpop.f32.mrb[0].mxu0
      %771 = vdwg.mxu0
      %v772 = vadd.f32 %v578, %v734
      %v773 = vadd.f32 %v581, %v737
      %v774 = vadd.f32 %v586, %v742
      %v775 = vadd.f32 %v589, %v745
      %v776 = vadd.f32 %v594, %v750
      %v777 = vadd.f32 %v597, %v753
      %v778 = vadd.f32 %v602, %v758
      %v779 = vadd.f32 %v605, %v761
      %v780 = vadd.f32 %v610, %v766
      %v781 = vadd.f32 %v613, %v769
      %v782 = vld [vmem:[%s246 + $0x4] sm:$0xe]
      %v783 = vld [vmem:[%s246 + $0x8] sm:$0xf]
      %v784 = vld [vmem:[%s246 + $0xc] sm:$0xf]
      %v785 = vld [vmem:[%s246 + $0x10] sm:$0xf]
      %v786 = vld [vmem:[%s246 + $0x14] sm:$0xf]
      %v787 = vld [vmem:[%s246 + $0x18] sm:$0xf]
      %v788 = vld [vmem:[%s246 + $0x1c] sm:$0xf]
      %v789 = vld [vmem:[%s246 + $0x20] sm:$0xf]
      %v790 = vld [vmem:[%s246 + $0x24] sm:$0xf]
      %v791 = vld [vmem:[%s246 + $0x28] sm:$0xf]
      %v792 = vld [vmem:[%s1 + $0xc0] sm:$0xf]
      %v793 = vld [vmem:[%s1 + $0xc4] sm:$0xf]
      %v794 = vld [vmem:[%s1 + $0xc8] sm:$0xf]
      %v795 = vld [vmem:[%s1 + $0xcc] sm:$0xf]
      %v796 = vld [vmem:[%s1 + $0xd0] sm:$0xf]
      %v797 = vld [vmem:[%s1 + $0xd4] sm:$0xf]
      %v798 = vld [vmem:[%s1 + $0xd8] sm:$0xf]
      %v799 = vld [vmem:[%s1 + $0xdc] sm:$0xf]
      %v800 = vld [vmem:[%s1 + $0xe0] sm:$0xf]
      %v801 = vld [vmem:[%s1 + $0xe4] sm:$0xf]
      %v802 = vld [vmem:[%s1 + $0xe8] sm:$0xf]
      %v803 = vld [vmem:[%s1 + $0xec] sm:$0xf]
      %v804 = vld [vmem:[%s1 + $0xf0] sm:$0xf]
      %v805 = vld [vmem:[%s1 + $0xf4] sm:$0xf]
      %v806 = vld [vmem:[%s1 + $0xf8] sm:$0xf]
      %v807 = vld [vmem:[%s1 + $0xfc] sm:$0xf]
      %v818 = vunpack.c.l.b16 %v782
      %v819 = vunpack.c.l.b16 %v783
      %v820 = vunpack.c.l.b16 %v784
      %v821 = vunpack.c.l.b16 %v785
      %v822 = vunpack.c.l.b16 %v786
      %v823 = vunpack.c.l.b16 %v787
      %v824 = vunpack.c.l.b16 %v788
      %v825 = vunpack.c.l.b16 %v789
      %v826 = vunpack.c.l.b16 %v790
      %v827 = vunpack.c.l.b16 %v791
      %v828 = vpack.c.b16 %v819, %v818
      %v829 = vpack.c.b16 %v821, %v820
      %v830 = vpack.c.b16 %v823, %v822
      %v831 = vpack.c.b16 %v825, %v824
      %v832 = vpack.c.b16 %v827, %v826
      %v833 = vrot.slane %v828, 1
      %v834 = vrot.slane %v829, 1
      %v835 = vsel %vm636, %v833, %v834
      %v836 = vrot.slane %v830, 1
      %v837 = vsel %vm636, %v834, %v836
      %v838 = vrot.slane %v831, 1
      %v839 = vsel %vm636, %v836, %v838
      %v840 = vrot.slane %v832, 1
      %v841 = vsel %vm636, %v838, %v840
      %v863 = vunpack.c.l.b16 %v792
      %v864 = vunpack.c.l.b16 %v793
      %v865 = vunpack.c.l.b16 %v794
      %v866 = vunpack.c.l.b16 %v795
      %v867 = vunpack.c.l.b16 %v796
      %v868 = vunpack.c.l.b16 %v797
      %v869 = vunpack.c.l.b16 %v798
      %v870 = vunpack.c.l.b16 %v799
      %v871 = vunpack.c.l.b16 %v800
      %v872 = vunpack.c.l.b16 %v801
      %v873 = vunpack.c.l.b16 %v802
      %v874 = vunpack.c.l.b16 %v803
      %v875 = vunpack.c.l.b16 %v804
      %v876 = vunpack.c.l.b16 %v805
      %v877 = vunpack.c.l.b16 %v806
      %v878 = vunpack.c.l.b16 %v807
      %v879 = vpack.c.b16 %v864, %v863
      %v880 = vpack.c.b16 %v866, %v865
      %v881 = vpack.c.b16 %v868, %v867
      %v882 = vpack.c.b16 %v870, %v869
      %v883 = vpack.c.b16 %v872, %v871
      %v884 = vpack.c.b16 %v874, %v873
      %v885 = vpack.c.b16 %v876, %v875
      %v886 = vpack.c.b16 %v878, %v877
      %895 = vmatprep.subr.bf16.mxu0 0
      %896 = vmatpush1.bf16.msra.mxu0 %v879
      %897 = vmatprep.subr.bf16.mxu0 0
      %898 = vmatpush1.bf16.msra.mxu0 %v880
      %899 = vmatprep.subr.bf16.mxu0 0
      %900 = vmatpush1.bf16.msra.mxu0 %v881
      %901 = vmatprep.subr.bf16.mxu0 0
      %902 = vmatpush1.bf16.msra.mxu0 %v882
      %903 = vmatprep.subr.bf16.mxu0 0
      %904 = vmatpush1.bf16.msra.mxu0 %v883
      %905 = vmatprep.subr.bf16.mxu0 0
      %906 = vmatpush1.bf16.msra.mxu0 %v884
      %907 = vmatprep.subr.bf16.mxu0 0
      %908 = vmatpush1.bf16.msra.mxu0 %v885
      %909 = vmatprep.subr.bf16.mxu0 0
      %910 = vmatpush1.bf16.msra.mxu0 %v886
      %911 = vmatprep.subr.bf16.mxu0 0
      %912 = vmatpush1.bf16.msra.mxu0 0
      %913 = vmatprep.subr.bf16.mxu0 0
      %914 = vmatpush1.bf16.msra.mxu0 0
      %915 = vmatprep.subr.bf16.mxu0 0
      %916 = vmatpush1.bf16.msra.mxu0 0
      %917 = vmatprep.subr.bf16.mxu0 0
      %918 = vmatpush1.bf16.msra.mxu0 0
      %919 = vmatprep.subr.bf16.mxu0 0
      %920 = vmatpush1.bf16.msra.mxu0 0
      %921 = vmatprep.subr.bf16.mxu0 0
      %922 = vmatpush1.bf16.msra.mxu0 0
      %923 = vmatprep.subr.bf16.mxu0 0
      %924 = vmatpush1.bf16.msra.mxu0 0
      %925 = vmatprep.subr.bf16.mxu0 0
      %926 = vmatpush1.bf16.msra.mxu0 0
      %927 = vmatprep.mubr.bf16.mxu0 0
      %928 = vmatmul.mubr.bf16.gmra.mrb[0].mxu0 %v835
      %v929 = vpop.f32.mrb[0].mxu0
      %v930 = vadd.f32 0.0, %v929
      %v931 = vpop.f32.mrb[0].mxu0
      %v932 = vpop.f32.mrb[0].mxu0
      %v933 = vadd.f32 0.0, %v932
      %v934 = vpop.f32.mrb[0].mxu0
      %935 = vmatprep.mubr.bf16.mxu0 0
      %936 = vmatmul.mubr.bf16.gmra.mrb[0].mxu0 %v837
      %v937 = vpop.f32.mrb[0].mxu0
      %v938 = vadd.f32 0.0, %v937
      %v939 = vpop.f32.mrb[0].mxu0
      %v940 = vpop.f32.mrb[0].mxu0
      %v941 = vadd.f32 0.0, %v940
      %v942 = vpop.f32.mrb[0].mxu0
      %943 = vmatprep.mubr.bf16.mxu0 0
      %944 = vmatmul.mubr.bf16.gmra.mrb[0].mxu0 %v839
      %v945 = vpop.f32.mrb[0].mxu0
      %v946 = vadd.f32 0.0, %v945
      %v947 = vpop.f32.mrb[0].mxu0
      %v948 = vpop.f32.mrb[0].mxu0
      %v949 = vadd.f32 0.0, %v948
      %v950 = vpop.f32.mrb[0].mxu0
      %951 = vmatprep.mubr.bf16.mxu0 0
      %952 = vmatmul.mubr.bf16.gmra.mrb[0].mxu0 %v841
      %v953 = vpop.f32.mrb[0].mxu0
      %v954 = vadd.f32 0.0, %v953
      %v955 = vpop.f32.mrb[0].mxu0
      %v956 = vpop.f32.mrb[0].mxu0
      %v957 = vadd.f32 0.0, %v956
      %v958 = vpop.f32.mrb[0].mxu0
      %959 = vmatprep.mubr.bf16.mxu0 0
      %960 = vmatmul.mubr.bf16.gmra.mrb[0].mxu0 %v840
      %v961 = vpop.f32.mrb[0].mxu0
      %v962 = vadd.f32 0.0, %v961
      %v963 = vpop.f32.mrb[0].mxu0
      %v964 = vpop.f32.mrb[0].mxu0
      %v965 = vadd.f32 0.0, %v964
      %v966 = vpop.f32.mrb[0].mxu0
      %967 = vdwg.mxu0
      %v968 = vadd.f32 %v772, %v930
      %v969 = vadd.f32 %v773, %v933
      %v970 = vadd.f32 %v774, %v938
      %v971 = vadd.f32 %v775, %v941
      %v972 = vadd.f32 %v776, %v946
      %v973 = vadd.f32 %v777, %v949
      %v974 = vadd.f32 %v778, %v954
      %v975 = vadd.f32 %v779, %v957
      %v976 = vadd.f32 %v780, %v962
      %v977 = vadd.f32 %v781, %v965
      %v978 = vld [vmem:[%s246 + $0x4] sm:$0xe]
      %v979 = vld [vmem:[%s246 + $0x8] sm:$0xf]
      %v980 = vld [vmem:[%s246 + $0xc] sm:$0xf]
      %v981 = vld [vmem:[%s246 + $0x10] sm:$0xf]
      %v982 = vld [vmem:[%s246 + $0x14] sm:$0xf]
      %v983 = vld [vmem:[%s246 + $0x18] sm:$0xf]
      %v984 = vld [vmem:[%s246 + $0x1c] sm:$0xf]
      %v985 = vld [vmem:[%s246 + $0x20] sm:$0xf]
      %v986 = vld [vmem:[%s246 + $0x24] sm:$0xf]
      %v987 = vld [vmem:[%s246 + $0x28] sm:$0xf]
      %v988 = vld [vmem:[%s246 + $0x2c] sm:$0x1]
      %v989 = vld [vmem:[%s1 + $0x100] sm:$0xf]
      %v990 = vld [vmem:[%s1 + $0x104] sm:$0xf]
      %v991 = vld [vmem:[%s1 + $0x108] sm:$0xf]
      %v992 = vld [vmem:[%s1 + $0x10c] sm:$0xf]
      %v993 = vld [vmem:[%s1 + $0x110] sm:$0xf]
      %v994 = vld [vmem:[%s1 + $0x114] sm:$0xf]
      %v995 = vld [vmem:[%s1 + $0x118] sm:$0xf]
      %v996 = vld [vmem:[%s1 + $0x11c] sm:$0xf]
      %v997 = vld [vmem:[%s1 + $0x120] sm:$0xf]
      %v998 = vld [vmem:[%s1 + $0x124] sm:$0xf]
      %v999 = vld [vmem:[%s1 + $0x128] sm:$0xf]
      %v1000 = vld [vmem:[%s1 + $0x12c] sm:$0xf]
      %v1001 = vld [vmem:[%s1 + $0x130] sm:$0xf]
      %v1002 = vld [vmem:[%s1 + $0x134] sm:$0xf]
      %v1003 = vld [vmem:[%s1 + $0x138] sm:$0xf]
      %v1004 = vld [vmem:[%s1 + $0x13c] sm:$0xf]
      %v1016 = vunpack.c.l.b16 %v978
      %v1017 = vunpack.c.l.b16 %v979
      %v1018 = vunpack.c.l.b16 %v980
      %v1019 = vunpack.c.l.b16 %v981
      %v1020 = vunpack.c.l.b16 %v982
      %v1021 = vunpack.c.l.b16 %v983
      %v1022 = vunpack.c.l.b16 %v984
      %v1023 = vunpack.c.l.b16 %v985
      %v1024 = vunpack.c.l.b16 %v986
      %v1025 = vunpack.c.l.b16 %v987
      %v1026 = vunpack.c.l.b16 %v988
      %v1027 = vpack.c.b16 %v1017, %v1016
      %v1028 = vpack.c.b16 %v1019, %v1018
      %v1029 = vpack.c.b16 %v1021, %v1020
      %v1030 = vpack.c.b16 %v1023, %v1022
      %v1031 = vpack.c.b16 %v1025, %v1024
      %v1032 = vpack.c.b16 %v1026, %v1026
      %vm1033 = vsmask.f32 6400
      %v1035 = vshrl.u32 %v1027, 16
      %v1037 = vrot.slane %v1035, 1
      %v1038 = vshll.u32 %v1027, 16
      %v1040 = vrot.slane %v1038, 2
      %v1041 = vor.u32 %v1037, %v1040
      %v1043 = vshrl.u32 %v1028, 16
      %v1045 = vrot.slane %v1043, 1
      %v1046 = vshll.u32 %v1028, 16
      %v1048 = vrot.slane %v1046, 2
      %v1049 = vor.u32 %v1045, %v1048
      %v1050 = vsel %vm1033, %v1041, %v1049
      %v1052 = vshrl.u32 %v1029, 16
      %v1054 = vrot.slane %v1052, 1
      %v1055 = vshll.u32 %v1029, 16
      %v1057 = vrot.slane %v1055, 2
      %v1058 = vor.u32 %v1054, %v1057
      %v1059 = vsel %vm1033, %v1049, %v1058
      %v1061 = vshrl.u32 %v1030, 16
      %v1063 = vrot.slane %v1061, 1
      %v1064 = vshll.u32 %v1030, 16
      %v1066 = vrot.slane %v1064, 2
      %v1067 = vor.u32 %v1063, %v1066
      %v1068 = vsel %vm1033, %v1058, %v1067
      %v1070 = vshrl.u32 %v1031, 16
      %v1072 = vrot.slane %v1070, 1
      %v1073 = vshll.u32 %v1031, 16
      %v1075 = vrot.slane %v1073, 2
      %v1076 = vor.u32 %v1072, %v1075
      %v1077 = vsel %vm1033, %v1067, %v1076
      %v1079 = vshll.u32 %v1032, 16
      %v1081 = vrot.slane %v1079, 2
      %v1082 = vsel %vm1033, %v1076, %v1081
      %v1104 = vunpack.c.l.b16 %v989
      %v1105 = vunpack.c.l.b16 %v990
      %v1106 = vunpack.c.l.b16 %v991
      %v1107 = vunpack.c.l.b16 %v992
      %v1108 = vunpack.c.l.b16 %v993
      %v1109 = vunpack.c.l.b16 %v994
      %v1110 = vunpack.c.l.b16 %v995
      %v1111 = vunpack.c.l.b16 %v996
      %v1112 = vunpack.c.l.b16 %v997
      %v1113 = vunpack.c.l.b16 %v998
      %v1114 = vunpack.c.l.b16 %v999
      %v1115 = vunpack.c.l.b16 %v1000
      %v1116 = vunpack.c.l.b16 %v1001
      %v1117 = vunpack.c.l.b16 %v1002
      %v1118 = vunpack.c.l.b16 %v1003
      %v1119 = vunpack.c.l.b16 %v1004
      %v1120 = vpack.c.b16 %v1105, %v1104
      %v1121 = vpack.c.b16 %v1107, %v1106
      %v1122 = vpack.c.b16 %v1109, %v1108
      %v1123 = vpack.c.b16 %v1111, %v1110
      %v1124 = vpack.c.b16 %v1113, %v1112
      %v1125 = vpack.c.b16 %v1115, %v1114
      %v1126 = vpack.c.b16 %v1117, %v1116
      %v1127 = vpack.c.b16 %v1119, %v1118
      %1136 = vmatprep.subr.bf16.mxu0 0
      %1137 = vmatpush1.bf16.msra.mxu0 %v1120
      %1138 = vmatprep.subr.bf16.mxu0 0
      %1139 = vmatpush1.bf16.msra.mxu0 %v1121
      %1140 = vmatprep.subr.bf16.mxu0 0
      %1141 = vmatpush1.bf16.msra.mxu0 %v1122
      %1142 = vmatprep.subr.bf16.mxu0 0
      %1143 = vmatpush1.bf16.msra.mxu0 %v1123
      %1144 = vmatprep.subr.bf16.mxu0 0
      %1145 = vmatpush1.bf16.msra.mxu0 %v1124
      %1146 = vmatprep.subr.bf16.mxu0 0
      %1147 = vmatpush1.bf16.msra.mxu0 %v1125
      %1148 = vmatprep.subr.bf16.mxu0 0
      %1149 = vmatpush1.bf16.msra.mxu0 %v1126
      %1150 = vmatprep.subr.bf16.mxu0 0
      %1151 = vmatpush1.bf16.msra.mxu0 %v1127
      %1152 = vmatprep.subr.bf16.mxu0 0
      %1153 = vmatpush1.bf16.msra.mxu0 0
      %1154 = vmatprep.subr.bf16.mxu0 0
      %1155 = vmatpush1.bf16.msra.mxu0 0
      %1156 = vmatprep.subr.bf16.mxu0 0
      %1157 = vmatpush1.bf16.msra.mxu0 0
      %1158 = vmatprep.subr.bf16.mxu0 0
      %1159 = vmatpush1.bf16.msra.mxu0 0
      %1160 = vmatprep.subr.bf16.mxu0 0
      %1161 = vmatpush1.bf16.msra.mxu0 0
      %1162 = vmatprep.subr.bf16.mxu0 0
      %1163 = vmatpush1.bf16.msra.mxu0 0
      %1164 = vmatprep.subr.bf16.mxu0 0
      %1165 = vmatpush1.bf16.msra.mxu0 0
      %1166 = vmatprep.subr.bf16.mxu0 0
      %1167 = vmatpush1.bf16.msra.mxu0 0
      %1168 = vmatprep.mubr.bf16.mxu0 0
      %1169 = vmatmul.mubr.bf16.gmra.mrb[0].mxu0 %v1050
      %v1170 = vpop.f32.mrb[0].mxu0
      %v1171 = vadd.f32 0.0, %v1170
      %v1172 = vpop.f32.mrb[0].mxu0
      %v1173 = vpop.f32.mrb[0].mxu0
      %v1174 = vadd.f32 0.0, %v1173
      %v1175 = vpop.f32.mrb[0].mxu0
      %1176 = vmatprep.mubr.bf16.mxu0 0
      %1177 = vmatmul.mubr.bf16.gmra.mrb[0].mxu0 %v1059
      %v1178 = vpop.f32.mrb[0].mxu0
      %v1179 = vadd.f32 0.0, %v1178
      %v1180 = vpop.f32.mrb[0].mxu0
      %v1181 = vpop.f32.mrb[0].mxu0
      %v1182 = vadd.f32 0.0, %v1181
      %v1183 = vpop.f32.mrb[0].mxu0
      %1184 = vmatprep.mubr.bf16.mxu0 0
      %1185 = vmatmul.mubr.bf16.gmra.mrb[0].mxu0 %v1068
      %v1186 = vpop.f32.mrb[0].mxu0
      %v1187 = vadd.f32 0.0, %v1186
      %v1188 = vpop.f32.mrb[0].mxu0
      %v1189 = vpop.f32.mrb[0].mxu0
      %v1190 = vadd.f32 0.0, %v1189
      %v1191 = vpop.f32.mrb[0].mxu0
      %1192 = vmatprep.mubr.bf16.mxu0 0
      %1193 = vmatmul.mubr.bf16.gmra.mrb[0].mxu0 %v1077
      %v1194 = vpop.f32.mrb[0].mxu0
      %v1195 = vadd.f32 0.0, %v1194
      %v1196 = vpop.f32.mrb[0].mxu0
      %v1197 = vpop.f32.mrb[0].mxu0
      %v1198 = vadd.f32 0.0, %v1197
      %v1199 = vpop.f32.mrb[0].mxu0
      %1200 = vmatprep.mubr.bf16.mxu0 0
      %1201 = vmatmul.mubr.bf16.gmra.mrb[0].mxu0 %v1082
      %v1202 = vpop.f32.mrb[0].mxu0
      %v1203 = vadd.f32 0.0, %v1202
      %v1204 = vpop.f32.mrb[0].mxu0
      %v1205 = vpop.f32.mrb[0].mxu0
      %v1206 = vadd.f32 0.0, %v1205
      %v1207 = vpop.f32.mrb[0].mxu0
      %1208 = vdwg.mxu0
      %v1209 = vadd.f32 %v968, %v1171
      %v1210 = vadd.f32 %v969, %v1174
      %v1211 = vadd.f32 %v970, %v1179
      %v1212 = vadd.f32 %v971, %v1182
      %v1213 = vadd.f32 %v972, %v1187
      %v1214 = vadd.f32 %v973, %v1190
      %v1215 = vadd.f32 %v974, %v1195
      %v1216 = vadd.f32 %v975, %v1198
      %v1217 = vadd.f32 %v976, %v1203
      %v1218 = vadd.f32 %v977, %v1206
      %v1219 = vld [vmem:[%s246 + $0x4] sm:$0xc]
      %v1220 = vld [vmem:[%s1 + $0x140] sm:$0xf]
      %v1221 = vld [vmem:[%s1 + $0x144] sm:$0xf]
      %v1222 = vld [vmem:[%s1 + $0x148] sm:$0xf]
      %v1223 = vld [vmem:[%s1 + $0x14c] sm:$0xf]
      %v1224 = vld [vmem:[%s1 + $0x150] sm:$0xf]
      %v1225 = vld [vmem:[%s1 + $0x154] sm:$0xf]
      %v1226 = vld [vmem:[%s1 + $0x158] sm:$0xf]
      %v1227 = vld [vmem:[%s1 + $0x15c] sm:$0xf]
      %v1228 = vld [vmem:[%s1 + $0x160] sm:$0xf]
      %v1229 = vld [vmem:[%s1 + $0x164] sm:$0xf]
      %v1230 = vld [vmem:[%s1 + $0x168] sm:$0xf]
      %v1231 = vld [vmem:[%s1 + $0x16c] sm:$0xf]
      %v1232 = vld [vmem:[%s1 + $0x170] sm:$0xf]
      %v1233 = vld [vmem:[%s1 + $0x174] sm:$0xf]
      %v1234 = vld [vmem:[%s1 + $0x178] sm:$0xf]
      %v1235 = vld [vmem:[%s1 + $0x17c] sm:$0xf]
      %v1237 = vunpack.c.l.b16 %v1219
      %v1238 = vpack.c.b16 %v1017, %v1237
      %vm1239 = vcmask 1045504
      %v1240 = vrot.slane %v1238, 2
      %v1241 = vrot.slane %v1028, 2
      %v1242 = vsel %vm1239, %v1240, %v1241
      %v1243 = vrot.slane %v1029, 2
      %v1244 = vsel %vm1239, %v1241, %v1243
      %v1245 = vrot.slane %v1030, 2
      %v1246 = vsel %vm1239, %v1243, %v1245
      %v1247 = vrot.slane %v1031, 2
      %v1248 = vsel %vm1239, %v1245, %v1247
      %v1249 = vrot.slane %v1032, 2
      %v1250 = vsel %vm1239, %v1247, %v1249
      %v1272 = vunpack.c.l.b16 %v1220
      %v1273 = vunpack.c.l.b16 %v1221
      %v1274 = vunpack.c.l.b16 %v1222
      %v1275 = vunpack.c.l.b16 %v1223
      %v1276 = vunpack.c.l.b16 %v1224
      %v1277 = vunpack.c.l.b16 %v1225
      %v1278 = vunpack.c.l.b16 %v1226
      %v1279 = vunpack.c.l.b16 %v1227
      %v1280 = vunpack.c.l.b16 %v1228
      %v1281 = vunpack.c.l.b16 %v1229
      %v1282 = vunpack.c.l.b16 %v1230
      %v1283 = vunpack.c.l.b16 %v1231
      %v1284 = vunpack.c.l.b16 %v1232
      %v1285 = vunpack.c.l.b16 %v1233
      %v1286 = vunpack.c.l.b16 %v1234
      %v1287 = vunpack.c.l.b16 %v1235
      %v1288 = vpack.c.b16 %v1273, %v1272
      %v1289 = vpack.c.b16 %v1275, %v1274
      %v1290 = vpack.c.b16 %v1277, %v1276
      %v1291 = vpack.c.b16 %v1279, %v1278
      %v1292 = vpack.c.b16 %v1281, %v1280
      %v1293 = vpack.c.b16 %v1283, %v1282
      %v1294 = vpack.c.b16 %v1285, %v1284
      %v1295 = vpack.c.b16 %v1287, %v1286
      %1304 = vmatprep.subr.bf16.mxu0 0
      %1305 = vmatpush1.bf16.msra.mxu0 %v1288
      %1306 = vmatprep.subr.bf16.mxu0 0
      %1307 = vmatpush1.bf16.msra.mxu0 %v1289
      %1308 = vmatprep.subr.bf16.mxu0 0
      %1309 = vmatpush1.bf16.msra.mxu0 %v1290
      %1310 = vmatprep.subr.bf16.mxu0 0
      %1311 = vmatpush1.bf16.msra.mxu0 %v1291
      %1312 = vmatprep.subr.bf16.mxu0 0
      %1313 = vmatpush1.bf16.msra.mxu0 %v1292
      %1314 = vmatprep.subr.bf16.mxu0 0
      %1315 = vmatpush1.bf16.msra.mxu0 %v1293
      %1316 = vmatprep.subr.bf16.mxu0 0
      %1317 = vmatpush1.bf16.msra.mxu0 %v1294
      %1318 = vmatprep.subr.bf16.mxu0 0
      %1319 = vmatpush1.bf16.msra.mxu0 %v1295
      %1320 = vmatprep.subr.bf16.mxu0 0
      %1321 = vmatpush1.bf16.msra.mxu0 0
      %1322 = vmatprep.subr.bf16.mxu0 0
      %1323 = vmatpush1.bf16.msra.mxu0 0
      %1324 = vmatprep.subr.bf16.mxu0 0
      %1325 = vmatpush1.bf16.msra.mxu0 0
      %1326 = vmatprep.subr.bf16.mxu0 0
      %1327 = vmatpush1.bf16.msra.mxu0 0
      %1328 = vmatprep.subr.bf16.mxu0 0
      %1329 = vmatpush1.bf16.msra.mxu0 0
      %1330 = vmatprep.subr.bf16.mxu0 0
      %1331 = vmatpush1.bf16.msra.mxu0 0
      %1332 = vmatprep.subr.bf16.mxu0 0
      %1333 = vmatpush1.bf16.msra.mxu0 0
      %1334 = vmatprep.subr.bf16.mxu0 0
      %1335 = vmatpush1.bf16.msra.mxu0 0
      %1336 = vmatprep.mubr.bf16.mxu0 0
      %1337 = vmatmul.mubr.bf16.gmra.mrb[0].mxu0 %v1242
      %v1338 = vpop.f32.mrb[0].mxu0
      %v1339 = vadd.f32 0.0, %v1338
      %v1340 = vpop.f32.mrb[0].mxu0
      %v1341 = vpop.f32.mrb[0].mxu0
      %v1342 = vadd.f32 0.0, %v1341
      %v1343 = vpop.f32.mrb[0].mxu0
      %1344 = vmatprep.mubr.bf16.mxu0 0
      %1345 = vmatmul.mubr.bf16.gmra.mrb[0].mxu0 %v1244
      %v1346 = vpop.f32.mrb[0].mxu0
      %v1347 = vadd.f32 0.0, %v1346
      %v1348 = vpop.f32.mrb[0].mxu0
      %v1349 = vpop.f32.mrb[0].mxu0
      %v1350 = vadd.f32 0.0, %v1349
      %v1351 = vpop.f32.mrb[0].mxu0
      %1352 = vmatprep.mubr.bf16.mxu0 0
      %1353 = vmatmul.mubr.bf16.gmra.mrb[0].mxu0 %v1246
      %v1354 = vpop.f32.mrb[0].mxu0
      %v1355 = vadd.f32 0.0, %v1354
      %v1356 = vpop.f32.mrb[0].mxu0
      %v1357 = vpop.f32.mrb[0].mxu0
      %v1358 = vadd.f32 0.0, %v1357
      %v1359 = vpop.f32.mrb[0].mxu0
      %1360 = vmatprep.mubr.bf16.mxu0 0
      %1361 = vmatmul.mubr.bf16.gmra.mrb[0].mxu0 %v1248
      %v1362 = vpop.f32.mrb[0].mxu0
      %v1363 = vadd.f32 0.0, %v1362
      %v1364 = vpop.f32.mrb[0].mxu0
      %v1365 = vpop.f32.mrb[0].mxu0
      %v1366 = vadd.f32 0.0, %v1365
      %v1367 = vpop.f32.mrb[0].mxu0
      %1368 = vmatprep.mubr.bf16.mxu0 0
      %1369 = vmatmul.mubr.bf16.gmra.mrb[0].mxu0 %v1250
      %v1370 = vpop.f32.mrb[0].mxu0
      %v1371 = vadd.f32 0.0, %v1370
      %v1372 = vpop.f32.mrb[0].mxu0
      %v1373 = vpop.f32.mrb[0].mxu0
      %v1374 = vadd.f32 0.0, %v1373
      %v1375 = vpop.f32.mrb[0].mxu0
      %1376 = vdwg.mxu0
      %v1377 = vadd.f32 %v1209, %v1339
      %v1378 = vadd.f32 %v1210, %v1342
      %v1379 = vadd.f32 %v1211, %v1347
      %v1380 = vadd.f32 %v1212, %v1350
      %v1381 = vadd.f32 %v1213, %v1355
      %v1382 = vadd.f32 %v1214, %v1358
      %v1383 = vadd.f32 %v1215, %v1363
      %v1384 = vadd.f32 %v1216, %v1366
      %v1385 = vadd.f32 %v1217, %v1371
      %v1386 = vadd.f32 %v1218, %v1374
      %v1387 = vld [vmem:[%s246 + $0x8] sm:$0xc]
      %v1388 = vld [vmem:[%s246 + $0xc] sm:$0xf]
      %v1389 = vld [vmem:[%s246 + $0x10] sm:$0xf]
      %v1390 = vld [vmem:[%s246 + $0x14] sm:$0xf]
      %v1391 = vld [vmem:[%s246 + $0x18] sm:$0xf]
      %v1392 = vld [vmem:[%s246 + $0x1c] sm:$0xf]
      %v1393 = vld [vmem:[%s246 + $0x20] sm:$0xf]
      %v1394 = vld [vmem:[%s246 + $0x24] sm:$0xf]
      %v1395 = vld [vmem:[%s246 + $0x28] sm:$0xf]
      %v1396 = vld [vmem:[%s246 + $0x2c] sm:$0xf]
      %v1397 = vld [vmem:[%s246 + $0x30] sm:$0x1]
      %v1398 = vld [vmem:[%s1 + $0x180] sm:$0xf]
      %v1399 = vld [vmem:[%s1 + $0x184] sm:$0xf]
      %v1400 = vld [vmem:[%s1 + $0x188] sm:$0xf]
      %v1401 = vld [vmem:[%s1 + $0x18c] sm:$0xf]
      %v1402 = vld [vmem:[%s1 + $0x190] sm:$0xf]
      %v1403 = vld [vmem:[%s1 + $0x194] sm:$0xf]
      %v1404 = vld [vmem:[%s1 + $0x198] sm:$0xf]
      %v1405 = vld [vmem:[%s1 + $0x19c] sm:$0xf]
      %v1406 = vld [vmem:[%s1 + $0x1a0] sm:$0xf]
      %v1407 = vld [vmem:[%s1 + $0x1a4] sm:$0xf]
      %v1408 = vld [vmem:[%s1 + $0x1a8] sm:$0xf]
      %v1409 = vld [vmem:[%s1 + $0x1ac] sm:$0xf]
      %v1410 = vld [vmem:[%s1 + $0x1b0] sm:$0xf]
      %v1411 = vld [vmem:[%s1 + $0x1b4] sm:$0xf]
      %v1412 = vld [vmem:[%s1 + $0x1b8] sm:$0xf]
      %v1413 = vld [vmem:[%s1 + $0x1bc] sm:$0xf]
      %v1425 = vunpack.c.l.b16 %v1387
      %v1426 = vunpack.c.l.b16 %v1388
      %v1427 = vunpack.c.l.b16 %v1389
      %v1428 = vunpack.c.l.b16 %v1390
      %v1429 = vunpack.c.l.b16 %v1391
      %v1430 = vunpack.c.l.b16 %v1392
      %v1431 = vunpack.c.l.b16 %v1393
      %v1432 = vunpack.c.l.b16 %v1394
      %v1433 = vunpack.c.l.b16 %v1395
      %v1434 = vunpack.c.l.b16 %v1396
      %v1435 = vunpack.c.l.b16 %v1397
      %v1436 = vpack.c.b16 %v1426, %v1425
      %v1437 = vpack.c.b16 %v1428, %v1427
      %v1438 = vpack.c.b16 %v1430, %v1429
      %v1439 = vpack.c.b16 %v1432, %v1431
      %v1440 = vpack.c.b16 %v1434, %v1433
      %v1441 = vpack.c.b16 %v1435, %v1435
      %v1442 = vrot.slane %v1436, 2
      %v1443 = vrot.slane %v1437, 2
      %v1444 = vsel %vm1239, %v1442, %v1443
      %v1445 = vrot.slane %v1438, 2
      %v1446 = vsel %vm1239, %v1443, %v1445
      %v1447 = vrot.slane %v1439, 2
      %v1448 = vsel %vm1239, %v1445, %v1447
      %v1449 = vrot.slane %v1440, 2
      %v1450 = vsel %vm1239, %v1447, %v1449
      %v1451 = vrot.slane %v1441, 2
      %v1452 = vsel %vm1239, %v1449, %v1451
      %v1474 = vunpack.c.l.b16 %v1398
      %v1475 = vunpack.c.l.b16 %v1399
      %v1476 = vunpack.c.l.b16 %v1400
      %v1477 = vunpack.c.l.b16 %v1401
      %v1478 = vunpack.c.l.b16 %v1402
      %v1479 = vunpack.c.l.b16 %v1403
      %v1480 = vunpack.c.l.b16 %v1404
      %v1481 = vunpack.c.l.b16 %v1405
      %v1482 = vunpack.c.l.b16 %v1406
      %v1483 = vunpack.c.l.b16 %v1407
      %v1484 = vunpack.c.l.b16 %v1408
      %v1485 = vunpack.c.l.b16 %v1409
      %v1486 = vunpack.c.l.b16 %v1410
      %v1487 = vunpack.c.l.b16 %v1411
      %v1488 = vunpack.c.l.b16 %v1412
      %v1489 = vunpack.c.l.b16 %v1413
      %v1490 = vpack.c.b16 %v1475, %v1474
      %v1491 = vpack.c.b16 %v1477, %v1476
      %v1492 = vpack.c.b16 %v1479, %v1478
      %v1493 = vpack.c.b16 %v1481, %v1480
      %v1494 = vpack.c.b16 %v1483, %v1482
      %v1495 = vpack.c.b16 %v1485, %v1484
      %v1496 = vpack.c.b16 %v1487, %v1486
      %v1497 = vpack.c.b16 %v1489, %v1488
      %1506 = vmatprep.subr.bf16.mxu0 0
      %1507 = vmatpush1.bf16.msra.mxu0 %v1490
      %1508 = vmatprep.subr.bf16.mxu0 0
      %1509 = vmatpush1.bf16.msra.mxu0 %v1491
      %1510 = vmatprep.subr.bf16.mxu0 0
      %1511 = vmatpush1.bf16.msra.mxu0 %v1492
      %1512 = vmatprep.subr.bf16.mxu0 0
      %1513 = vmatpush1.bf16.msra.mxu0 %v1493
      %1514 = vmatprep.subr.bf16.mxu0 0
      %1515 = vmatpush1.bf16.msra.mxu0 %v1494
      %1516 = vmatprep.subr.bf16.mxu0 0
      %1517 = vmatpush1.bf16.msra.mxu0 %v1495
      %1518 = vmatprep.subr.bf16.mxu0 0
      %1519 = vmatpush1.bf16.msra.mxu0 %v1496
      %1520 = vmatprep.subr.bf16.mxu0 0
      %1521 = vmatpush1.bf16.msra.mxu0 %v1497
      %1522 = vmatprep.subr.bf16.mxu0 0
      %1523 = vmatpush1.bf16.msra.mxu0 0
      %1524 = vmatprep.subr.bf16.mxu0 0
      %1525 = vmatpush1.bf16.msra.mxu0 0
      %1526 = vmatprep.subr.bf16.mxu0 0
      %1527 = vmatpush1.bf16.msra.mxu0 0
      %1528 = vmatprep.subr.bf16.mxu0 0
      %1529 = vmatpush1.bf16.msra.mxu0 0
      %1530 = vmatprep.subr.bf16.mxu0 0
      %1531 = vmatpush1.bf16.msra.mxu0 0
      %1532 = vmatprep.subr.bf16.mxu0 0
      %1533 = vmatpush1.bf16.msra.mxu0 0
      %1534 = vmatprep.subr.bf16.mxu0 0
      %1535 = vmatpush1.bf16.msra.mxu0 0
      %1536 = vmatprep.subr.bf16.mxu0 0
      %1537 = vmatpush1.bf16.msra.mxu0 0
      %1538 = vmatprep.mubr.bf16.mxu0 0
      %1539 = vmatmul.mubr.bf16.gmra.mrb[0].mxu0 %v1444
      %v1540 = vpop.f32.mrb[0].mxu0
      %v1541 = vadd.f32 0.0, %v1540
      %v1542 = vpop.f32.mrb[0].mxu0
      %v1543 = vpop.f32.mrb[0].mxu0
      %v1544 = vadd.f32 0.0, %v1543
      %v1545 = vpop.f32.mrb[0].mxu0
      %1546 = vmatprep.mubr.bf16.mxu0 0
      %1547 = vmatmul.mubr.bf16.gmra.mrb[0].mxu0 %v1446
      %v1548 = vpop.f32.mrb[0].mxu0
      %v1549 = vadd.f32 0.0, %v1548
      %v1550 = vpop.f32.mrb[0].mxu0
      %v1551 = vpop.f32.mrb[0].mxu0
      %v1552 = vadd.f32 0.0, %v1551
      %v1553 = vpop.f32.mrb[0].mxu0
      %1554 = vmatprep.mubr.bf16.mxu0 0
      %1555 = vmatmul.mubr.bf16.gmra.mrb[0].mxu0 %v1448
      %v1556 = vpop.f32.mrb[0].mxu0
      %v1557 = vadd.f32 0.0, %v1556
      %v1558 = vpop.f32.mrb[0].mxu0
      %v1559 = vpop.f32.mrb[0].mxu0
      %v1560 = vadd.f32 0.0, %v1559
      %v1561 = vpop.f32.mrb[0].mxu0
      %1562 = vmatprep.mubr.bf16.mxu0 0
      %1563 = vmatmul.mubr.bf16.gmra.mrb[0].mxu0 %v1450
      %v1564 = vpop.f32.mrb[0].mxu0
      %v1565 = vadd.f32 0.0, %v1564
      %v1566 = vpop.f32.mrb[0].mxu0
      %v1567 = vpop.f32.mrb[0].mxu0
      %v1568 = vadd.f32 0.0, %v1567
      %v1569 = vpop.f32.mrb[0].mxu0
      %1570 = vmatprep.mubr.bf16.mxu0 0
      %1571 = vmatmul.mubr.bf16.gmra.mrb[0].mxu0 %v1452
      %v1572 = vpop.f32.mrb[0].mxu0
      %v1573 = vadd.f32 0.0, %v1572
      %v1574 = vpop.f32.mrb[0].mxu0
      %v1575 = vpop.f32.mrb[0].mxu0
      %v1576 = vadd.f32 0.0, %v1575
      %v1577 = vpop.f32.mrb[0].mxu0
      %1578 = vdwg.mxu0
      %v1579 = vadd.f32 %v1377, %v1541
      %v1580 = vadd.f32 %v1378, %v1544
      %v1581 = vadd.f32 %v1379, %v1549
      %v1582 = vadd.f32 %v1380, %v1552
      %v1583 = vadd.f32 %v1381, %v1557
      %v1584 = vadd.f32 %v1382, %v1560
      %v1585 = vadd.f32 %v1383, %v1565
      %v1586 = vadd.f32 %v1384, %v1568
      %v1587 = vadd.f32 %v1385, %v1573
      %v1588 = vadd.f32 %v1386, %v1576
      %v1589 = vld [vmem:[%s246 + $0x30] sm:$0x3]
      %v1590 = vld [vmem:[%s1 + $0x1c0] sm:$0xf]
      %v1591 = vld [vmem:[%s1 + $0x1c4] sm:$0xf]
      %v1592 = vld [vmem:[%s1 + $0x1c8] sm:$0xf]
      %v1593 = vld [vmem:[%s1 + $0x1cc] sm:$0xf]
      %v1594 = vld [vmem:[%s1 + $0x1d0] sm:$0xf]
      %v1595 = vld [vmem:[%s1 + $0x1d4] sm:$0xf]
      %v1596 = vld [vmem:[%s1 + $0x1d8] sm:$0xf]
      %v1597 = vld [vmem:[%s1 + $0x1dc] sm:$0xf]
      %v1598 = vld [vmem:[%s1 + $0x1e0] sm:$0xf]
      %v1599 = vld [vmem:[%s1 + $0x1e4] sm:$0xf]
      %v1600 = vld [vmem:[%s1 + $0x1e8] sm:$0xf]
      %v1601 = vld [vmem:[%s1 + $0x1ec] sm:$0xf]
      %v1602 = vld [vmem:[%s1 + $0x1f0] sm:$0xf]
      %v1603 = vld [vmem:[%s1 + $0x1f4] sm:$0xf]
      %v1604 = vld [vmem:[%s1 + $0x1f8] sm:$0xf]
      %v1605 = vld [vmem:[%s1 + $0x1fc] sm:$0xf]
      %v1607 = vunpack.c.l.b16 %v1589
      %v1608 = vpack.c.b16 %v1607, %v1607
      %vm1609 = vsmask.f32 5376
      %v1611 = vshrl.u32 %v1436, 16
      %v1613 = vrot.slane %v1611, 2
      %v1614 = vshll.u32 %v1436, 16
      %v1616 = vrot.slane %v1614, 3
      %v1617 = vor.u32 %v1613, %v1616
      %v1619 = vshrl.u32 %v1437, 16
      %v1621 = vrot.slane %v1619, 2
      %v1622 = vshll.u32 %v1437, 16
      %v1624 = vrot.slane %v1622, 3
      %v1625 = vor.u32 %v1621, %v1624
      %v1626 = vsel %vm1609, %v1617, %v1625
      %v1628 = vshrl.u32 %v1438, 16
      %v1630 = vrot.slane %v1628, 2
      %v1631 = vshll.u32 %v1438, 16
      %v1633 = vrot.slane %v1631, 3
      %v1634 = vor.u32 %v1630, %v1633
      %v1635 = vsel %vm1609, %v1625, %v1634
      %v1637 = vshrl.u32 %v1439, 16
      %v1639 = vrot.slane %v1637, 2
      %v1640 = vshll.u32 %v1439, 16
      %v1642 = vrot.slane %v1640, 3
      %v1643 = vor.u32 %v1639, %v1642
      %v1644 = vsel %vm1609, %v1634, %v1643
      %v1646 = vshrl.u32 %v1440, 16
      %v1648 = vrot.slane %v1646, 2
      %v1649 = vshll.u32 %v1440, 16
      %v1651 = vrot.slane %v1649, 3
      %v1652 = vor.u32 %v1648, %v1651
      %v1653 = vsel %vm1609, %v1643, %v1652
      %v1655 = vshrl.u32 %v1608, 16
      %v1657 = vrot.slane %v1655, 2
      %v1658 = vshll.u32 %v1608, 16
      %v1660 = vrot.slane %v1658, 3
      %v1661 = vor.u32 %v1657, %v1660
      %v1662 = vsel %vm1609, %v1652, %v1661
      %v1684 = vunpack.c.l.b16 %v1590
      %v1685 = vunpack.c.l.b16 %v1591
      %v1686 = vunpack.c.l.b16 %v1592
      %v1687 = vunpack.c.l.b16 %v1593
      %v1688 = vunpack.c.l.b16 %v1594
      %v1689 = vunpack.c.l.b16 %v1595
      %v1690 = vunpack.c.l.b16 %v1596
      %v1691 = vunpack.c.l.b16 %v1597
      %v1692 = vunpack.c.l.b16 %v1598
      %v1693 = vunpack.c.l.b16 %v1599
      %v1694 = vunpack.c.l.b16 %v1600
      %v1695 = vunpack.c.l.b16 %v1601
      %v1696 = vunpack.c.l.b16 %v1602
      %v1697 = vunpack.c.l.b16 %v1603
      %v1698 = vunpack.c.l.b16 %v1604
      %v1699 = vunpack.c.l.b16 %v1605
      %v1700 = vpack.c.b16 %v1685, %v1684
      %v1701 = vpack.c.b16 %v1687, %v1686
      %v1702 = vpack.c.b16 %v1689, %v1688
      %v1703 = vpack.c.b16 %v1691, %v1690
      %v1704 = vpack.c.b16 %v1693, %v1692
      %v1705 = vpack.c.b16 %v1695, %v1694
      %v1706 = vpack.c.b16 %v1697, %v1696
      %v1707 = vpack.c.b16 %v1699, %v1698
      %1716 = vmatprep.subr.bf16.mxu0 0
      %1717 = vmatpush1.bf16.msra.mxu0 %v1700
      %1718 = vmatprep.subr.bf16.mxu0 0
      %1719 = vmatpush1.bf16.msra.mxu0 %v1701
      %1720 = vmatprep.subr.bf16.mxu0 0
      %1721 = vmatpush1.bf16.msra.mxu0 %v1702
      %1722 = vmatprep.subr.bf16.mxu0 0
      %1723 = vmatpush1.bf16.msra.mxu0 %v1703
      %1724 = vmatprep.subr.bf16.mxu0 0
      %1725 = vmatpush1.bf16.msra.mxu0 %v1704
      %1726 = vmatprep.subr.bf16.mxu0 0
      %1727 = vmatpush1.bf16.msra.mxu0 %v1705
      %1728 = vmatprep.subr.bf16.mxu0 0
      %1729 = vmatpush1.bf16.msra.mxu0 %v1706
      %1730 = vmatprep.subr.bf16.mxu0 0
      %1731 = vmatpush1.bf16.msra.mxu0 %v1707
      %1732 = vmatprep.subr.bf16.mxu0 0
      %1733 = vmatpush1.bf16.msra.mxu0 0
      %1734 = vmatprep.subr.bf16.mxu0 0
      %1735 = vmatpush1.bf16.msra.mxu0 0
      %1736 = vmatprep.subr.bf16.mxu0 0
      %1737 = vmatpush1.bf16.msra.mxu0 0
      %1738 = vmatprep.subr.bf16.mxu0 0
      %1739 = vmatpush1.bf16.msra.mxu0 0
      %1740 = vmatprep.subr.bf16.mxu0 0
      %1741 = vmatpush1.bf16.msra.mxu0 0
      %1742 = vmatprep.subr.bf16.mxu0 0
      %1743 = vmatpush1.bf16.msra.mxu0 0
      %1744 = vmatprep.subr.bf16.mxu0 0
      %1745 = vmatpush1.bf16.msra.mxu0 0
      %1746 = vmatprep.subr.bf16.mxu0 0
      %1747 = vmatpush1.bf16.msra.mxu0 0
      %1748 = vmatprep.mubr.bf16.mxu0 0
      %1749 = vmatmul.mubr.bf16.gmra.mrb[0].mxu0 %v1626
      %v1750 = vpop.f32.mrb[0].mxu0
      %v1751 = vadd.f32 0.0, %v1750
      %v1752 = vpop.f32.mrb[0].mxu0
      %v1753 = vpop.f32.mrb[0].mxu0
      %v1754 = vadd.f32 0.0, %v1753
      %v1755 = vpop.f32.mrb[0].mxu0
      %1756 = vmatprep.mubr.bf16.mxu0 0
      %1757 = vmatmul.mubr.bf16.gmra.mrb[0].mxu0 %v1635
      %v1758 = vpop.f32.mrb[0].mxu0
      %v1759 = vadd.f32 0.0, %v1758
      %v1760 = vpop.f32.mrb[0].mxu0
      %v1761 = vpop.f32.mrb[0].mxu0
      %v1762 = vadd.f32 0.0, %v1761
      %v1763 = vpop.f32.mrb[0].mxu0
      %1764 = vmatprep.mubr.bf16.mxu0 0
      %1765 = vmatmul.mubr.bf16.gmra.mrb[0].mxu0 %v1644
      %v1766 = vpop.f32.mrb[0].mxu0
      %v1767 = vadd.f32 0.0, %v1766
      %v1768 = vpop.f32.mrb[0].mxu0
      %v1769 = vpop.f32.mrb[0].mxu0
      %v1770 = vadd.f32 0.0, %v1769
      %v1771 = vpop.f32.mrb[0].mxu0
      %1772 = vmatprep.mubr.bf16.mxu0 0
      %1773 = vmatmul.mubr.bf16.gmra.mrb[0].mxu0 %v1653
      %v1774 = vpop.f32.mrb[0].mxu0
      %v1775 = vadd.f32 0.0, %v1774
      %v1776 = vpop.f32.mrb[0].mxu0
      %v1777 = vpop.f32.mrb[0].mxu0
      %v1778 = vadd.f32 0.0, %v1777
      %v1779 = vpop.f32.mrb[0].mxu0
      %1780 = vmatprep.mubr.bf16.mxu0 0
      %1781 = vmatmul.mubr.bf16.gmra.mrb[0].mxu0 %v1662
      %v1782 = vpop.f32.mrb[0].mxu0
      %v1783 = vadd.f32 0.0, %v1782
      %v1784 = vpop.f32.mrb[0].mxu0
      %v1785 = vpop.f32.mrb[0].mxu0
      %v1786 = vadd.f32 0.0, %v1785
      %v1787 = vpop.f32.mrb[0].mxu0
      %1788 = vdwg.mxu0
      %v1789 = vadd.f32 %v1579, %v1751
      %v1790 = vadd.f32 %v1580, %v1754
      %v1791 = vadd.f32 %v1581, %v1759
      %v1792 = vadd.f32 %v1582, %v1762
      %v1793 = vadd.f32 %v1583, %v1767
      %v1794 = vadd.f32 %v1584, %v1770
      %v1795 = vadd.f32 %v1585, %v1775
      %v1796 = vadd.f32 %v1586, %v1778
      %v1797 = vadd.f32 %v1587, %v1783
      %v1798 = vadd.f32 %v1588, %v1786
      %v1799 = vld [vmem:[%s246 + $0x8] sm:$0x8]
      %v1800 = vld [vmem:[%s1 + $0x200] sm:$0xf]
      %v1801 = vld [vmem:[%s1 + $0x204] sm:$0xf]
      %v1802 = vld [vmem:[%s1 + $0x208] sm:$0xf]
      %v1803 = vld [vmem:[%s1 + $0x20c] sm:$0xf]
      %v1804 = vld [vmem:[%s1 + $0x210] sm:$0xf]
      %v1805 = vld [vmem:[%s1 + $0x214] sm:$0xf]
      %v1806 = vld [vmem:[%s1 + $0x218] sm:$0xf]
      %v1807 = vld [vmem:[%s1 + $0x21c] sm:$0xf]
      %v1808 = vld [vmem:[%s1 + $0x220] sm:$0xf]
      %v1809 = vld [vmem:[%s1 + $0x224] sm:$0xf]
      %v1810 = vld [vmem:[%s1 + $0x228] sm:$0xf]
      %v1811 = vld [vmem:[%s1 + $0x22c] sm:$0xf]
      %v1812 = vld [vmem:[%s1 + $0x230] sm:$0xf]
      %v1813 = vld [vmem:[%s1 + $0x234] sm:$0xf]
      %v1814 = vld [vmem:[%s1 + $0x238] sm:$0xf]
      %v1815 = vld [vmem:[%s1 + $0x23c] sm:$0xf]
      %v1817 = vunpack.c.l.b16 %v1799
      %v1818 = vpack.c.b16 %v1426, %v1817
      %vm1819 = vcmask 1044480
      %v1820 = vrot.slane %v1818, 3
      %v1821 = vrot.slane %v1437, 3
      %v1822 = vsel %vm1819, %v1820, %v1821
      %v1823 = vrot.slane %v1438, 3
      %v1824 = vsel %vm1819, %v1821, %v1823
      %v1825 = vrot.slane %v1439, 3
      %v1826 = vsel %vm1819, %v1823, %v1825
      %v1827 = vrot.slane %v1440, 3
      %v1828 = vsel %vm1819, %v1825, %v1827
      %v1829 = vrot.slane %v1608, 3
      %v1830 = vsel %vm1819, %v1827, %v1829
      %v1852 = vunpack.c.l.b16 %v1800
      %v1853 = vunpack.c.l.b16 %v1801
      %v1854 = vunpack.c.l.b16 %v1802
      %v1855 = vunpack.c.l.b16 %v1803
      %v1856 = vunpack.c.l.b16 %v1804
      %v1857 = vunpack.c.l.b16 %v1805
      %v1858 = vunpack.c.l.b16 %v1806
      %v1859 = vunpack.c.l.b16 %v1807
      %v1860 = vunpack.c.l.b16 %v1808
      %v1861 = vunpack.c.l.b16 %v1809
      %v1862 = vunpack.c.l.b16 %v1810
      %v1863 = vunpack.c.l.b16 %v1811
      %v1864 = vunpack.c.l.b16 %v1812
      %v1865 = vunpack.c.l.b16 %v1813
      %v1866 = vunpack.c.l.b16 %v1814
      %v1867 = vunpack.c.l.b16 %v1815
      %v1868 = vpack.c.b16 %v1853, %v1852
      %v1869 = vpack.c.b16 %v1855, %v1854
      %v1870 = vpack.c.b16 %v1857, %v1856
      %v1871 = vpack.c.b16 %v1859, %v1858
      %v1872 = vpack.c.b16 %v1861, %v1860
      %v1873 = vpack.c.b16 %v1863, %v1862
      %v1874 = vpack.c.b16 %v1865, %v1864
      %v1875 = vpack.c.b16 %v1867, %v1866
      %1884 = vmatprep.subr.bf16.mxu0 0
      %1885 = vmatpush1.bf16.msra.mxu0 %v1868
      %1886 = vmatprep.subr.bf16.mxu0 0
      %1887 = vmatpush1.bf16.msra.mxu0 %v1869
      %1888 = vmatprep.subr.bf16.mxu0 0
      %1889 = vmatpush1.bf16.msra.mxu0 %v1870
      %1890 = vmatprep.subr.bf16.mxu0 0
      %1891 = vmatpush1.bf16.msra.mxu0 %v1871
      %1892 = vmatprep.subr.bf16.mxu0 0
      %1893 = vmatpush1.bf16.msra.mxu0 %v1872
      %1894 = vmatprep.subr.bf16.mxu0 0
      %1895 = vmatpush1.bf16.msra.mxu0 %v1873
      %1896 = vmatprep.subr.bf16.mxu0 0
      %1897 = vmatpush1.bf16.msra.mxu0 %v1874
      %1898 = vmatprep.subr.bf16.mxu0 0
      %1899 = vmatpush1.bf16.msra.mxu0 %v1875
      %1900 = vmatprep.subr.bf16.mxu0 0
      %1901 = vmatpush1.bf16.msra.mxu0 0
      %1902 = vmatprep.subr.bf16.mxu0 0
      %1903 = vmatpush1.bf16.msra.mxu0 0
      %1904 = vmatprep.subr.bf16.mxu0 0
      %1905 = vmatpush1.bf16.msra.mxu0 0
      %1906 = vmatprep.subr.bf16.mxu0 0
      %1907 = vmatpush1.bf16.msra.mxu0 0
      %1908 = vmatprep.subr.bf16.mxu0 0
      %1909 = vmatpush1.bf16.msra.mxu0 0
      %1910 = vmatprep.subr.bf16.mxu0 0
      %1911 = vmatpush1.bf16.msra.mxu0 0
      %1912 = vmatprep.subr.bf16.mxu0 0
      %1913 = vmatpush1.bf16.msra.mxu0 0
      %1914 = vmatprep.subr.bf16.mxu0 0
      %1915 = vmatpush1.bf16.msra.mxu0 0
      %1916 = vmatprep.mubr.bf16.mxu0 0
      %1917 = vmatmul.mubr.bf16.gmra.mrb[0].mxu0 %v1822
      %v1918 = vpop.f32.mrb[0].mxu0
      %v1919 = vadd.f32 0.0, %v1918
      %v1920 = vpop.f32.mrb[0].mxu0
      %v1921 = vpop.f32.mrb[0].mxu0
      %v1922 = vadd.f32 0.0, %v1921
      %v1923 = vpop.f32.mrb[0].mxu0
      %1924 = vmatprep.mubr.bf16.mxu0 0
      %1925 = vmatmul.mubr.bf16.gmra.mrb[0].mxu0 %v1824
      %v1926 = vpop.f32.mrb[0].mxu0
      %v1927 = vadd.f32 0.0, %v1926
      %v1928 = vpop.f32.mrb[0].mxu0
      %v1929 = vpop.f32.mrb[0].mxu0
      %v1930 = vadd.f32 0.0, %v1929
      %v1931 = vpop.f32.mrb[0].mxu0
      %1932 = vmatprep.mubr.bf16.mxu0 0
      %1933 = vmatmul.mubr.bf16.gmra.mrb[0].mxu0 %v1826
      %v1934 = vpop.f32.mrb[0].mxu0
      %v1935 = vadd.f32 0.0, %v1934
      %v1936 = vpop.f32.mrb[0].mxu0
      %v1937 = vpop.f32.mrb[0].mxu0
      %v1938 = vadd.f32 0.0, %v1937
      %v1939 = vpop.f32.mrb[0].mxu0
      %1940 = vmatprep.mubr.bf16.mxu0 0
      %1941 = vmatmul.mubr.bf16.gmra.mrb[0].mxu0 %v1828
      %v1942 = vpop.f32.mrb[0].mxu0
      %v1943 = vadd.f32 0.0, %v1942
      %v1944 = vpop.f32.mrb[0].mxu0
      %v1945 = vpop.f32.mrb[0].mxu0
      %v1946 = vadd.f32 0.0, %v1945
      %v1947 = vpop.f32.mrb[0].mxu0
      %1948 = vmatprep.mubr.bf16.mxu0 0
      %1949 = vmatmul.mubr.bf16.gmra.mrb[0].mxu0 %v1830
      %v1950 = vpop.f32.mrb[0].mxu0
      %v1951 = vadd.f32 0.0, %v1950
      %v1952 = vpop.f32.mrb[0].mxu0
      %v1953 = vpop.f32.mrb[0].mxu0
      %v1954 = vadd.f32 0.0, %v1953
      %v1955 = vpop.f32.mrb[0].mxu0
      %1956 = vdwg.mxu0
      %v1957 = vadd.f32 %v1789, %v1919
      %v1958 = vadd.f32 %v1790, %v1922
      %v1959 = vadd.f32 %v1791, %v1927
      %v1960 = vadd.f32 %v1792, %v1930
      %v1961 = vadd.f32 %v1793, %v1935
      %v1962 = vadd.f32 %v1794, %v1938
      %v1963 = vadd.f32 %v1795, %v1943
      %v1964 = vadd.f32 %v1796, %v1946
      %v1965 = vadd.f32 %v1797, %v1951
      %v1966 = vadd.f32 %v1798, %v1954
      %v1967 = vld [vmem:[%s2] sm:$0x1]
      %v1969 = vlaneseq
      %v1970 = vshrl.u32 %v1969, 7
      %v1971 = vsub.s32 0, %v1970
      %v1972 = vrot.slane %v1967, %v1971
      %v1974 = vadd.f32 %v1957, %v1972
      %v1975 = vadd.f32 %v1958, %v1972
      %v1976 = vadd.f32 %v1959, %v1972
      %v1977 = vadd.f32 %v1960, %v1972
      %v1978 = vadd.f32 %v1961, %v1972
      %v1979 = vadd.f32 %v1962, %v1972
      %v1980 = vadd.f32 %v1963, %v1972
      %v1981 = vadd.f32 %v1964, %v1972
      %v1982 = vadd.f32 %v1965, %v1972
      %v1983 = vadd.f32 %v1966, %v1972
      %v1984 = vmax.f32 %v1974, 0.0
      %v1985 = vmax.f32 %v1975, 0.0
      %v1986 = vmax.f32 %v1976, 0.0
      %v1987 = vmax.f32 %v1977, 0.0
      %v1988 = vmax.f32 %v1978, 0.0
      %v1989 = vmax.f32 %v1979, 0.0
      %v1990 = vmax.f32 %v1980, 0.0
      %v1991 = vmax.f32 %v1981, 0.0
      %v1992 = vmax.f32 %v1982, 0.0
      %v1993 = vmax.f32 %v1983, 0.0
      %v1994 = vld [vmem:[%s5] sm:$0xff]
      %v1995 = vld [vmem:[%s5 + $0x8] sm:$0xff]
      %v1996 = vld [vmem:[%s5 + $0x10] sm:$0xff]
      %v1997 = vld [vmem:[%s5 + $0x18] sm:$0xff]
      %v1998 = vld [vmem:[%s5 + $0x20] sm:$0xff]
      %v1999 = vld [vmem:[%s5 + $0x28] sm:$0xff]
      %v2000 = vld [vmem:[%s5 + $0x30] sm:$0xff]
      %v2001 = vld [vmem:[%s5 + $0x38] sm:$0xff]
      %v2002 = vld [vmem:[%s5 + $0x40] sm:$0xff]
      %v2003 = vld [vmem:[%s5 + $0x48] sm:$0x3f]
      %2005 = vset.pattern.permute.xlu0 0
      %2006 = vperm.xlu0 %2005, %v1994
      %v2007 = vpop.permute.xlu0 %2006
      %2010 = vset.pattern.permute.xlu0 0
      %2011 = vperm.xlu0 %2010, %v1995
      %v2012 = vpop.permute.xlu0 %2011
      %2015 = vset.pattern.permute.xlu0 0
      %2016 = vperm.xlu0 %2015, %v1996
      %v2017 = vpop.permute.xlu0 %2016
      %2020 = vset.pattern.permute.xlu0 0
      %2021 = vperm.xlu0 %2020, %v1997
      %v2022 = vpop.permute.xlu0 %2021
      %2025 = vset.pattern.permute.xlu0 0
      %2026 = vperm.xlu0 %2025, %v1998
      %v2027 = vpop.permute.xlu0 %2026
      %2030 = vset.pattern.permute.xlu0 0
      %2031 = vperm.xlu0 %2030, %v1999
      %v2032 = vpop.permute.xlu0 %2031
      %2035 = vset.pattern.permute.xlu0 0
      %2036 = vperm.xlu0 %2035, %v2000
      %v2037 = vpop.permute.xlu0 %2036
      %2040 = vset.pattern.permute.xlu0 0
      %2041 = vperm.xlu0 %2040, %v2001
      %v2042 = vpop.permute.xlu0 %2041
      %2045 = vset.pattern.permute.xlu0 0
      %2046 = vperm.xlu0 %2045, %v2002
      %v2047 = vpop.permute.xlu0 %2046
      %2050 = vset.pattern.permute.xlu0 0
      %2051 = vperm.xlu0 %2050, %v2003
      %v2052 = vpop.permute.xlu0 %2051
      %v2054 = vmul.f32 %v1984, %v2007
      %v2055 = vmul.f32 %v1985, %v2012
      %v2056 = vmul.f32 %v1986, %v2017
      %v2057 = vmul.f32 %v1987, %v2022
      %v2058 = vmul.f32 %v1988, %v2027
      %v2059 = vmul.f32 %v1989, %v2032
      %v2060 = vmul.f32 %v1990, %v2037
      %v2061 = vmul.f32 %v1991, %v2042
      %v2062 = vmul.f32 %v1992, %v2047
      %v2063 = vmul.f32 %v1993, %v2052
      %2064 = vst [vmem:[#allocation2] sm:$0xf] 0
      %2065 = vst [vmem:[#allocation2 + $0x4] sm:$0xf] 0
      %2066 = vst [vmem:[#allocation2 + $0x8] sm:$0xf] 0
      %2067 = vst [vmem:[#allocation2 + $0xc] sm:$0xf] 0
      %2068 = vst [vmem:[#allocation2 + $0x10] sm:$0xf] 0
      %2069 = vst [vmem:[#allocation2 + $0x14] sm:$0xf] 0
      %2070 = vst [vmem:[#allocation2 + $0x18] sm:$0xf] 0
      %2071 = vst [vmem:[#allocation2 + $0x1c] sm:$0xf] 0
      %2072 = vst [vmem:[#allocation2 + $0x20] sm:$0xf] 0
      %2073 = vst [vmem:[#allocation2 + $0x24] sm:$0xf] 0
      %2074 = vst [vmem:[#allocation2 + $0x28] sm:$0xf] 0
      %2075 = vst [vmem:[#allocation2 + $0x2c] sm:$0xf] 0
      %2076 = vst [vmem:[#allocation2 + $0x30] sm:$0x3] 0
      %v2077 = vpack.c.bf16 %v2055, %v2054
      %v2078 = vpack.c.bf16 %v2057, %v2056
      %v2079 = vpack.c.bf16 %v2059, %v2058
      %v2080 = vpack.c.bf16 %v2061, %v2060
      %v2081 = vpack.c.bf16 %v2063, %v2062
      %v2087 = vunpack.c.l.b16 %v2077
      %v2088 = vunpack.c.h.b16 %v2077
      %v2089 = vunpack.c.l.b16 %v2078
      %v2090 = vunpack.c.h.b16 %v2078
      %v2091 = vunpack.c.l.b16 %v2079
      %v2092 = vunpack.c.h.b16 %v2079
      %v2093 = vunpack.c.l.b16 %v2080
      %v2094 = vunpack.c.h.b16 %v2080
      %v2095 = vunpack.c.l.b16 %v2081
      %v2096 = vunpack.c.h.b16 %v2081
      %v2097 = vpack.c.b16 %v2087, %v2087
      %v2098 = vpack.c.b16 %v2088, %v2088
      %v2099 = vpack.c.b16 %v2089, %v2089
      %v2100 = vpack.c.b16 %v2090, %v2090
      %v2101 = vpack.c.b16 %v2091, %v2091
      %v2102 = vpack.c.b16 %v2092, %v2092
      %v2103 = vpack.c.b16 %v2093, %v2093
      %v2104 = vpack.c.b16 %v2094, %v2094
      %v2105 = vpack.c.b16 %v2095, %v2095
      %v2106 = vpack.c.b16 %v2096, %v2096
      %vm2107 = vsmask.f32 1280
      %vm2108 = vsmask.f32 5392
      %vm2109 = vmor %vm2107, %vm2108
      %v2111 = vshrl.u32 %v2097, 16
      %v2113 = vrot.slane %v2111, 6
      %v2114 = vshll.u32 %v2097, 16
      %v2116 = vrot.slane %v2114, 7
      %v2117 = vor.u32 %v2113, %v2116
      %v2118 = vrot.slane %v2117, 4
      %v2120 = vshrl.u32 %v2098, 16
      %v2122 = vrot.slane %v2120, 6
      %v2123 = vshll.u32 %v2098, 16
      %v2125 = vrot.slane %v2123, 7
      %v2126 = vor.u32 %v2122, %v2125
      %v2127 = vsel %vm2109, %v2118, %v2126
      %v2128 = vrot.slane %v2126, 4
      %v2130 = vshrl.u32 %v2099, 16
      %v2132 = vrot.slane %v2130, 6
      %v2133 = vshll.u32 %v2099, 16
      %v2135 = vrot.slane %v2133, 7
      %v2136 = vor.u32 %v2132, %v2135
      %v2137 = vsel %vm2109, %v2128, %v2136
      %v2138 = vrot.slane %v2136, 4
      %v2140 = vshrl.u32 %v2100, 16
      %v2142 = vrot.slane %v2140, 6
      %v2143 = vshll.u32 %v2100, 16
      %v2145 = vrot.slane %v2143, 7
      %v2146 = vor.u32 %v2142, %v2145
      %v2147 = vsel %vm2109, %v2138, %v2146
      %v2148 = vrot.slane %v2146, 4
      %v2150 = vshrl.u32 %v2101, 16
      %v2152 = vrot.slane %v2150, 6
      %v2153 = vshll.u32 %v2101, 16
      %v2155 = vrot.slane %v2153, 7
      %v2156 = vor.u32 %v2152, %v2155
      %v2157 = vsel %vm2109, %v2148, %v2156
      %v2158 = vrot.slane %v2156, 4
      %v2160 = vshrl.u32 %v2102, 16
      %v2162 = vrot.slane %v2160, 6
      %v2163 = vshll.u32 %v2102, 16
      %v2165 = vrot.slane %v2163, 7
      %v2166 = vor.u32 %v2162, %v2165
      %v2167 = vsel %vm2109, %v2158, %v2166
      %v2168 = vrot.slane %v2166, 4
      %v2170 = vshrl.u32 %v2103, 16
      %v2172 = vrot.slane %v2170, 6
      %v2173 = vshll.u32 %v2103, 16
      %v2175 = vrot.slane %v2173, 7
      %v2176 = vor.u32 %v2172, %v2175
      %v2177 = vsel %vm2109, %v2168, %v2176
      %v2178 = vrot.slane %v2176, 4
      %v2180 = vshrl.u32 %v2104, 16
      %v2182 = vrot.slane %v2180, 6
      %v2183 = vshll.u32 %v2104, 16
      %v2185 = vrot.slane %v2183, 7
      %v2186 = vor.u32 %v2182, %v2185
      %v2187 = vsel %vm2109, %v2178, %v2186
      %v2188 = vrot.slane %v2186, 4
      %v2190 = vshrl.u32 %v2105, 16
      %v2192 = vrot.slane %v2190, 6
      %v2193 = vshll.u32 %v2105, 16
      %v2195 = vrot.slane %v2193, 7
      %v2196 = vor.u32 %v2192, %v2195
      %v2197 = vsel %vm2109, %v2188, %v2196
      %v2198 = vrot.slane %v2196, 4
      %v2200 = vshrl.u32 %v2106, 16
      %v2202 = vrot.slane %v2200, 6
      %v2203 = vshll.u32 %v2106, 16
      %v2205 = vrot.slane %v2203, 7
      %v2206 = vor.u32 %v2202, %v2205
      %v2207 = vsel %vm2109, %v2198, %v2206
      %v2208 = vrot.slane %v2202, 4
      %vm2220 = vcmask 1043457
      %vm2221 = vsmask.f32 7942
      %vm2222 = vmand %vm2220, %vm2221
      %v2223 = vld [vmem:[#allocation2 + $0x4] sm:$0xe]
      %v2224 = vsel %vm2222, %v2117, %v2223
      %2225 = vst [vmem:[#allocation2 + $0x4] sm:$0xe] %v2224
      %2226 = vst [vmem:[#allocation2 + $0x8] sm:$0xf] %v2127
      %2227 = vst [vmem:[#allocation2 + $0xc] sm:$0xf] %v2137
      %2228 = vst [vmem:[#allocation2 + $0x10] sm:$0xf] %v2147
      %2229 = vst [vmem:[#allocation2 + $0x14] sm:$0xf] %v2157
      %2230 = vst [vmem:[#allocation2 + $0x18] sm:$0xf] %v2167
      %2231 = vst [vmem:[#allocation2 + $0x1c] sm:$0xf] %v2177
      %2232 = vst [vmem:[#allocation2 + $0x20] sm:$0xf] %v2187
      %2233 = vst [vmem:[#allocation2 + $0x24] sm:$0xf] %v2197
      %2234 = vst [vmem:[#allocation2 + $0x28] sm:$0xf] %v2207
      %vm2235 = vcmask 1040384
      %vm2236 = vsmask.f32 256
      %vm2237 = vmand %vm2235, %vm2236
      %v2238 = vld [vmem:[#allocation2 + $0x2c] sm:$0x1]
      %v2239 = vsel %vm2237, %v2208, %v2238
      %2240 = vst [vmem:[#allocation2 + $0x2c] sm:$0x1] %v2239
      %v2241 = vld [vmem:[#allocation2] sm:$0xf]
      %v2242 = vld [vmem:[#allocation2 + $0x4] sm:$0xf]
      %v2243 = vld [vmem:[#allocation2 + $0x8] sm:$0xf]
      %v2244 = vld [vmem:[#allocation2 + $0xc] sm:$0xf]
      %v2245 = vld [vmem:[#allocation2 + $0x10] sm:$0xf]
      %v2246 = vld [vmem:[#allocation2 + $0x14] sm:$0xf]
      %v2247 = vld [vmem:[#allocation2 + $0x18] sm:$0xf]
      %v2248 = vld [vmem:[#allocation2 + $0x1c] sm:$0xf]
      %v2249 = vld [vmem:[#allocation2 + $0x20] sm:$0xf]
      %v2250 = vld [vmem:[#allocation2 + $0x24] sm:$0x7]
      %v2251 = vld [vmem:[%s3] sm:$0xf]
      %v2252 = vld [vmem:[%s3 + $0x4] sm:$0xf]
      %v2253 = vld [vmem:[%s3 + $0x8] sm:$0xf]
      %v2254 = vld [vmem:[%s3 + $0xc] sm:$0xf]
      %v2255 = vld [vmem:[%s3 + $0x10] sm:$0xf]
      %v2256 = vld [vmem:[%s3 + $0x14] sm:$0xf]
      %v2257 = vld [vmem:[%s3 + $0x18] sm:$0xf]
      %v2258 = vld [vmem:[%s3 + $0x1c] sm:$0xf]
      %v2259 = vld [vmem:[%s3 + $0x20] sm:$0xf]
      %v2260 = vld [vmem:[%s3 + $0x24] sm:$0xf]
      %v2261 = vld [vmem:[%s3 + $0x28] sm:$0xf]
      %v2262 = vld [vmem:[%s3 + $0x2c] sm:$0xf]
      %v2263 = vld [vmem:[%s3 + $0x30] sm:$0xf]
      %v2264 = vld [vmem:[%s3 + $0x34] sm:$0xf]
      %v2265 = vld [vmem:[%s3 + $0x38] sm:$0xf]
      %v2266 = vld [vmem:[%s3 + $0x3c] sm:$0xf]
      %v2267 = vld [vmem:[#allocation2 + $0x24] sm:$0xf]
      %v2268 = vld [vmem:[%s3 + $0x40] sm:$0xf]
      %v2269 = vld [vmem:[%s3 + $0x44] sm:$0xf]
      %v2270 = vld [vmem:[%s3 + $0x48] sm:$0xf]
      %v2271 = vld [vmem:[%s3 + $0x4c] sm:$0xf]
      %v2272 = vld [vmem:[%s3 + $0x50] sm:$0xf]
      %v2273 = vld [vmem:[%s3 + $0x54] sm:$0xf]
      %v2274 = vld [vmem:[%s3 + $0x58] sm:$0xf]
      %v2275 = vld [vmem:[%s3 + $0x5c] sm:$0xf]
      %v2276 = vld [vmem:[%s3 + $0x60] sm:$0xf]
      %v2277 = vld [vmem:[%s3 + $0x64] sm:$0xf]
      %v2278 = vld [vmem:[%s3 + $0x68] sm:$0xf]
      %v2279 = vld [vmem:[%s3 + $0x6c] sm:$0xf]
      %v2280 = vld [vmem:[%s3 + $0x70] sm:$0xf]
      %v2281 = vld [vmem:[%s3 + $0x74] sm:$0xf]
      %v2282 = vld [vmem:[%s3 + $0x78] sm:$0xf]
      %v2283 = vld [vmem:[%s3 + $0x7c] sm:$0xf]
      %v2294 = vunpack.c.l.b16 %v2241
      %v2295 = vunpack.c.l.b16 %v2242
      %v2296 = vunpack.c.l.b16 %v2243
      %v2297 = vunpack.c.l.b16 %v2244
      %v2298 = vunpack.c.l.b16 %v2245
      %v2299 = vunpack.c.l.b16 %v2246
      %v2300 = vunpack.c.l.b16 %v2247
      %v2301 = vunpack.c.l.b16 %v2248
      %v2302 = vunpack.c.l.b16 %v2249
      %v2303 = vunpack.c.l.b16 %v2267
      %v2304 = vpack.c.b16 %v2295, %v2294
      %v2305 = vpack.c.b16 %v2297, %v2296
      %v2306 = vpack.c.b16 %v2299, %v2298
      %v2307 = vpack.c.b16 %v2301, %v2300
      %v2308 = vpack.c.b16 %v2303, %v2302
      %v2310 = vshrl.u32 %v2304, 16
      %v2312 = vshll.u32 %v2304, 16
      %v2314 = vrot.slane %v2312, 1
      %v2315 = vor.u32 %v2310, %v2314
      %v2317 = vshll.u32 %v2305, 16
      %v2319 = vrot.slane %v2317, 1
      %v2320 = vsel %vm321, %v2315, %v2319
      %v2321 = vshrl.u32 %v2305, 16
      %v2323 = vor.u32 %v2321, %v2319
      %v2325 = vshll.u32 %v2306, 16
      %v2327 = vrot.slane %v2325, 1
      %v2328 = vsel %vm321, %v2323, %v2327
      %v2329 = vshrl.u32 %v2306, 16
      %v2331 = vor.u32 %v2329, %v2327
      %v2333 = vshll.u32 %v2307, 16
      %v2335 = vrot.slane %v2333, 1
      %v2336 = vsel %vm321, %v2331, %v2335
      %v2337 = vshrl.u32 %v2307, 16
      %v2339 = vor.u32 %v2337, %v2335
      %v2341 = vshll.u32 %v2308, 16
      %v2343 = vrot.slane %v2341, 1
      %v2344 = vsel %vm321, %v2339, %v2343
      %v2345 = vshrl.u32 %v2308, 16
      %v2347 = vor.u32 %v2345, %v2343
      %v2369 = vunpack.c.l.b16 %v2268
      %v2370 = vunpack.c.l.b16 %v2269
      %v2371 = vunpack.c.l.b16 %v2270
      %v2372 = vunpack.c.l.b16 %v2271
      %v2373 = vunpack.c.l.b16 %v2272
      %v2374 = vunpack.c.l.b16 %v2273
      %v2375 = vunpack.c.l.b16 %v2274
      %v2376 = vunpack.c.l.b16 %v2275
      %v2377 = vunpack.c.l.b16 %v2276
      %v2378 = vunpack.c.l.b16 %v2277
      %v2379 = vunpack.c.l.b16 %v2278
      %v2380 = vunpack.c.l.b16 %v2279
      %v2381 = vunpack.c.l.b16 %v2280
      %v2382 = vunpack.c.l.b16 %v2281
      %v2383 = vunpack.c.l.b16 %v2282
      %v2384 = vunpack.c.l.b16 %v2283
      %v2385 = vpack.c.b16 %v2370, %v2369
      %v2386 = vpack.c.b16 %v2372, %v2371
      %v2387 = vpack.c.b16 %v2374, %v2373
      %v2388 = vpack.c.b16 %v2376, %v2375
      %v2389 = vpack.c.b16 %v2378, %v2377
      %v2390 = vpack.c.b16 %v2380, %v2379
      %v2391 = vpack.c.b16 %v2382, %v2381
      %v2392 = vpack.c.b16 %v2384, %v2383
      %2401 = vmatprep.subr.bf16.mxu0 0
      %2402 = vmatpush1.bf16.msra.mxu0 %v2385
      %2403 = vmatprep.subr.bf16.mxu0 0
      %2404 = vmatpush1.bf16.msra.mxu0 %v2386
      %2405 = vmatprep.subr.bf16.mxu0 0
      %2406 = vmatpush1.bf16.msra.mxu0 %v2387
      %2407 = vmatprep.subr.bf16.mxu0 0
      %2408 = vmatpush1.bf16.msra.mxu0 %v2388
      %2409 = vmatprep.subr.bf16.mxu0 0
      %2410 = vmatpush1.bf16.msra.mxu0 %v2389
      %2411 = vmatprep.subr.bf16.mxu0 0
      %2412 = vmatpush1.bf16.msra.mxu0 %v2390
      %2413 = vmatprep.subr.bf16.mxu0 0
      %2414 = vmatpush1.bf16.msra.mxu0 %v2391
      %2415 = vmatprep.subr.bf16.mxu0 0
      %2416 = vmatpush1.bf16.msra.mxu0 %v2392
      %2417 = vmatprep.subr.bf16.mxu0 0
      %2418 = vmatpush1.bf16.msra.mxu0 0
      %2419 = vmatprep.subr.bf16.mxu0 0
      %2420 = vmatpush1.bf16.msra.mxu0 0
      %2421 = vmatprep.subr.bf16.mxu0 0
      %2422 = vmatpush1.bf16.msra.mxu0 0
      %2423 = vmatprep.subr.bf16.mxu0 0
      %2424 = vmatpush1.bf16.msra.mxu0 0
      %2425 = vmatprep.subr.bf16.mxu0 0
      %2426 = vmatpush1.bf16.msra.mxu0 0
      %2427 = vmatprep.subr.bf16.mxu0 0
      %2428 = vmatpush1.bf16.msra.mxu0 0
      %2429 = vmatprep.subr.bf16.mxu0 0
      %2430 = vmatpush1.bf16.msra.mxu0 0
      %2431 = vmatprep.subr.bf16.mxu0 0
      %2432 = vmatpush1.bf16.msra.mxu0 0
      %2433 = vmatprep.mubr.bf16.mxu0 0
      %2434 = vmatmul.mubr.bf16.gmra.mrb[0].mxu0 %v2320
      %v2435 = vpop.f32.mrb[0].mxu0
      %v2436 = vadd.f32 0.0, %v2435
      %v2437 = vpop.f32.mrb[0].mxu0
      %v2438 = vpop.f32.mrb[0].mxu0
      %v2439 = vadd.f32 0.0, %v2438
      %v2440 = vpop.f32.mrb[0].mxu0
      %2441 = vmatprep.mubr.bf16.mxu0 0
      %2442 = vmatmul.mubr.bf16.gmra.mrb[0].mxu0 %v2328
      %v2443 = vpop.f32.mrb[0].mxu0
      %v2444 = vadd.f32 0.0, %v2443
      %v2445 = vpop.f32.mrb[0].mxu0
      %v2446 = vpop.f32.mrb[0].mxu0
      %v2447 = vadd.f32 0.0, %v2446
      %v2448 = vpop.f32.mrb[0].mxu0
      %2449 = vmatprep.mubr.bf16.mxu0 0
      %2450 = vmatmul.mubr.bf16.gmra.mrb[0].mxu0 %v2336
      %v2451 = vpop.f32.mrb[0].mxu0
      %v2452 = vadd.f32 0.0, %v2451
      %v2453 = vpop.f32.mrb[0].mxu0
      %v2454 = vpop.f32.mrb[0].mxu0
      %v2455 = vadd.f32 0.0, %v2454
      %v2456 = vpop.f32.mrb[0].mxu0
      %2457 = vmatprep.mubr.bf16.mxu0 0
      %2458 = vmatmul.mubr.bf16.gmra.mrb[0].mxu0 %v2344
      %v2459 = vpop.f32.mrb[0].mxu0
      %v2460 = vadd.f32 0.0, %v2459
      %v2461 = vpop.f32.mrb[0].mxu0
      %v2462 = vpop.f32.mrb[0].mxu0
      %v2463 = vadd.f32 0.0, %v2462
      %v2464 = vpop.f32.mrb[0].mxu0
      %2465 = vmatprep.mubr.bf16.mxu0 0
      %2466 = vmatmul.mubr.bf16.gmra.mrb[0].mxu0 %v2347
      %v2467 = vpop.f32.mrb[0].mxu0
      %v2468 = vadd.f32 0.0, %v2467
      %v2469 = vpop.f32.mrb[0].mxu0
      %v2470 = vpop.f32.mrb[0].mxu0
      %v2471 = vadd.f32 0.0, %v2470
      %v2472 = vpop.f32.mrb[0].mxu0
      %2473 = vdwg.mxu0
      %v2475 = vunpack.c.l.b16 %v2250
      %v2476 = vpack.c.b16 %v2475, %v2302
      %v2498 = vunpack.c.l.b16 %v2251
      %v2499 = vunpack.c.l.b16 %v2252
      %v2500 = vunpack.c.l.b16 %v2253
      %v2501 = vunpack.c.l.b16 %v2254
      %v2502 = vunpack.c.l.b16 %v2255
      %v2503 = vunpack.c.l.b16 %v2256
      %v2504 = vunpack.c.l.b16 %v2257
      %v2505 = vunpack.c.l.b16 %v2258
      %v2506 = vunpack.c.l.b16 %v2259
      %v2507 = vunpack.c.l.b16 %v2260
      %v2508 = vunpack.c.l.b16 %v2261
      %v2509 = vunpack.c.l.b16 %v2262
      %v2510 = vunpack.c.l.b16 %v2263
      %v2511 = vunpack.c.l.b16 %v2264
      %v2512 = vunpack.c.l.b16 %v2265
      %v2513 = vunpack.c.l.b16 %v2266
      %v2514 = vpack.c.b16 %v2499, %v2498
      %v2515 = vpack.c.b16 %v2501, %v2500
      %v2516 = vpack.c.b16 %v2503, %v2502
      %v2517 = vpack.c.b16 %v2505, %v2504
      %v2518 = vpack.c.b16 %v2507, %v2506
      %v2519 = vpack.c.b16 %v2509, %v2508
      %v2520 = vpack.c.b16 %v2511, %v2510
      %v2521 = vpack.c.b16 %v2513, %v2512
      %2530 = vmatprep.subr.bf16.mxu0 0
      %2531 = vmatpush1.bf16.msra.mxu0 %v2514
      %2532 = vmatprep.subr.bf16.mxu0 0
      %2533 = vmatpush1.bf16.msra.mxu0 %v2515
      %2534 = vmatprep.subr.bf16.mxu0 0
      %2535 = vmatpush1.bf16.msra.mxu0 %v2516
      %2536 = vmatprep.subr.bf16.mxu0 0
      %2537 = vmatpush1.bf16.msra.mxu0 %v2517
      %2538 = vmatprep.subr.bf16.mxu0 0
      %2539 = vmatpush1.bf16.msra.mxu0 %v2518
      %2540 = vmatprep.subr.bf16.mxu0 0
      %2541 = vmatpush1.bf16.msra.mxu0 %v2519
      %2542 = vmatprep.subr.bf16.mxu0 0
      %2543 = vmatpush1.bf16.msra.mxu0 %v2520
      %2544 = vmatprep.subr.bf16.mxu0 0
      %2545 = vmatpush1.bf16.msra.mxu0 %v2521
      %2546 = vmatprep.subr.bf16.mxu0 0
      %2547 = vmatpush1.bf16.msra.mxu0 0
      %2548 = vmatprep.subr.bf16.mxu0 0
      %2549 = vmatpush1.bf16.msra.mxu0 0
      %2550 = vmatprep.subr.bf16.mxu0 0
      %2551 = vmatpush1.bf16.msra.mxu0 0
      %2552 = vmatprep.subr.bf16.mxu0 0
      %2553 = vmatpush1.bf16.msra.mxu0 0
      %2554 = vmatprep.subr.bf16.mxu0 0
      %2555 = vmatpush1.bf16.msra.mxu0 0
      %2556 = vmatprep.subr.bf16.mxu0 0
      %2557 = vmatpush1.bf16.msra.mxu0 0
      %2558 = vmatprep.subr.bf16.mxu0 0
      %2559 = vmatpush1.bf16.msra.mxu0 0
      %2560 = vmatprep.subr.bf16.mxu0 0
      %2561 = vmatpush1.bf16.msra.mxu0 0
      %2562 = vmatprep.mubr.bf16.mxu0 0
      %2563 = vmatmul.mubr.bf16.gmra.mrb[0].mxu0 %v2304
      %v2564 = vpop.f32.mrb[0].mxu0
      %v2565 = vadd.f32 %v2436, %v2564
      %v2566 = vpop.f32.mrb[0].mxu0
      %v2567 = vpop.f32.mrb[0].mxu0
      %v2568 = vadd.f32 %v2439, %v2567
      %v2569 = vpop.f32.mrb[0].mxu0
      %2570 = vmatprep.mubr.bf16.mxu0 0
      %2571 = vmatmul.mubr.bf16.gmra.mrb[0].mxu0 %v2305
      %v2572 = vpop.f32.mrb[0].mxu0
      %v2573 = vadd.f32 %v2444, %v2572
      %v2574 = vpop.f32.mrb[0].mxu0
      %v2575 = vpop.f32.mrb[0].mxu0
      %v2576 = vadd.f32 %v2447, %v2575
      %v2577 = vpop.f32.mrb[0].mxu0
      %2578 = vmatprep.mubr.bf16.mxu0 0
      %2579 = vmatmul.mubr.bf16.gmra.mrb[0].mxu0 %v2306
      %v2580 = vpop.f32.mrb[0].mxu0
      %v2581 = vadd.f32 %v2452, %v2580
      %v2582 = vpop.f32.mrb[0].mxu0
      %v2583 = vpop.f32.mrb[0].mxu0
      %v2584 = vadd.f32 %v2455, %v2583
      %v2585 = vpop.f32.mrb[0].mxu0
      %2586 = vmatprep.mubr.bf16.mxu0 0
      %2587 = vmatmul.mubr.bf16.gmra.mrb[0].mxu0 %v2307
      %v2588 = vpop.f32.mrb[0].mxu0
      %v2589 = vadd.f32 %v2460, %v2588
      %v2590 = vpop.f32.mrb[0].mxu0
      %v2591 = vpop.f32.mrb[0].mxu0
      %v2592 = vadd.f32 %v2463, %v2591
      %v2593 = vpop.f32.mrb[0].mxu0
      %2594 = vmatprep.mubr.bf16.mxu0 0
      %2595 = vmatmul.mubr.bf16.gmra.mrb[0].mxu0 %v2476
      %v2596 = vpop.f32.mrb[0].mxu0
      %v2597 = vadd.f32 %v2468, %v2596
      %v2598 = vpop.f32.mrb[0].mxu0
      %v2599 = vpop.f32.mrb[0].mxu0
      %v2600 = vadd.f32 %v2471, %v2599
      %v2601 = vpop.f32.mrb[0].mxu0
      %2602 = vdwg.mxu0
      %v2603 = vld [vmem:[#allocation2] sm:$0xe]
      %v2604 = vld [vmem:[%s3 + $0x80] sm:$0xf]
      %v2605 = vld [vmem:[%s3 + $0x84] sm:$0xf]
      %v2606 = vld [vmem:[%s3 + $0x88] sm:$0xf]
      %v2607 = vld [vmem:[%s3 + $0x8c] sm:$0xf]
      %v2608 = vld [vmem:[%s3 + $0x90] sm:$0xf]
      %v2609 = vld [vmem:[%s3 + $0x94] sm:$0xf]
      %v2610 = vld [vmem:[%s3 + $0x98] sm:$0xf]
      %v2611 = vld [vmem:[%s3 + $0x9c] sm:$0xf]
      %v2612 = vld [vmem:[%s3 + $0xa0] sm:$0xf]
      %v2613 = vld [vmem:[%s3 + $0xa4] sm:$0xf]
      %v2614 = vld [vmem:[%s3 + $0xa8] sm:$0xf]
      %v2615 = vld [vmem:[%s3 + $0xac] sm:$0xf]
      %v2616 = vld [vmem:[%s3 + $0xb0] sm:$0xf]
      %v2617 = vld [vmem:[%s3 + $0xb4] sm:$0xf]
      %v2618 = vld [vmem:[%s3 + $0xb8] sm:$0xf]
      %v2619 = vld [vmem:[%s3 + $0xbc] sm:$0xf]
      %v2621 = vunpack.c.l.b16 %v2603
      %v2622 = vpack.c.b16 %v2295, %v2621
      %v2623 = vrot.slane %v2622, 1
      %v2624 = vrot.slane %v2305, 1
      %v2625 = vsel %vm636, %v2623, %v2624
      %v2626 = vrot.slane %v2306, 1
      %v2627 = vsel %vm636, %v2624, %v2626
      %v2628 = vrot.slane %v2307, 1
      %v2629 = vsel %vm636, %v2626, %v2628
      %v2630 = vrot.slane %v2308, 1
      %v2631 = vsel %vm636, %v2628, %v2630
      %v2653 = vunpack.c.l.b16 %v2604
      %v2654 = vunpack.c.l.b16 %v2605
      %v2655 = vunpack.c.l.b16 %v2606
      %v2656 = vunpack.c.l.b16 %v2607
      %v2657 = vunpack.c.l.b16 %v2608
      %v2658 = vunpack.c.l.b16 %v2609
      %v2659 = vunpack.c.l.b16 %v2610
      %v2660 = vunpack.c.l.b16 %v2611
      %v2661 = vunpack.c.l.b16 %v2612
      %v2662 = vunpack.c.l.b16 %v2613
      %v2663 = vunpack.c.l.b16 %v2614
      %v2664 = vunpack.c.l.b16 %v2615
      %v2665 = vunpack.c.l.b16 %v2616
      %v2666 = vunpack.c.l.b16 %v2617
      %v2667 = vunpack.c.l.b16 %v2618
      %v2668 = vunpack.c.l.b16 %v2619
      %v2669 = vpack.c.b16 %v2654, %v2653
      %v2670 = vpack.c.b16 %v2656, %v2655
      %v2671 = vpack.c.b16 %v2658, %v2657
      %v2672 = vpack.c.b16 %v2660, %v2659
      %v2673 = vpack.c.b16 %v2662, %v2661
      %v2674 = vpack.c.b16 %v2664, %v2663
      %v2675 = vpack.c.b16 %v2666, %v2665
      %v2676 = vpack.c.b16 %v2668, %v2667
      %2685 = vmatprep.subr.bf16.mxu0 0
      %2686 = vmatpush1.bf16.msra.mxu0 %v2669
      %2687 = vmatprep.subr.bf16.mxu0 0
      %2688 = vmatpush1.bf16.msra.mxu0 %v2670
      %2689 = vmatprep.subr.bf16.mxu0 0
      %2690 = vmatpush1.bf16.msra.mxu0 %v2671
      %2691 = vmatprep.subr.bf16.mxu0 0
      %2692 = vmatpush1.bf16.msra.mxu0 %v2672
      %2693 = vmatprep.subr.bf16.mxu0 0
      %2694 = vmatpush1.bf16.msra.mxu0 %v2673
      %2695 = vmatprep.subr.bf16.mxu0 0
      %2696 = vmatpush1.bf16.msra.mxu0 %v2674
      %2697 = vmatprep.subr.bf16.mxu0 0
      %2698 = vmatpush1.bf16.msra.mxu0 %v2675
      %2699 = vmatprep.subr.bf16.mxu0 0
      %2700 = vmatpush1.bf16.msra.mxu0 %v2676
      %2701 = vmatprep.subr.bf16.mxu0 0
      %2702 = vmatpush1.bf16.msra.mxu0 0
      %2703 = vmatprep.subr.bf16.mxu0 0
      %2704 = vmatpush1.bf16.msra.mxu0 0
      %2705 = vmatprep.subr.bf16.mxu0 0
      %2706 = vmatpush1.bf16.msra.mxu0 0
      %2707 = vmatprep.subr.bf16.mxu0 0
      %2708 = vmatpush1.bf16.msra.mxu0 0
      %2709 = vmatprep.subr.bf16.mxu0 0
      %2710 = vmatpush1.bf16.msra.mxu0 0
      %2711 = vmatprep.subr.bf16.mxu0 0
      %2712 = vmatpush1.bf16.msra.mxu0 0
      %2713 = vmatprep.subr.bf16.mxu0 0
      %2714 = vmatpush1.bf16.msra.mxu0 0
      %2715 = vmatprep.subr.bf16.mxu0 0
      %2716 = vmatpush1.bf16.msra.mxu0 0
      %2717 = vmatprep.mubr.bf16.mxu0 0
      %2718 = vmatmul.mubr.bf16.gmra.mrb[0].mxu0 %v2625
      %v2719 = vpop.f32.mrb[0].mxu0
      %v2720 = vadd.f32 0.0, %v2719
      %v2721 = vpop.f32.mrb[0].mxu0
      %v2722 = vpop.f32.mrb[0].mxu0
      %v2723 = vadd.f32 0.0, %v2722
      %v2724 = vpop.f32.mrb[0].mxu0
      %2725 = vmatprep.mubr.bf16.mxu0 0
      %2726 = vmatmul.mubr.bf16.gmra.mrb[0].mxu0 %v2627
      %v2727 = vpop.f32.mrb[0].mxu0
      %v2728 = vadd.f32 0.0, %v2727
      %v2729 = vpop.f32.mrb[0].mxu0
      %v2730 = vpop.f32.mrb[0].mxu0
      %v2731 = vadd.f32 0.0, %v2730
      %v2732 = vpop.f32.mrb[0].mxu0
      %2733 = vmatprep.mubr.bf16.mxu0 0
      %2734 = vmatmul.mubr.bf16.gmra.mrb[0].mxu0 %v2629
      %v2735 = vpop.f32.mrb[0].mxu0
      %v2736 = vadd.f32 0.0, %v2735
      %v2737 = vpop.f32.mrb[0].mxu0
      %v2738 = vpop.f32.mrb[0].mxu0
      %v2739 = vadd.f32 0.0, %v2738
      %v2740 = vpop.f32.mrb[0].mxu0
      %2741 = vmatprep.mubr.bf16.mxu0 0
      %2742 = vmatmul.mubr.bf16.gmra.mrb[0].mxu0 %v2631
      %v2743 = vpop.f32.mrb[0].mxu0
      %v2744 = vadd.f32 0.0, %v2743
      %v2745 = vpop.f32.mrb[0].mxu0
      %v2746 = vpop.f32.mrb[0].mxu0
      %v2747 = vadd.f32 0.0, %v2746
      %v2748 = vpop.f32.mrb[0].mxu0
      %2749 = vmatprep.mubr.bf16.mxu0 0
      %2750 = vmatmul.mubr.bf16.gmra.mrb[0].mxu0 %v2630
      %v2751 = vpop.f32.mrb[0].mxu0
      %v2752 = vadd.f32 0.0, %v2751
      %v2753 = vpop.f32.mrb[0].mxu0
      %v2754 = vpop.f32.mrb[0].mxu0
      %v2755 = vadd.f32 0.0, %v2754
      %v2756 = vpop.f32.mrb[0].mxu0
      %2757 = vdwg.mxu0
      %v2758 = vadd.f32 %v2565, %v2720
      %v2759 = vadd.f32 %v2568, %v2723
      %v2760 = vadd.f32 %v2573, %v2728
      %v2761 = vadd.f32 %v2576, %v2731
      %v2762 = vadd.f32 %v2581, %v2736
      %v2763 = vadd.f32 %v2584, %v2739
      %v2764 = vadd.f32 %v2589, %v2744
      %v2765 = vadd.f32 %v2592, %v2747
      %v2766 = vadd.f32 %v2597, %v2752
      %v2767 = vadd.f32 %v2600, %v2755
      %v2768 = vld [vmem:[#allocation2 + $0x4] sm:$0xe]
      %v2769 = vld [vmem:[#allocation2 + $0x8] sm:$0xf]
      %v2770 = vld [vmem:[#allocation2 + $0xc] sm:$0xf]
      %v2771 = vld [vmem:[#allocation2 + $0x10] sm:$0xf]
      %v2772 = vld [vmem:[#allocation2 + $0x14] sm:$0xf]
      %v2773 = vld [vmem:[#allocation2 + $0x18] sm:$0xf]
      %v2774 = vld [vmem:[#allocation2 + $0x1c] sm:$0xf]
      %v2775 = vld [vmem:[#allocation2 + $0x20] sm:$0xf]
      %v2776 = vld [vmem:[#allocation2 + $0x24] sm:$0xf]
      %v2777 = vld [vmem:[#allocation2 + $0x28] sm:$0xf]
      %v2778 = vld [vmem:[%s3 + $0xc0] sm:$0xf]
      %v2779 = vld [vmem:[%s3 + $0xc4] sm:$0xf]
      %v2780 = vld [vmem:[%s3 + $0xc8] sm:$0xf]
      %v2781 = vld [vmem:[%s3 + $0xcc] sm:$0xf]
      %v2782 = vld [vmem:[%s3 + $0xd0] sm:$0xf]
      %v2783 = vld [vmem:[%s3 + $0xd4] sm:$0xf]
      %v2784 = vld [vmem:[%s3 + $0xd8] sm:$0xf]
      %v2785 = vld [vmem:[%s3 + $0xdc] sm:$0xf]
      %v2786 = vld [vmem:[%s3 + $0xe0] sm:$0xf]
      %v2787 = vld [vmem:[%s3 + $0xe4] sm:$0xf]
      %v2788 = vld [vmem:[%s3 + $0xe8] sm:$0xf]
      %v2789 = vld [vmem:[%s3 + $0xec] sm:$0xf]
      %v2790 = vld [vmem:[%s3 + $0xf0] sm:$0xf]
      %v2791 = vld [vmem:[%s3 + $0xf4] sm:$0xf]
      %v2792 = vld [vmem:[%s3 + $0xf8] sm:$0xf]
      %v2793 = vld [vmem:[%s3 + $0xfc] sm:$0xf]
      %v2804 = vunpack.c.l.b16 %v2768
      %v2805 = vunpack.c.l.b16 %v2769
      %v2806 = vunpack.c.l.b16 %v2770
      %v2807 = vunpack.c.l.b16 %v2771
      %v2808 = vunpack.c.l.b16 %v2772
      %v2809 = vunpack.c.l.b16 %v2773
      %v2810 = vunpack.c.l.b16 %v2774
      %v2811 = vunpack.c.l.b16 %v2775
      %v2812 = vunpack.c.l.b16 %v2776
      %v2813 = vunpack.c.l.b16 %v2777
      %v2814 = vpack.c.b16 %v2805, %v2804
      %v2815 = vpack.c.b16 %v2807, %v2806
      %v2816 = vpack.c.b16 %v2809, %v2808
      %v2817 = vpack.c.b16 %v2811, %v2810
      %v2818 = vpack.c.b16 %v2813, %v2812
      %v2819 = vrot.slane %v2814, 1
      %v2820 = vrot.slane %v2815, 1
      %v2821 = vsel %vm636, %v2819, %v2820
      %v2822 = vrot.slane %v2816, 1
      %v2823 = vsel %vm636, %v2820, %v2822
      %v2824 = vrot.slane %v2817, 1
      %v2825 = vsel %vm636, %v2822, %v2824
      %v2826 = vrot.slane %v2818, 1
      %v2827 = vsel %vm636, %v2824, %v2826
      %v2849 = vunpack.c.l.b16 %v2778
      %v2850 = vunpack.c.l.b16 %v2779
      %v2851 = vunpack.c.l.b16 %v2780
      %v2852 = vunpack.c.l.b16 %v2781
      %v2853 = vunpack.c.l.b16 %v2782
      %v2854 = vunpack.c.l.b16 %v2783
      %v2855 = vunpack.c.l.b16 %v2784
      %v2856 = vunpack.c.l.b16 %v2785
      %v2857 = vunpack.c.l.b16 %v2786
      %v2858 = vunpack.c.l.b16 %v2787
      %v2859 = vunpack.c.l.b16 %v2788
      %v2860 = vunpack.c.l.b16 %v2789
      %v2861 = vunpack.c.l.b16 %v2790
      %v2862 = vunpack.c.l.b16 %v2791
      %v2863 = vunpack.c.l.b16 %v2792
      %v2864 = vunpack.c.l.b16 %v2793
      %v2865 = vpack.c.b16 %v2850, %v2849
      %v2866 = vpack.c.b16 %v2852, %v2851
      %v2867 = vpack.c.b16 %v2854, %v2853
      %v2868 = vpack.c.b16 %v2856, %v2855
      %v2869 = vpack.c.b16 %v2858, %v2857
      %v2870 = vpack.c.b16 %v2860, %v2859
      %v2871 = vpack.c.b16 %v2862, %v2861
      %v2872 = vpack.c.b16 %v2864, %v2863
      %2881 = vmatprep.subr.bf16.mxu0 0
      %2882 = vmatpush1.bf16.msra.mxu0 %v2865
      %2883 = vmatprep.subr.bf16.mxu0 0
      %2884 = vmatpush1.bf16.msra.mxu0 %v2866
      %2885 = vmatprep.subr.bf16.mxu0 0
      %2886 = vmatpush1.bf16.msra.mxu0 %v2867
      %2887 = vmatprep.subr.bf16.mxu0 0
      %2888 = vmatpush1.bf16.msra.mxu0 %v2868
      %2889 = vmatprep.subr.bf16.mxu0 0
      %2890 = vmatpush1.bf16.msra.mxu0 %v2869
      %2891 = vmatprep.subr.bf16.mxu0 0
      %2892 = vmatpush1.bf16.msra.mxu0 %v2870
      %2893 = vmatprep.subr.bf16.mxu0 0
      %2894 = vmatpush1.bf16.msra.mxu0 %v2871
      %2895 = vmatprep.subr.bf16.mxu0 0
      %2896 = vmatpush1.bf16.msra.mxu0 %v2872
      %2897 = vmatprep.subr.bf16.mxu0 0
      %2898 = vmatpush1.bf16.msra.mxu0 0
      %2899 = vmatprep.subr.bf16.mxu0 0
      %2900 = vmatpush1.bf16.msra.mxu0 0
      %2901 = vmatprep.subr.bf16.mxu0 0
      %2902 = vmatpush1.bf16.msra.mxu0 0
      %2903 = vmatprep.subr.bf16.mxu0 0
      %2904 = vmatpush1.bf16.msra.mxu0 0
      %2905 = vmatprep.subr.bf16.mxu0 0
      %2906 = vmatpush1.bf16.msra.mxu0 0
      %2907 = vmatprep.subr.bf16.mxu0 0
      %2908 = vmatpush1.bf16.msra.mxu0 0
      %2909 = vmatprep.subr.bf16.mxu0 0
      %2910 = vmatpush1.bf16.msra.mxu0 0
      %2911 = vmatprep.subr.bf16.mxu0 0
      %2912 = vmatpush1.bf16.msra.mxu0 0
      %2913 = vmatprep.mubr.bf16.mxu0 0
      %2914 = vmatmul.mubr.bf16.gmra.mrb[0].mxu0 %v2821
      %v2915 = vpop.f32.mrb[0].mxu0
      %v2916 = vadd.f32 0.0, %v2915
      %v2917 = vpop.f32.mrb[0].mxu0
      %v2918 = vpop.f32.mrb[0].mxu0
      %v2919 = vadd.f32 0.0, %v2918
      %v2920 = vpop.f32.mrb[0].mxu0
      %2921 = vmatprep.mubr.bf16.mxu0 0
      %2922 = vmatmul.mubr.bf16.gmra.mrb[0].mxu0 %v2823
      %v2923 = vpop.f32.mrb[0].mxu0
      %v2924 = vadd.f32 0.0, %v2923
      %v2925 = vpop.f32.mrb[0].mxu0
      %v2926 = vpop.f32.mrb[0].mxu0
      %v2927 = vadd.f32 0.0, %v2926
      %v2928 = vpop.f32.mrb[0].mxu0
      %2929 = vmatprep.mubr.bf16.mxu0 0
      %2930 = vmatmul.mubr.bf16.gmra.mrb[0].mxu0 %v2825
      %v2931 = vpop.f32.mrb[0].mxu0
      %v2932 = vadd.f32 0.0, %v2931
      %v2933 = vpop.f32.mrb[0].mxu0
      %v2934 = vpop.f32.mrb[0].mxu0
      %v2935 = vadd.f32 0.0, %v2934
      %v2936 = vpop.f32.mrb[0].mxu0
      %2937 = vmatprep.mubr.bf16.mxu0 0
      %2938 = vmatmul.mubr.bf16.gmra.mrb[0].mxu0 %v2827
      %v2939 = vpop.f32.mrb[0].mxu0
      %v2940 = vadd.f32 0.0, %v2939
      %v2941 = vpop.f32.mrb[0].mxu0
      %v2942 = vpop.f32.mrb[0].mxu0
      %v2943 = vadd.f32 0.0, %v2942
      %v2944 = vpop.f32.mrb[0].mxu0
      %2945 = vmatprep.mubr.bf16.mxu0 0
      %2946 = vmatmul.mubr.bf16.gmra.mrb[0].mxu0 %v2826
      %v2947 = vpop.f32.mrb[0].mxu0
      %v2948 = vadd.f32 0.0, %v2947
      %v2949 = vpop.f32.mrb[0].mxu0
      %v2950 = vpop.f32.mrb[0].mxu0
      %v2951 = vadd.f32 0.0, %v2950
      %v2952 = vpop.f32.mrb[0].mxu0
      %2953 = vdwg.mxu0
      %v2954 = vadd.f32 %v2758, %v2916
      %v2955 = vadd.f32 %v2759, %v2919
      %v2956 = vadd.f32 %v2760, %v2924
      %v2957 = vadd.f32 %v2761, %v2927
      %v2958 = vadd.f32 %v2762, %v2932
      %v2959 = vadd.f32 %v2763, %v2935
      %v2960 = vadd.f32 %v2764, %v2940
      %v2961 = vadd.f32 %v2765, %v2943
      %v2962 = vadd.f32 %v2766, %v2948
      %v2963 = vadd.f32 %v2767, %v2951
      %v2964 = vld [vmem:[#allocation2 + $0x4] sm:$0xe]
      %v2965 = vld [vmem:[#allocation2 + $0x8] sm:$0xf]
      %v2966 = vld [vmem:[#allocation2 + $0xc] sm:$0xf]
      %v2967 = vld [vmem:[#allocation2 + $0x10] sm:$0xf]
      %v2968 = vld [vmem:[#allocation2 + $0x14] sm:$0xf]
      %v2969 = vld [vmem:[#allocation2 + $0x18] sm:$0xf]
      %v2970 = vld [vmem:[#allocation2 + $0x1c] sm:$0xf]
      %v2971 = vld [vmem:[#allocation2 + $0x20] sm:$0xf]
      %v2972 = vld [vmem:[#allocation2 + $0x24] sm:$0xf]
      %v2973 = vld [vmem:[#allocation2 + $0x28] sm:$0xf]
      %v2974 = vld [vmem:[#allocation2 + $0x2c] sm:$0x1]
      %v2975 = vld [vmem:[%s3 + $0x100] sm:$0xf]
      %v2976 = vld [vmem:[%s3 + $0x104] sm:$0xf]
      %v2977 = vld [vmem:[%s3 + $0x108] sm:$0xf]
      %v2978 = vld [vmem:[%s3 + $0x10c] sm:$0xf]
      %v2979 = vld [vmem:[%s3 + $0x110] sm:$0xf]
      %v2980 = vld [vmem:[%s3 + $0x114] sm:$0xf]
      %v2981 = vld [vmem:[%s3 + $0x118] sm:$0xf]
      %v2982 = vld [vmem:[%s3 + $0x11c] sm:$0xf]
      %v2983 = vld [vmem:[%s3 + $0x120] sm:$0xf]
      %v2984 = vld [vmem:[%s3 + $0x124] sm:$0xf]
      %v2985 = vld [vmem:[%s3 + $0x128] sm:$0xf]
      %v2986 = vld [vmem:[%s3 + $0x12c] sm:$0xf]
      %v2987 = vld [vmem:[%s3 + $0x130] sm:$0xf]
      %v2988 = vld [vmem:[%s3 + $0x134] sm:$0xf]
      %v2989 = vld [vmem:[%s3 + $0x138] sm:$0xf]
      %v2990 = vld [vmem:[%s3 + $0x13c] sm:$0xf]
      %v3002 = vunpack.c.l.b16 %v2964
      %v3003 = vunpack.c.l.b16 %v2965
      %v3004 = vunpack.c.l.b16 %v2966
      %v3005 = vunpack.c.l.b16 %v2967
      %v3006 = vunpack.c.l.b16 %v2968
      %v3007 = vunpack.c.l.b16 %v2969
      %v3008 = vunpack.c.l.b16 %v2970
      %v3009 = vunpack.c.l.b16 %v2971
      %v3010 = vunpack.c.l.b16 %v2972
      %v3011 = vunpack.c.l.b16 %v2973
      %v3012 = vunpack.c.l.b16 %v2974
      %v3013 = vpack.c.b16 %v3003, %v3002
      %v3014 = vpack.c.b16 %v3005, %v3004
      %v3015 = vpack.c.b16 %v3007, %v3006
      %v3016 = vpack.c.b16 %v3009, %v3008
      %v3017 = vpack.c.b16 %v3011, %v3010
      %v3018 = vpack.c.b16 %v3012, %v3012
      %v3020 = vshrl.u32 %v3013, 16
      %v3022 = vrot.slane %v3020, 1
      %v3023 = vshll.u32 %v3013, 16
      %v3025 = vrot.slane %v3023, 2
      %v3026 = vor.u32 %v3022, %v3025
      %v3028 = vshrl.u32 %v3014, 16
      %v3030 = vrot.slane %v3028, 1
      %v3031 = vshll.u32 %v3014, 16
      %v3033 = vrot.slane %v3031, 2
      %v3034 = vor.u32 %v3030, %v3033
      %v3035 = vsel %vm1033, %v3026, %v3034
      %v3037 = vshrl.u32 %v3015, 16
      %v3039 = vrot.slane %v3037, 1
      %v3040 = vshll.u32 %v3015, 16
      %v3042 = vrot.slane %v3040, 2
      %v3043 = vor.u32 %v3039, %v3042
      %v3044 = vsel %vm1033, %v3034, %v3043
      %v3046 = vshrl.u32 %v3016, 16
      %v3048 = vrot.slane %v3046, 1
      %v3049 = vshll.u32 %v3016, 16
      %v3051 = vrot.slane %v3049, 2
      %v3052 = vor.u32 %v3048, %v3051
      %v3053 = vsel %vm1033, %v3043, %v3052
      %v3055 = vshrl.u32 %v3017, 16
      %v3057 = vrot.slane %v3055, 1
      %v3058 = vshll.u32 %v3017, 16
      %v3060 = vrot.slane %v3058, 2
      %v3061 = vor.u32 %v3057, %v3060
      %v3062 = vsel %vm1033, %v3052, %v3061
      %v3064 = vshll.u32 %v3018, 16
      %v3066 = vrot.slane %v3064, 2
      %v3067 = vsel %vm1033, %v3061, %v3066
      %v3089 = vunpack.c.l.b16 %v2975
      %v3090 = vunpack.c.l.b16 %v2976
      %v3091 = vunpack.c.l.b16 %v2977
      %v3092 = vunpack.c.l.b16 %v2978
      %v3093 = vunpack.c.l.b16 %v2979
      %v3094 = vunpack.c.l.b16 %v2980
      %v3095 = vunpack.c.l.b16 %v2981
      %v3096 = vunpack.c.l.b16 %v2982
      %v3097 = vunpack.c.l.b16 %v2983
      %v3098 = vunpack.c.l.b16 %v2984
      %v3099 = vunpack.c.l.b16 %v2985
      %v3100 = vunpack.c.l.b16 %v2986
      %v3101 = vunpack.c.l.b16 %v2987
      %v3102 = vunpack.c.l.b16 %v2988
      %v3103 = vunpack.c.l.b16 %v2989
      %v3104 = vunpack.c.l.b16 %v2990
      %v3105 = vpack.c.b16 %v3090, %v3089
      %v3106 = vpack.c.b16 %v3092, %v3091
      %v3107 = vpack.c.b16 %v3094, %v3093
      %v3108 = vpack.c.b16 %v3096, %v3095
      %v3109 = vpack.c.b16 %v3098, %v3097
      %v3110 = vpack.c.b16 %v3100, %v3099
      %v3111 = vpack.c.b16 %v3102, %v3101
      %v3112 = vpack.c.b16 %v3104, %v3103
      %3121 = vmatprep.subr.bf16.mxu0 0
      %3122 = vmatpush1.bf16.msra.mxu0 %v3105
      %3123 = vmatprep.subr.bf16.mxu0 0
      %3124 = vmatpush1.bf16.msra.mxu0 %v3106
      %3125 = vmatprep.subr.bf16.mxu0 0
      %3126 = vmatpush1.bf16.msra.mxu0 %v3107
      %3127 = vmatprep.subr.bf16.mxu0 0
      %3128 = vmatpush1.bf16.msra.mxu0 %v3108
      %3129 = vmatprep.subr.bf16.mxu0 0
      %3130 = vmatpush1.bf16.msra.mxu0 %v3109
      %3131 = vmatprep.subr.bf16.mxu0 0
      %3132 = vmatpush1.bf16.msra.mxu0 %v3110
      %3133 = vmatprep.subr.bf16.mxu0 0
      %3134 = vmatpush1.bf16.msra.mxu0 %v3111
      %3135 = vmatprep.subr.bf16.mxu0 0
      %3136 = vmatpush1.bf16.msra.mxu0 %v3112
      %3137 = vmatprep.subr.bf16.mxu0 0
      %3138 = vmatpush1.bf16.msra.mxu0 0
      %3139 = vmatprep.subr.bf16.mxu0 0
      %3140 = vmatpush1.bf16.msra.mxu0 0
      %3141 = vmatprep.subr.bf16.mxu0 0
      %3142 = vmatpush1.bf16.msra.mxu0 0
      %3143 = vmatprep.subr.bf16.mxu0 0
      %3144 = vmatpush1.bf16.msra.mxu0 0
      %3145 = vmatprep.subr.bf16.mxu0 0
      %3146 = vmatpush1.bf16.msra.mxu0 0
      %3147 = vmatprep.subr.bf16.mxu0 0
      %3148 = vmatpush1.bf16.msra.mxu0 0
      %3149 = vmatprep.subr.bf16.mxu0 0
      %3150 = vmatpush1.bf16.msra.mxu0 0
      %3151 = vmatprep.subr.bf16.mxu0 0
      %3152 = vmatpush1.bf16.msra.mxu0 0
      %3153 = vmatprep.mubr.bf16.mxu0 0
      %3154 = vmatmul.mubr.bf16.gmra.mrb[0].mxu0 %v3035
      %v3155 = vpop.f32.mrb[0].mxu0
      %v3156 = vadd.f32 0.0, %v3155
      %v3157 = vpop.f32.mrb[0].mxu0
      %v3158 = vpop.f32.mrb[0].mxu0
      %v3159 = vadd.f32 0.0, %v3158
      %v3160 = vpop.f32.mrb[0].mxu0
      %3161 = vmatprep.mubr.bf16.mxu0 0
      %3162 = vmatmul.mubr.bf16.gmra.mrb[0].mxu0 %v3044
      %v3163 = vpop.f32.mrb[0].mxu0
      %v3164 = vadd.f32 0.0, %v3163
      %v3165 = vpop.f32.mrb[0].mxu0
      %v3166 = vpop.f32.mrb[0].mxu0
      %v3167 = vadd.f32 0.0, %v3166
      %v3168 = vpop.f32.mrb[0].mxu0
      %3169 = vmatprep.mubr.bf16.mxu0 0
      %3170 = vmatmul.mubr.bf16.gmra.mrb[0].mxu0 %v3053
      %v3171 = vpop.f32.mrb[0].mxu0
      %v3172 = vadd.f32 0.0, %v3171
      %v3173 = vpop.f32.mrb[0].mxu0
      %v3174 = vpop.f32.mrb[0].mxu0
      %v3175 = vadd.f32 0.0, %v3174
      %v3176 = vpop.f32.mrb[0].mxu0
      %3177 = vmatprep.mubr.bf16.mxu0 0
      %3178 = vmatmul.mubr.bf16.gmra.mrb[0].mxu0 %v3062
      %v3179 = vpop.f32.mrb[0].mxu0
      %v3180 = vadd.f32 0.0, %v3179
      %v3181 = vpop.f32.mrb[0].mxu0
      %v3182 = vpop.f32.mrb[0].mxu0
      %v3183 = vadd.f32 0.0, %v3182
      %v3184 = vpop.f32.mrb[0].mxu0
      %3185 = vmatprep.mubr.bf16.mxu0 0
      %3186 = vmatmul.mubr.bf16.gmra.mrb[0].mxu0 %v3067
      %v3187 = vpop.f32.mrb[0].mxu0
      %v3188 = vadd.f32 0.0, %v3187
      %v3189 = vpop.f32.mrb[0].mxu0
      %v3190 = vpop.f32.mrb[0].mxu0
      %v3191 = vadd.f32 0.0, %v3190
      %v3192 = vpop.f32.mrb[0].mxu0
      %3193 = vdwg.mxu0
      %v3194 = vadd.f32 %v2954, %v3156
      %v3195 = vadd.f32 %v2955, %v3159
      %v3196 = vadd.f32 %v2956, %v3164
      %v3197 = vadd.f32 %v2957, %v3167
      %v3198 = vadd.f32 %v2958, %v3172
      %v3199 = vadd.f32 %v2959, %v3175
      %v3200 = vadd.f32 %v2960, %v3180
      %v3201 = vadd.f32 %v2961, %v3183
      %v3202 = vadd.f32 %v2962, %v3188
      %v3203 = vadd.f32 %v2963, %v3191
      %v3204 = vld [vmem:[#allocation2 + $0x4] sm:$0xc]
      %v3205 = vld [vmem:[%s3 + $0x140] sm:$0xf]
      %v3206 = vld [vmem:[%s3 + $0x144] sm:$0xf]
      %v3207 = vld [vmem:[%s3 + $0x148] sm:$0xf]
      %v3208 = vld [vmem:[%s3 + $0x14c] sm:$0xf]
      %v3209 = vld [vmem:[%s3 + $0x150] sm:$0xf]
      %v3210 = vld [vmem:[%s3 + $0x154] sm:$0xf]
      %v3211 = vld [vmem:[%s3 + $0x158] sm:$0xf]
      %v3212 = vld [vmem:[%s3 + $0x15c] sm:$0xf]
      %v3213 = vld [vmem:[%s3 + $0x160] sm:$0xf]
      %v3214 = vld [vmem:[%s3 + $0x164] sm:$0xf]
      %v3215 = vld [vmem:[%s3 + $0x168] sm:$0xf]
      %v3216 = vld [vmem:[%s3 + $0x16c] sm:$0xf]
      %v3217 = vld [vmem:[%s3 + $0x170] sm:$0xf]
      %v3218 = vld [vmem:[%s3 + $0x174] sm:$0xf]
      %v3219 = vld [vmem:[%s3 + $0x178] sm:$0xf]
      %v3220 = vld [vmem:[%s3 + $0x17c] sm:$0xf]
      %v3222 = vunpack.c.l.b16 %v3204
      %v3223 = vpack.c.b16 %v3003, %v3222
      %v3224 = vrot.slane %v3223, 2
      %v3225 = vrot.slane %v3014, 2
      %v3226 = vsel %vm1239, %v3224, %v3225
      %v3227 = vrot.slane %v3015, 2
      %v3228 = vsel %vm1239, %v3225, %v3227
      %v3229 = vrot.slane %v3016, 2
      %v3230 = vsel %vm1239, %v3227, %v3229
      %v3231 = vrot.slane %v3017, 2
      %v3232 = vsel %vm1239, %v3229, %v3231
      %v3233 = vrot.slane %v3018, 2
      %v3234 = vsel %vm1239, %v3231, %v3233
      %v3256 = vunpack.c.l.b16 %v3205
      %v3257 = vunpack.c.l.b16 %v3206
      %v3258 = vunpack.c.l.b16 %v3207
      %v3259 = vunpack.c.l.b16 %v3208
      %v3260 = vunpack.c.l.b16 %v3209
      %v3261 = vunpack.c.l.b16 %v3210
      %v3262 = vunpack.c.l.b16 %v3211
      %v3263 = vunpack.c.l.b16 %v3212
      %v3264 = vunpack.c.l.b16 %v3213
      %v3265 = vunpack.c.l.b16 %v3214
      %v3266 = vunpack.c.l.b16 %v3215
      %v3267 = vunpack.c.l.b16 %v3216
      %v3268 = vunpack.c.l.b16 %v3217
      %v3269 = vunpack.c.l.b16 %v3218
      %v3270 = vunpack.c.l.b16 %v3219
      %v3271 = vunpack.c.l.b16 %v3220
      %v3272 = vpack.c.b16 %v3257, %v3256
      %v3273 = vpack.c.b16 %v3259, %v3258
      %v3274 = vpack.c.b16 %v3261, %v3260
      %v3275 = vpack.c.b16 %v3263, %v3262
      %v3276 = vpack.c.b16 %v3265, %v3264
      %v3277 = vpack.c.b16 %v3267, %v3266
      %v3278 = vpack.c.b16 %v3269, %v3268
      %v3279 = vpack.c.b16 %v3271, %v3270
      %3288 = vmatprep.subr.bf16.mxu0 0
      %3289 = vmatpush1.bf16.msra.mxu0 %v3272
      %3290 = vmatprep.subr.bf16.mxu0 0
      %3291 = vmatpush1.bf16.msra.mxu0 %v3273
      %3292 = vmatprep.subr.bf16.mxu0 0
      %3293 = vmatpush1.bf16.msra.mxu0 %v3274
      %3294 = vmatprep.subr.bf16.mxu0 0
      %3295 = vmatpush1.bf16.msra.mxu0 %v3275
      %3296 = vmatprep.subr.bf16.mxu0 0
      %3297 = vmatpush1.bf16.msra.mxu0 %v3276
      %3298 = vmatprep.subr.bf16.mxu0 0
      %3299 = vmatpush1.bf16.msra.mxu0 %v3277
      %3300 = vmatprep.subr.bf16.mxu0 0
      %3301 = vmatpush1.bf16.msra.mxu0 %v3278
      %3302 = vmatprep.subr.bf16.mxu0 0
      %3303 = vmatpush1.bf16.msra.mxu0 %v3279
      %3304 = vmatprep.subr.bf16.mxu0 0
      %3305 = vmatpush1.bf16.msra.mxu0 0
      %3306 = vmatprep.subr.bf16.mxu0 0
      %3307 = vmatpush1.bf16.msra.mxu0 0
      %3308 = vmatprep.subr.bf16.mxu0 0
      %3309 = vmatpush1.bf16.msra.mxu0 0
      %3310 = vmatprep.subr.bf16.mxu0 0
      %3311 = vmatpush1.bf16.msra.mxu0 0
      %3312 = vmatprep.subr.bf16.mxu0 0
      %3313 = vmatpush1.bf16.msra.mxu0 0
      %3314 = vmatprep.subr.bf16.mxu0 0
      %3315 = vmatpush1.bf16.msra.mxu0 0
      %3316 = vmatprep.subr.bf16.mxu0 0
      %3317 = vmatpush1.bf16.msra.mxu0 0
      %3318 = vmatprep.subr.bf16.mxu0 0
      %3319 = vmatpush1.bf16.msra.mxu0 0
      %3320 = vmatprep.mubr.bf16.mxu0 0
      %3321 = vmatmul.mubr.bf16.gmra.mrb[0].mxu0 %v3226
      %v3322 = vpop.f32.mrb[0].mxu0
      %v3323 = vadd.f32 0.0, %v3322
      %v3324 = vpop.f32.mrb[0].mxu0
      %v3325 = vpop.f32.mrb[0].mxu0
      %v3326 = vadd.f32 0.0, %v3325
      %v3327 = vpop.f32.mrb[0].mxu0
      %3328 = vmatprep.mubr.bf16.mxu0 0
      %3329 = vmatmul.mubr.bf16.gmra.mrb[0].mxu0 %v3228
      %v3330 = vpop.f32.mrb[0].mxu0
      %v3331 = vadd.f32 0.0, %v3330
      %v3332 = vpop.f32.mrb[0].mxu0
      %v3333 = vpop.f32.mrb[0].mxu0
      %v3334 = vadd.f32 0.0, %v3333
      %v3335 = vpop.f32.mrb[0].mxu0
      %3336 = vmatprep.mubr.bf16.mxu0 0
      %3337 = vmatmul.mubr.bf16.gmra.mrb[0].mxu0 %v3230
      %v3338 = vpop.f32.mrb[0].mxu0
      %v3339 = vadd.f32 0.0, %v3338
      %v3340 = vpop.f32.mrb[0].mxu0
      %v3341 = vpop.f32.mrb[0].mxu0
      %v3342 = vadd.f32 0.0, %v3341
      %v3343 = vpop.f32.mrb[0].mxu0
      %3344 = vmatprep.mubr.bf16.mxu0 0
      %3345 = vmatmul.mubr.bf16.gmra.mrb[0].mxu0 %v3232
      %v3346 = vpop.f32.mrb[0].mxu0
      %v3347 = vadd.f32 0.0, %v3346
      %v3348 = vpop.f32.mrb[0].mxu0
      %v3349 = vpop.f32.mrb[0].mxu0
      %v3350 = vadd.f32 0.0, %v3349
      %v3351 = vpop.f32.mrb[0].mxu0
      %3352 = vmatprep.mubr.bf16.mxu0 0
      %3353 = vmatmul.mubr.bf16.gmra.mrb[0].mxu0 %v3234
      %v3354 = vpop.f32.mrb[0].mxu0
      %v3355 = vadd.f32 0.0, %v3354
      %v3356 = vpop.f32.mrb[0].mxu0
      %v3357 = vpop.f32.mrb[0].mxu0
      %v3358 = vadd.f32 0.0, %v3357
      %v3359 = vpop.f32.mrb[0].mxu0
      %3360 = vdwg.mxu0
      %v3361 = vadd.f32 %v3194, %v3323
      %v3362 = vadd.f32 %v3195, %v3326
      %v3363 = vadd.f32 %v3196, %v3331
      %v3364 = vadd.f32 %v3197, %v3334
      %v3365 = vadd.f32 %v3198, %v3339
      %v3366 = vadd.f32 %v3199, %v3342
      %v3367 = vadd.f32 %v3200, %v3347
      %v3368 = vadd.f32 %v3201, %v3350
      %v3369 = vadd.f32 %v3202, %v3355
      %v3370 = vadd.f32 %v3203, %v3358
      %v3371 = vld [vmem:[#allocation2 + $0x8] sm:$0xc]
      %v3372 = vld [vmem:[#allocation2 + $0xc] sm:$0xf]
      %v3373 = vld [vmem:[#allocation2 + $0x10] sm:$0xf]
      %v3374 = vld [vmem:[#allocation2 + $0x14] sm:$0xf]
      %v3375 = vld [vmem:[#allocation2 + $0x18] sm:$0xf]
      %v3376 = vld [vmem:[#allocation2 + $0x1c] sm:$0xf]
      %v3377 = vld [vmem:[#allocation2 + $0x20] sm:$0xf]
      %v3378 = vld [vmem:[#allocation2 + $0x24] sm:$0xf]
      %v3379 = vld [vmem:[#allocation2 + $0x28] sm:$0xf]
      %v3380 = vld [vmem:[#allocation2 + $0x2c] sm:$0xf]
      %v3381 = vld [vmem:[#allocation2 + $0x30] sm:$0x1]
      %v3382 = vld [vmem:[%s3 + $0x180] sm:$0xf]
      %v3383 = vld [vmem:[%s3 + $0x184] sm:$0xf]
      %v3384 = vld [vmem:[%s3 + $0x188] sm:$0xf]
      %v3385 = vld [vmem:[%s3 + $0x18c] sm:$0xf]
      %v3386 = vld [vmem:[%s3 + $0x190] sm:$0xf]
      %v3387 = vld [vmem:[%s3 + $0x194] sm:$0xf]
      %v3388 = vld [vmem:[%s3 + $0x198] sm:$0xf]
      %v3389 = vld [vmem:[%s3 + $0x19c] sm:$0xf]
      %v3390 = vld [vmem:[%s3 + $0x1a0] sm:$0xf]
      %v3391 = vld [vmem:[%s3 + $0x1a4] sm:$0xf]
      %v3392 = vld [vmem:[%s3 + $0x1a8] sm:$0xf]
      %v3393 = vld [vmem:[%s3 + $0x1ac] sm:$0xf]
      %v3394 = vld [vmem:[%s3 + $0x1b0] sm:$0xf]
      %v3395 = vld [vmem:[%s3 + $0x1b4] sm:$0xf]
      %v3396 = vld [vmem:[%s3 + $0x1b8] sm:$0xf]
      %v3397 = vld [vmem:[%s3 + $0x1bc] sm:$0xf]
      %v3409 = vunpack.c.l.b16 %v3371
      %v3410 = vunpack.c.l.b16 %v3372
      %v3411 = vunpack.c.l.b16 %v3373
      %v3412 = vunpack.c.l.b16 %v3374
      %v3413 = vunpack.c.l.b16 %v3375
      %v3414 = vunpack.c.l.b16 %v3376
      %v3415 = vunpack.c.l.b16 %v3377
      %v3416 = vunpack.c.l.b16 %v3378
      %v3417 = vunpack.c.l.b16 %v3379
      %v3418 = vunpack.c.l.b16 %v3380
      %v3419 = vunpack.c.l.b16 %v3381
      %v3420 = vpack.c.b16 %v3410, %v3409
      %v3421 = vpack.c.b16 %v3412, %v3411
      %v3422 = vpack.c.b16 %v3414, %v3413
      %v3423 = vpack.c.b16 %v3416, %v3415
      %v3424 = vpack.c.b16 %v3418, %v3417
      %v3425 = vpack.c.b16 %v3419, %v3419
      %v3426 = vrot.slane %v3420, 2
      %v3427 = vrot.slane %v3421, 2
      %v3428 = vsel %vm1239, %v3426, %v3427
      %v3429 = vrot.slane %v3422, 2
      %v3430 = vsel %vm1239, %v3427, %v3429
      %v3431 = vrot.slane %v3423, 2
      %v3432 = vsel %vm1239, %v3429, %v3431
      %v3433 = vrot.slane %v3424, 2
      %v3434 = vsel %vm1239, %v3431, %v3433
      %v3435 = vrot.slane %v3425, 2
      %v3436 = vsel %vm1239, %v3433, %v3435
      %v3458 = vunpack.c.l.b16 %v3382
      %v3459 = vunpack.c.l.b16 %v3383
      %v3460 = vunpack.c.l.b16 %v3384
      %v3461 = vunpack.c.l.b16 %v3385
      %v3462 = vunpack.c.l.b16 %v3386
      %v3463 = vunpack.c.l.b16 %v3387
      %v3464 = vunpack.c.l.b16 %v3388
      %v3465 = vunpack.c.l.b16 %v3389
      %v3466 = vunpack.c.l.b16 %v3390
      %v3467 = vunpack.c.l.b16 %v3391
      %v3468 = vunpack.c.l.b16 %v3392
      %v3469 = vunpack.c.l.b16 %v3393
      %v3470 = vunpack.c.l.b16 %v3394
      %v3471 = vunpack.c.l.b16 %v3395
      %v3472 = vunpack.c.l.b16 %v3396
      %v3473 = vunpack.c.l.b16 %v3397
      %v3474 = vpack.c.b16 %v3459, %v3458
      %v3475 = vpack.c.b16 %v3461, %v3460
      %v3476 = vpack.c.b16 %v3463, %v3462
      %v3477 = vpack.c.b16 %v3465, %v3464
      %v3478 = vpack.c.b16 %v3467, %v3466
      %v3479 = vpack.c.b16 %v3469, %v3468
      %v3480 = vpack.c.b16 %v3471, %v3470
      %v3481 = vpack.c.b16 %v3473, %v3472
      %3490 = vmatprep.subr.bf16.mxu0 0
      %3491 = vmatpush1.bf16.msra.mxu0 %v3474
      %3492 = vmatprep.subr.bf16.mxu0 0
      %3493 = vmatpush1.bf16.msra.mxu0 %v3475
      %3494 = vmatprep.subr.bf16.mxu0 0
      %3495 = vmatpush1.bf16.msra.mxu0 %v3476
      %3496 = vmatprep.subr.bf16.mxu0 0
      %3497 = vmatpush1.bf16.msra.mxu0 %v3477
      %3498 = vmatprep.subr.bf16.mxu0 0
      %3499 = vmatpush1.bf16.msra.mxu0 %v3478
      %3500 = vmatprep.subr.bf16.mxu0 0
      %3501 = vmatpush1.bf16.msra.mxu0 %v3479
      %3502 = vmatprep.subr.bf16.mxu0 0
      %3503 = vmatpush1.bf16.msra.mxu0 %v3480
      %3504 = vmatprep.subr.bf16.mxu0 0
      %3505 = vmatpush1.bf16.msra.mxu0 %v3481
      %3506 = vmatprep.subr.bf16.mxu0 0
      %3507 = vmatpush1.bf16.msra.mxu0 0
      %3508 = vmatprep.subr.bf16.mxu0 0
      %3509 = vmatpush1.bf16.msra.mxu0 0
      %3510 = vmatprep.subr.bf16.mxu0 0
      %3511 = vmatpush1.bf16.msra.mxu0 0
      %3512 = vmatprep.subr.bf16.mxu0 0
      %3513 = vmatpush1.bf16.msra.mxu0 0
      %3514 = vmatprep.subr.bf16.mxu0 0
      %3515 = vmatpush1.bf16.msra.mxu0 0
      %3516 = vmatprep.subr.bf16.mxu0 0
      %3517 = vmatpush1.bf16.msra.mxu0 0
      %3518 = vmatprep.subr.bf16.mxu0 0
      %3519 = vmatpush1.bf16.msra.mxu0 0
      %3520 = vmatprep.subr.bf16.mxu0 0
      %3521 = vmatpush1.bf16.msra.mxu0 0
      %3522 = vmatprep.mubr.bf16.mxu0 0
      %3523 = vmatmul.mubr.bf16.gmra.mrb[0].mxu0 %v3428
      %v3524 = vpop.f32.mrb[0].mxu0
      %v3525 = vadd.f32 0.0, %v3524
      %v3526 = vpop.f32.mrb[0].mxu0
      %v3527 = vpop.f32.mrb[0].mxu0
      %v3528 = vadd.f32 0.0, %v3527
      %v3529 = vpop.f32.mrb[0].mxu0
      %3530 = vmatprep.mubr.bf16.mxu0 0
      %3531 = vmatmul.mubr.bf16.gmra.mrb[0].mxu0 %v3430
      %v3532 = vpop.f32.mrb[0].mxu0
      %v3533 = vadd.f32 0.0, %v3532
      %v3534 = vpop.f32.mrb[0].mxu0
      %v3535 = vpop.f32.mrb[0].mxu0
      %v3536 = vadd.f32 0.0, %v3535
      %v3537 = vpop.f32.mrb[0].mxu0
      %3538 = vmatprep.mubr.bf16.mxu0 0
      %3539 = vmatmul.mubr.bf16.gmra.mrb[0].mxu0 %v3432
      %v3540 = vpop.f32.mrb[0].mxu0
      %v3541 = vadd.f32 0.0, %v3540
      %v3542 = vpop.f32.mrb[0].mxu0
      %v3543 = vpop.f32.mrb[0].mxu0
      %v3544 = vadd.f32 0.0, %v3543
      %v3545 = vpop.f32.mrb[0].mxu0
      %3546 = vmatprep.mubr.bf16.mxu0 0
      %3547 = vmatmul.mubr.bf16.gmra.mrb[0].mxu0 %v3434
      %v3548 = vpop.f32.mrb[0].mxu0
      %v3549 = vadd.f32 0.0, %v3548
      %v3550 = vpop.f32.mrb[0].mxu0
      %v3551 = vpop.f32.mrb[0].mxu0
      %v3552 = vadd.f32 0.0, %v3551
      %v3553 = vpop.f32.mrb[0].mxu0
      %3554 = vmatprep.mubr.bf16.mxu0 0
      %3555 = vmatmul.mubr.bf16.gmra.mrb[0].mxu0 %v3436
      %v3556 = vpop.f32.mrb[0].mxu0
      %v3557 = vadd.f32 0.0, %v3556
      %v3558 = vpop.f32.mrb[0].mxu0
      %v3559 = vpop.f32.mrb[0].mxu0
      %v3560 = vadd.f32 0.0, %v3559
      %v3561 = vpop.f32.mrb[0].mxu0
      %3562 = vdwg.mxu0
      %v3563 = vadd.f32 %v3361, %v3525
      %v3564 = vadd.f32 %v3362, %v3528
      %v3565 = vadd.f32 %v3363, %v3533
      %v3566 = vadd.f32 %v3364, %v3536
      %v3567 = vadd.f32 %v3365, %v3541
      %v3568 = vadd.f32 %v3366, %v3544
      %v3569 = vadd.f32 %v3367, %v3549
      %v3570 = vadd.f32 %v3368, %v3552
      %v3571 = vadd.f32 %v3369, %v3557
      %v3572 = vadd.f32 %v3370, %v3560
      %v3573 = vld [vmem:[#allocation2 + $0x30] sm:$0x3]
      %v3574 = vld [vmem:[%s3 + $0x1c0] sm:$0xf]
      %v3575 = vld [vmem:[%s3 + $0x1c4] sm:$0xf]
      %v3576 = vld [vmem:[%s3 + $0x1c8] sm:$0xf]
      %v3577 = vld [vmem:[%s3 + $0x1cc] sm:$0xf]
      %v3578 = vld [vmem:[%s3 + $0x1d0] sm:$0xf]
      %v3579 = vld [vmem:[%s3 + $0x1d4] sm:$0xf]
      %v3580 = vld [vmem:[%s3 + $0x1d8] sm:$0xf]
      %v3581 = vld [vmem:[%s3 + $0x1dc] sm:$0xf]
      %v3582 = vld [vmem:[%s3 + $0x1e0] sm:$0xf]
      %v3583 = vld [vmem:[%s3 + $0x1e4] sm:$0xf]
      %v3584 = vld [vmem:[%s3 + $0x1e8] sm:$0xf]
      %v3585 = vld [vmem:[%s3 + $0x1ec] sm:$0xf]
      %v3586 = vld [vmem:[%s3 + $0x1f0] sm:$0xf]
      %v3587 = vld [vmem:[%s3 + $0x1f4] sm:$0xf]
      %v3588 = vld [vmem:[%s3 + $0x1f8] sm:$0xf]
      %v3589 = vld [vmem:[%s3 + $0x1fc] sm:$0xf]
      %v3591 = vunpack.c.l.b16 %v3573
      %v3592 = vpack.c.b16 %v3591, %v3591
      %v3594 = vshrl.u32 %v3420, 16
      %v3596 = vrot.slane %v3594, 2
      %v3597 = vshll.u32 %v3420, 16
      %v3599 = vrot.slane %v3597, 3
      %v3600 = vor.u32 %v3596, %v3599
      %v3602 = vshrl.u32 %v3421, 16
      %v3604 = vrot.slane %v3602, 2
      %v3605 = vshll.u32 %v3421, 16
      %v3607 = vrot.slane %v3605, 3
      %v3608 = vor.u32 %v3604, %v3607
      %v3609 = vsel %vm1609, %v3600, %v3608
      %v3611 = vshrl.u32 %v3422, 16
      %v3613 = vrot.slane %v3611, 2
      %v3614 = vshll.u32 %v3422, 16
      %v3616 = vrot.slane %v3614, 3
      %v3617 = vor.u32 %v3613, %v3616
      %v3618 = vsel %vm1609, %v3608, %v3617
      %v3620 = vshrl.u32 %v3423, 16
      %v3622 = vrot.slane %v3620, 2
      %v3623 = vshll.u32 %v3423, 16
      %v3625 = vrot.slane %v3623, 3
      %v3626 = vor.u32 %v3622, %v3625
      %v3627 = vsel %vm1609, %v3617, %v3626
      %v3629 = vshrl.u32 %v3424, 16
      %v3631 = vrot.slane %v3629, 2
      %v3632 = vshll.u32 %v3424, 16
      %v3634 = vrot.slane %v3632, 3
      %v3635 = vor.u32 %v3631, %v3634
      %v3636 = vsel %vm1609, %v3626, %v3635
      %v3638 = vshrl.u32 %v3592, 16
      %v3640 = vrot.slane %v3638, 2
      %v3641 = vshll.u32 %v3592, 16
      %v3643 = vrot.slane %v3641, 3
      %v3644 = vor.u32 %v3640, %v3643
      %v3645 = vsel %vm1609, %v3635, %v3644
      %v3667 = vunpack.c.l.b16 %v3574
      %v3668 = vunpack.c.l.b16 %v3575
      %v3669 = vunpack.c.l.b16 %v3576
      %v3670 = vunpack.c.l.b16 %v3577
      %v3671 = vunpack.c.l.b16 %v3578
      %v3672 = vunpack.c.l.b16 %v3579
      %v3673 = vunpack.c.l.b16 %v3580
      %v3674 = vunpack.c.l.b16 %v3581
      %v3675 = vunpack.c.l.b16 %v3582
      %v3676 = vunpack.c.l.b16 %v3583
      %v3677 = vunpack.c.l.b16 %v3584
      %v3678 = vunpack.c.l.b16 %v3585
      %v3679 = vunpack.c.l.b16 %v3586
      %v3680 = vunpack.c.l.b16 %v3587
      %v3681 = vunpack.c.l.b16 %v3588
      %v3682 = vunpack.c.l.b16 %v3589
      %v3683 = vpack.c.b16 %v3668, %v3667
      %v3684 = vpack.c.b16 %v3670, %v3669
      %v3685 = vpack.c.b16 %v3672, %v3671
      %v3686 = vpack.c.b16 %v3674, %v3673
      %v3687 = vpack.c.b16 %v3676, %v3675
      %v3688 = vpack.c.b16 %v3678, %v3677
      %v3689 = vpack.c.b16 %v3680, %v3679
      %v3690 = vpack.c.b16 %v3682, %v3681
      %3699 = vmatprep.subr.bf16.mxu0 0
      %3700 = vmatpush1.bf16.msra.mxu0 %v3683
      %3701 = vmatprep.subr.bf16.mxu0 0
      %3702 = vmatpush1.bf16.msra.mxu0 %v3684
      %3703 = vmatprep.subr.bf16.mxu0 0
      %3704 = vmatpush1.bf16.msra.mxu0 %v3685
      %3705 = vmatprep.subr.bf16.mxu0 0
      %3706 = vmatpush1.bf16.msra.mxu0 %v3686
      %3707 = vmatprep.subr.bf16.mxu0 0
      %3708 = vmatpush1.bf16.msra.mxu0 %v3687
      %3709 = vmatprep.subr.bf16.mxu0 0
      %3710 = vmatpush1.bf16.msra.mxu0 %v3688
      %3711 = vmatprep.subr.bf16.mxu0 0
      %3712 = vmatpush1.bf16.msra.mxu0 %v3689
      %3713 = vmatprep.subr.bf16.mxu0 0
      %3714 = vmatpush1.bf16.msra.mxu0 %v3690
      %3715 = vmatprep.subr.bf16.mxu0 0
      %3716 = vmatpush1.bf16.msra.mxu0 0
      %3717 = vmatprep.subr.bf16.mxu0 0
      %3718 = vmatpush1.bf16.msra.mxu0 0
      %3719 = vmatprep.subr.bf16.mxu0 0
      %3720 = vmatpush1.bf16.msra.mxu0 0
      %3721 = vmatprep.subr.bf16.mxu0 0
      %3722 = vmatpush1.bf16.msra.mxu0 0
      %3723 = vmatprep.subr.bf16.mxu0 0
      %3724 = vmatpush1.bf16.msra.mxu0 0
      %3725 = vmatprep.subr.bf16.mxu0 0
      %3726 = vmatpush1.bf16.msra.mxu0 0
      %3727 = vmatprep.subr.bf16.mxu0 0
      %3728 = vmatpush1.bf16.msra.mxu0 0
      %3729 = vmatprep.subr.bf16.mxu0 0
      %3730 = vmatpush1.bf16.msra.mxu0 0
      %3731 = vmatprep.mubr.bf16.mxu0 0
      %3732 = vmatmul.mubr.bf16.gmra.mrb[0].mxu0 %v3609
      %v3733 = vpop.f32.mrb[0].mxu0
      %v3734 = vadd.f32 0.0, %v3733
      %v3735 = vpop.f32.mrb[0].mxu0
      %v3736 = vpop.f32.mrb[0].mxu0
      %v3737 = vadd.f32 0.0, %v3736
      %v3738 = vpop.f32.mrb[0].mxu0
      %3739 = vmatprep.mubr.bf16.mxu0 0
      %3740 = vmatmul.mubr.bf16.gmra.mrb[0].mxu0 %v3618
      %v3741 = vpop.f32.mrb[0].mxu0
      %v3742 = vadd.f32 0.0, %v3741
      %v3743 = vpop.f32.mrb[0].mxu0
      %v3744 = vpop.f32.mrb[0].mxu0
      %v3745 = vadd.f32 0.0, %v3744
      %v3746 = vpop.f32.mrb[0].mxu0
      %3747 = vmatprep.mubr.bf16.mxu0 0
      %3748 = vmatmul.mubr.bf16.gmra.mrb[0].mxu0 %v3627
      %v3749 = vpop.f32.mrb[0].mxu0
      %v3750 = vadd.f32 0.0, %v3749
      %v3751 = vpop.f32.mrb[0].mxu0
      %v3752 = vpop.f32.mrb[0].mxu0
      %v3753 = vadd.f32 0.0, %v3752
      %v3754 = vpop.f32.mrb[0].mxu0
      %3755 = vmatprep.mubr.bf16.mxu0 0
      %3756 = vmatmul.mubr.bf16.gmra.mrb[0].mxu0 %v3636
      %v3757 = vpop.f32.mrb[0].mxu0
      %v3758 = vadd.f32 0.0, %v3757
      %v3759 = vpop.f32.mrb[0].mxu0
      %v3760 = vpop.f32.mrb[0].mxu0
      %v3761 = vadd.f32 0.0, %v3760
      %v3762 = vpop.f32.mrb[0].mxu0
      %3763 = vmatprep.mubr.bf16.mxu0 0
      %3764 = vmatmul.mubr.bf16.gmra.mrb[0].mxu0 %v3645
      %v3765 = vpop.f32.mrb[0].mxu0
      %v3766 = vadd.f32 0.0, %v3765
      %v3767 = vpop.f32.mrb[0].mxu0
      %v3768 = vpop.f32.mrb[0].mxu0
      %v3769 = vadd.f32 0.0, %v3768
      %v3770 = vpop.f32.mrb[0].mxu0
      %3771 = vdwg.mxu0
      %v3772 = vadd.f32 %v3563, %v3734
      %v3773 = vadd.f32 %v3564, %v3737
      %v3774 = vadd.f32 %v3565, %v3742
      %v3775 = vadd.f32 %v3566, %v3745
      %v3776 = vadd.f32 %v3567, %v3750
      %v3777 = vadd.f32 %v3568, %v3753
      %v3778 = vadd.f32 %v3569, %v3758
      %v3779 = vadd.f32 %v3570, %v3761
      %v3780 = vadd.f32 %v3571, %v3766
      %v3781 = vadd.f32 %v3572, %v3769
      %v3782 = vld [vmem:[#allocation2 + $0x8] sm:$0x8]
      %v3783 = vld [vmem:[%s3 + $0x200] sm:$0xf]
      %v3784 = vld [vmem:[%s3 + $0x204] sm:$0xf]
      %v3785 = vld [vmem:[%s3 + $0x208] sm:$0xf]
      %v3786 = vld [vmem:[%s3 + $0x20c] sm:$0xf]
      %v3787 = vld [vmem:[%s3 + $0x210] sm:$0xf]
      %v3788 = vld [vmem:[%s3 + $0x214] sm:$0xf]
      %v3789 = vld [vmem:[%s3 + $0x218] sm:$0xf]
      %v3790 = vld [vmem:[%s3 + $0x21c] sm:$0xf]
      %v3791 = vld [vmem:[%s3 + $0x220] sm:$0xf]
      %v3792 = vld [vmem:[%s3 + $0x224] sm:$0xf]
      %v3793 = vld [vmem:[%s3 + $0x228] sm:$0xf]
      %v3794 = vld [vmem:[%s3 + $0x22c] sm:$0xf]
      %v3795 = vld [vmem:[%s3 + $0x230] sm:$0xf]
      %v3796 = vld [vmem:[%s3 + $0x234] sm:$0xf]
      %v3797 = vld [vmem:[%s3 + $0x238] sm:$0xf]
      %v3798 = vld [vmem:[%s3 + $0x23c] sm:$0xf]
      %v3800 = vunpack.c.l.b16 %v3782
      %v3801 = vpack.c.b16 %v3410, %v3800
      %v3802 = vrot.slane %v3801, 3
      %v3803 = vrot.slane %v3421, 3
      %v3804 = vsel %vm1819, %v3802, %v3803
      %v3805 = vrot.slane %v3422, 3
      %v3806 = vsel %vm1819, %v3803, %v3805
      %v3807 = vrot.slane %v3423, 3
      %v3808 = vsel %vm1819, %v3805, %v3807
      %v3809 = vrot.slane %v3424, 3
      %v3810 = vsel %vm1819, %v3807, %v3809
      %v3811 = vrot.slane %v3592, 3
      %v3812 = vsel %vm1819, %v3809, %v3811
      %v3834 = vunpack.c.l.b16 %v3783
      %v3835 = vunpack.c.l.b16 %v3784
      %v3836 = vunpack.c.l.b16 %v3785
      %v3837 = vunpack.c.l.b16 %v3786
      %v3838 = vunpack.c.l.b16 %v3787
      %v3839 = vunpack.c.l.b16 %v3788
      %v3840 = vunpack.c.l.b16 %v3789
      %v3841 = vunpack.c.l.b16 %v3790
      %v3842 = vunpack.c.l.b16 %v3791
      %v3843 = vunpack.c.l.b16 %v3792
      %v3844 = vunpack.c.l.b16 %v3793
      %v3845 = vunpack.c.l.b16 %v3794
      %v3846 = vunpack.c.l.b16 %v3795
      %v3847 = vunpack.c.l.b16 %v3796
      %v3848 = vunpack.c.l.b16 %v3797
      %v3849 = vunpack.c.l.b16 %v3798
      %v3850 = vpack.c.b16 %v3835, %v3834
      %v3851 = vpack.c.b16 %v3837, %v3836
      %v3852 = vpack.c.b16 %v3839, %v3838
      %v3853 = vpack.c.b16 %v3841, %v3840
      %v3854 = vpack.c.b16 %v3843, %v3842
      %v3855 = vpack.c.b16 %v3845, %v3844
      %v3856 = vpack.c.b16 %v3847, %v3846
      %v3857 = vpack.c.b16 %v3849, %v3848
      %3866 = vmatprep.subr.bf16.mxu0 0
      %3867 = vmatpush1.bf16.msra.mxu0 %v3850
      %3868 = vmatprep.subr.bf16.mxu0 0
      %3869 = vmatpush1.bf16.msra.mxu0 %v3851
      %3870 = vmatprep.subr.bf16.mxu0 0
      %3871 = vmatpush1.bf16.msra.mxu0 %v3852
      %3872 = vmatprep.subr.bf16.mxu0 0
      %3873 = vmatpush1.bf16.msra.mxu0 %v3853
      %3874 = vmatprep.subr.bf16.mxu0 0
      %3875 = vmatpush1.bf16.msra.mxu0 %v3854
      %3876 = vmatprep.subr.bf16.mxu0 0
      %3877 = vmatpush1.bf16.msra.mxu0 %v3855
      %3878 = vmatprep.subr.bf16.mxu0 0
      %3879 = vmatpush1.bf16.msra.mxu0 %v3856
      %3880 = vmatprep.subr.bf16.mxu0 0
      %3881 = vmatpush1.bf16.msra.mxu0 %v3857
      %3882 = vmatprep.subr.bf16.mxu0 0
      %3883 = vmatpush1.bf16.msra.mxu0 0
      %3884 = vmatprep.subr.bf16.mxu0 0
      %3885 = vmatpush1.bf16.msra.mxu0 0
      %3886 = vmatprep.subr.bf16.mxu0 0
      %3887 = vmatpush1.bf16.msra.mxu0 0
      %3888 = vmatprep.subr.bf16.mxu0 0
      %3889 = vmatpush1.bf16.msra.mxu0 0
      %3890 = vmatprep.subr.bf16.mxu0 0
      %3891 = vmatpush1.bf16.msra.mxu0 0
      %3892 = vmatprep.subr.bf16.mxu0 0
      %3893 = vmatpush1.bf16.msra.mxu0 0
      %3894 = vmatprep.subr.bf16.mxu0 0
      %3895 = vmatpush1.bf16.msra.mxu0 0
      %3896 = vmatprep.subr.bf16.mxu0 0
      %3897 = vmatpush1.bf16.msra.mxu0 0
      %3898 = vmatprep.mubr.bf16.mxu0 0
      %3899 = vmatmul.mubr.bf16.gmra.mrb[0].mxu0 %v3804
      %v3900 = vpop.f32.mrb[0].mxu0
      %v3901 = vadd.f32 0.0, %v3900
      %v3902 = vpop.f32.mrb[0].mxu0
      %v3903 = vpop.f32.mrb[0].mxu0
      %v3904 = vadd.f32 0.0, %v3903
      %v3905 = vpop.f32.mrb[0].mxu0
      %3906 = vmatprep.mubr.bf16.mxu0 0
      %3907 = vmatmul.mubr.bf16.gmra.mrb[0].mxu0 %v3806
      %v3908 = vpop.f32.mrb[0].mxu0
      %v3909 = vadd.f32 0.0, %v3908
      %v3910 = vpop.f32.mrb[0].mxu0
      %v3911 = vpop.f32.mrb[0].mxu0
      %v3912 = vadd.f32 0.0, %v3911
      %v3913 = vpop.f32.mrb[0].mxu0
      %3914 = vmatprep.mubr.bf16.mxu0 0
      %3915 = vmatmul.mubr.bf16.gmra.mrb[0].mxu0 %v3808
      %v3916 = vpop.f32.mrb[0].mxu0
      %v3917 = vadd.f32 0.0, %v3916
      %v3918 = vpop.f32.mrb[0].mxu0
      %v3919 = vpop.f32.mrb[0].mxu0
      %v3920 = vadd.f32 0.0, %v3919
      %v3921 = vpop.f32.mrb[0].mxu0
      %3922 = vmatprep.mubr.bf16.mxu0 0
      %3923 = vmatmul.mubr.bf16.gmra.mrb[0].mxu0 %v3810
      %v3924 = vpop.f32.mrb[0].mxu0
      %v3925 = vadd.f32 0.0, %v3924
      %v3926 = vpop.f32.mrb[0].mxu0
      %v3927 = vpop.f32.mrb[0].mxu0
      %v3928 = vadd.f32 0.0, %v3927
      %v3929 = vpop.f32.mrb[0].mxu0
      %3930 = vmatprep.mubr.bf16.mxu0 0
      %3931 = vmatmul.mubr.bf16.gmra.mrb[0].mxu0 %v3812
      %v3932 = vpop.f32.mrb[0].mxu0
      %v3933 = vadd.f32 0.0, %v3932
      %v3934 = vpop.f32.mrb[0].mxu0
      %v3935 = vpop.f32.mrb[0].mxu0
      %v3936 = vadd.f32 0.0, %v3935
      %v3937 = vpop.f32.mrb[0].mxu0
      %3938 = vdwg.mxu0
      %v3939 = vadd.f32 %v3772, %v3901
      %v3940 = vadd.f32 %v3773, %v3904
      %v3941 = vadd.f32 %v3774, %v3909
      %v3942 = vadd.f32 %v3775, %v3912
      %v3943 = vadd.f32 %v3776, %v3917
      %v3944 = vadd.f32 %v3777, %v3920
      %v3945 = vadd.f32 %v3778, %v3925
      %v3946 = vadd.f32 %v3779, %v3928
      %v3947 = vadd.f32 %v3780, %v3933
      %v3948 = vadd.f32 %v3781, %v3936
      %v3949 = vld [vmem:[%s246 + $0x4] sm:$0xe]
      %v3950 = vld [vmem:[%s246 + $0x8] sm:$0xf]
      %v3951 = vld [vmem:[%s246 + $0xc] sm:$0xf]
      %v3952 = vld [vmem:[%s246 + $0x10] sm:$0xf]
      %v3953 = vld [vmem:[%s246 + $0x14] sm:$0xf]
      %v3954 = vld [vmem:[%s246 + $0x18] sm:$0xf]
      %v3955 = vld [vmem:[%s246 + $0x1c] sm:$0xf]
      %v3956 = vld [vmem:[%s246 + $0x20] sm:$0xf]
      %v3957 = vld [vmem:[%s246 + $0x24] sm:$0xf]
      %v3958 = vld [vmem:[%s246 + $0x28] sm:$0xf]
      %v3959 = vld [vmem:[%s246 + $0x2c] sm:$0x1]
      %v3960 = vunpack.c.l.bf16 %v3949
      %v3961 = vunpack.c.l.bf16 %v3950
      %v3962 = vunpack.c.l.bf16 %v3951
      %v3963 = vunpack.c.l.bf16 %v3952
      %v3964 = vunpack.c.l.bf16 %v3953
      %v3965 = vunpack.c.l.bf16 %v3954
      %v3966 = vunpack.c.l.bf16 %v3955
      %v3967 = vunpack.c.l.bf16 %v3956
      %v3968 = vunpack.c.l.bf16 %v3957
      %v3969 = vunpack.c.l.bf16 %v3958
      %v3970 = vunpack.c.l.bf16 %v3959
      %v3971 = vld [vmem:[%s4] sm:$0x1]
      %v3973 = vlaneseq
      %v3974 = vshrl.u32 %v3973, 7
      %v3975 = vsub.s32 0, %v3974
      %v3976 = vrot.slane %v3971, %v3975
      %v3978 = vadd.f32 %v3939, %v3976
      %v3979 = vadd.f32 %v3940, %v3976
      %v3980 = vadd.f32 %v3941, %v3976
      %v3981 = vadd.f32 %v3942, %v3976
      %v3982 = vadd.f32 %v3943, %v3976
      %v3983 = vadd.f32 %v3944, %v3976
      %v3984 = vadd.f32 %v3945, %v3976
      %v3985 = vadd.f32 %v3946, %v3976
      %v3986 = vadd.f32 %v3947, %v3976
      %v3987 = vadd.f32 %v3948, %v3976
      %vm3999 = vcmask 1044480
      %v4000 = vrot.slane %v3960, 3
      %v4001 = vrot.slane %v3961, 3
      %v4002 = vsel %vm3999, %v4000, %v4001
      %v4003 = vrot.slane %v3962, 3
      %v4004 = vsel %vm3999, %v4001, %v4003
      %v4005 = vrot.slane %v3963, 3
      %v4006 = vsel %vm3999, %v4003, %v4005
      %v4007 = vrot.slane %v3964, 3
      %v4008 = vsel %vm3999, %v4005, %v4007
      %v4009 = vrot.slane %v3965, 3
      %v4010 = vsel %vm3999, %v4007, %v4009
      %v4011 = vrot.slane %v3966, 3
      %v4012 = vsel %vm3999, %v4009, %v4011
      %v4013 = vrot.slane %v3967, 3
      %v4014 = vsel %vm3999, %v4011, %v4013
      %v4015 = vrot.slane %v3968, 3
      %v4016 = vsel %vm3999, %v4013, %v4015
      %v4017 = vrot.slane %v3969, 3
      %v4018 = vsel %vm3999, %v4015, %v4017
      %v4019 = vrot.slane %v3970, 3
      %v4020 = vsel %vm3999, %v4017, %v4019
      %v4031 = vadd.f32 %v3978, %v4002
      %v4032 = vadd.f32 %v3979, %v4004
      %v4033 = vadd.f32 %v3980, %v4006
      %v4034 = vadd.f32 %v3981, %v4008
      %v4035 = vadd.f32 %v3982, %v4010
      %v4036 = vadd.f32 %v3983, %v4012
      %v4037 = vadd.f32 %v3984, %v4014
      %v4038 = vadd.f32 %v3985, %v4016
      %v4039 = vadd.f32 %v3986, %v4018
      %v4040 = vadd.f32 %v3987, %v4020
      %v4041 = vld [vmem:[%s5] sm:$0xff]
      %v4042 = vld [vmem:[%s5 + $0x8] sm:$0xff]
      %v4043 = vld [vmem:[%s5 + $0x10] sm:$0xff]
      %v4044 = vld [vmem:[%s5 + $0x18] sm:$0xff]
      %v4045 = vld [vmem:[%s5 + $0x20] sm:$0xff]
      %v4046 = vld [vmem:[%s5 + $0x28] sm:$0xff]
      %v4047 = vld [vmem:[%s5 + $0x30] sm:$0xff]
      %v4048 = vld [vmem:[%s5 + $0x38] sm:$0xff]
      %v4049 = vld [vmem:[%s5 + $0x40] sm:$0xff]
      %v4050 = vld [vmem:[%s5 + $0x48] sm:$0x3f]
      %4052 = vset.pattern.permute.xlu0 0
      %4053 = vperm.xlu0 %4052, %v4041
      %v4054 = vpop.permute.xlu0 %4053
      %4057 = vset.pattern.permute.xlu0 0
      %4058 = vperm.xlu0 %4057, %v4042
      %v4059 = vpop.permute.xlu0 %4058
      %4062 = vset.pattern.permute.xlu0 0
      %4063 = vperm.xlu0 %4062, %v4043
      %v4064 = vpop.permute.xlu0 %4063
      %4067 = vset.pattern.permute.xlu0 0
      %4068 = vperm.xlu0 %4067, %v4044
      %v4069 = vpop.permute.xlu0 %4068
      %4072 = vset.pattern.permute.xlu0 0
      %4073 = vperm.xlu0 %4072, %v4045
      %v4074 = vpop.permute.xlu0 %4073
      %4077 = vset.pattern.permute.xlu0 0
      %4078 = vperm.xlu0 %4077, %v4046
      %v4079 = vpop.permute.xlu0 %4078
      %4082 = vset.pattern.permute.xlu0 0
      %4083 = vperm.xlu0 %4082, %v4047
      %v4084 = vpop.permute.xlu0 %4083
      %4087 = vset.pattern.permute.xlu0 0
      %4088 = vperm.xlu0 %4087, %v4048
      %v4089 = vpop.permute.xlu0 %4088
      %4092 = vset.pattern.permute.xlu0 0
      %4093 = vperm.xlu0 %4092, %v4049
      %v4094 = vpop.permute.xlu0 %4093
      %4097 = vset.pattern.permute.xlu0 0
      %4098 = vperm.xlu0 %4097, %v4050
      %v4099 = vpop.permute.xlu0 %4098
      %v4101 = vmul.f32 %v4031, %v4054
      %v4102 = vmul.f32 %v4032, %v4059
      %v4103 = vmul.f32 %v4033, %v4064
      %v4104 = vmul.f32 %v4034, %v4069
      %v4105 = vmul.f32 %v4035, %v4074
      %v4106 = vmul.f32 %v4036, %v4079
      %v4107 = vmul.f32 %v4037, %v4084
      %v4108 = vmul.f32 %v4038, %v4089
      %v4109 = vmul.f32 %v4039, %v4094
      %v4110 = vmul.f32 %v4040, %v4099
      %4111 = vst [vmem:[%s251] sm:$0xf] 0
      %4112 = vst [vmem:[%s251 + $0x4] sm:$0xf] 0
      %4113 = vst [vmem:[%s251 + $0x8] sm:$0xf] 0
      %4114 = vst [vmem:[%s251 + $0xc] sm:$0xf] 0
      %4115 = vst [vmem:[%s251 + $0x10] sm:$0xf] 0
      %4116 = vst [vmem:[%s251 + $0x14] sm:$0xf] 0
      %4117 = vst [vmem:[%s251 + $0x18] sm:$0xf] 0
      %4118 = vst [vmem:[%s251 + $0x1c] sm:$0xf] 0
      %4119 = vst [vmem:[%s251 + $0x20] sm:$0xf] 0
      %4120 = vst [vmem:[%s251 + $0x24] sm:$0xf] 0
      %4121 = vst [vmem:[%s251 + $0x28] sm:$0xf] 0
      %4122 = vst [vmem:[%s251 + $0x2c] sm:$0xf] 0
      %4123 = vst [vmem:[%s251 + $0x30] sm:$0x3] 0
      %v4124 = vpack.c.bf16 %v4102, %v4101
      %v4125 = vpack.c.bf16 %v4104, %v4103
      %v4126 = vpack.c.bf16 %v4106, %v4105
      %v4127 = vpack.c.bf16 %v4108, %v4107
      %v4128 = vpack.c.bf16 %v4110, %v4109
      %v4134 = vunpack.c.l.b16 %v4124
      %v4135 = vunpack.c.h.b16 %v4124
      %v4136 = vunpack.c.l.b16 %v4125
      %v4137 = vunpack.c.h.b16 %v4125
      %v4138 = vunpack.c.l.b16 %v4126
      %v4139 = vunpack.c.h.b16 %v4126
      %v4140 = vunpack.c.l.b16 %v4127
      %v4141 = vunpack.c.h.b16 %v4127
      %v4142 = vunpack.c.l.b16 %v4128
      %v4143 = vunpack.c.h.b16 %v4128
      %v4144 = vpack.c.b16 %v4134, %v4134
      %v4145 = vpack.c.b16 %v4135, %v4135
      %v4146 = vpack.c.b16 %v4136, %v4136
      %v4147 = vpack.c.b16 %v4137, %v4137
      %v4148 = vpack.c.b16 %v4138, %v4138
      %v4149 = vpack.c.b16 %v4139, %v4139
      %v4150 = vpack.c.b16 %v4140, %v4140
      %v4151 = vpack.c.b16 %v4141, %v4141
      %v4152 = vpack.c.b16 %v4142, %v4142
      %v4153 = vpack.c.b16 %v4143, %v4143
      %v4155 = vshrl.u32 %v4144, 16
      %v4157 = vrot.slane %v4155, 6
      %v4158 = vshll.u32 %v4144, 16
      %v4160 = vrot.slane %v4158, 7
      %v4161 = vor.u32 %v4157, %v4160
      %v4162 = vrot.slane %v4161, 4
      %v4164 = vshrl.u32 %v4145, 16
      %v4166 = vrot.slane %v4164, 6
      %v4167 = vshll.u32 %v4145, 16
      %v4169 = vrot.slane %v4167, 7
      %v4170 = vor.u32 %v4166, %v4169
      %v4171 = vsel %vm2109, %v4162, %v4170
      %v4172 = vrot.slane %v4170, 4
      %v4174 = vshrl.u32 %v4146, 16
      %v4176 = vrot.slane %v4174, 6
      %v4177 = vshll.u32 %v4146, 16
      %v4179 = vrot.slane %v4177, 7
      %v4180 = vor.u32 %v4176, %v4179
      %v4181 = vsel %vm2109, %v4172, %v4180
      %v4182 = vrot.slane %v4180, 4
      %v4184 = vshrl.u32 %v4147, 16
      %v4186 = vrot.slane %v4184, 6
      %v4187 = vshll.u32 %v4147, 16
      %v4189 = vrot.slane %v4187, 7
      %v4190 = vor.u32 %v4186, %v4189
      %v4191 = vsel %vm2109, %v4182, %v4190
      %v4192 = vrot.slane %v4190, 4
      %v4194 = vshrl.u32 %v4148, 16
      %v4196 = vrot.slane %v4194, 6
      %v4197 = vshll.u32 %v4148, 16
      %v4199 = vrot.slane %v4197, 7
      %v4200 = vor.u32 %v4196, %v4199
      %v4201 = vsel %vm2109, %v4192, %v4200
      %v4202 = vrot.slane %v4200, 4
      %v4204 = vshrl.u32 %v4149, 16
      %v4206 = vrot.slane %v4204, 6
      %v4207 = vshll.u32 %v4149, 16
      %v4209 = vrot.slane %v4207, 7
      %v4210 = vor.u32 %v4206, %v4209
      %v4211 = vsel %vm2109, %v4202, %v4210
      %v4212 = vrot.slane %v4210, 4
      %v4214 = vshrl.u32 %v4150, 16
      %v4216 = vrot.slane %v4214, 6
      %v4217 = vshll.u32 %v4150, 16
      %v4219 = vrot.slane %v4217, 7
      %v4220 = vor.u32 %v4216, %v4219
      %v4221 = vsel %vm2109, %v4212, %v4220
      %v4222 = vrot.slane %v4220, 4
      %v4224 = vshrl.u32 %v4151, 16
      %v4226 = vrot.slane %v4224, 6
      %v4227 = vshll.u32 %v4151, 16
      %v4229 = vrot.slane %v4227, 7
      %v4230 = vor.u32 %v4226, %v4229
      %v4231 = vsel %vm2109, %v4222, %v4230
      %v4232 = vrot.slane %v4230, 4
      %v4234 = vshrl.u32 %v4152, 16
      %v4236 = vrot.slane %v4234, 6
      %v4237 = vshll.u32 %v4152, 16
      %v4239 = vrot.slane %v4237, 7
      %v4240 = vor.u32 %v4236, %v4239
      %v4241 = vsel %vm2109, %v4232, %v4240
      %v4242 = vrot.slane %v4240, 4
      %v4244 = vshrl.u32 %v4153, 16
      %v4246 = vrot.slane %v4244, 6
      %v4247 = vshll.u32 %v4153, 16
      %v4249 = vrot.slane %v4247, 7
      %v4250 = vor.u32 %v4246, %v4249
      %v4251 = vsel %vm2109, %v4242, %v4250
      %v4252 = vrot.slane %v4246, 4
      %v4264 = vld [vmem:[%s251 + $0x4] sm:$0xe]
      %v4265 = vsel %vm2222, %v4161, %v4264
      %4266 = vst [vmem:[%s251 + $0x4] sm:$0xe] %v4265
      %4267 = vst [vmem:[%s251 + $0x8] sm:$0xf] %v4171
      %4268 = vst [vmem:[%s251 + $0xc] sm:$0xf] %v4181
      %4269 = vst [vmem:[%s251 + $0x10] sm:$0xf] %v4191
      %4270 = vst [vmem:[%s251 + $0x14] sm:$0xf] %v4201
      %4271 = vst [vmem:[%s251 + $0x18] sm:$0xf] %v4211
      %4272 = vst [vmem:[%s251 + $0x1c] sm:$0xf] %v4221
      %4273 = vst [vmem:[%s251 + $0x20] sm:$0xf] %v4231
      %4274 = vst [vmem:[%s251 + $0x24] sm:$0xf] %v4241
      %4275 = vst [vmem:[%s251 + $0x28] sm:$0xf] %v4251
      %v4276 = vld [vmem:[%s251 + $0x2c] sm:$0x1]
      %v4277 = vsel %vm2237, %v4252, %v4276
      %4278 = vst [vmem:[%s251 + $0x2c] sm:$0x1] %v4277
      %p4279 = scmp.lt.s32.totalorder %s17, 1
      %s4280 = scalar_select %p4279, %s17, 1
      %s4281 = smul.addr %s4280, 13
      %s4282 = smul.addr %s4281, 4
      %s4283 = scalar_lea.vmem %s6, %s4282
      // Predicated region
      $region45: #{stem_forward.4} parent=43 // pred_check
        %p4284 = pneg %p166
      $region46: #{stem_forward.4} parent=43 // pred_check_branch
        %4286 = sbr.rel (%p4284) target = $region48
      $region47: #{stem_forward.4} parent=43 // pred_region
        _
      $region48: #{stem_forward.4} parent=43 // pred_fallthru
        _
    $region44: #{stem_forward.4} parent=5 // pred_fallthru
      _
    %p4287 = scmp.le.s32.totalorder 2, %s12
    // Predicated region
    $region49: #{stem_forward.4} parent=5 // pred_check
      %p4288 = pneg %p4287
    $region50: #{stem_forward.4} parent=5 // pred_check_branch
      %4290 = sbr.rel (%p4288) target = $region52
    $region51: #{stem_forward.4} parent=5 // pred_region
      %s4291 = ssub.s32 %s12, 2
      // Predicated region
      $region53: #{stem_forward.4} parent=51 // pred_check
        %p4292 = pneg %p172
      $region54: #{stem_forward.4} parent=51 // pred_check_branch
        %4294 = sbr.rel (%p4292) target = $region56
      $region55: #{stem_forward.4} parent=51 // pred_region
        %p4295 = scmp.lt.s32.totalorder %s18, 1
        %s4296 = scalar_select %p4295, %s18, 1
        %s4297 = smul.addr %s4296, 13
        %s4298 = smul.addr %s4297, 4
        %s4299 = scalar_lea.vmem %s6, %s4298
      $region56: #{stem_forward.4} parent=51 // pred_fallthru
        _
    $region52: #{stem_forward.4} parent=5 // pred_fallthru
      _
  $region6: #{stem_forward.4} parent=0 // loop_footer
    %s16 = sadd.s32 1, %s12
  $region7: #{stem_forward.4} parent=0 // loop_footer_branch
    %11 = sbr.rel target = $region3
  $region8: #{stem_forward.4} parent=0 // loop_exit
    _

</llo_original>
